<compile_context>
chip_gen: v7x
topology: tpu7x:2x2x1
jax: 0.10.0
libtpu: 0.0.40
codegen_flags: <defaults>
</compile_context>

<pallas_src>
import functools

import jax
import jax.numpy as jnp
from jax import lax
from jax.experimental import pallas as pl
from jax.experimental.pallas import tpu as pltpu

EPS = 1e-5
NEG_SLOPE = 0.2
K = 3          # kernel size (k_size=3, stride=1, padding=1 defaults)
LANES = 128    # TPU lane width


def _conv_in_lrelu_kernel(x_ref, w_ref, b_ref, o_ref, xp_ref, *, D, H, W, Cin):
    """One grid step = (one batch element) x (one 128-wide out-channel block).

    x_ref : (1, D, H, W, Cin)      un-padded input block, NDHWC, f32
    w_ref : (27*Cin, 128)          folded conv weight block (f32 or bf16)
    b_ref : (1, 128)               conv bias block, f32 (zero on padded chans)
    o_ref : (1, D*H*W, 128)        output block, f32, lane-dense
    xp_ref: (D+2, H+2, W+2, Cin)   VMEM scratch: zero-padded input
    """
    DHW = D * H * W

    # ---- padding fused into the kernel: zero halo, copy interior -----------
    xp_ref[...] = jnp.zeros_like(xp_ref)
    xp_ref[1:D + 1, 1:H + 1, 1:W + 1, :] = x_ref[0]

    # ---- im2col: fold all 27 taps into the contraction dimension -----------
    pieces = []
    for kd in range(K):
        for kh in range(K):
            for kw in range(K):
                pieces.append(xp_ref[kd:kd + D, kh:kh + H, kw:kw + W, :])
    patch = jnp.concatenate(pieces, axis=-1)          # (D, H, W, 27*Cin)
    patch = patch.reshape(DHW, K * K * K * Cin)       # (DHW, 27*Cin)
    patch = patch.astype(w_ref.dtype)                 # bf16 operands if requested

    # ---- one MXU matmul: (DHW, 27*Cin) x (27*Cin, 128), f32 accumulate -----
    acc = jnp.dot(patch, w_ref[...], preferred_element_type=jnp.float32)
    acc = acc + b_ref[...]                            # (DHW, 128) + (1, 128)

    # Park conv+bias in the output VMEM block: it doubles as the f32
    # accumulator scratch so the epilogue streams from VMEM instead of
    # keeping a 64-vreg value live across the whole epilogue.
    o_ref[0] = acc

    # ---- InstanceNorm3d (affine=False, biased var) + LeakyReLU(0.2) --------
    a = o_ref[0]
    inv_n = jnp.float32(1.0 / DHW)
    s1 = jnp.sum(a, axis=0, keepdims=True)            # (1, 128)
    s2 = jnp.sum(a * a, axis=0, keepdims=True)        # fused single stats pass
    mean = s1 * inv_n
    var = jnp.maximum(s2 * inv_n - mean * mean, 0.0)
    y = (a - mean) * lax.rsqrt(var + EPS)
    o_ref[0] = jnp.where(y >= 0, y, NEG_SLOPE * y)


def _vmem_padded_bytes(shape, dtype):
    """Approximate VMEM footprint of a buffer incl. (8,128) tile padding."""
    itemsize = jnp.dtype(dtype).itemsize
    dims = list(shape)
    if len(dims) == 1:
        dims = [1] + dims
    dims[-1] = -(-dims[-1] // LANES) * LANES
    dims[-2] = -(-dims[-2] // 8) * 8
    n = 1
    for d in dims:
        n *= int(d)
    return n * itemsize


def general_conv3d_pallas(x_ncdhw, weight, bias, *, matmul_dtype=jnp.float32):
    """x_ncdhw: (N, Cin, D, H, W); weight: (Cout, Cin, 3, 3, 3); bias: (Cout,).

    Returns (N, Cout, D, H, W) f32: LeakyReLU(InstanceNorm(Conv3d(x) + b), 0.2).
    """
    N, Cin, D, H, W = x_ncdhw.shape
    Cout = weight.shape[0]
    DHW = D * H * W
    KKC = K * K * K * Cin

    cout_pad = -(-Cout // LANES) * LANES      # pad out-channels to 128-lane blocks
    n_co = cout_pad // LANES

    # Layout glue: one fused XLA transpose in (padding now lives in the kernel).
    x = jnp.transpose(x_ncdhw, (0, 2, 3, 4, 1)).astype(jnp.float32)     # NDHWC
    # (Cout, Cin, kd, kh, kw) -> (kd, kh, kw, Cin, Cout) -> (27*Cin, Cout_pad)
    w = jnp.transpose(weight, (2, 3, 4, 1, 0)).reshape(KKC, Cout)
    w = jnp.pad(w, ((0, 0), (0, cout_pad - Cout))).astype(matmul_dtype)
    b = jnp.pad(bias.astype(jnp.float32), (0, cout_pad - Cout)).reshape(1, cout_pad)

    kernel = functools.partial(_conv_in_lrelu_kernel, D=D, H=H, W=W, Cin=Cin)

    # VMEM budget: double-buffered blocks + padded-input scratch + im2col temps.
    est = 2 * (_vmem_padded_bytes((1, D, H, W, Cin), jnp.float32)
               + _vmem_padded_bytes((KKC, LANES), matmul_dtype)
               + _vmem_padded_bytes((1, LANES), jnp.float32)
               + _vmem_padded_bytes((1, DHW, LANES), jnp.float32))
    est += _vmem_padded_bytes((D + 2, H + 2, W + 2, Cin), jnp.float32)
    est += 3 * _vmem_padded_bytes((DHW, KKC), jnp.float32)
    vmem_limit = int(min(max(2 * est, 32 * 2**20), 56 * 2**20))  # headroom; v7x-safe cap

    out = pl.pallas_call(
        kernel,
        out_shape=jax.ShapeDtypeStruct((N, DHW, cout_pad), jnp.float32),
        grid_spec=pltpu.PrefetchScalarGridSpec(
            num_scalar_prefetch=0,
            grid=(N, n_co),
            in_specs=[
                pl.BlockSpec((1, D, H, W, Cin), lambda n, co: (n, 0, 0, 0, 0)),
                pl.BlockSpec((KKC, LANES), lambda n, co: (0, co)),
                pl.BlockSpec((1, LANES), lambda n, co: (0, co)),
            ],
            out_specs=pl.BlockSpec((1, DHW, LANES), lambda n, co: (n, 0, co)),
            scratch_shapes=[pltpu.VMEM((D + 2, H + 2, W + 2, Cin), jnp.float32)],
        ),
        compiler_params=pltpu.CompilerParams(
            dimension_semantics=("parallel", "parallel"),
            vmem_limit_bytes=vmem_limit),
    )(x, w, b)

    # Slice off channel padding; slice+reshape+transpose fuse into one XLA copy.
    out = out[:, :, :Cout].reshape(N, D, H, W, Cout)
    return jnp.transpose(out, (0, 4, 1, 2, 3))                 # back to NCDHW


def general_conv3d_ref(x, weight, bias):
    """Pure-JAX reference mirroring the PyTorch module (all f32)."""
    y = lax.conv_general_dilated(
        x, weight, window_strides=(1, 1, 1), padding=((1, 1), (1, 1), (1, 1)),
        dimension_numbers=("NCDHW", "OIDHW", "NCDHW"))
    y = y + bias.reshape(1, -1, 1, 1, 1)
    mean = jnp.mean(y, axis=(2, 3, 4), keepdims=True)
    var = jnp.mean((y - mean) ** 2, axis=(2, 3, 4), keepdims=True)
    y = (y - mean) / jnp.sqrt(var + EPS)
    return jnp.where(y >= 0, y, NEG_SLOPE * y)


if __name__ == "__main__":
    key = jax.random.PRNGKey(0)
    N, Cin, Cout, D, H, W = 2, 4, 8, 8, 8, 8

    kx, kw, kb = jax.random.split(key, 3)
    x = jax.random.normal(kx, (N, Cin, D, H, W), dtype=jnp.float32)
    fan_in = Cin * K * K * K
    weight = jax.random.normal(kw, (Cout, Cin, K, K, K), dtype=jnp.float32) * (fan_in ** -0.5)
    bias = jax.random.normal(kb, (Cout,), dtype=jnp.float32) * 0.1

    ref = general_conv3d_ref(x, weight, bias)

    # f32 matmul path: tight check against the f32 reference.
    out_f32 = general_conv3d_pallas(x, weight, bias, matmul_dtype=jnp.float32)
    jax.block_until_ready(out_f32)
    assert out_f32.shape == (N, Cout, D, H, W)
    assert jnp.allclose(out_f32, ref, atol=2e-4, rtol=2e-4), "f32 mismatch vs reference"

    # bf16-operand path (v6e/v7x MXU format, f32 accumulation): looser check.
    out_bf16 = general_conv3d_pallas(x, weight, bias, matmul_dtype=jnp.bfloat16)
    jax.block_until_ready(out_bf16)
    assert out_bf16.shape == (N, Cout, D, H, W)
    assert jnp.allclose(out_bf16, ref, atol=3e-2, rtol=3e-2), "bf16 mismatch vs reference"

    print("KERNEL_OK")
</pallas_src>

<mosaic_0001>
module attributes {stable_mosaic.version = 11 : i64} {
  func.func @_conv_in_lrelu_kernel(%arg0: i32, %arg1: i32, %arg2: memref<1x8x8x8x4xf32, #tpu.memory_space<vmem>>, %arg3: memref<108x128xf32, #tpu.memory_space<vmem>>, %arg4: memref<1x128xf32, #tpu.memory_space<vmem>>, %arg5: memref<1x512x128xf32, #tpu.memory_space<vmem>>, %arg6: memref<10x10x10x4xf32, #tpu.memory_space<vmem>>) attributes {dimension_semantics = [#tpu.dimension_semantics<parallel>, #tpu.dimension_semantics<parallel>], iteration_bounds = array<i64: 2, 1>, scalar_prefetch = 0 : i64, scratch_operands = 1 : i64, tpu.core_type = #tpu.core_type<tc>, window_params = [{transform_indices = @transform_0, window_bounds = array<i64: 1, 8, 8, 8, 4>}, {transform_indices = @transform_1, window_bounds = array<i64: 108, 128>}, {transform_indices = @transform_2, window_bounds = array<i64: 1, 128>}, {transform_indices = @transform_3, window_bounds = array<i64: 1, 512, 128>}]} {
    %cst = arith.constant 0.000000e+00 : f32
    %0 = vector.broadcast %cst : f32 to vector<10x10x10x4xf32>
    %c0 = arith.constant 0 : index
    %c0_0 = arith.constant 0 : index
    %c0_1 = arith.constant 0 : index
    %c0_2 = arith.constant 0 : index
    %1 = vector.load %arg6[%c0, %c0_0, %c0_1, %c0_2] : memref<10x10x10x4xf32, #tpu.memory_space<vmem>>, vector<10x10x10x4xf32>
    tpu.vector_store %arg6[%c0, %c0_0, %c0_1, %c0_2], %0 {strides = array<i32>} : memref<10x10x10x4xf32, #tpu.memory_space<vmem>>, vector<10x10x10x4xf32>,
    %c0_3 = arith.constant 0 : index
    %c0_4 = arith.constant 0 : index
    %c0_5 = arith.constant 0 : index
    %c0_6 = arith.constant 0 : index
    %c0_7 = arith.constant 0 : index
    %2 = vector.load %arg2[%c0_3, %c0_4, %c0_5, %c0_6, %c0_7] : memref<1x8x8x8x4xf32, #tpu.memory_space<vmem>>, vector<1x8x8x8x4xf32>
    %3 = vector.shape_cast %2 : vector<1x8x8x8x4xf32> to vector<8x8x8x4xf32>
    %c1 = arith.constant 1 : index
    %c1_8 = arith.constant 1 : index
    %c1_9 = arith.constant 1 : index
    %c0_10 = arith.constant 0 : index
    %4 = vector.load %arg6[%c1, %c1_8, %c1_9, %c0_10] : memref<10x10x10x4xf32, #tpu.memory_space<vmem>>, vector<8x8x8x4xf32>
    tpu.vector_store %arg6[%c1, %c1_8, %c1_9, %c0_10], %3 {strides = array<i32>} : memref<10x10x10x4xf32, #tpu.memory_space<vmem>>, vector<8x8x8x4xf32>,
    %c0_11 = arith.constant 0 : index
    %c0_12 = arith.constant 0 : index
    %c0_13 = arith.constant 0 : index
    %c0_14 = arith.constant 0 : index
    %5 = vector.load %arg6[%c0_11, %c0_12, %c0_13, %c0_14] : memref<10x10x10x4xf32, #tpu.memory_space<vmem>>, vector<8x8x8x4xf32>
    %c0_15 = arith.constant 0 : index
    %c0_16 = arith.constant 0 : index
    %c1_17 = arith.constant 1 : index
    %c0_18 = arith.constant 0 : index
    %6 = vector.load %arg6[%c0_15, %c0_16, %c1_17, %c0_18] : memref<10x10x10x4xf32, #tpu.memory_space<vmem>>, vector<8x8x8x4xf32>
    %c0_19 = arith.constant 0 : index
    %c0_20 = arith.constant 0 : index
    %c2 = arith.constant 2 : index
    %c0_21 = arith.constant 0 : index
    %7 = vector.load %arg6[%c0_19, %c0_20, %c2, %c0_21] : memref<10x10x10x4xf32, #tpu.memory_space<vmem>>, vector<8x8x8x4xf32>
    %c0_22 = arith.constant 0 : index
    %c1_23 = arith.constant 1 : index
    %c0_24 = arith.constant 0 : index
    %c0_25 = arith.constant 0 : index
    %8 = vector.load %arg6[%c0_22, %c1_23, %c0_24, %c0_25] : memref<10x10x10x4xf32, #tpu.memory_space<vmem>>, vector<8x8x8x4xf32>
    %c0_26 = arith.constant 0 : index
    %c1_27 = arith.constant 1 : index
    %c1_28 = arith.constant 1 : index
    %c0_29 = arith.constant 0 : index
    %9 = vector.load %arg6[%c0_26, %c1_27, %c1_28, %c0_29] : memref<10x10x10x4xf32, #tpu.memory_space<vmem>>, vector<8x8x8x4xf32>
    %c0_30 = arith.constant 0 : index
    %c1_31 = arith.constant 1 : index
    %c2_32 = arith.constant 2 : index
    %c0_33 = arith.constant 0 : index
    %10 = vector.load %arg6[%c0_30, %c1_31, %c2_32, %c0_33] : memref<10x10x10x4xf32, #tpu.memory_space<vmem>>, vector<8x8x8x4xf32>
    %c0_34 = arith.constant 0 : index
    %c2_35 = arith.constant 2 : index
    %c0_36 = arith.constant 0 : index
    %c0_37 = arith.constant 0 : index
    %11 = vector.load %arg6[%c0_34, %c2_35, %c0_36, %c0_37] : memref<10x10x10x4xf32, #tpu.memory_space<vmem>>, vector<8x8x8x4xf32>
    %c0_38 = arith.constant 0 : index
    %c2_39 = arith.constant 2 : index
    %c1_40 = arith.constant 1 : index
    %c0_41 = arith.constant 0 : index
    %12 = vector.load %arg6[%c0_38, %c2_39, %c1_40, %c0_41] : memref<10x10x10x4xf32, #tpu.memory_space<vmem>>, vector<8x8x8x4xf32>
    %c0_42 = arith.constant 0 : index
    %c2_43 = arith.constant 2 : index
    %c2_44 = arith.constant 2 : index
    %c0_45 = arith.constant 0 : index
    %13 = vector.load %arg6[%c0_42, %c2_43, %c2_44, %c0_45] : memref<10x10x10x4xf32, #tpu.memory_space<vmem>>, vector<8x8x8x4xf32>
    %c1_46 = arith.constant 1 : index
    %c0_47 = arith.constant 0 : index
    %c0_48 = arith.constant 0 : index
    %c0_49 = arith.constant 0 : index
    %14 = vector.load %arg6[%c1_46, %c0_47, %c0_48, %c0_49] : memref<10x10x10x4xf32, #tpu.memory_space<vmem>>, vector<8x8x8x4xf32>
    %c1_50 = arith.constant 1 : index
    %c0_51 = arith.constant 0 : index
    %c1_52 = arith.constant 1 : index
    %c0_53 = arith.constant 0 : index
    %15 = vector.load %arg6[%c1_50, %c0_51, %c1_52, %c0_53] : memref<10x10x10x4xf32, #tpu.memory_space<vmem>>, vector<8x8x8x4xf32>
    %c1_54 = arith.constant 1 : index
    %c0_55 = arith.constant 0 : index
    %c2_56 = arith.constant 2 : index
    %c0_57 = arith.constant 0 : index
    %16 = vector.load %arg6[%c1_54, %c0_55, %c2_56, %c0_57] : memref<10x10x10x4xf32, #tpu.memory_space<vmem>>, vector<8x8x8x4xf32>
    %c1_58 = arith.constant 1 : index
    %c1_59 = arith.constant 1 : index
    %c0_60 = arith.constant 0 : index
    %c0_61 = arith.constant 0 : index
    %17 = vector.load %arg6[%c1_58, %c1_59, %c0_60, %c0_61] : memref<10x10x10x4xf32, #tpu.memory_space<vmem>>, vector<8x8x8x4xf32>
    %c1_62 = arith.constant 1 : index
    %c1_63 = arith.constant 1 : index
    %c1_64 = arith.constant 1 : index
    %c0_65 = arith.constant 0 : index
    %18 = vector.load %arg6[%c1_62, %c1_63, %c1_64, %c0_65] : memref<10x10x10x4xf32, #tpu.memory_space<vmem>>, vector<8x8x8x4xf32>
    %c1_66 = arith.constant 1 : index
    %c1_67 = arith.constant 1 : index
    %c2_68 = arith.constant 2 : index
    %c0_69 = arith.constant 0 : index
    %19 = vector.load %arg6[%c1_66, %c1_67, %c2_68, %c0_69] : memref<10x10x10x4xf32, #tpu.memory_space<vmem>>, vector<8x8x8x4xf32>
    %c1_70 = arith.constant 1 : index
    %c2_71 = arith.constant 2 : index
    %c0_72 = arith.constant 0 : index
    %c0_73 = arith.constant 0 : index
    %20 = vector.load %arg6[%c1_70, %c2_71, %c0_72, %c0_73] : memref<10x10x10x4xf32, #tpu.memory_space<vmem>>, vector<8x8x8x4xf32>
    %c1_74 = arith.constant 1 : index
    %c2_75 = arith.constant 2 : index
    %c1_76 = arith.constant 1 : index
    %c0_77 = arith.constant 0 : index
    %21 = vector.load %arg6[%c1_74, %c2_75, %c1_76, %c0_77] : memref<10x10x10x4xf32, #tpu.memory_space<vmem>>, vector<8x8x8x4xf32>
    %c1_78 = arith.constant 1 : index
    %c2_79 = arith.constant 2 : index
    %c2_80 = arith.constant 2 : index
    %c0_81 = arith.constant 0 : index
    %22 = vector.load %arg6[%c1_78, %c2_79, %c2_80, %c0_81] : memref<10x10x10x4xf32, #tpu.memory_space<vmem>>, vector<8x8x8x4xf32>
    %c2_82 = arith.constant 2 : index
    %c0_83 = arith.constant 0 : index
    %c0_84 = arith.constant 0 : index
    %c0_85 = arith.constant 0 : index
    %23 = vector.load %arg6[%c2_82, %c0_83, %c0_84, %c0_85] : memref<10x10x10x4xf32, #tpu.memory_space<vmem>>, vector<8x8x8x4xf32>
    %c2_86 = arith.constant 2 : index
    %c0_87 = arith.constant 0 : index
    %c1_88 = arith.constant 1 : index
    %c0_89 = arith.constant 0 : index
    %24 = vector.load %arg6[%c2_86, %c0_87, %c1_88, %c0_89] : memref<10x10x10x4xf32, #tpu.memory_space<vmem>>, vector<8x8x8x4xf32>
    %c2_90 = arith.constant 2 : index
    %c0_91 = arith.constant 0 : index
    %c2_92 = arith.constant 2 : index
    %c0_93 = arith.constant 0 : index
    %25 = vector.load %arg6[%c2_90, %c0_91, %c2_92, %c0_93] : memref<10x10x10x4xf32, #tpu.memory_space<vmem>>, vector<8x8x8x4xf32>
    %c2_94 = arith.constant 2 : index
    %c1_95 = arith.constant 1 : index
    %c0_96 = arith.constant 0 : index
    %c0_97 = arith.constant 0 : index
    %26 = vector.load %arg6[%c2_94, %c1_95, %c0_96, %c0_97] : memref<10x10x10x4xf32, #tpu.memory_space<vmem>>, vector<8x8x8x4xf32>
    %c2_98 = arith.constant 2 : index
    %c1_99 = arith.constant 1 : index
    %c1_100 = arith.constant 1 : index
    %c0_101 = arith.constant 0 : index
    %27 = vector.load %arg6[%c2_98, %c1_99, %c1_100, %c0_101] : memref<10x10x10x4xf32, #tpu.memory_space<vmem>>, vector<8x8x8x4xf32>
    %c2_102 = arith.constant 2 : index
    %c1_103 = arith.constant 1 : index
    %c2_104 = arith.constant 2 : index
    %c0_105 = arith.constant 0 : index
    %28 = vector.load %arg6[%c2_102, %c1_103, %c2_104, %c0_105] : memref<10x10x10x4xf32, #tpu.memory_space<vmem>>, vector<8x8x8x4xf32>
    %c2_106 = arith.constant 2 : index
    %c2_107 = arith.constant 2 : index
    %c0_108 = arith.constant 0 : index
    %c0_109 = arith.constant 0 : index
    %29 = vector.load %arg6[%c2_106, %c2_107, %c0_108, %c0_109] : memref<10x10x10x4xf32, #tpu.memory_space<vmem>>, vector<8x8x8x4xf32>
    %c2_110 = arith.constant 2 : index
    %c2_111 = arith.constant 2 : index
    %c1_112 = arith.constant 1 : index
    %c0_113 = arith.constant 0 : index
    %30 = vector.load %arg6[%c2_110, %c2_111, %c1_112, %c0_113] : memref<10x10x10x4xf32, #tpu.memory_space<vmem>>, vector<8x8x8x4xf32>
    %c2_114 = arith.constant 2 : index
    %c2_115 = arith.constant 2 : index
    %c2_116 = arith.constant 2 : index
    %c0_117 = arith.constant 0 : index
    %31 = vector.load %arg6[%c2_114, %c2_115, %c2_116, %c0_117] : memref<10x10x10x4xf32, #tpu.memory_space<vmem>>, vector<8x8x8x4xf32>
    %32 = tpu.concatenate %5, %6, %7, %8, %9, %10, %11, %12, %13, %14, %15, %16, %17, %18, %19, %20 in 3 : vector<8x8x8x4xf32>, vector<8x8x8x4xf32>, vector<8x8x8x4xf32>, vector<8x8x8x4xf32>, vector<8x8x8x4xf32>, vector<8x8x8x4xf32>, vector<8x8x8x4xf32>, vector<8x8x8x4xf32>, vector<8x8x8x4xf32>, vector<8x8x8x4xf32>, vector<8x8x8x4xf32>, vector<8x8x8x4xf32>, vector<8x8x8x4xf32>, vector<8x8x8x4xf32>, vector<8x8x8x4xf32>, vector<8x8x8x4xf32> -> vector<8x8x8x64xf32>
    %33 = tpu.concatenate %21, %22, %23, %24, %25, %26, %27, %28, %29, %30, %31 in 3 : vector<8x8x8x4xf32>, vector<8x8x8x4xf32>, vector<8x8x8x4xf32>, vector<8x8x8x4xf32>, vector<8x8x8x4xf32>, vector<8x8x8x4xf32>, vector<8x8x8x4xf32>, vector<8x8x8x4xf32>, vector<8x8x8x4xf32>, vector<8x8x8x4xf32>, vector<8x8x8x4xf32> -> vector<8x8x8x44xf32>
    %34 = tpu.concatenate %32, %33 in 3 : vector<8x8x8x64xf32>, vector<8x8x8x44xf32> -> vector<8x8x8x108xf32>
    %35 = vector.shape_cast %34 : vector<8x8x8x108xf32> to vector<512x108xf32>
    %c0_118 = arith.constant 0 : index
    %c0_119 = arith.constant 0 : index
    %36 = vector.load %arg3[%c0_118, %c0_119] : memref<108x128xf32, #tpu.memory_space<vmem>>, vector<108x128xf32>
    %cst_120 = arith.constant dense<0.000000e+00> : vector<512x128xf32>
    %37 = tpu.matmul %35, %36, %cst_120 {dimension_numbers = #tpu.dot_dimension_numbers<[1], [0], [0], [1], [0, 0, 1, 1], [], []>} : vector<512x108xf32>, vector<108x128xf32>, vector<512x128xf32> -> vector<512x128xf32>
    %c0_121 = arith.constant 0 : index
    %c0_122 = arith.constant 0 : index
    %38 = vector.load %arg4[%c0_121, %c0_122] : memref<1x128xf32, #tpu.memory_space<vmem>>, vector<1x128xf32>
    %39 = vector.broadcast %38 : vector<1x128xf32> to vector<512x128xf32>
    %40 = arith.addf %37, %39 : vector<512x128xf32>
    %c0_123 = arith.constant 0 : index
    %c0_124 = arith.constant 0 : index
    %c0_125 = arith.constant 0 : index
    %41 = vector.load %arg5[%c0_123, %c0_124, %c0_125] : memref<1x512x128xf32, #tpu.memory_space<vmem>>, vector<1x512x128xf32>
    %42 = vector.shape_cast %41 : vector<1x512x128xf32> to vector<512x128xf32>
    %43 = vector.shape_cast %40 : vector<512x128xf32> to vector<1x512x128xf32>
    tpu.vector_store %arg5[%c0_123, %c0_124, %c0_125], %43 {strides = array<i32>} : memref<1x512x128xf32, #tpu.memory_space<vmem>>, vector<1x512x128xf32>,
    %c0_126 = arith.constant 0 : index
    %c0_127 = arith.constant 0 : index
    %c0_128 = arith.constant 0 : index
    %44 = vector.load %arg5[%c0_126, %c0_127, %c0_128] : memref<1x512x128xf32, #tpu.memory_space<vmem>>, vector<1x512x128xf32>
    %45 = vector.shape_cast %44 : vector<1x512x128xf32> to vector<512x128xf32>
    %cst_129 = arith.constant dense<0.000000e+00> : vector<128xf32>
    %46 = vector.multi_reduction <add>, %45, %cst_129 [0] : vector<512x128xf32> to vector<128xf32>
    %47 = vector.shape_cast %46 : vector<128xf32> to vector<1x128xf32>
    %48 = arith.mulf %45, %45 : vector<512x128xf32>
    %cst_130 = arith.constant dense<0.000000e+00> : vector<128xf32>
    %49 = vector.multi_reduction <add>, %48, %cst_130 [0] : vector<512x128xf32> to vector<128xf32>
    %50 = vector.shape_cast %49 : vector<128xf32> to vector<1x128xf32>
    %cst_131 = arith.constant 0.001953125 : f32
    %51 = vector.broadcast %cst_131 : f32 to vector<1x128xf32>
    %52 = arith.mulf %47, %51 : vector<1x128xf32>
    %cst_132 = arith.constant 0.001953125 : f32
    %53 = vector.broadcast %cst_132 : f32 to vector<1x128xf32>
    %54 = arith.mulf %50, %53 : vector<1x128xf32>
    %55 = arith.mulf %52, %52 : vector<1x128xf32>
    %56 = arith.subf %54, %55 : vector<1x128xf32>
    %cst_133 = arith.constant 0.000000e+00 : f32
    %57 = vector.broadcast %cst_133 : f32 to vector<1x128xf32>
    %58 = arith.maximumf %56, %57 : vector<1x128xf32>
    %59 = vector.broadcast %52 : vector<1x128xf32> to vector<512x128xf32>
    %60 = arith.subf %45, %59 : vector<512x128xf32>
    %cst_134 = arith.constant 9.99999974E-6 : f32
    %61 = vector.broadcast %cst_134 : f32 to vector<1x128xf32>
    %62 = arith.addf %58, %61 : vector<1x128xf32>
    %63 = math.rsqrt %62 : vector<1x128xf32>
    %64 = vector.broadcast %63 : vector<1x128xf32> to vector<512x128xf32>
    %65 = arith.mulf %60, %64 : vector<512x128xf32>
    %cst_135 = arith.constant 0.000000e+00 : f32
    %66 = vector.broadcast %cst_135 : f32 to vector<512x128xf32>
    %67 = arith.cmpf oge, %65, %66 : vector<512x128xf32>
    %cst_136 = arith.constant 2.000000e-01 : f32
    %68 = vector.broadcast %cst_136 : f32 to vector<512x128xf32>
    %69 = arith.mulf %68, %65 : vector<512x128xf32>
    %70 = arith.select %67, %65, %69 : vector<512x128xi1>, vector<512x128xf32>
    %c0_137 = arith.constant 0 : index
    %c0_138 = arith.constant 0 : index
    %c0_139 = arith.constant 0 : index
    %71 = vector.load %arg5[%c0_137, %c0_138, %c0_139] : memref<1x512x128xf32, #tpu.memory_space<vmem>>, vector<1x512x128xf32>
    %72 = vector.shape_cast %71 : vector<1x512x128xf32> to vector<512x128xf32>
    %73 = vector.shape_cast %70 : vector<512x128xf32> to vector<1x512x128xf32>
    tpu.vector_store %arg5[%c0_137, %c0_138, %c0_139], %73 {strides = array<i32>} : memref<1x512x128xf32, #tpu.memory_space<vmem>>, vector<1x512x128xf32>,
    return
  }
  func.func @transform_0(%arg0: i32, %arg1: i32) -> (i32, i32, i32, i32, i32) {
    %c0_i32 = arith.constant 0 : i32
    %c0_i32_0 = arith.constant 0 : i32
    %c0_i32_1 = arith.constant 0 : i32
    %c0_i32_2 = arith.constant 0 : i32
    %c0_i32_3 = arith.constant 0 : i32
    return %arg0, %c0_i32, %c0_i32_0, %c0_i32_1, %c0_i32_2 : i32, i32, i32, i32, i32
  }
  func.func @transform_1(%arg0: i32, %arg1: i32) -> (i32, i32) {
    %c0_i32 = arith.constant 0 : i32
    %c0_i32_0 = arith.constant 0 : i32
    return %c0_i32, %arg1 : i32, i32
  }
  func.func @transform_2(%arg0: i32, %arg1: i32) -> (i32, i32) {
    %c0_i32 = arith.constant 0 : i32
    %c0_i32_0 = arith.constant 0 : i32
    return %c0_i32, %arg1 : i32, i32
  }
  func.func @transform_3(%arg0: i32, %arg1: i32) -> (i32, i32, i32) {
    %c0_i32 = arith.constant 0 : i32
    %c0_i32_0 = arith.constant 0 : i32
    return %arg0, %c0_i32, %arg1 : i32, i32, i32
  }
}

</mosaic_0001>

<llo_original>
// kernel: tpu_custom_call.1
$region0: #{tpu_custom_call.1}
  #allocation0 [shape = 'u32[]', space=smem, size = 0x4, offset = 0x4, fixed_abs, tag = 'smem constant byte address 0x4 - core index']
  #allocation1 [shape = 'u32[144,128]{1,0:T(1,128)}', space=vmem, size = 0x12000, scoped, tag = 'internal scratch']
  #allocation2 [shape = 'f32[10,10,10,4]{3,2,1,0:T(8,128)}', space=vmem, size = 0xc8000, scoped, tag = 'scratch operand']
  %s0 = inlined_call_operand.vmem [shape: f32[2,8,8,8,4], index: 0, kind: input, shape index: {}]
  %s1 = inlined_call_operand.vmem [shape: f32[108,128], index: 1, kind: input, shape index: {}]
  %s2 = inlined_call_operand.vmem [shape: f32[1,128], index: 2, kind: input, shape index: {}]
  %s3 = inlined_call_operand.hbm [shape: f32[2,512,128], index: 3, kind: output, shape index: {}]
  %s4 = sld [smem:[#allocation0]]
  $region45: #{tpu_custom_call.1} parent=0
    _
  %s6 = ssub.s32 1, %s4
  %s7 = scalar_select 0, %s6, %s4
  $region1: #{tpu_custom_call.1} parent=0
    #allocation3 [shape = 'u8[524288]{0}', space=vmem, size = 0x80000, scoped, tag = 'output window, operand 0']
    #allocation4 [shape = 's32[2]{0}', space=sflag, size = 0x8, scoped, tag = 'scoped memory for tpu_custom_call.1']
    %8 = vsyncpa [#allocation4], 0
    %s9 = scalar_lea.sflag [#allocation4], 1
    %10 = vsyncpa %s9, 0
    loop: start=0, step=1, limit=4
    $region2: #{tpu_custom_call.1} parent=1 // loop_pre_header
      _
    $region3: #{tpu_custom_call.1} parent=1 // loop_header
      %s12 = sphi 0, %s16
      %p13 = scmp.ge.s32.totalorder %s12, 4
      %s19 = sphi 0, %s31
      %s20 = sphi 0, %s27
      %s21 = sphi 0, %s19
      %s22 = sphi 0, %s20
      %s23 = sphi 0, %s21
      %s24 = sphi 0, %s22
      %s34 = sphi 0, %s36
      %s37 = sphi 0, %s34
      %s38 = sphi 0, %s37
      %s54 = sphi 0, %s38
      %s60 = sphi 0, %s62
      %s63 = sphi 0, %s60
      %s64 = sphi 0, %s63
      %s80 = sphi 0, %s64
      %s86 = sphi 0, %s88
      %s89 = sphi 0, %s86
      %s90 = sphi 0, %s89
      %s106 = sphi 0, %s90
      %s114 = sphi 0, %s116
      %s117 = sphi 0, %s114
      %s118 = sphi 0, %s117
      %s134 = sphi 0, %s118
    $region4: #{tpu_custom_call.1} parent=1 // loop_header_branch
      %15 = sbr.rel (%p13) target = $region8
    $region5: #{tpu_custom_call.1} parent=1 // loop_body
      %s17 = ssub.s32 %s12, 1
      %s18 = ssub.s32 %s12, 2
      %s25 = sadd.s32 1, %s20
      %p26 = scmp.ge.s32.totalorder %s25, 1
      %s27 = scalar_select %p26, 0, %s25
      %s28 = sadd.s32 1, %s19
      %s29 = scalar_select %p26, %s28, %s19
      %p30 = scmp.ge.s32.totalorder %s29, 2
      %s31 = scalar_select %p30, 0, %s29
      %s32 = ssub.s32 %s19, %s31
      %p33 = scmp.eq.s32.totalorder %s32, 0
      %s35 = sadd.s32 %s34, 1
      %s36 = scalar_select %p33, %s34, %s35
      %p39 = pneg %p33
      %p40 = scmp.eq.s32.totalorder %s12, 1
      %p41 = por %p39, %p40
      %p42 = scmp.ne.s32.totalorder %s34, %s37
      %p43 = scmp.eq.s32.totalorder %s12, 0
      %p44 = por %p42, %p43
      %p45 = scmp.ne.s32.totalorder %s34, %s37
      %p46 = scmp.eq.s32.totalorder %s17, 1
      %p47 = por %p45, %p46
      %p48 = scmp.ne.s32.totalorder %s37, %s38
      %p49 = scmp.eq.s32.totalorder %s17, 0
      %p50 = por %p48, %p49
      %p51 = scmp.ne.s32.totalorder %s37, %s38
      %p52 = scmp.eq.s32.totalorder %s18, 1
      %p53 = por %p51, %p52
      %p55 = scmp.ne.s32.totalorder %s38, %s54
      %p56 = scmp.eq.s32.totalorder %s18, 0
      %p57 = por %p55, %p56
      %s58 = ssub.s32 %s20, %s27
      %p59 = scmp.eq.s32.totalorder %s58, 0
      %s61 = sadd.s32 %s60, 1
      %s62 = scalar_select %p59, %s60, %s61
      %p65 = pneg %p59
      %p66 = scmp.eq.s32.totalorder %s12, 1
      %p67 = por %p65, %p66
      %p68 = scmp.ne.s32.totalorder %s60, %s63
      %p69 = scmp.eq.s32.totalorder %s12, 0
      %p70 = por %p68, %p69
      %p71 = scmp.ne.s32.totalorder %s60, %s63
      %p72 = scmp.eq.s32.totalorder %s17, 1
      %p73 = por %p71, %p72
      %p74 = scmp.ne.s32.totalorder %s63, %s64
      %p75 = scmp.eq.s32.totalorder %s17, 0
      %p76 = por %p74, %p75
      %p77 = scmp.ne.s32.totalorder %s63, %s64
      %p78 = scmp.eq.s32.totalorder %s18, 1
      %p79 = por %p77, %p78
      %p81 = scmp.ne.s32.totalorder %s64, %s80
      %p82 = scmp.eq.s32.totalorder %s18, 0
      %p83 = por %p81, %p82
      %s84 = ssub.s32 %s20, %s27
      %p85 = scmp.eq.s32.totalorder %s84, 0
      %s87 = sadd.s32 %s86, 1
      %s88 = scalar_select %p85, %s86, %s87
      %p91 = pneg %p85
      %p92 = scmp.eq.s32.totalorder %s12, 1
      %p93 = por %p91, %p92
      %p94 = scmp.ne.s32.totalorder %s86, %s89
      %p95 = scmp.eq.s32.totalorder %s12, 0
      %p96 = por %p94, %p95
      %p97 = scmp.ne.s32.totalorder %s86, %s89
      %p98 = scmp.eq.s32.totalorder %s17, 1
      %p99 = por %p97, %p98
      %p100 = scmp.ne.s32.totalorder %s89, %s90
      %p101 = scmp.eq.s32.totalorder %s17, 0
      %p102 = por %p100, %p101
      %p103 = scmp.ne.s32.totalorder %s89, %s90
      %p104 = scmp.eq.s32.totalorder %s18, 1
      %p105 = por %p103, %p104
      %p107 = scmp.ne.s32.totalorder %s90, %s106
      %p108 = scmp.eq.s32.totalorder %s18, 0
      %p109 = por %p107, %p108
      %s110 = ssub.s32 %s19, %s31
      %s111 = ssub.s32 %s20, %s27
      %s112 = sor.u32 %s110, %s111
      %p113 = scmp.eq.s32.totalorder %s112, 0
      %s115 = sadd.s32 %s114, 1
      %s116 = scalar_select %p113, %s114, %s115
      %p119 = pneg %p113
      %p120 = scmp.eq.s32.totalorder %s12, 1
      %p121 = por %p119, %p120
      %p122 = scmp.ne.s32.totalorder %s114, %s117
      %p123 = scmp.eq.s32.totalorder %s12, 0
      %p124 = por %p122, %p123
      %p125 = scmp.ne.s32.totalorder %s114, %s117
      %p126 = scmp.eq.s32.totalorder %s17, 1
      %p127 = por %p125, %p126
      %p128 = scmp.ne.s32.totalorder %s117, %s118
      %p129 = scmp.eq.s32.totalorder %s17, 0
      %p130 = por %p128, %p129
      %p131 = scmp.ne.s32.totalorder %s117, %s118
      %p132 = scmp.eq.s32.totalorder %s18, 1
      %p133 = por %p131, %p132
      %p135 = scmp.ne.s32.totalorder %s118, %s134
      %p136 = scmp.eq.s32.totalorder %s18, 0
      %p137 = por %p135, %p136
      %p138 = scmp.le.s32.totalorder 1, %s12
      %p139 = scmp.lt.s32.totalorder %s12, 3
      %p140 = pnand %p138, %p139
      %p141 = pneg %p140
      // Predicated region
      $region9: #{tpu_custom_call.1} parent=5 // pred_check
        _
      $region10: #{tpu_custom_call.1} parent=5 // pred_check_branch
        %143 = sbr.rel (%p140) target = $region12
      $region11: #{tpu_custom_call.1} parent=5 // pred_region
        %s144 = ssub.s32 %s12, 1
        // Predicated region
        $region13: #{tpu_custom_call.1} parent=11 // pred_check
          %p145 = pneg %p76
        $region14: #{tpu_custom_call.1} parent=11 // pred_check_branch
          %147 = sbr.rel (%p145) target = $region16
        $region15: #{tpu_custom_call.1} parent=11 // pred_region
          %p148 = scmp.lt.s32.totalorder %s22, 0
          %s149 = scalar_select %p148, %s22, 0
          %s150 = smul.addr %s149, 8
          %s151 = scalar_lea.vmem %s1, %s150
        $region16: #{tpu_custom_call.1} parent=11 // pred_fallthru
          _
        // Predicated region
        $region17: #{tpu_custom_call.1} parent=11 // pred_check
          %p152 = pneg %p102
        $region18: #{tpu_custom_call.1} parent=11 // pred_check_branch
          %154 = sbr.rel (%p152) target = $region20
        $region19: #{tpu_custom_call.1} parent=11 // pred_region
          %p155 = scmp.lt.s32.totalorder %s22, 0
          %s156 = scalar_select %p155, %s22, 0
          %s157 = scalar_lea.vmem %s2, %s156
        $region20: #{tpu_custom_call.1} parent=11 // pred_fallthru
          _
      $region12: #{tpu_custom_call.1} parent=5 // pred_fallthru
        _
      %p158 = scmp.lt.s32.totalorder %s12, 2
      // Predicated region
      $region21: #{tpu_custom_call.1} parent=5 // pred_check
        %p159 = pneg %p158
      $region22: #{tpu_custom_call.1} parent=5 // pred_check_branch
        %161 = sbr.rel (%p159) target = $region24
      $region23: #{tpu_custom_call.1} parent=5 // pred_region
        // Predicated region
        $region25: #{tpu_custom_call.1} parent=23 // pred_check
          %p162 = pneg %p44
        $region26: #{tpu_custom_call.1} parent=23 // pred_check_branch
          %164 = sbr.rel (%p162) target = $region28
        $region27: #{tpu_custom_call.1} parent=23 // pred_region
          %p165 = scmp.lt.s32.totalorder %s19, 1
          %s166 = scalar_select %p165, %s19, 1
          %s167 = smul.addr %s166, 64
          %s168 = smul.addr %s167, 8
          %s169 = scalar_lea.vmem %s0, %s168
        $region28: #{tpu_custom_call.1} parent=23 // pred_fallthru
          _
      $region24: #{tpu_custom_call.1} parent=5 // pred_fallthru
        _
      %p170 = scmp.le.s32.totalorder 1, %s12
      %p171 = scmp.lt.s32.totalorder %s12, 3
      %p172 = pnand %p170, %p171
      %p173 = pneg %p172
      // Predicated region
      $region29: #{tpu_custom_call.1} parent=5 // pred_check
        _
      $region30: #{tpu_custom_call.1} parent=5 // pred_check_branch
        %175 = sbr.rel (%p172) target = $region32
      $region31: #{tpu_custom_call.1} parent=5 // pred_region
        %s176 = ssub.s32 %s12, 1
        %p177 = scmp.lt.s32.totalorder %s21, 1
        %s178 = scalar_select %p177, %s21, 1
        %s179 = smul.addr %s178, 64
        %s180 = smul.addr %s179, 8
        %s181 = scalar_lea.vmem %s0, %s180
        %p182 = pneg %p50
        %p183 = pneg %p47
        %p184 = scmp.lt.s32.totalorder %s22, 0
        %s185 = scalar_select %p184, %s22, 0
        %s186 = smul.addr %s185, 8
        %s187 = scalar_lea.vmem %s1, %s186
        %p188 = pneg %p76
        %p189 = pneg %p73
        %p190 = scmp.lt.s32.totalorder %s22, 0
        %s191 = scalar_select %p190, %s22, 0
        %s192 = scalar_lea.vmem %s2, %s191
        %p193 = pneg %p102
        %p194 = pneg %p99
        %p195 = pneg %p130
        %p196 = pneg %p127
        %s197 = sand.u32 %s117, 1
        %s198 = scalar_lea.sflag [#allocation4], %s197
        %s199 = sand.u32 %s117, 1
        %s200 = smul.addr %s199, 512
        %s201 = scalar_lea.vmem [#allocation3], %s200
        %p202 = scmp.lt.s32.totalorder %s21, 1
        %s203 = scalar_select %p202, %s21, 1
        %s204 = smul.addr %s203, 64
        %s205 = smul.addr %s204, 8
        %s206 = scalar_lea.vmem %s0, %s205
        %p207 = scmp.lt.s32.totalorder %s22, 0
        %s208 = scalar_select %p207, %s22, 0
        %s209 = smul.addr %s208, 8
        %s210 = scalar_lea.vmem %s1, %s209
        %p211 = scmp.lt.s32.totalorder %s22, 0
        %s212 = scalar_select %p211, %s22, 0
        %s213 = scalar_lea.vmem %s2, %s212
        %vm214 = vcmask 31744
        %215 = vst.msk [vmem:[#allocation2] sm:$0xff] %vm214, 0.0
        %vm216 = vcmask 25600
        %217 = vst.msk [vmem:[#allocation2 + $0x8] sm:$0x3] %vm216, 0.0
        %218 = vst.msk [vmem:[#allocation2 + $0x10] sm:$0xff] %vm214, 0.0
        %219 = vst.msk [vmem:[#allocation2 + $0x18] sm:$0x3] %vm216, 0.0
        %220 = vst.msk [vmem:[#allocation2 + $0x20] sm:$0xff] %vm214, 0.0
        %221 = vst.msk [vmem:[#allocation2 + $0x28] sm:$0x3] %vm216, 0.0
        %222 = vst.msk [vmem:[#allocation2 + $0x30] sm:$0xff] %vm214, 0.0
        %223 = vst.msk [vmem:[#allocation2 + $0x38] sm:$0x3] %vm216, 0.0
        %224 = vst.msk [vmem:[#allocation2 + $0x40] sm:$0xff] %vm214, 0.0
        %225 = vst.msk [vmem:[#allocation2 + $0x48] sm:$0x3] %vm216, 0.0
        %226 = vst.msk [vmem:[#allocation2 + $0x50] sm:$0xff] %vm214, 0.0
        %227 = vst.msk [vmem:[#allocation2 + $0x58] sm:$0x3] %vm216, 0.0
        %228 = vst.msk [vmem:[#allocation2 + $0x60] sm:$0xff] %vm214, 0.0
        %229 = vst.msk [vmem:[#allocation2 + $0x68] sm:$0x3] %vm216, 0.0
        %230 = vst.msk [vmem:[#allocation2 + $0x70] sm:$0xff] %vm214, 0.0
        %231 = vst.msk [vmem:[#allocation2 + $0x78] sm:$0x3] %vm216, 0.0
        %232 = vst.msk [vmem:[#allocation2 + $0x80] sm:$0xff] %vm214, 0.0
        %233 = vst.msk [vmem:[#allocation2 + $0x88] sm:$0x3] %vm216, 0.0
        %234 = vst.msk [vmem:[#allocation2 + $0x90] sm:$0xff] %vm214, 0.0
        %235 = vst.msk [vmem:[#allocation2 + $0x98] sm:$0x3] %vm216, 0.0
        %236 = vst.msk [vmem:[#allocation2 + $0xa0] sm:$0xff] %vm214, 0.0
        %237 = vst.msk [vmem:[#allocation2 + $0xa8] sm:$0x3] %vm216, 0.0
        %238 = vst.msk [vmem:[#allocation2 + $0xb0] sm:$0xff] %vm214, 0.0
        %239 = vst.msk [vmem:[#allocation2 + $0xb8] sm:$0x3] %vm216, 0.0
        %240 = vst.msk [vmem:[#allocation2 + $0xc0] sm:$0xff] %vm214, 0.0
        %241 = vst.msk [vmem:[#allocation2 + $0xc8] sm:$0x3] %vm216, 0.0
        %242 = vst.msk [vmem:[#allocation2 + $0xd0] sm:$0xff] %vm214, 0.0
        %243 = vst.msk [vmem:[#allocation2 + $0xd8] sm:$0x3] %vm216, 0.0
        %244 = vst.msk [vmem:[#allocation2 + $0xe0] sm:$0xff] %vm214, 0.0
        %245 = vst.msk [vmem:[#allocation2 + $0xe8] sm:$0x3] %vm216, 0.0
        %246 = vst.msk [vmem:[#allocation2 + $0xf0] sm:$0xff] %vm214, 0.0
        %247 = vst.msk [vmem:[#allocation2 + $0xf8] sm:$0x3] %vm216, 0.0
        %248 = vst.msk [vmem:[#allocation2 + $0x100] sm:$0xff] %vm214, 0.0
        %249 = vst.msk [vmem:[#allocation2 + $0x108] sm:$0x3] %vm216, 0.0
        %250 = vst.msk [vmem:[#allocation2 + $0x110] sm:$0xff] %vm214, 0.0
        %251 = vst.msk [vmem:[#allocation2 + $0x118] sm:$0x3] %vm216, 0.0
        %252 = vst.msk [vmem:[#allocation2 + $0x120] sm:$0xff] %vm214, 0.0
        %253 = vst.msk [vmem:[#allocation2 + $0x128] sm:$0x3] %vm216, 0.0
        %254 = vst.msk [vmem:[#allocation2 + $0x130] sm:$0xff] %vm214, 0.0
        %255 = vst.msk [vmem:[#allocation2 + $0x138] sm:$0x3] %vm216, 0.0
        %256 = vst.msk [vmem:[#allocation2 + $0x140] sm:$0xff] %vm214, 0.0
        %257 = vst.msk [vmem:[#allocation2 + $0x148] sm:$0x3] %vm216, 0.0
        %258 = vst.msk [vmem:[#allocation2 + $0x150] sm:$0xff] %vm214, 0.0
        %259 = vst.msk [vmem:[#allocation2 + $0x158] sm:$0x3] %vm216, 0.0
        %260 = vst.msk [vmem:[#allocation2 + $0x160] sm:$0xff] %vm214, 0.0
        %261 = vst.msk [vmem:[#allocation2 + $0x168] sm:$0x3] %vm216, 0.0
        %262 = vst.msk [vmem:[#allocation2 + $0x170] sm:$0xff] %vm214, 0.0
        %263 = vst.msk [vmem:[#allocation2 + $0x178] sm:$0x3] %vm216, 0.0
        %264 = vst.msk [vmem:[#allocation2 + $0x180] sm:$0xff] %vm214, 0.0
        %265 = vst.msk [vmem:[#allocation2 + $0x188] sm:$0x3] %vm216, 0.0
        %266 = vst.msk [vmem:[#allocation2 + $0x190] sm:$0xff] %vm214, 0.0
        %267 = vst.msk [vmem:[#allocation2 + $0x198] sm:$0x3] %vm216, 0.0
        %268 = vst.msk [vmem:[#allocation2 + $0x1a0] sm:$0xff] %vm214, 0.0
        %269 = vst.msk [vmem:[#allocation2 + $0x1a8] sm:$0x3] %vm216, 0.0
        %270 = vst.msk [vmem:[#allocation2 + $0x1b0] sm:$0xff] %vm214, 0.0
        %271 = vst.msk [vmem:[#allocation2 + $0x1b8] sm:$0x3] %vm216, 0.0
        %272 = vst.msk [vmem:[#allocation2 + $0x1c0] sm:$0xff] %vm214, 0.0
        %273 = vst.msk [vmem:[#allocation2 + $0x1c8] sm:$0x3] %vm216, 0.0
        %274 = vst.msk [vmem:[#allocation2 + $0x1d0] sm:$0xff] %vm214, 0.0
        %275 = vst.msk [vmem:[#allocation2 + $0x1d8] sm:$0x3] %vm216, 0.0
        %276 = vst.msk [vmem:[#allocation2 + $0x1e0] sm:$0xff] %vm214, 0.0
        %277 = vst.msk [vmem:[#allocation2 + $0x1e8] sm:$0x3] %vm216, 0.0
        %278 = vst.msk [vmem:[#allocation2 + $0x1f0] sm:$0xff] %vm214, 0.0
        %279 = vst.msk [vmem:[#allocation2 + $0x1f8] sm:$0x3] %vm216, 0.0
        %280 = vst.msk [vmem:[#allocation2 + $0x200] sm:$0xff] %vm214, 0.0
        %281 = vst.msk [vmem:[#allocation2 + $0x208] sm:$0x3] %vm216, 0.0
        %282 = vst.msk [vmem:[#allocation2 + $0x210] sm:$0xff] %vm214, 0.0
        %283 = vst.msk [vmem:[#allocation2 + $0x218] sm:$0x3] %vm216, 0.0
        %284 = vst.msk [vmem:[#allocation2 + $0x220] sm:$0xff] %vm214, 0.0
        %285 = vst.msk [vmem:[#allocation2 + $0x228] sm:$0x3] %vm216, 0.0
        %286 = vst.msk [vmem:[#allocation2 + $0x230] sm:$0xff] %vm214, 0.0
        %287 = vst.msk [vmem:[#allocation2 + $0x238] sm:$0x3] %vm216, 0.0
        %288 = vst.msk [vmem:[#allocation2 + $0x240] sm:$0xff] %vm214, 0.0
        %289 = vst.msk [vmem:[#allocation2 + $0x248] sm:$0x3] %vm216, 0.0
        %290 = vst.msk [vmem:[#allocation2 + $0x250] sm:$0xff] %vm214, 0.0
        %291 = vst.msk [vmem:[#allocation2 + $0x258] sm:$0x3] %vm216, 0.0
        %292 = vst.msk [vmem:[#allocation2 + $0x260] sm:$0xff] %vm214, 0.0
        %293 = vst.msk [vmem:[#allocation2 + $0x268] sm:$0x3] %vm216, 0.0
        %294 = vst.msk [vmem:[#allocation2 + $0x270] sm:$0xff] %vm214, 0.0
        %295 = vst.msk [vmem:[#allocation2 + $0x278] sm:$0x3] %vm216, 0.0
        %296 = vst.msk [vmem:[#allocation2 + $0x280] sm:$0xff] %vm214, 0.0
        %297 = vst.msk [vmem:[#allocation2 + $0x288] sm:$0x3] %vm216, 0.0
        %298 = vst.msk [vmem:[#allocation2 + $0x290] sm:$0xff] %vm214, 0.0
        %299 = vst.msk [vmem:[#allocation2 + $0x298] sm:$0x3] %vm216, 0.0
        %300 = vst.msk [vmem:[#allocation2 + $0x2a0] sm:$0xff] %vm214, 0.0
        %301 = vst.msk [vmem:[#allocation2 + $0x2a8] sm:$0x3] %vm216, 0.0
        %302 = vst.msk [vmem:[#allocation2 + $0x2b0] sm:$0xff] %vm214, 0.0
        %303 = vst.msk [vmem:[#allocation2 + $0x2b8] sm:$0x3] %vm216, 0.0
        %304 = vst.msk [vmem:[#allocation2 + $0x2c0] sm:$0xff] %vm214, 0.0
        %305 = vst.msk [vmem:[#allocation2 + $0x2c8] sm:$0x3] %vm216, 0.0
        %306 = vst.msk [vmem:[#allocation2 + $0x2d0] sm:$0xff] %vm214, 0.0
        %307 = vst.msk [vmem:[#allocation2 + $0x2d8] sm:$0x3] %vm216, 0.0
        %308 = vst.msk [vmem:[#allocation2 + $0x2e0] sm:$0xff] %vm214, 0.0
        %309 = vst.msk [vmem:[#allocation2 + $0x2e8] sm:$0x3] %vm216, 0.0
        %310 = vst.msk [vmem:[#allocation2 + $0x2f0] sm:$0xff] %vm214, 0.0
        %311 = vst.msk [vmem:[#allocation2 + $0x2f8] sm:$0x3] %vm216, 0.0
        %312 = vst.msk [vmem:[#allocation2 + $0x300] sm:$0xff] %vm214, 0.0
        %313 = vst.msk [vmem:[#allocation2 + $0x308] sm:$0x3] %vm216, 0.0
        %314 = vst.msk [vmem:[#allocation2 + $0x310] sm:$0xff] %vm214, 0.0
        %315 = vst.msk [vmem:[#allocation2 + $0x318] sm:$0x3] %vm216, 0.0
        %316 = vst.msk [vmem:[#allocation2 + $0x320] sm:$0xff] %vm214, 0.0
        %317 = vst.msk [vmem:[#allocation2 + $0x328] sm:$0x3] %vm216, 0.0
        %318 = vst.msk [vmem:[#allocation2 + $0x330] sm:$0xff] %vm214, 0.0
        %319 = vst.msk [vmem:[#allocation2 + $0x338] sm:$0x3] %vm216, 0.0
        %320 = vst.msk [vmem:[#allocation2 + $0x340] sm:$0xff] %vm214, 0.0
        %321 = vst.msk [vmem:[#allocation2 + $0x348] sm:$0x3] %vm216, 0.0
        %322 = vst.msk [vmem:[#allocation2 + $0x350] sm:$0xff] %vm214, 0.0
        %323 = vst.msk [vmem:[#allocation2 + $0x358] sm:$0x3] %vm216, 0.0
        %324 = vst.msk [vmem:[#allocation2 + $0x360] sm:$0xff] %vm214, 0.0
        %325 = vst.msk [vmem:[#allocation2 + $0x368] sm:$0x3] %vm216, 0.0
        %326 = vst.msk [vmem:[#allocation2 + $0x370] sm:$0xff] %vm214, 0.0
        %327 = vst.msk [vmem:[#allocation2 + $0x378] sm:$0x3] %vm216, 0.0
        %328 = vst.msk [vmem:[#allocation2 + $0x380] sm:$0xff] %vm214, 0.0
        %329 = vst.msk [vmem:[#allocation2 + $0x388] sm:$0x3] %vm216, 0.0
        %330 = vst.msk [vmem:[#allocation2 + $0x390] sm:$0xff] %vm214, 0.0
        %331 = vst.msk [vmem:[#allocation2 + $0x398] sm:$0x3] %vm216, 0.0
        %332 = vst.msk [vmem:[#allocation2 + $0x3a0] sm:$0xff] %vm214, 0.0
        %333 = vst.msk [vmem:[#allocation2 + $0x3a8] sm:$0x3] %vm216, 0.0
        %334 = vst.msk [vmem:[#allocation2 + $0x3b0] sm:$0xff] %vm214, 0.0
        %335 = vst.msk [vmem:[#allocation2 + $0x3b8] sm:$0x3] %vm216, 0.0
        %336 = vst.msk [vmem:[#allocation2 + $0x3c0] sm:$0xff] %vm214, 0.0
        %337 = vst.msk [vmem:[#allocation2 + $0x3c8] sm:$0x3] %vm216, 0.0
        %338 = vst.msk [vmem:[#allocation2 + $0x3d0] sm:$0xff] %vm214, 0.0
        %339 = vst.msk [vmem:[#allocation2 + $0x3d8] sm:$0x3] %vm216, 0.0
        %340 = vst.msk [vmem:[#allocation2 + $0x3e0] sm:$0xff] %vm214, 0.0
        %341 = vst.msk [vmem:[#allocation2 + $0x3e8] sm:$0x3] %vm216, 0.0
        %342 = vst.msk [vmem:[#allocation2 + $0x3f0] sm:$0xff] %vm214, 0.0
        %343 = vst.msk [vmem:[#allocation2 + $0x3f8] sm:$0x3] %vm216, 0.0
        %344 = vst.msk [vmem:[#allocation2 + $0x400] sm:$0xff] %vm214, 0.0
        %345 = vst.msk [vmem:[#allocation2 + $0x408] sm:$0x3] %vm216, 0.0
        %346 = vst.msk [vmem:[#allocation2 + $0x410] sm:$0xff] %vm214, 0.0
        %347 = vst.msk [vmem:[#allocation2 + $0x418] sm:$0x3] %vm216, 0.0
        %348 = vst.msk [vmem:[#allocation2 + $0x420] sm:$0xff] %vm214, 0.0
        %349 = vst.msk [vmem:[#allocation2 + $0x428] sm:$0x3] %vm216, 0.0
        %350 = vst.msk [vmem:[#allocation2 + $0x430] sm:$0xff] %vm214, 0.0
        %351 = vst.msk [vmem:[#allocation2 + $0x438] sm:$0x3] %vm216, 0.0
        %352 = vst.msk [vmem:[#allocation2 + $0x440] sm:$0xff] %vm214, 0.0
        %353 = vst.msk [vmem:[#allocation2 + $0x448] sm:$0x3] %vm216, 0.0
        %354 = vst.msk [vmem:[#allocation2 + $0x450] sm:$0xff] %vm214, 0.0
        %355 = vst.msk [vmem:[#allocation2 + $0x458] sm:$0x3] %vm216, 0.0
        %356 = vst.msk [vmem:[#allocation2 + $0x460] sm:$0xff] %vm214, 0.0
        %357 = vst.msk [vmem:[#allocation2 + $0x468] sm:$0x3] %vm216, 0.0
        %358 = vst.msk [vmem:[#allocation2 + $0x470] sm:$0xff] %vm214, 0.0
        %359 = vst.msk [vmem:[#allocation2 + $0x478] sm:$0x3] %vm216, 0.0
        %360 = vst.msk [vmem:[#allocation2 + $0x480] sm:$0xff] %vm214, 0.0
        %361 = vst.msk [vmem:[#allocation2 + $0x488] sm:$0x3] %vm216, 0.0
        %362 = vst.msk [vmem:[#allocation2 + $0x490] sm:$0xff] %vm214, 0.0
        %363 = vst.msk [vmem:[#allocation2 + $0x498] sm:$0x3] %vm216, 0.0
        %364 = vst.msk [vmem:[#allocation2 + $0x4a0] sm:$0xff] %vm214, 0.0
        %365 = vst.msk [vmem:[#allocation2 + $0x4a8] sm:$0x3] %vm216, 0.0
        %366 = vst.msk [vmem:[#allocation2 + $0x4b0] sm:$0xff] %vm214, 0.0
        %367 = vst.msk [vmem:[#allocation2 + $0x4b8] sm:$0x3] %vm216, 0.0
        %368 = vst.msk [vmem:[#allocation2 + $0x4c0] sm:$0xff] %vm214, 0.0
        %369 = vst.msk [vmem:[#allocation2 + $0x4c8] sm:$0x3] %vm216, 0.0
        %370 = vst.msk [vmem:[#allocation2 + $0x4d0] sm:$0xff] %vm214, 0.0
        %371 = vst.msk [vmem:[#allocation2 + $0x4d8] sm:$0x3] %vm216, 0.0
        %372 = vst.msk [vmem:[#allocation2 + $0x4e0] sm:$0xff] %vm214, 0.0
        %373 = vst.msk [vmem:[#allocation2 + $0x4e8] sm:$0x3] %vm216, 0.0
        %374 = vst.msk [vmem:[#allocation2 + $0x4f0] sm:$0xff] %vm214, 0.0
        %375 = vst.msk [vmem:[#allocation2 + $0x4f8] sm:$0x3] %vm216, 0.0
        %376 = vst.msk [vmem:[#allocation2 + $0x500] sm:$0xff] %vm214, 0.0
        %377 = vst.msk [vmem:[#allocation2 + $0x508] sm:$0x3] %vm216, 0.0
        %378 = vst.msk [vmem:[#allocation2 + $0x510] sm:$0xff] %vm214, 0.0
        %379 = vst.msk [vmem:[#allocation2 + $0x518] sm:$0x3] %vm216, 0.0
        %380 = vst.msk [vmem:[#allocation2 + $0x520] sm:$0xff] %vm214, 0.0
        %381 = vst.msk [vmem:[#allocation2 + $0x528] sm:$0x3] %vm216, 0.0
        %382 = vst.msk [vmem:[#allocation2 + $0x530] sm:$0xff] %vm214, 0.0
        %383 = vst.msk [vmem:[#allocation2 + $0x538] sm:$0x3] %vm216, 0.0
        %384 = vst.msk [vmem:[#allocation2 + $0x540] sm:$0xff] %vm214, 0.0
        %385 = vst.msk [vmem:[#allocation2 + $0x548] sm:$0x3] %vm216, 0.0
        %386 = vst.msk [vmem:[#allocation2 + $0x550] sm:$0xff] %vm214, 0.0
        %387 = vst.msk [vmem:[#allocation2 + $0x558] sm:$0x3] %vm216, 0.0
        %388 = vst.msk [vmem:[#allocation2 + $0x560] sm:$0xff] %vm214, 0.0
        %389 = vst.msk [vmem:[#allocation2 + $0x568] sm:$0x3] %vm216, 0.0
        %390 = vst.msk [vmem:[#allocation2 + $0x570] sm:$0xff] %vm214, 0.0
        %391 = vst.msk [vmem:[#allocation2 + $0x578] sm:$0x3] %vm216, 0.0
        %392 = vst.msk [vmem:[#allocation2 + $0x580] sm:$0xff] %vm214, 0.0
        %393 = vst.msk [vmem:[#allocation2 + $0x588] sm:$0x3] %vm216, 0.0
        %394 = vst.msk [vmem:[#allocation2 + $0x590] sm:$0xff] %vm214, 0.0
        %395 = vst.msk [vmem:[#allocation2 + $0x598] sm:$0x3] %vm216, 0.0
        %396 = vst.msk [vmem:[#allocation2 + $0x5a0] sm:$0xff] %vm214, 0.0
        %397 = vst.msk [vmem:[#allocation2 + $0x5a8] sm:$0x3] %vm216, 0.0
        %398 = vst.msk [vmem:[#allocation2 + $0x5b0] sm:$0xff] %vm214, 0.0
        %399 = vst.msk [vmem:[#allocation2 + $0x5b8] sm:$0x3] %vm216, 0.0
        %400 = vst.msk [vmem:[#allocation2 + $0x5c0] sm:$0xff] %vm214, 0.0
        %401 = vst.msk [vmem:[#allocation2 + $0x5c8] sm:$0x3] %vm216, 0.0
        %402 = vst.msk [vmem:[#allocation2 + $0x5d0] sm:$0xff] %vm214, 0.0
        %403 = vst.msk [vmem:[#allocation2 + $0x5d8] sm:$0x3] %vm216, 0.0
        %404 = vst.msk [vmem:[#allocation2 + $0x5e0] sm:$0xff] %vm214, 0.0
        %405 = vst.msk [vmem:[#allocation2 + $0x5e8] sm:$0x3] %vm216, 0.0
        %406 = vst.msk [vmem:[#allocation2 + $0x5f0] sm:$0xff] %vm214, 0.0
        %407 = vst.msk [vmem:[#allocation2 + $0x5f8] sm:$0x3] %vm216, 0.0
        %408 = vst.msk [vmem:[#allocation2 + $0x600] sm:$0xff] %vm214, 0.0
        %409 = vst.msk [vmem:[#allocation2 + $0x608] sm:$0x3] %vm216, 0.0
        %410 = vst.msk [vmem:[#allocation2 + $0x610] sm:$0xff] %vm214, 0.0
        %411 = vst.msk [vmem:[#allocation2 + $0x618] sm:$0x3] %vm216, 0.0
        %412 = vst.msk [vmem:[#allocation2 + $0x620] sm:$0xff] %vm214, 0.0
        %413 = vst.msk [vmem:[#allocation2 + $0x628] sm:$0x3] %vm216, 0.0
        %414 = vst.msk [vmem:[#allocation2 + $0x630] sm:$0xff] %vm214, 0.0
        %415 = vst.msk [vmem:[#allocation2 + $0x638] sm:$0x3] %vm216, 0.0
        %v416 = vld [vmem:[%s206] sm:$0xff]
        %v417 = vld [vmem:[%s206 + $0x8] sm:$0xff]
        %v418 = vld [vmem:[%s206 + $0x10] sm:$0xff]
        %v419 = vld [vmem:[%s206 + $0x18] sm:$0xff]
        %v420 = vld [vmem:[%s206 + $0x20] sm:$0xff]
        %v421 = vld [vmem:[%s206 + $0x28] sm:$0xff]
        %v422 = vld [vmem:[%s206 + $0x30] sm:$0xff]
        %v423 = vld [vmem:[%s206 + $0x38] sm:$0xff]
        %v424 = vld [vmem:[%s206 + $0x40] sm:$0xff]
        %v425 = vld [vmem:[%s206 + $0x48] sm:$0xff]
        %v426 = vld [vmem:[%s206 + $0x50] sm:$0xff]
        %v427 = vld [vmem:[%s206 + $0x58] sm:$0xff]
        %v428 = vld [vmem:[%s206 + $0x60] sm:$0xff]
        %v429 = vld [vmem:[%s206 + $0x68] sm:$0xff]
        %v430 = vld [vmem:[%s206 + $0x70] sm:$0xff]
        %v431 = vld [vmem:[%s206 + $0x78] sm:$0xff]
        %v432 = vld [vmem:[%s206 + $0x80] sm:$0xff]
        %v433 = vld [vmem:[%s206 + $0x88] sm:$0xff]
        %v434 = vld [vmem:[%s206 + $0x90] sm:$0xff]
        %v435 = vld [vmem:[%s206 + $0x98] sm:$0xff]
        %v436 = vld [vmem:[%s206 + $0xa0] sm:$0xff]
        %v437 = vld [vmem:[%s206 + $0xa8] sm:$0xff]
        %v438 = vld [vmem:[%s206 + $0xb0] sm:$0xff]
        %v439 = vld [vmem:[%s206 + $0xb8] sm:$0xff]
        %v440 = vld [vmem:[%s206 + $0xc0] sm:$0xff]
        %v441 = vld [vmem:[%s206 + $0xc8] sm:$0xff]
        %v442 = vld [vmem:[%s206 + $0xd0] sm:$0xff]
        %v443 = vld [vmem:[%s206 + $0xd8] sm:$0xff]
        %v444 = vld [vmem:[%s206 + $0xe0] sm:$0xff]
        %v445 = vld [vmem:[%s206 + $0xe8] sm:$0xff]
        %v446 = vld [vmem:[%s206 + $0xf0] sm:$0xff]
        %v447 = vld [vmem:[%s206 + $0xf8] sm:$0xff]
        %v448 = vld [vmem:[%s206 + $0x100] sm:$0xff]
        %v449 = vld [vmem:[%s206 + $0x108] sm:$0xff]
        %v450 = vld [vmem:[%s206 + $0x110] sm:$0xff]
        %v451 = vld [vmem:[%s206 + $0x118] sm:$0xff]
        %v452 = vld [vmem:[%s206 + $0x120] sm:$0xff]
        %v453 = vld [vmem:[%s206 + $0x128] sm:$0xff]
        %v454 = vld [vmem:[%s206 + $0x130] sm:$0xff]
        %v455 = vld [vmem:[%s206 + $0x138] sm:$0xff]
        %v456 = vld [vmem:[%s206 + $0x140] sm:$0xff]
        %v457 = vld [vmem:[%s206 + $0x148] sm:$0xff]
        %v458 = vld [vmem:[%s206 + $0x150] sm:$0xff]
        %v459 = vld [vmem:[%s206 + $0x158] sm:$0xff]
        %v460 = vld [vmem:[%s206 + $0x160] sm:$0xff]
        %v461 = vld [vmem:[%s206 + $0x168] sm:$0xff]
        %v462 = vld [vmem:[%s206 + $0x170] sm:$0xff]
        %v463 = vld [vmem:[%s206 + $0x178] sm:$0xff]
        %v464 = vld [vmem:[%s206 + $0x180] sm:$0xff]
        %v465 = vld [vmem:[%s206 + $0x188] sm:$0xff]
        %v466 = vld [vmem:[%s206 + $0x190] sm:$0xff]
        %v467 = vld [vmem:[%s206 + $0x198] sm:$0xff]
        %v468 = vld [vmem:[%s206 + $0x1a0] sm:$0xff]
        %v469 = vld [vmem:[%s206 + $0x1a8] sm:$0xff]
        %v470 = vld [vmem:[%s206 + $0x1b0] sm:$0xff]
        %v471 = vld [vmem:[%s206 + $0x1b8] sm:$0xff]
        %v472 = vld [vmem:[%s206 + $0x1c0] sm:$0xff]
        %v473 = vld [vmem:[%s206 + $0x1c8] sm:$0xff]
        %v474 = vld [vmem:[%s206 + $0x1d0] sm:$0xff]
        %v475 = vld [vmem:[%s206 + $0x1d8] sm:$0xff]
        %v476 = vld [vmem:[%s206 + $0x1e0] sm:$0xff]
        %v477 = vld [vmem:[%s206 + $0x1e8] sm:$0xff]
        %v478 = vld [vmem:[%s206 + $0x1f0] sm:$0xff]
        %v479 = vld [vmem:[%s206 + $0x1f8] sm:$0xff]
        %s480 = scalar_lea.vmem [#allocation2], 176
        %481 = vst.msk [vmem:[%s480 + $0x1] sm:$0xff] %vm214, %v416
        %482 = vst.msk [vmem:[%s480 + $0x11] sm:$0xff] %vm214, %v417
        %483 = vst.msk [vmem:[%s480 + $0x21] sm:$0xff] %vm214, %v418
        %484 = vst.msk [vmem:[%s480 + $0x31] sm:$0xff] %vm214, %v419
        %485 = vst.msk [vmem:[%s480 + $0x41] sm:$0xff] %vm214, %v420
        %486 = vst.msk [vmem:[%s480 + $0x51] sm:$0xff] %vm214, %v421
        %487 = vst.msk [vmem:[%s480 + $0x61] sm:$0xff] %vm214, %v422
        %488 = vst.msk [vmem:[%s480 + $0x71] sm:$0xff] %vm214, %v423
        %489 = vst.msk [vmem:[%s480 + $0xa1] sm:$0xff] %vm214, %v424
        %490 = vst.msk [vmem:[%s480 + $0xb1] sm:$0xff] %vm214, %v425
        %491 = vst.msk [vmem:[%s480 + $0xc1] sm:$0xff] %vm214, %v426
        %492 = vst.msk [vmem:[%s480 + $0xd1] sm:$0xff] %vm214, %v427
        %493 = vst.msk [vmem:[%s480 + $0xe1] sm:$0xff] %vm214, %v428
        %494 = vst.msk [vmem:[%s480 + $0xf1] sm:$0xff] %vm214, %v429
        %495 = vst.msk [vmem:[%s480 + $0x101] sm:$0xff] %vm214, %v430
        %496 = vst.msk [vmem:[%s480 + $0x111] sm:$0xff] %vm214, %v431
        %497 = vst.msk [vmem:[%s480 + $0x141] sm:$0xff] %vm214, %v432
        %498 = vst.msk [vmem:[%s480 + $0x151] sm:$0xff] %vm214, %v433
        %499 = vst.msk [vmem:[%s480 + $0x161] sm:$0xff] %vm214, %v434
        %500 = vst.msk [vmem:[%s480 + $0x171] sm:$0xff] %vm214, %v435
        %501 = vst.msk [vmem:[%s480 + $0x181] sm:$0xff] %vm214, %v436
        %502 = vst.msk [vmem:[%s480 + $0x191] sm:$0xff] %vm214, %v437
        %503 = vst.msk [vmem:[%s480 + $0x1a1] sm:$0xff] %vm214, %v438
        %504 = vst.msk [vmem:[%s480 + $0x1b1] sm:$0xff] %vm214, %v439
        %505 = vst.msk [vmem:[%s480 + $0x1e1] sm:$0xff] %vm214, %v440
        %506 = vst.msk [vmem:[%s480 + $0x1f1] sm:$0xff] %vm214, %v441
        %507 = vst.msk [vmem:[%s480 + $0x201] sm:$0xff] %vm214, %v442
        %508 = vst.msk [vmem:[%s480 + $0x211] sm:$0xff] %vm214, %v443
        %509 = vst.msk [vmem:[%s480 + $0x221] sm:$0xff] %vm214, %v444
        %510 = vst.msk [vmem:[%s480 + $0x231] sm:$0xff] %vm214, %v445
        %511 = vst.msk [vmem:[%s480 + $0x241] sm:$0xff] %vm214, %v446
        %512 = vst.msk [vmem:[%s480 + $0x251] sm:$0xff] %vm214, %v447
        %513 = vst.msk [vmem:[%s480 + $0x281] sm:$0xff] %vm214, %v448
        %514 = vst.msk [vmem:[%s480 + $0x291] sm:$0xff] %vm214, %v449
        %515 = vst.msk [vmem:[%s480 + $0x2a1] sm:$0xff] %vm214, %v450
        %516 = vst.msk [vmem:[%s480 + $0x2b1] sm:$0xff] %vm214, %v451
        %517 = vst.msk [vmem:[%s480 + $0x2c1] sm:$0xff] %vm214, %v452
        %518 = vst.msk [vmem:[%s480 + $0x2d1] sm:$0xff] %vm214, %v453
        %519 = vst.msk [vmem:[%s480 + $0x2e1] sm:$0xff] %vm214, %v454
        %520 = vst.msk [vmem:[%s480 + $0x2f1] sm:$0xff] %vm214, %v455
        %521 = vst.msk [vmem:[%s480 + $0x321] sm:$0xff] %vm214, %v456
        %522 = vst.msk [vmem:[%s480 + $0x331] sm:$0xff] %vm214, %v457
        %523 = vst.msk [vmem:[%s480 + $0x341] sm:$0xff] %vm214, %v458
        %524 = vst.msk [vmem:[%s480 + $0x351] sm:$0xff] %vm214, %v459
        %525 = vst.msk [vmem:[%s480 + $0x361] sm:$0xff] %vm214, %v460
        %526 = vst.msk [vmem:[%s480 + $0x371] sm:$0xff] %vm214, %v461
        %527 = vst.msk [vmem:[%s480 + $0x381] sm:$0xff] %vm214, %v462
        %528 = vst.msk [vmem:[%s480 + $0x391] sm:$0xff] %vm214, %v463
        %529 = vst.msk [vmem:[%s480 + $0x3c1] sm:$0xff] %vm214, %v464
        %530 = vst.msk [vmem:[%s480 + $0x3d1] sm:$0xff] %vm214, %v465
        %531 = vst.msk [vmem:[%s480 + $0x3e1] sm:$0xff] %vm214, %v466
        %532 = vst.msk [vmem:[%s480 + $0x3f1] sm:$0xff] %vm214, %v467
        %533 = vst.msk [vmem:[%s480 + $0x401] sm:$0xff] %vm214, %v468
        %534 = vst.msk [vmem:[%s480 + $0x411] sm:$0xff] %vm214, %v469
        %535 = vst.msk [vmem:[%s480 + $0x421] sm:$0xff] %vm214, %v470
        %536 = vst.msk [vmem:[%s480 + $0x431] sm:$0xff] %vm214, %v471
        %537 = vst.msk [vmem:[%s480 + $0x461] sm:$0xff] %vm214, %v472
        %538 = vst.msk [vmem:[%s480 + $0x471] sm:$0xff] %vm214, %v473
        %539 = vst.msk [vmem:[%s480 + $0x481] sm:$0xff] %vm214, %v474
        %540 = vst.msk [vmem:[%s480 + $0x491] sm:$0xff] %vm214, %v475
        %541 = vst.msk [vmem:[%s480 + $0x4a1] sm:$0xff] %vm214, %v476
        %542 = vst.msk [vmem:[%s480 + $0x4b1] sm:$0xff] %vm214, %v477
        %543 = vst.msk [vmem:[%s480 + $0x4c1] sm:$0xff] %vm214, %v478
        %544 = vst.msk [vmem:[%s480 + $0x4d1] sm:$0xff] %vm214, %v479
        %v545 = vld [vmem:[#allocation2] sm:$0xff]
        %v546 = vld [vmem:[#allocation2 + $0x10] sm:$0xff]
        %v547 = vld [vmem:[#allocation2 + $0x20] sm:$0xff]
        %v548 = vld [vmem:[#allocation2 + $0x30] sm:$0xff]
        %v549 = vld [vmem:[#allocation2 + $0x40] sm:$0xff]
        %v550 = vld [vmem:[#allocation2 + $0x50] sm:$0xff]
        %v551 = vld [vmem:[#allocation2 + $0x60] sm:$0xff]
        %v552 = vld [vmem:[#allocation2 + $0x70] sm:$0xff]
        %v553 = vld [vmem:[#allocation2 + $0xa0] sm:$0xff]
        %v554 = vld [vmem:[#allocation2 + $0xb0] sm:$0xff]
        %v555 = vld [vmem:[#allocation2 + $0xc0] sm:$0xff]
        %v556 = vld [vmem:[#allocation2 + $0xd0] sm:$0xff]
        %v557 = vld [vmem:[#allocation2 + $0xe0] sm:$0xff]
        %v558 = vld [vmem:[#allocation2 + $0xf0] sm:$0xff]
        %v559 = vld [vmem:[#allocation2 + $0x100] sm:$0xff]
        %v560 = vld [vmem:[#allocation2 + $0x110] sm:$0xff]
        %v561 = vld [vmem:[#allocation2 + $0x140] sm:$0xff]
        %v562 = vld [vmem:[#allocation2 + $0x150] sm:$0xff]
        %v563 = vld [vmem:[#allocation2 + $0x160] sm:$0xff]
        %v564 = vld [vmem:[#allocation2 + $0x170] sm:$0xff]
        %v565 = vld [vmem:[#allocation2 + $0x180] sm:$0xff]
        %v566 = vld [vmem:[#allocation2 + $0x190] sm:$0xff]
        %v567 = vld [vmem:[#allocation2 + $0x1a0] sm:$0xff]
        %v568 = vld [vmem:[#allocation2 + $0x1b0] sm:$0xff]
        %v569 = vld [vmem:[#allocation2 + $0x1e0] sm:$0xff]
        %v570 = vld [vmem:[#allocation2 + $0x1f0] sm:$0xff]
        %v571 = vld [vmem:[#allocation2 + $0x200] sm:$0xff]
        %v572 = vld [vmem:[#allocation2 + $0x210] sm:$0xff]
        %v573 = vld [vmem:[#allocation2 + $0x220] sm:$0xff]
        %v574 = vld [vmem:[#allocation2 + $0x230] sm:$0xff]
        %v575 = vld [vmem:[#allocation2 + $0x240] sm:$0xff]
        %v576 = vld [vmem:[#allocation2 + $0x250] sm:$0xff]
        %v577 = vld [vmem:[#allocation2 + $0x280] sm:$0xff]
        %v578 = vld [vmem:[#allocation2 + $0x290] sm:$0xff]
        %v579 = vld [vmem:[#allocation2 + $0x2a0] sm:$0xff]
        %v580 = vld [vmem:[#allocation2 + $0x2b0] sm:$0xff]
        %v581 = vld [vmem:[#allocation2 + $0x2c0] sm:$0xff]
        %v582 = vld [vmem:[#allocation2 + $0x2d0] sm:$0xff]
        %v583 = vld [vmem:[#allocation2 + $0x2e0] sm:$0xff]
        %v584 = vld [vmem:[#allocation2 + $0x2f0] sm:$0xff]
        %v585 = vld [vmem:[#allocation2 + $0x320] sm:$0xff]
        %v586 = vld [vmem:[#allocation2 + $0x330] sm:$0xff]
        %v587 = vld [vmem:[#allocation2 + $0x340] sm:$0xff]
        %v588 = vld [vmem:[#allocation2 + $0x350] sm:$0xff]
        %v589 = vld [vmem:[#allocation2 + $0x360] sm:$0xff]
        %v590 = vld [vmem:[#allocation2 + $0x370] sm:$0xff]
        %v591 = vld [vmem:[#allocation2 + $0x380] sm:$0xff]
        %v592 = vld [vmem:[#allocation2 + $0x390] sm:$0xff]
        %v593 = vld [vmem:[#allocation2 + $0x3c0] sm:$0xff]
        %v594 = vld [vmem:[#allocation2 + $0x3d0] sm:$0xff]
        %v595 = vld [vmem:[#allocation2 + $0x3e0] sm:$0xff]
        %v596 = vld [vmem:[#allocation2 + $0x3f0] sm:$0xff]
        %v597 = vld [vmem:[#allocation2 + $0x400] sm:$0xff]
        %v598 = vld [vmem:[#allocation2 + $0x410] sm:$0xff]
        %v599 = vld [vmem:[#allocation2 + $0x420] sm:$0xff]
        %v600 = vld [vmem:[#allocation2 + $0x430] sm:$0xff]
        %v601 = vld [vmem:[#allocation2 + $0x460] sm:$0xff]
        %v602 = vld [vmem:[#allocation2 + $0x470] sm:$0xff]
        %v603 = vld [vmem:[#allocation2 + $0x480] sm:$0xff]
        %v604 = vld [vmem:[#allocation2 + $0x490] sm:$0xff]
        %v605 = vld [vmem:[#allocation2 + $0x4a0] sm:$0xff]
        %v606 = vld [vmem:[#allocation2 + $0x4b0] sm:$0xff]
        %v607 = vld [vmem:[#allocation2 + $0x4c0] sm:$0xff]
        %v608 = vld [vmem:[#allocation2 + $0x4d0] sm:$0xff]
        %v609 = vld [vmem:[#allocation2 + $0x1] sm:$0xff]
        %v610 = vld [vmem:[#allocation2 + $0x11] sm:$0xff]
        %v611 = vld [vmem:[#allocation2 + $0x21] sm:$0xff]
        %v612 = vld [vmem:[#allocation2 + $0x31] sm:$0xff]
        %v613 = vld [vmem:[#allocation2 + $0x41] sm:$0xff]
        %v614 = vld [vmem:[#allocation2 + $0x51] sm:$0xff]
        %v615 = vld [vmem:[#allocation2 + $0x61] sm:$0xff]
        %v616 = vld [vmem:[#allocation2 + $0x71] sm:$0xff]
        %v617 = vld [vmem:[#allocation2 + $0xa1] sm:$0xff]
        %v618 = vld [vmem:[#allocation2 + $0xb1] sm:$0xff]
        %v619 = vld [vmem:[#allocation2 + $0xc1] sm:$0xff]
        %v620 = vld [vmem:[#allocation2 + $0xd1] sm:$0xff]
        %v621 = vld [vmem:[#allocation2 + $0xe1] sm:$0xff]
        %v622 = vld [vmem:[#allocation2 + $0xf1] sm:$0xff]
        %v623 = vld [vmem:[#allocation2 + $0x101] sm:$0xff]
        %v624 = vld [vmem:[#allocation2 + $0x111] sm:$0xff]
        %v625 = vld [vmem:[#allocation2 + $0x141] sm:$0xff]
        %v626 = vld [vmem:[#allocation2 + $0x151] sm:$0xff]
        %v627 = vld [vmem:[#allocation2 + $0x161] sm:$0xff]
        %v628 = vld [vmem:[#allocation2 + $0x171] sm:$0xff]
        %v629 = vld [vmem:[#allocation2 + $0x181] sm:$0xff]
        %v630 = vld [vmem:[#allocation2 + $0x191] sm:$0xff]
        %v631 = vld [vmem:[#allocation2 + $0x1a1] sm:$0xff]
        %v632 = vld [vmem:[#allocation2 + $0x1b1] sm:$0xff]
        %v633 = vld [vmem:[#allocation2 + $0x1e1] sm:$0xff]
        %v634 = vld [vmem:[#allocation2 + $0x1f1] sm:$0xff]
        %v635 = vld [vmem:[#allocation2 + $0x201] sm:$0xff]
        %v636 = vld [vmem:[#allocation2 + $0x211] sm:$0xff]
        %v637 = vld [vmem:[#allocation2 + $0x221] sm:$0xff]
        %v638 = vld [vmem:[#allocation2 + $0x231] sm:$0xff]
        %v639 = vld [vmem:[#allocation2 + $0x241] sm:$0xff]
        %v640 = vld [vmem:[#allocation2 + $0x251] sm:$0xff]
        %v641 = vld [vmem:[#allocation2 + $0x281] sm:$0xff]
        %v642 = vld [vmem:[#allocation2 + $0x291] sm:$0xff]
        %v643 = vld [vmem:[#allocation2 + $0x2a1] sm:$0xff]
        %v644 = vld [vmem:[#allocation2 + $0x2b1] sm:$0xff]
        %v645 = vld [vmem:[#allocation2 + $0x2c1] sm:$0xff]
        %v646 = vld [vmem:[#allocation2 + $0x2d1] sm:$0xff]
        %v647 = vld [vmem:[#allocation2 + $0x2e1] sm:$0xff]
        %v648 = vld [vmem:[#allocation2 + $0x2f1] sm:$0xff]
        %v649 = vld [vmem:[#allocation2 + $0x321] sm:$0xff]
        %v650 = vld [vmem:[#allocation2 + $0x331] sm:$0xff]
        %v651 = vld [vmem:[#allocation2 + $0x341] sm:$0xff]
        %v652 = vld [vmem:[#allocation2 + $0x351] sm:$0xff]
        %v653 = vld [vmem:[#allocation2 + $0x361] sm:$0xff]
        %v654 = vld [vmem:[#allocation2 + $0x371] sm:$0xff]
        %v655 = vld [vmem:[#allocation2 + $0x381] sm:$0xff]
        %v656 = vld [vmem:[#allocation2 + $0x391] sm:$0xff]
        %v657 = vld [vmem:[#allocation2 + $0x3c1] sm:$0xff]
        %v658 = vld [vmem:[#allocation2 + $0x3d1] sm:$0xff]
        %v659 = vld [vmem:[#allocation2 + $0x3e1] sm:$0xff]
        %v660 = vld [vmem:[#allocation2 + $0x3f1] sm:$0xff]
        %v661 = vld [vmem:[#allocation2 + $0x401] sm:$0xff]
        %v662 = vld [vmem:[#allocation2 + $0x411] sm:$0xff]
        %v663 = vld [vmem:[#allocation2 + $0x421] sm:$0xff]
        %v664 = vld [vmem:[#allocation2 + $0x431] sm:$0xff]
        %v665 = vld [vmem:[#allocation2 + $0x461] sm:$0xff]
        %v666 = vld [vmem:[#allocation2 + $0x471] sm:$0xff]
        %v667 = vld [vmem:[#allocation2 + $0x481] sm:$0xff]
        %v668 = vld [vmem:[#allocation2 + $0x491] sm:$0xff]
        %v669 = vld [vmem:[#allocation2 + $0x4a1] sm:$0xff]
        %v670 = vld [vmem:[#allocation2 + $0x4b1] sm:$0xff]
        %v671 = vld [vmem:[#allocation2 + $0x4c1] sm:$0xff]
        %v672 = vld [vmem:[#allocation2 + $0x4d1] sm:$0xff]
        %v673 = vld [vmem:[#allocation2 + $0x2] sm:$0xff]
        %v674 = vld [vmem:[#allocation2 + $0x12] sm:$0xff]
        %v675 = vld [vmem:[#allocation2 + $0x22] sm:$0xff]
        %v676 = vld [vmem:[#allocation2 + $0x32] sm:$0xff]
        %v677 = vld [vmem:[#allocation2 + $0x42] sm:$0xff]
        %v678 = vld [vmem:[#allocation2 + $0x52] sm:$0xff]
        %v679 = vld [vmem:[#allocation2 + $0x62] sm:$0xff]
        %v680 = vld [vmem:[#allocation2 + $0x72] sm:$0xff]
        %v681 = vld [vmem:[#allocation2 + $0xa2] sm:$0xff]
        %v682 = vld [vmem:[#allocation2 + $0xb2] sm:$0xff]
        %v683 = vld [vmem:[#allocation2 + $0xc2] sm:$0xff]
        %v684 = vld [vmem:[#allocation2 + $0xd2] sm:$0xff]
        %v685 = vld [vmem:[#allocation2 + $0xe2] sm:$0xff]
        %v686 = vld [vmem:[#allocation2 + $0xf2] sm:$0xff]
        %v687 = vld [vmem:[#allocation2 + $0x102] sm:$0xff]
        %v688 = vld [vmem:[#allocation2 + $0x112] sm:$0xff]
        %v689 = vld [vmem:[#allocation2 + $0x142] sm:$0xff]
        %v690 = vld [vmem:[#allocation2 + $0x152] sm:$0xff]
        %v691 = vld [vmem:[#allocation2 + $0x162] sm:$0xff]
        %v692 = vld [vmem:[#allocation2 + $0x172] sm:$0xff]
        %v693 = vld [vmem:[#allocation2 + $0x182] sm:$0xff]
        %v694 = vld [vmem:[#allocation2 + $0x192] sm:$0xff]
        %v695 = vld [vmem:[#allocation2 + $0x1a2] sm:$0xff]
        %v696 = vld [vmem:[#allocation2 + $0x1b2] sm:$0xff]
        %v697 = vld [vmem:[#allocation2 + $0x1e2] sm:$0xff]
        %v698 = vld [vmem:[#allocation2 + $0x1f2] sm:$0xff]
        %v699 = vld [vmem:[#allocation2 + $0x202] sm:$0xff]
        %v700 = vld [vmem:[#allocation2 + $0x212] sm:$0xff]
        %v701 = vld [vmem:[#allocation2 + $0x222] sm:$0xff]
        %v702 = vld [vmem:[#allocation2 + $0x232] sm:$0xff]
        %v703 = vld [vmem:[#allocation2 + $0x242] sm:$0xff]
        %v704 = vld [vmem:[#allocation2 + $0x252] sm:$0xff]
        %v705 = vld [vmem:[#allocation2 + $0x282] sm:$0xff]
        %v706 = vld [vmem:[#allocation2 + $0x292] sm:$0xff]
        %v707 = vld [vmem:[#allocation2 + $0x2a2] sm:$0xff]
        %v708 = vld [vmem:[#allocation2 + $0x2b2] sm:$0xff]
        %v709 = vld [vmem:[#allocation2 + $0x2c2] sm:$0xff]
        %v710 = vld [vmem:[#allocation2 + $0x2d2] sm:$0xff]
        %v711 = vld [vmem:[#allocation2 + $0x2e2] sm:$0xff]
        %v712 = vld [vmem:[#allocation2 + $0x2f2] sm:$0xff]
        %v713 = vld [vmem:[#allocation2 + $0x322] sm:$0xff]
        %v714 = vld [vmem:[#allocation2 + $0x332] sm:$0xff]
        %v715 = vld [vmem:[#allocation2 + $0x342] sm:$0xff]
        %v716 = vld [vmem:[#allocation2 + $0x352] sm:$0xff]
        %v717 = vld [vmem:[#allocation2 + $0x362] sm:$0xff]
        %v718 = vld [vmem:[#allocation2 + $0x372] sm:$0xff]
        %v719 = vld [vmem:[#allocation2 + $0x382] sm:$0xff]
        %v720 = vld [vmem:[#allocation2 + $0x392] sm:$0xff]
        %v721 = vld [vmem:[#allocation2 + $0x3c2] sm:$0xff]
        %v722 = vld [vmem:[#allocation2 + $0x3d2] sm:$0xff]
        %v723 = vld [vmem:[#allocation2 + $0x3e2] sm:$0xff]
        %v724 = vld [vmem:[#allocation2 + $0x3f2] sm:$0xff]
        %v725 = vld [vmem:[#allocation2 + $0x402] sm:$0xff]
        %v726 = vld [vmem:[#allocation2 + $0x412] sm:$0xff]
        %v727 = vld [vmem:[#allocation2 + $0x422] sm:$0xff]
        %v728 = vld [vmem:[#allocation2 + $0x432] sm:$0xff]
        %v729 = vld [vmem:[#allocation2 + $0x462] sm:$0xff]
        %v730 = vld [vmem:[#allocation2 + $0x472] sm:$0xff]
        %v731 = vld [vmem:[#allocation2 + $0x482] sm:$0xff]
        %v732 = vld [vmem:[#allocation2 + $0x492] sm:$0xff]
        %v733 = vld [vmem:[#allocation2 + $0x4a2] sm:$0xff]
        %v734 = vld [vmem:[#allocation2 + $0x4b2] sm:$0xff]
        %v735 = vld [vmem:[#allocation2 + $0x4c2] sm:$0xff]
        %v736 = vld [vmem:[#allocation2 + $0x4d2] sm:$0xff]
        %s737 = scalar_lea.vmem [#allocation2], 16
        %v738 = vld [vmem:[%s737] sm:$0xff]
        %v739 = vld [vmem:[%s737 + $0x10] sm:$0xff]
        %v740 = vld [vmem:[%s737 + $0x20] sm:$0xff]
        %v741 = vld [vmem:[%s737 + $0x30] sm:$0xff]
        %v742 = vld [vmem:[%s737 + $0x40] sm:$0xff]
        %v743 = vld [vmem:[%s737 + $0x50] sm:$0xff]
        %v744 = vld [vmem:[%s737 + $0x60] sm:$0xff]
        %v745 = vld [vmem:[%s737 + $0x70] sm:$0xff]
        %v746 = vld [vmem:[%s737 + $0xa0] sm:$0xff]
        %v747 = vld [vmem:[%s737 + $0xb0] sm:$0xff]
        %v748 = vld [vmem:[%s737 + $0xc0] sm:$0xff]
        %v749 = vld [vmem:[%s737 + $0xd0] sm:$0xff]
        %v750 = vld [vmem:[%s737 + $0xe0] sm:$0xff]
        %v751 = vld [vmem:[%s737 + $0xf0] sm:$0xff]
        %v752 = vld [vmem:[%s737 + $0x100] sm:$0xff]
        %v753 = vld [vmem:[%s737 + $0x110] sm:$0xff]
        %v754 = vld [vmem:[%s737 + $0x140] sm:$0xff]
        %v755 = vld [vmem:[%s737 + $0x150] sm:$0xff]
        %v756 = vld [vmem:[%s737 + $0x160] sm:$0xff]
        %v757 = vld [vmem:[%s737 + $0x170] sm:$0xff]
        %v758 = vld [vmem:[%s737 + $0x180] sm:$0xff]
        %v759 = vld [vmem:[%s737 + $0x190] sm:$0xff]
        %v760 = vld [vmem:[%s737 + $0x1a0] sm:$0xff]
        %v761 = vld [vmem:[%s737 + $0x1b0] sm:$0xff]
        %v762 = vld [vmem:[%s737 + $0x1e0] sm:$0xff]
        %v763 = vld [vmem:[%s737 + $0x1f0] sm:$0xff]
        %v764 = vld [vmem:[%s737 + $0x200] sm:$0xff]
        %v765 = vld [vmem:[%s737 + $0x210] sm:$0xff]
        %v766 = vld [vmem:[%s737 + $0x220] sm:$0xff]
        %v767 = vld [vmem:[%s737 + $0x230] sm:$0xff]
        %v768 = vld [vmem:[%s737 + $0x240] sm:$0xff]
        %v769 = vld [vmem:[%s737 + $0x250] sm:$0xff]
        %v770 = vld [vmem:[%s737 + $0x280] sm:$0xff]
        %v771 = vld [vmem:[%s737 + $0x290] sm:$0xff]
        %v772 = vld [vmem:[%s737 + $0x2a0] sm:$0xff]
        %v773 = vld [vmem:[%s737 + $0x2b0] sm:$0xff]
        %v774 = vld [vmem:[%s737 + $0x2c0] sm:$0xff]
        %v775 = vld [vmem:[%s737 + $0x2d0] sm:$0xff]
        %v776 = vld [vmem:[%s737 + $0x2e0] sm:$0xff]
        %v777 = vld [vmem:[%s737 + $0x2f0] sm:$0xff]
        %v778 = vld [vmem:[%s737 + $0x320] sm:$0xff]
        %v779 = vld [vmem:[%s737 + $0x330] sm:$0xff]
        %v780 = vld [vmem:[%s737 + $0x340] sm:$0xff]
        %v781 = vld [vmem:[%s737 + $0x350] sm:$0xff]
        %v782 = vld [vmem:[%s737 + $0x360] sm:$0xff]
        %v783 = vld [vmem:[%s737 + $0x370] sm:$0xff]
        %v784 = vld [vmem:[%s737 + $0x380] sm:$0xff]
        %v785 = vld [vmem:[%s737 + $0x390] sm:$0xff]
        %v786 = vld [vmem:[%s737 + $0x3c0] sm:$0xff]
        %v787 = vld [vmem:[%s737 + $0x3d0] sm:$0xff]
        %v788 = vld [vmem:[%s737 + $0x3e0] sm:$0xff]
        %v789 = vld [vmem:[%s737 + $0x3f0] sm:$0xff]
        %v790 = vld [vmem:[%s737 + $0x400] sm:$0xff]
        %v791 = vld [vmem:[%s737 + $0x410] sm:$0xff]
        %v792 = vld [vmem:[%s737 + $0x420] sm:$0xff]
        %v793 = vld [vmem:[%s737 + $0x430] sm:$0xff]
        %v794 = vld [vmem:[%s737 + $0x460] sm:$0xff]
        %v795 = vld [vmem:[%s737 + $0x470] sm:$0xff]
        %v796 = vld [vmem:[%s737 + $0x480] sm:$0xff]
        %v797 = vld [vmem:[%s737 + $0x490] sm:$0xff]
        %v798 = vld [vmem:[%s737 + $0x4a0] sm:$0xff]
        %v799 = vld [vmem:[%s737 + $0x4b0] sm:$0xff]
        %v800 = vld [vmem:[%s737 + $0x4c0] sm:$0xff]
        %v801 = vld [vmem:[%s737 + $0x4d0] sm:$0xff]
        %v802 = vld [vmem:[%s737 + $0x1] sm:$0xff]
        %v803 = vld [vmem:[%s737 + $0x11] sm:$0xff]
        %v804 = vld [vmem:[%s737 + $0x21] sm:$0xff]
        %v805 = vld [vmem:[%s737 + $0x31] sm:$0xff]
        %v806 = vld [vmem:[%s737 + $0x41] sm:$0xff]
        %v807 = vld [vmem:[%s737 + $0x51] sm:$0xff]
        %v808 = vld [vmem:[%s737 + $0x61] sm:$0xff]
        %v809 = vld [vmem:[%s737 + $0x71] sm:$0xff]
        %v810 = vld [vmem:[%s737 + $0xa1] sm:$0xff]
        %v811 = vld [vmem:[%s737 + $0xb1] sm:$0xff]
        %v812 = vld [vmem:[%s737 + $0xc1] sm:$0xff]
        %v813 = vld [vmem:[%s737 + $0xd1] sm:$0xff]
        %v814 = vld [vmem:[%s737 + $0xe1] sm:$0xff]
        %v815 = vld [vmem:[%s737 + $0xf1] sm:$0xff]
        %v816 = vld [vmem:[%s737 + $0x101] sm:$0xff]
        %v817 = vld [vmem:[%s737 + $0x111] sm:$0xff]
        %v818 = vld [vmem:[%s737 + $0x141] sm:$0xff]
        %v819 = vld [vmem:[%s737 + $0x151] sm:$0xff]
        %v820 = vld [vmem:[%s737 + $0x161] sm:$0xff]
        %v821 = vld [vmem:[%s737 + $0x171] sm:$0xff]
        %v822 = vld [vmem:[%s737 + $0x181] sm:$0xff]
        %v823 = vld [vmem:[%s737 + $0x191] sm:$0xff]
        %v824 = vld [vmem:[%s737 + $0x1a1] sm:$0xff]
        %v825 = vld [vmem:[%s737 + $0x1b1] sm:$0xff]
        %v826 = vld [vmem:[%s737 + $0x1e1] sm:$0xff]
        %v827 = vld [vmem:[%s737 + $0x1f1] sm:$0xff]
        %v828 = vld [vmem:[%s737 + $0x201] sm:$0xff]
        %v829 = vld [vmem:[%s737 + $0x211] sm:$0xff]
        %v830 = vld [vmem:[%s737 + $0x221] sm:$0xff]
        %v831 = vld [vmem:[%s737 + $0x231] sm:$0xff]
        %v832 = vld [vmem:[%s737 + $0x241] sm:$0xff]
        %v833 = vld [vmem:[%s737 + $0x251] sm:$0xff]
        %v834 = vld [vmem:[%s737 + $0x281] sm:$0xff]
        %v835 = vld [vmem:[%s737 + $0x291] sm:$0xff]
        %v836 = vld [vmem:[%s737 + $0x2a1] sm:$0xff]
        %v837 = vld [vmem:[%s737 + $0x2b1] sm:$0xff]
        %v838 = vld [vmem:[%s737 + $0x2c1] sm:$0xff]
        %v839 = vld [vmem:[%s737 + $0x2d1] sm:$0xff]
        %v840 = vld [vmem:[%s737 + $0x2e1] sm:$0xff]
        %v841 = vld [vmem:[%s737 + $0x2f1] sm:$0xff]
        %v842 = vld [vmem:[%s737 + $0x321] sm:$0xff]
        %v843 = vld [vmem:[%s737 + $0x331] sm:$0xff]
        %v844 = vld [vmem:[%s737 + $0x341] sm:$0xff]
        %v845 = vld [vmem:[%s737 + $0x351] sm:$0xff]
        %v846 = vld [vmem:[%s737 + $0x361] sm:$0xff]
        %v847 = vld [vmem:[%s737 + $0x371] sm:$0xff]
        %v848 = vld [vmem:[%s737 + $0x381] sm:$0xff]
        %v849 = vld [vmem:[%s737 + $0x391] sm:$0xff]
        %v850 = vld [vmem:[%s737 + $0x3c1] sm:$0xff]
        %v851 = vld [vmem:[%s737 + $0x3d1] sm:$0xff]
        %v852 = vld [vmem:[%s737 + $0x3e1] sm:$0xff]
        %v853 = vld [vmem:[%s737 + $0x3f1] sm:$0xff]
        %v854 = vld [vmem:[%s737 + $0x401] sm:$0xff]
        %v855 = vld [vmem:[%s737 + $0x411] sm:$0xff]
        %v856 = vld [vmem:[%s737 + $0x421] sm:$0xff]
        %v857 = vld [vmem:[%s737 + $0x431] sm:$0xff]
        %v858 = vld [vmem:[%s737 + $0x461] sm:$0xff]
        %v859 = vld [vmem:[%s737 + $0x471] sm:$0xff]
        %v860 = vld [vmem:[%s737 + $0x481] sm:$0xff]
        %v861 = vld [vmem:[%s737 + $0x491] sm:$0xff]
        %v862 = vld [vmem:[%s737 + $0x4a1] sm:$0xff]
        %v863 = vld [vmem:[%s737 + $0x4b1] sm:$0xff]
        %v864 = vld [vmem:[%s737 + $0x4c1] sm:$0xff]
        %v865 = vld [vmem:[%s737 + $0x4d1] sm:$0xff]
        %v866 = vld [vmem:[%s737 + $0x2] sm:$0xff]
        %v867 = vld [vmem:[%s737 + $0x12] sm:$0xff]
        %v868 = vld [vmem:[%s737 + $0x22] sm:$0xff]
        %v869 = vld [vmem:[%s737 + $0x32] sm:$0xff]
        %v870 = vld [vmem:[%s737 + $0x42] sm:$0xff]
        %v871 = vld [vmem:[%s737 + $0x52] sm:$0xff]
        %v872 = vld [vmem:[%s737 + $0x62] sm:$0xff]
        %v873 = vld [vmem:[%s737 + $0x72] sm:$0xff]
        %v874 = vld [vmem:[%s737 + $0xa2] sm:$0xff]
        %v875 = vld [vmem:[%s737 + $0xb2] sm:$0xff]
        %v876 = vld [vmem:[%s737 + $0xc2] sm:$0xff]
        %v877 = vld [vmem:[%s737 + $0xd2] sm:$0xff]
        %v878 = vld [vmem:[%s737 + $0xe2] sm:$0xff]
        %v879 = vld [vmem:[%s737 + $0xf2] sm:$0xff]
        %v880 = vld [vmem:[%s737 + $0x102] sm:$0xff]
        %v881 = vld [vmem:[%s737 + $0x112] sm:$0xff]
        %v882 = vld [vmem:[%s737 + $0x142] sm:$0xff]
        %v883 = vld [vmem:[%s737 + $0x152] sm:$0xff]
        %v884 = vld [vmem:[%s737 + $0x162] sm:$0xff]
        %v885 = vld [vmem:[%s737 + $0x172] sm:$0xff]
        %v886 = vld [vmem:[%s737 + $0x182] sm:$0xff]
        %v887 = vld [vmem:[%s737 + $0x192] sm:$0xff]
        %v888 = vld [vmem:[%s737 + $0x1a2] sm:$0xff]
        %v889 = vld [vmem:[%s737 + $0x1b2] sm:$0xff]
        %v890 = vld [vmem:[%s737 + $0x1e2] sm:$0xff]
        %v891 = vld [vmem:[%s737 + $0x1f2] sm:$0xff]
        %v892 = vld [vmem:[%s737 + $0x202] sm:$0xff]
        %v893 = vld [vmem:[%s737 + $0x212] sm:$0xff]
        %v894 = vld [vmem:[%s737 + $0x222] sm:$0xff]
        %v895 = vld [vmem:[%s737 + $0x232] sm:$0xff]
        %v896 = vld [vmem:[%s737 + $0x242] sm:$0xff]
        %v897 = vld [vmem:[%s737 + $0x252] sm:$0xff]
        %v898 = vld [vmem:[%s737 + $0x282] sm:$0xff]
        %v899 = vld [vmem:[%s737 + $0x292] sm:$0xff]
        %v900 = vld [vmem:[%s737 + $0x2a2] sm:$0xff]
        %v901 = vld [vmem:[%s737 + $0x2b2] sm:$0xff]
        %v902 = vld [vmem:[%s737 + $0x2c2] sm:$0xff]
        %v903 = vld [vmem:[%s737 + $0x2d2] sm:$0xff]
        %v904 = vld [vmem:[%s737 + $0x2e2] sm:$0xff]
        %v905 = vld [vmem:[%s737 + $0x2f2] sm:$0xff]
        %v906 = vld [vmem:[%s737 + $0x322] sm:$0xff]
        %v907 = vld [vmem:[%s737 + $0x332] sm:$0xff]
        %v908 = vld [vmem:[%s737 + $0x342] sm:$0xff]
        %v909 = vld [vmem:[%s737 + $0x352] sm:$0xff]
        %v910 = vld [vmem:[%s737 + $0x362] sm:$0xff]
        %v911 = vld [vmem:[%s737 + $0x372] sm:$0xff]
        %v912 = vld [vmem:[%s737 + $0x382] sm:$0xff]
        %v913 = vld [vmem:[%s737 + $0x392] sm:$0xff]
        %v914 = vld [vmem:[%s737 + $0x3c2] sm:$0xff]
        %v915 = vld [vmem:[%s737 + $0x3d2] sm:$0xff]
        %v916 = vld [vmem:[%s737 + $0x3e2] sm:$0xff]
        %v917 = vld [vmem:[%s737 + $0x3f2] sm:$0xff]
        %v918 = vld [vmem:[%s737 + $0x402] sm:$0xff]
        %v919 = vld [vmem:[%s737 + $0x412] sm:$0xff]
        %v920 = vld [vmem:[%s737 + $0x422] sm:$0xff]
        %v921 = vld [vmem:[%s737 + $0x432] sm:$0xff]
        %v922 = vld [vmem:[%s737 + $0x462] sm:$0xff]
        %v923 = vld [vmem:[%s737 + $0x472] sm:$0xff]
        %v924 = vld [vmem:[%s737 + $0x482] sm:$0xff]
        %v925 = vld [vmem:[%s737 + $0x492] sm:$0xff]
        %v926 = vld [vmem:[%s737 + $0x4a2] sm:$0xff]
        %v927 = vld [vmem:[%s737 + $0x4b2] sm:$0xff]
        %v928 = vld [vmem:[%s737 + $0x4c2] sm:$0xff]
        %v929 = vld [vmem:[%s737 + $0x4d2] sm:$0xff]
        %s930 = scalar_lea.vmem [#allocation2], 32
        %v931 = vld [vmem:[%s930] sm:$0xff]
        %v932 = vld [vmem:[%s930 + $0x10] sm:$0xff]
        %v933 = vld [vmem:[%s930 + $0x20] sm:$0xff]
        %v934 = vld [vmem:[%s930 + $0x30] sm:$0xff]
        %v935 = vld [vmem:[%s930 + $0x40] sm:$0xff]
        %v936 = vld [vmem:[%s930 + $0x50] sm:$0xff]
        %v937 = vld [vmem:[%s930 + $0x60] sm:$0xff]
        %v938 = vld [vmem:[%s930 + $0x70] sm:$0xff]
        %v939 = vld [vmem:[%s930 + $0xa0] sm:$0xff]
        %v940 = vld [vmem:[%s930 + $0xb0] sm:$0xff]
        %v941 = vld [vmem:[%s930 + $0xc0] sm:$0xff]
        %v942 = vld [vmem:[%s930 + $0xd0] sm:$0xff]
        %v943 = vld [vmem:[%s930 + $0xe0] sm:$0xff]
        %v944 = vld [vmem:[%s930 + $0xf0] sm:$0xff]
        %v945 = vld [vmem:[%s930 + $0x100] sm:$0xff]
        %v946 = vld [vmem:[%s930 + $0x110] sm:$0xff]
        %v947 = vld [vmem:[%s930 + $0x140] sm:$0xff]
        %v948 = vld [vmem:[%s930 + $0x150] sm:$0xff]
        %v949 = vld [vmem:[%s930 + $0x160] sm:$0xff]
        %v950 = vld [vmem:[%s930 + $0x170] sm:$0xff]
        %v951 = vld [vmem:[%s930 + $0x180] sm:$0xff]
        %v952 = vld [vmem:[%s930 + $0x190] sm:$0xff]
        %v953 = vld [vmem:[%s930 + $0x1a0] sm:$0xff]
        %v954 = vld [vmem:[%s930 + $0x1b0] sm:$0xff]
        %v955 = vld [vmem:[%s930 + $0x1e0] sm:$0xff]
        %v956 = vld [vmem:[%s930 + $0x1f0] sm:$0xff]
        %v957 = vld [vmem:[%s930 + $0x200] sm:$0xff]
        %v958 = vld [vmem:[%s930 + $0x210] sm:$0xff]
        %v959 = vld [vmem:[%s930 + $0x220] sm:$0xff]
        %v960 = vld [vmem:[%s930 + $0x230] sm:$0xff]
        %v961 = vld [vmem:[%s930 + $0x240] sm:$0xff]
        %v962 = vld [vmem:[%s930 + $0x250] sm:$0xff]
        %v963 = vld [vmem:[%s930 + $0x280] sm:$0xff]
        %v964 = vld [vmem:[%s930 + $0x290] sm:$0xff]
        %v965 = vld [vmem:[%s930 + $0x2a0] sm:$0xff]
        %v966 = vld [vmem:[%s930 + $0x2b0] sm:$0xff]
        %v967 = vld [vmem:[%s930 + $0x2c0] sm:$0xff]
        %v968 = vld [vmem:[%s930 + $0x2d0] sm:$0xff]
        %v969 = vld [vmem:[%s930 + $0x2e0] sm:$0xff]
        %v970 = vld [vmem:[%s930 + $0x2f0] sm:$0xff]
        %v971 = vld [vmem:[%s930 + $0x320] sm:$0xff]
        %v972 = vld [vmem:[%s930 + $0x330] sm:$0xff]
        %v973 = vld [vmem:[%s930 + $0x340] sm:$0xff]
        %v974 = vld [vmem:[%s930 + $0x350] sm:$0xff]
        %v975 = vld [vmem:[%s930 + $0x360] sm:$0xff]
        %v976 = vld [vmem:[%s930 + $0x370] sm:$0xff]
        %v977 = vld [vmem:[%s930 + $0x380] sm:$0xff]
        %v978 = vld [vmem:[%s930 + $0x390] sm:$0xff]
        %v979 = vld [vmem:[%s930 + $0x3c0] sm:$0xff]
        %v980 = vld [vmem:[%s930 + $0x3d0] sm:$0xff]
        %v981 = vld [vmem:[%s930 + $0x3e0] sm:$0xff]
        %v982 = vld [vmem:[%s930 + $0x3f0] sm:$0xff]
        %v983 = vld [vmem:[%s930 + $0x400] sm:$0xff]
        %v984 = vld [vmem:[%s930 + $0x410] sm:$0xff]
        %v985 = vld [vmem:[%s930 + $0x420] sm:$0xff]
        %v986 = vld [vmem:[%s930 + $0x430] sm:$0xff]
        %v987 = vld [vmem:[%s930 + $0x460] sm:$0xff]
        %v988 = vld [vmem:[%s930 + $0x470] sm:$0xff]
        %v989 = vld [vmem:[%s930 + $0x480] sm:$0xff]
        %v990 = vld [vmem:[%s930 + $0x490] sm:$0xff]
        %v991 = vld [vmem:[%s930 + $0x4a0] sm:$0xff]
        %v992 = vld [vmem:[%s930 + $0x4b0] sm:$0xff]
        %v993 = vld [vmem:[%s930 + $0x4c0] sm:$0xff]
        %v994 = vld [vmem:[%s930 + $0x4d0] sm:$0xff]
        %v995 = vld [vmem:[%s930 + $0x1] sm:$0xff]
        %v996 = vld [vmem:[%s930 + $0x11] sm:$0xff]
        %v997 = vld [vmem:[%s930 + $0x21] sm:$0xff]
        %v998 = vld [vmem:[%s930 + $0x31] sm:$0xff]
        %v999 = vld [vmem:[%s930 + $0x41] sm:$0xff]
        %v1000 = vld [vmem:[%s930 + $0x51] sm:$0xff]
        %v1001 = vld [vmem:[%s930 + $0x61] sm:$0xff]
        %v1002 = vld [vmem:[%s930 + $0x71] sm:$0xff]
        %v1003 = vld [vmem:[%s930 + $0xa1] sm:$0xff]
        %v1004 = vld [vmem:[%s930 + $0xb1] sm:$0xff]
        %v1005 = vld [vmem:[%s930 + $0xc1] sm:$0xff]
        %v1006 = vld [vmem:[%s930 + $0xd1] sm:$0xff]
        %v1007 = vld [vmem:[%s930 + $0xe1] sm:$0xff]
        %v1008 = vld [vmem:[%s930 + $0xf1] sm:$0xff]
        %v1009 = vld [vmem:[%s930 + $0x101] sm:$0xff]
        %v1010 = vld [vmem:[%s930 + $0x111] sm:$0xff]
        %v1011 = vld [vmem:[%s930 + $0x141] sm:$0xff]
        %v1012 = vld [vmem:[%s930 + $0x151] sm:$0xff]
        %v1013 = vld [vmem:[%s930 + $0x161] sm:$0xff]
        %v1014 = vld [vmem:[%s930 + $0x171] sm:$0xff]
        %v1015 = vld [vmem:[%s930 + $0x181] sm:$0xff]
        %v1016 = vld [vmem:[%s930 + $0x191] sm:$0xff]
        %v1017 = vld [vmem:[%s930 + $0x1a1] sm:$0xff]
        %v1018 = vld [vmem:[%s930 + $0x1b1] sm:$0xff]
        %v1019 = vld [vmem:[%s930 + $0x1e1] sm:$0xff]
        %v1020 = vld [vmem:[%s930 + $0x1f1] sm:$0xff]
        %v1021 = vld [vmem:[%s930 + $0x201] sm:$0xff]
        %v1022 = vld [vmem:[%s930 + $0x211] sm:$0xff]
        %v1023 = vld [vmem:[%s930 + $0x221] sm:$0xff]
        %v1024 = vld [vmem:[%s930 + $0x231] sm:$0xff]
        %v1025 = vld [vmem:[%s930 + $0x241] sm:$0xff]
        %v1026 = vld [vmem:[%s930 + $0x251] sm:$0xff]
        %v1027 = vld [vmem:[%s930 + $0x281] sm:$0xff]
        %v1028 = vld [vmem:[%s930 + $0x291] sm:$0xff]
        %v1029 = vld [vmem:[%s930 + $0x2a1] sm:$0xff]
        %v1030 = vld [vmem:[%s930 + $0x2b1] sm:$0xff]
        %v1031 = vld [vmem:[%s930 + $0x2c1] sm:$0xff]
        %v1032 = vld [vmem:[%s930 + $0x2d1] sm:$0xff]
        %v1033 = vld [vmem:[%s930 + $0x2e1] sm:$0xff]
        %v1034 = vld [vmem:[%s930 + $0x2f1] sm:$0xff]
        %v1035 = vld [vmem:[%s930 + $0x321] sm:$0xff]
        %v1036 = vld [vmem:[%s930 + $0x331] sm:$0xff]
        %v1037 = vld [vmem:[%s930 + $0x341] sm:$0xff]
        %v1038 = vld [vmem:[%s930 + $0x351] sm:$0xff]
        %v1039 = vld [vmem:[%s930 + $0x361] sm:$0xff]
        %v1040 = vld [vmem:[%s930 + $0x371] sm:$0xff]
        %v1041 = vld [vmem:[%s930 + $0x381] sm:$0xff]
        %v1042 = vld [vmem:[%s930 + $0x391] sm:$0xff]
        %v1043 = vld [vmem:[%s930 + $0x3c1] sm:$0xff]
        %v1044 = vld [vmem:[%s930 + $0x3d1] sm:$0xff]
        %v1045 = vld [vmem:[%s930 + $0x3e1] sm:$0xff]
        %v1046 = vld [vmem:[%s930 + $0x3f1] sm:$0xff]
        %v1047 = vld [vmem:[%s930 + $0x401] sm:$0xff]
        %v1048 = vld [vmem:[%s930 + $0x411] sm:$0xff]
        %v1049 = vld [vmem:[%s930 + $0x421] sm:$0xff]
        %v1050 = vld [vmem:[%s930 + $0x431] sm:$0xff]
        %v1051 = vld [vmem:[%s930 + $0x461] sm:$0xff]
        %v1052 = vld [vmem:[%s930 + $0x471] sm:$0xff]
        %v1053 = vld [vmem:[%s930 + $0x481] sm:$0xff]
        %v1054 = vld [vmem:[%s930 + $0x491] sm:$0xff]
        %v1055 = vld [vmem:[%s930 + $0x4a1] sm:$0xff]
        %v1056 = vld [vmem:[%s930 + $0x4b1] sm:$0xff]
        %v1057 = vld [vmem:[%s930 + $0x4c1] sm:$0xff]
        %v1058 = vld [vmem:[%s930 + $0x4d1] sm:$0xff]
        %v1059 = vld [vmem:[%s930 + $0x2] sm:$0xff]
        %v1060 = vld [vmem:[%s930 + $0x12] sm:$0xff]
        %v1061 = vld [vmem:[%s930 + $0x22] sm:$0xff]
        %v1062 = vld [vmem:[%s930 + $0x32] sm:$0xff]
        %v1063 = vld [vmem:[%s930 + $0x42] sm:$0xff]
        %v1064 = vld [vmem:[%s930 + $0x52] sm:$0xff]
        %v1065 = vld [vmem:[%s930 + $0x62] sm:$0xff]
        %v1066 = vld [vmem:[%s930 + $0x72] sm:$0xff]
        %v1067 = vld [vmem:[%s930 + $0xa2] sm:$0xff]
        %v1068 = vld [vmem:[%s930 + $0xb2] sm:$0xff]
        %v1069 = vld [vmem:[%s930 + $0xc2] sm:$0xff]
        %v1070 = vld [vmem:[%s930 + $0xd2] sm:$0xff]
        %v1071 = vld [vmem:[%s930 + $0xe2] sm:$0xff]
        %v1072 = vld [vmem:[%s930 + $0xf2] sm:$0xff]
        %v1073 = vld [vmem:[%s930 + $0x102] sm:$0xff]
        %v1074 = vld [vmem:[%s930 + $0x112] sm:$0xff]
        %v1075 = vld [vmem:[%s930 + $0x142] sm:$0xff]
        %v1076 = vld [vmem:[%s930 + $0x152] sm:$0xff]
        %v1077 = vld [vmem:[%s930 + $0x162] sm:$0xff]
        %v1078 = vld [vmem:[%s930 + $0x172] sm:$0xff]
        %v1079 = vld [vmem:[%s930 + $0x182] sm:$0xff]
        %v1080 = vld [vmem:[%s930 + $0x192] sm:$0xff]
        %v1081 = vld [vmem:[%s930 + $0x1a2] sm:$0xff]
        %v1082 = vld [vmem:[%s930 + $0x1b2] sm:$0xff]
        %v1083 = vld [vmem:[%s930 + $0x1e2] sm:$0xff]
        %v1084 = vld [vmem:[%s930 + $0x1f2] sm:$0xff]
        %v1085 = vld [vmem:[%s930 + $0x202] sm:$0xff]
        %v1086 = vld [vmem:[%s930 + $0x212] sm:$0xff]
        %v1087 = vld [vmem:[%s930 + $0x222] sm:$0xff]
        %v1088 = vld [vmem:[%s930 + $0x232] sm:$0xff]
        %v1089 = vld [vmem:[%s930 + $0x242] sm:$0xff]
        %v1090 = vld [vmem:[%s930 + $0x252] sm:$0xff]
        %v1091 = vld [vmem:[%s930 + $0x282] sm:$0xff]
        %v1092 = vld [vmem:[%s930 + $0x292] sm:$0xff]
        %v1093 = vld [vmem:[%s930 + $0x2a2] sm:$0xff]
        %v1094 = vld [vmem:[%s930 + $0x2b2] sm:$0xff]
        %v1095 = vld [vmem:[%s930 + $0x2c2] sm:$0xff]
        %v1096 = vld [vmem:[%s930 + $0x2d2] sm:$0xff]
        %v1097 = vld [vmem:[%s930 + $0x2e2] sm:$0xff]
        %v1098 = vld [vmem:[%s930 + $0x2f2] sm:$0xff]
        %v1099 = vld [vmem:[%s930 + $0x322] sm:$0xff]
        %v1100 = vld [vmem:[%s930 + $0x332] sm:$0xff]
        %v1101 = vld [vmem:[%s930 + $0x342] sm:$0xff]
        %v1102 = vld [vmem:[%s930 + $0x352] sm:$0xff]
        %v1103 = vld [vmem:[%s930 + $0x362] sm:$0xff]
        %v1104 = vld [vmem:[%s930 + $0x372] sm:$0xff]
        %v1105 = vld [vmem:[%s930 + $0x382] sm:$0xff]
        %v1106 = vld [vmem:[%s930 + $0x392] sm:$0xff]
        %v1107 = vld [vmem:[%s930 + $0x3c2] sm:$0xff]
        %v1108 = vld [vmem:[%s930 + $0x3d2] sm:$0xff]
        %v1109 = vld [vmem:[%s930 + $0x3e2] sm:$0xff]
        %v1110 = vld [vmem:[%s930 + $0x3f2] sm:$0xff]
        %v1111 = vld [vmem:[%s930 + $0x402] sm:$0xff]
        %v1112 = vld [vmem:[%s930 + $0x412] sm:$0xff]
        %v1113 = vld [vmem:[%s930 + $0x422] sm:$0xff]
        %v1114 = vld [vmem:[%s930 + $0x432] sm:$0xff]
        %v1115 = vld [vmem:[%s930 + $0x462] sm:$0xff]
        %v1116 = vld [vmem:[%s930 + $0x472] sm:$0xff]
        %v1117 = vld [vmem:[%s930 + $0x482] sm:$0xff]
        %v1118 = vld [vmem:[%s930 + $0x492] sm:$0xff]
        %v1119 = vld [vmem:[%s930 + $0x4a2] sm:$0xff]
        %v1120 = vld [vmem:[%s930 + $0x4b2] sm:$0xff]
        %v1121 = vld [vmem:[%s930 + $0x4c2] sm:$0xff]
        %v1122 = vld [vmem:[%s930 + $0x4d2] sm:$0xff]
        %s1123 = scalar_lea.vmem [#allocation2], 160
        %v1124 = vld [vmem:[%s1123] sm:$0xff]
        %v1125 = vld [vmem:[%s1123 + $0x10] sm:$0xff]
        %v1126 = vld [vmem:[%s1123 + $0x20] sm:$0xff]
        %v1127 = vld [vmem:[%s1123 + $0x30] sm:$0xff]
        %v1128 = vld [vmem:[%s1123 + $0x40] sm:$0xff]
        %v1129 = vld [vmem:[%s1123 + $0x50] sm:$0xff]
        %v1130 = vld [vmem:[%s1123 + $0x60] sm:$0xff]
        %v1131 = vld [vmem:[%s1123 + $0x70] sm:$0xff]
        %v1132 = vld [vmem:[%s1123 + $0xa0] sm:$0xff]
        %v1133 = vld [vmem:[%s1123 + $0xb0] sm:$0xff]
        %v1134 = vld [vmem:[%s1123 + $0xc0] sm:$0xff]
        %v1135 = vld [vmem:[%s1123 + $0xd0] sm:$0xff]
        %v1136 = vld [vmem:[%s1123 + $0xe0] sm:$0xff]
        %v1137 = vld [vmem:[%s1123 + $0xf0] sm:$0xff]
        %v1138 = vld [vmem:[%s1123 + $0x100] sm:$0xff]
        %v1139 = vld [vmem:[%s1123 + $0x110] sm:$0xff]
        %v1140 = vld [vmem:[%s1123 + $0x140] sm:$0xff]
        %v1141 = vld [vmem:[%s1123 + $0x150] sm:$0xff]
        %v1142 = vld [vmem:[%s1123 + $0x160] sm:$0xff]
        %v1143 = vld [vmem:[%s1123 + $0x170] sm:$0xff]
        %v1144 = vld [vmem:[%s1123 + $0x180] sm:$0xff]
        %v1145 = vld [vmem:[%s1123 + $0x190] sm:$0xff]
        %v1146 = vld [vmem:[%s1123 + $0x1a0] sm:$0xff]
        %v1147 = vld [vmem:[%s1123 + $0x1b0] sm:$0xff]
        %v1148 = vld [vmem:[%s1123 + $0x1e0] sm:$0xff]
        %v1149 = vld [vmem:[%s1123 + $0x1f0] sm:$0xff]
        %v1150 = vld [vmem:[%s1123 + $0x200] sm:$0xff]
        %v1151 = vld [vmem:[%s1123 + $0x210] sm:$0xff]
        %v1152 = vld [vmem:[%s1123 + $0x220] sm:$0xff]
        %v1153 = vld [vmem:[%s1123 + $0x230] sm:$0xff]
        %v1154 = vld [vmem:[%s1123 + $0x240] sm:$0xff]
        %v1155 = vld [vmem:[%s1123 + $0x250] sm:$0xff]
        %v1156 = vld [vmem:[%s1123 + $0x280] sm:$0xff]
        %v1157 = vld [vmem:[%s1123 + $0x290] sm:$0xff]
        %v1158 = vld [vmem:[%s1123 + $0x2a0] sm:$0xff]
        %v1159 = vld [vmem:[%s1123 + $0x2b0] sm:$0xff]
        %v1160 = vld [vmem:[%s1123 + $0x2c0] sm:$0xff]
        %v1161 = vld [vmem:[%s1123 + $0x2d0] sm:$0xff]
        %v1162 = vld [vmem:[%s1123 + $0x2e0] sm:$0xff]
        %v1163 = vld [vmem:[%s1123 + $0x2f0] sm:$0xff]
        %v1164 = vld [vmem:[%s1123 + $0x320] sm:$0xff]
        %v1165 = vld [vmem:[%s1123 + $0x330] sm:$0xff]
        %v1166 = vld [vmem:[%s1123 + $0x340] sm:$0xff]
        %v1167 = vld [vmem:[%s1123 + $0x350] sm:$0xff]
        %v1168 = vld [vmem:[%s1123 + $0x360] sm:$0xff]
        %v1169 = vld [vmem:[%s1123 + $0x370] sm:$0xff]
        %v1170 = vld [vmem:[%s1123 + $0x380] sm:$0xff]
        %v1171 = vld [vmem:[%s1123 + $0x390] sm:$0xff]
        %v1172 = vld [vmem:[%s1123 + $0x3c0] sm:$0xff]
        %v1173 = vld [vmem:[%s1123 + $0x3d0] sm:$0xff]
        %v1174 = vld [vmem:[%s1123 + $0x3e0] sm:$0xff]
        %v1175 = vld [vmem:[%s1123 + $0x3f0] sm:$0xff]
        %v1176 = vld [vmem:[%s1123 + $0x400] sm:$0xff]
        %v1177 = vld [vmem:[%s1123 + $0x410] sm:$0xff]
        %v1178 = vld [vmem:[%s1123 + $0x420] sm:$0xff]
        %v1179 = vld [vmem:[%s1123 + $0x430] sm:$0xff]
        %v1180 = vld [vmem:[%s1123 + $0x460] sm:$0xff]
        %v1181 = vld [vmem:[%s1123 + $0x470] sm:$0xff]
        %v1182 = vld [vmem:[%s1123 + $0x480] sm:$0xff]
        %v1183 = vld [vmem:[%s1123 + $0x490] sm:$0xff]
        %v1184 = vld [vmem:[%s1123 + $0x4a0] sm:$0xff]
        %v1185 = vld [vmem:[%s1123 + $0x4b0] sm:$0xff]
        %v1186 = vld [vmem:[%s1123 + $0x4c0] sm:$0xff]
        %v1187 = vld [vmem:[%s1123 + $0x4d0] sm:$0xff]
        %v1188 = vld [vmem:[%s1123 + $0x1] sm:$0xff]
        %v1189 = vld [vmem:[%s1123 + $0x11] sm:$0xff]
        %v1190 = vld [vmem:[%s1123 + $0x21] sm:$0xff]
        %v1191 = vld [vmem:[%s1123 + $0x31] sm:$0xff]
        %v1192 = vld [vmem:[%s1123 + $0x41] sm:$0xff]
        %v1193 = vld [vmem:[%s1123 + $0x51] sm:$0xff]
        %v1194 = vld [vmem:[%s1123 + $0x61] sm:$0xff]
        %v1195 = vld [vmem:[%s1123 + $0x71] sm:$0xff]
        %v1196 = vld [vmem:[%s1123 + $0xa1] sm:$0xff]
        %v1197 = vld [vmem:[%s1123 + $0xb1] sm:$0xff]
        %v1198 = vld [vmem:[%s1123 + $0xc1] sm:$0xff]
        %v1199 = vld [vmem:[%s1123 + $0xd1] sm:$0xff]
        %v1200 = vld [vmem:[%s1123 + $0xe1] sm:$0xff]
        %v1201 = vld [vmem:[%s1123 + $0xf1] sm:$0xff]
        %v1202 = vld [vmem:[%s1123 + $0x101] sm:$0xff]
        %v1203 = vld [vmem:[%s1123 + $0x111] sm:$0xff]
        %v1204 = vld [vmem:[%s1123 + $0x141] sm:$0xff]
        %v1205 = vld [vmem:[%s1123 + $0x151] sm:$0xff]
        %v1206 = vld [vmem:[%s1123 + $0x161] sm:$0xff]
        %v1207 = vld [vmem:[%s1123 + $0x171] sm:$0xff]
        %v1208 = vld [vmem:[%s1123 + $0x181] sm:$0xff]
        %v1209 = vld [vmem:[%s1123 + $0x191] sm:$0xff]
        %v1210 = vld [vmem:[%s1123 + $0x1a1] sm:$0xff]
        %v1211 = vld [vmem:[%s1123 + $0x1b1] sm:$0xff]
        %v1212 = vld [vmem:[%s1123 + $0x1e1] sm:$0xff]
        %v1213 = vld [vmem:[%s1123 + $0x1f1] sm:$0xff]
        %v1214 = vld [vmem:[%s1123 + $0x201] sm:$0xff]
        %v1215 = vld [vmem:[%s1123 + $0x211] sm:$0xff]
        %v1216 = vld [vmem:[%s1123 + $0x221] sm:$0xff]
        %v1217 = vld [vmem:[%s1123 + $0x231] sm:$0xff]
        %v1218 = vld [vmem:[%s1123 + $0x241] sm:$0xff]
        %v1219 = vld [vmem:[%s1123 + $0x251] sm:$0xff]
        %v1220 = vld [vmem:[%s1123 + $0x281] sm:$0xff]
        %v1221 = vld [vmem:[%s1123 + $0x291] sm:$0xff]
        %v1222 = vld [vmem:[%s1123 + $0x2a1] sm:$0xff]
        %v1223 = vld [vmem:[%s1123 + $0x2b1] sm:$0xff]
        %v1224 = vld [vmem:[%s1123 + $0x2c1] sm:$0xff]
        %v1225 = vld [vmem:[%s1123 + $0x2d1] sm:$0xff]
        %v1226 = vld [vmem:[%s1123 + $0x2e1] sm:$0xff]
        %v1227 = vld [vmem:[%s1123 + $0x2f1] sm:$0xff]
        %v1228 = vld [vmem:[%s1123 + $0x321] sm:$0xff]
        %v1229 = vld [vmem:[%s1123 + $0x331] sm:$0xff]
        %v1230 = vld [vmem:[%s1123 + $0x341] sm:$0xff]
        %v1231 = vld [vmem:[%s1123 + $0x351] sm:$0xff]
        %v1232 = vld [vmem:[%s1123 + $0x361] sm:$0xff]
        %v1233 = vld [vmem:[%s1123 + $0x371] sm:$0xff]
        %v1234 = vld [vmem:[%s1123 + $0x381] sm:$0xff]
        %v1235 = vld [vmem:[%s1123 + $0x391] sm:$0xff]
        %v1236 = vld [vmem:[%s1123 + $0x3c1] sm:$0xff]
        %v1237 = vld [vmem:[%s1123 + $0x3d1] sm:$0xff]
        %v1238 = vld [vmem:[%s1123 + $0x3e1] sm:$0xff]
        %v1239 = vld [vmem:[%s1123 + $0x3f1] sm:$0xff]
        %v1240 = vld [vmem:[%s1123 + $0x401] sm:$0xff]
        %v1241 = vld [vmem:[%s1123 + $0x411] sm:$0xff]
        %v1242 = vld [vmem:[%s1123 + $0x421] sm:$0xff]
        %v1243 = vld [vmem:[%s1123 + $0x431] sm:$0xff]
        %v1244 = vld [vmem:[%s1123 + $0x461] sm:$0xff]
        %v1245 = vld [vmem:[%s1123 + $0x471] sm:$0xff]
        %v1246 = vld [vmem:[%s1123 + $0x481] sm:$0xff]
        %v1247 = vld [vmem:[%s1123 + $0x491] sm:$0xff]
        %v1248 = vld [vmem:[%s1123 + $0x4a1] sm:$0xff]
        %v1249 = vld [vmem:[%s1123 + $0x4b1] sm:$0xff]
        %v1250 = vld [vmem:[%s1123 + $0x4c1] sm:$0xff]
        %v1251 = vld [vmem:[%s1123 + $0x4d1] sm:$0xff]
        %v1252 = vld [vmem:[%s1123 + $0x2] sm:$0xff]
        %v1253 = vld [vmem:[%s1123 + $0x12] sm:$0xff]
        %v1254 = vld [vmem:[%s1123 + $0x22] sm:$0xff]
        %v1255 = vld [vmem:[%s1123 + $0x32] sm:$0xff]
        %v1256 = vld [vmem:[%s1123 + $0x42] sm:$0xff]
        %v1257 = vld [vmem:[%s1123 + $0x52] sm:$0xff]
        %v1258 = vld [vmem:[%s1123 + $0x62] sm:$0xff]
        %v1259 = vld [vmem:[%s1123 + $0x72] sm:$0xff]
        %v1260 = vld [vmem:[%s1123 + $0xa2] sm:$0xff]
        %v1261 = vld [vmem:[%s1123 + $0xb2] sm:$0xff]
        %v1262 = vld [vmem:[%s1123 + $0xc2] sm:$0xff]
        %v1263 = vld [vmem:[%s1123 + $0xd2] sm:$0xff]
        %v1264 = vld [vmem:[%s1123 + $0xe2] sm:$0xff]
        %v1265 = vld [vmem:[%s1123 + $0xf2] sm:$0xff]
        %v1266 = vld [vmem:[%s1123 + $0x102] sm:$0xff]
        %v1267 = vld [vmem:[%s1123 + $0x112] sm:$0xff]
        %v1268 = vld [vmem:[%s1123 + $0x142] sm:$0xff]
        %v1269 = vld [vmem:[%s1123 + $0x152] sm:$0xff]
        %v1270 = vld [vmem:[%s1123 + $0x162] sm:$0xff]
        %v1271 = vld [vmem:[%s1123 + $0x172] sm:$0xff]
        %v1272 = vld [vmem:[%s1123 + $0x182] sm:$0xff]
        %v1273 = vld [vmem:[%s1123 + $0x192] sm:$0xff]
        %v1274 = vld [vmem:[%s1123 + $0x1a2] sm:$0xff]
        %v1275 = vld [vmem:[%s1123 + $0x1b2] sm:$0xff]
        %v1276 = vld [vmem:[%s1123 + $0x1e2] sm:$0xff]
        %v1277 = vld [vmem:[%s1123 + $0x1f2] sm:$0xff]
        %v1278 = vld [vmem:[%s1123 + $0x202] sm:$0xff]
        %v1279 = vld [vmem:[%s1123 + $0x212] sm:$0xff]
        %v1280 = vld [vmem:[%s1123 + $0x222] sm:$0xff]
        %v1281 = vld [vmem:[%s1123 + $0x232] sm:$0xff]
        %v1282 = vld [vmem:[%s1123 + $0x242] sm:$0xff]
        %v1283 = vld [vmem:[%s1123 + $0x252] sm:$0xff]
        %v1284 = vld [vmem:[%s1123 + $0x282] sm:$0xff]
        %v1285 = vld [vmem:[%s1123 + $0x292] sm:$0xff]
        %v1286 = vld [vmem:[%s1123 + $0x2a2] sm:$0xff]
        %v1287 = vld [vmem:[%s1123 + $0x2b2] sm:$0xff]
        %v1288 = vld [vmem:[%s1123 + $0x2c2] sm:$0xff]
        %v1289 = vld [vmem:[%s1123 + $0x2d2] sm:$0xff]
        %v1290 = vld [vmem:[%s1123 + $0x2e2] sm:$0xff]
        %v1291 = vld [vmem:[%s1123 + $0x2f2] sm:$0xff]
        %v1292 = vld [vmem:[%s1123 + $0x322] sm:$0xff]
        %v1293 = vld [vmem:[%s1123 + $0x332] sm:$0xff]
        %v1294 = vld [vmem:[%s1123 + $0x342] sm:$0xff]
        %v1295 = vld [vmem:[%s1123 + $0x352] sm:$0xff]
        %v1296 = vld [vmem:[%s1123 + $0x362] sm:$0xff]
        %v1297 = vld [vmem:[%s1123 + $0x372] sm:$0xff]
        %v1298 = vld [vmem:[%s1123 + $0x382] sm:$0xff]
        %v1299 = vld [vmem:[%s1123 + $0x392] sm:$0xff]
        %v1300 = vld [vmem:[%s1123 + $0x3c2] sm:$0xff]
        %v1301 = vld [vmem:[%s1123 + $0x3d2] sm:$0xff]
        %v1302 = vld [vmem:[%s1123 + $0x3e2] sm:$0xff]
        %v1303 = vld [vmem:[%s1123 + $0x3f2] sm:$0xff]
        %v1304 = vld [vmem:[%s1123 + $0x402] sm:$0xff]
        %v1305 = vld [vmem:[%s1123 + $0x412] sm:$0xff]
        %v1306 = vld [vmem:[%s1123 + $0x422] sm:$0xff]
        %v1307 = vld [vmem:[%s1123 + $0x432] sm:$0xff]
        %v1308 = vld [vmem:[%s1123 + $0x462] sm:$0xff]
        %v1309 = vld [vmem:[%s1123 + $0x472] sm:$0xff]
        %v1310 = vld [vmem:[%s1123 + $0x482] sm:$0xff]
        %v1311 = vld [vmem:[%s1123 + $0x492] sm:$0xff]
        %v1312 = vld [vmem:[%s1123 + $0x4a2] sm:$0xff]
        %v1313 = vld [vmem:[%s1123 + $0x4b2] sm:$0xff]
        %v1314 = vld [vmem:[%s1123 + $0x4c2] sm:$0xff]
        %v1315 = vld [vmem:[%s1123 + $0x4d2] sm:$0xff]
        %v1316 = vld [vmem:[%s480] sm:$0xff]
        %v1317 = vld [vmem:[%s480 + $0x10] sm:$0xff]
        %v1318 = vld [vmem:[%s480 + $0x20] sm:$0xff]
        %v1319 = vld [vmem:[%s480 + $0x30] sm:$0xff]
        %v1320 = vld [vmem:[%s480 + $0x40] sm:$0xff]
        %v1321 = vld [vmem:[%s480 + $0x50] sm:$0xff]
        %v1322 = vld [vmem:[%s480 + $0x60] sm:$0xff]
        %v1323 = vld [vmem:[%s480 + $0x70] sm:$0xff]
        %v1324 = vld [vmem:[%s480 + $0xa0] sm:$0xff]
        %v1325 = vld [vmem:[%s480 + $0xb0] sm:$0xff]
        %v1326 = vld [vmem:[%s480 + $0xc0] sm:$0xff]
        %v1327 = vld [vmem:[%s480 + $0xd0] sm:$0xff]
        %v1328 = vld [vmem:[%s480 + $0xe0] sm:$0xff]
        %v1329 = vld [vmem:[%s480 + $0xf0] sm:$0xff]
        %v1330 = vld [vmem:[%s480 + $0x100] sm:$0xff]
        %v1331 = vld [vmem:[%s480 + $0x110] sm:$0xff]
        %v1332 = vld [vmem:[%s480 + $0x140] sm:$0xff]
        %v1333 = vld [vmem:[%s480 + $0x150] sm:$0xff]
        %v1334 = vld [vmem:[%s480 + $0x160] sm:$0xff]
        %v1335 = vld [vmem:[%s480 + $0x170] sm:$0xff]
        %v1336 = vld [vmem:[%s480 + $0x180] sm:$0xff]
        %v1337 = vld [vmem:[%s480 + $0x190] sm:$0xff]
        %v1338 = vld [vmem:[%s480 + $0x1a0] sm:$0xff]
        %v1339 = vld [vmem:[%s480 + $0x1b0] sm:$0xff]
        %v1340 = vld [vmem:[%s480 + $0x1e0] sm:$0xff]
        %v1341 = vld [vmem:[%s480 + $0x1f0] sm:$0xff]
        %v1342 = vld [vmem:[%s480 + $0x200] sm:$0xff]
        %v1343 = vld [vmem:[%s480 + $0x210] sm:$0xff]
        %v1344 = vld [vmem:[%s480 + $0x220] sm:$0xff]
        %v1345 = vld [vmem:[%s480 + $0x230] sm:$0xff]
        %v1346 = vld [vmem:[%s480 + $0x240] sm:$0xff]
        %v1347 = vld [vmem:[%s480 + $0x250] sm:$0xff]
        %v1348 = vld [vmem:[%s480 + $0x280] sm:$0xff]
        %v1349 = vld [vmem:[%s480 + $0x290] sm:$0xff]
        %v1350 = vld [vmem:[%s480 + $0x2a0] sm:$0xff]
        %v1351 = vld [vmem:[%s480 + $0x2b0] sm:$0xff]
        %v1352 = vld [vmem:[%s480 + $0x2c0] sm:$0xff]
        %v1353 = vld [vmem:[%s480 + $0x2d0] sm:$0xff]
        %v1354 = vld [vmem:[%s480 + $0x2e0] sm:$0xff]
        %v1355 = vld [vmem:[%s480 + $0x2f0] sm:$0xff]
        %v1356 = vld [vmem:[%s480 + $0x320] sm:$0xff]
        %v1357 = vld [vmem:[%s480 + $0x330] sm:$0xff]
        %v1358 = vld [vmem:[%s480 + $0x340] sm:$0xff]
        %v1359 = vld [vmem:[%s480 + $0x350] sm:$0xff]
        %v1360 = vld [vmem:[%s480 + $0x360] sm:$0xff]
        %v1361 = vld [vmem:[%s480 + $0x370] sm:$0xff]
        %v1362 = vld [vmem:[%s480 + $0x380] sm:$0xff]
        %v1363 = vld [vmem:[%s480 + $0x390] sm:$0xff]
        %v1364 = vld [vmem:[%s480 + $0x3c0] sm:$0xff]
        %v1365 = vld [vmem:[%s480 + $0x3d0] sm:$0xff]
        %v1366 = vld [vmem:[%s480 + $0x3e0] sm:$0xff]
        %v1367 = vld [vmem:[%s480 + $0x3f0] sm:$0xff]
        %v1368 = vld [vmem:[%s480 + $0x400] sm:$0xff]
        %v1369 = vld [vmem:[%s480 + $0x410] sm:$0xff]
        %v1370 = vld [vmem:[%s480 + $0x420] sm:$0xff]
        %v1371 = vld [vmem:[%s480 + $0x430] sm:$0xff]
        %v1372 = vld [vmem:[%s480 + $0x460] sm:$0xff]
        %v1373 = vld [vmem:[%s480 + $0x470] sm:$0xff]
        %v1374 = vld [vmem:[%s480 + $0x480] sm:$0xff]
        %v1375 = vld [vmem:[%s480 + $0x490] sm:$0xff]
        %v1376 = vld [vmem:[%s480 + $0x4a0] sm:$0xff]
        %v1377 = vld [vmem:[%s480 + $0x4b0] sm:$0xff]
        %v1378 = vld [vmem:[%s480 + $0x4c0] sm:$0xff]
        %v1379 = vld [vmem:[%s480 + $0x4d0] sm:$0xff]
        %v1380 = vld [vmem:[%s480 + $0x1] sm:$0xff]
        %v1381 = vld [vmem:[%s480 + $0x11] sm:$0xff]
        %v1382 = vld [vmem:[%s480 + $0x21] sm:$0xff]
        %v1383 = vld [vmem:[%s480 + $0x31] sm:$0xff]
        %v1384 = vld [vmem:[%s480 + $0x41] sm:$0xff]
        %v1385 = vld [vmem:[%s480 + $0x51] sm:$0xff]
        %v1386 = vld [vmem:[%s480 + $0x61] sm:$0xff]
        %v1387 = vld [vmem:[%s480 + $0x71] sm:$0xff]
        %v1388 = vld [vmem:[%s480 + $0xa1] sm:$0xff]
        %v1389 = vld [vmem:[%s480 + $0xb1] sm:$0xff]
        %v1390 = vld [vmem:[%s480 + $0xc1] sm:$0xff]
        %v1391 = vld [vmem:[%s480 + $0xd1] sm:$0xff]
        %v1392 = vld [vmem:[%s480 + $0xe1] sm:$0xff]
        %v1393 = vld [vmem:[%s480 + $0xf1] sm:$0xff]
        %v1394 = vld [vmem:[%s480 + $0x101] sm:$0xff]
        %v1395 = vld [vmem:[%s480 + $0x111] sm:$0xff]
        %v1396 = vld [vmem:[%s480 + $0x141] sm:$0xff]
        %v1397 = vld [vmem:[%s480 + $0x151] sm:$0xff]
        %v1398 = vld [vmem:[%s480 + $0x161] sm:$0xff]
        %v1399 = vld [vmem:[%s480 + $0x171] sm:$0xff]
        %v1400 = vld [vmem:[%s480 + $0x181] sm:$0xff]
        %v1401 = vld [vmem:[%s480 + $0x191] sm:$0xff]
        %v1402 = vld [vmem:[%s480 + $0x1a1] sm:$0xff]
        %v1403 = vld [vmem:[%s480 + $0x1b1] sm:$0xff]
        %v1404 = vld [vmem:[%s480 + $0x1e1] sm:$0xff]
        %v1405 = vld [vmem:[%s480 + $0x1f1] sm:$0xff]
        %v1406 = vld [vmem:[%s480 + $0x201] sm:$0xff]
        %v1407 = vld [vmem:[%s480 + $0x211] sm:$0xff]
        %v1408 = vld [vmem:[%s480 + $0x221] sm:$0xff]
        %v1409 = vld [vmem:[%s480 + $0x231] sm:$0xff]
        %v1410 = vld [vmem:[%s480 + $0x241] sm:$0xff]
        %v1411 = vld [vmem:[%s480 + $0x251] sm:$0xff]
        %v1412 = vld [vmem:[%s480 + $0x281] sm:$0xff]
        %v1413 = vld [vmem:[%s480 + $0x291] sm:$0xff]
        %v1414 = vld [vmem:[%s480 + $0x2a1] sm:$0xff]
        %v1415 = vld [vmem:[%s480 + $0x2b1] sm:$0xff]
        %v1416 = vld [vmem:[%s480 + $0x2c1] sm:$0xff]
        %v1417 = vld [vmem:[%s480 + $0x2d1] sm:$0xff]
        %v1418 = vld [vmem:[%s480 + $0x2e1] sm:$0xff]
        %v1419 = vld [vmem:[%s480 + $0x2f1] sm:$0xff]
        %v1420 = vld [vmem:[%s480 + $0x321] sm:$0xff]
        %v1421 = vld [vmem:[%s480 + $0x331] sm:$0xff]
        %v1422 = vld [vmem:[%s480 + $0x341] sm:$0xff]
        %v1423 = vld [vmem:[%s480 + $0x351] sm:$0xff]
        %v1424 = vld [vmem:[%s480 + $0x361] sm:$0xff]
        %v1425 = vld [vmem:[%s480 + $0x371] sm:$0xff]
        %v1426 = vld [vmem:[%s480 + $0x381] sm:$0xff]
        %v1427 = vld [vmem:[%s480 + $0x391] sm:$0xff]
        %v1428 = vld [vmem:[%s480 + $0x3c1] sm:$0xff]
        %v1429 = vld [vmem:[%s480 + $0x3d1] sm:$0xff]
        %v1430 = vld [vmem:[%s480 + $0x3e1] sm:$0xff]
        %v1431 = vld [vmem:[%s480 + $0x3f1] sm:$0xff]
        %v1432 = vld [vmem:[%s480 + $0x401] sm:$0xff]
        %v1433 = vld [vmem:[%s480 + $0x411] sm:$0xff]
        %v1434 = vld [vmem:[%s480 + $0x421] sm:$0xff]
        %v1435 = vld [vmem:[%s480 + $0x431] sm:$0xff]
        %v1436 = vld [vmem:[%s480 + $0x461] sm:$0xff]
        %v1437 = vld [vmem:[%s480 + $0x471] sm:$0xff]
        %v1438 = vld [vmem:[%s480 + $0x481] sm:$0xff]
        %v1439 = vld [vmem:[%s480 + $0x491] sm:$0xff]
        %v1440 = vld [vmem:[%s480 + $0x4a1] sm:$0xff]
        %v1441 = vld [vmem:[%s480 + $0x4b1] sm:$0xff]
        %v1442 = vld [vmem:[%s480 + $0x4c1] sm:$0xff]
        %v1443 = vld [vmem:[%s480 + $0x4d1] sm:$0xff]
        %v1444 = vld [vmem:[%s480 + $0x2] sm:$0xff]
        %v1445 = vld [vmem:[%s480 + $0x12] sm:$0xff]
        %v1446 = vld [vmem:[%s480 + $0x22] sm:$0xff]
        %v1447 = vld [vmem:[%s480 + $0x32] sm:$0xff]
        %v1448 = vld [vmem:[%s480 + $0x42] sm:$0xff]
        %v1449 = vld [vmem:[%s480 + $0x52] sm:$0xff]
        %v1450 = vld [vmem:[%s480 + $0x62] sm:$0xff]
        %v1451 = vld [vmem:[%s480 + $0x72] sm:$0xff]
        %v1452 = vld [vmem:[%s480 + $0xa2] sm:$0xff]
        %v1453 = vld [vmem:[%s480 + $0xb2] sm:$0xff]
        %v1454 = vld [vmem:[%s480 + $0xc2] sm:$0xff]
        %v1455 = vld [vmem:[%s480 + $0xd2] sm:$0xff]
        %v1456 = vld [vmem:[%s480 + $0xe2] sm:$0xff]
        %v1457 = vld [vmem:[%s480 + $0xf2] sm:$0xff]
        %v1458 = vld [vmem:[%s480 + $0x102] sm:$0xff]
        %v1459 = vld [vmem:[%s480 + $0x112] sm:$0xff]
        %v1460 = vld [vmem:[%s480 + $0x142] sm:$0xff]
        %v1461 = vld [vmem:[%s480 + $0x152] sm:$0xff]
        %v1462 = vld [vmem:[%s480 + $0x162] sm:$0xff]
        %v1463 = vld [vmem:[%s480 + $0x172] sm:$0xff]
        %v1464 = vld [vmem:[%s480 + $0x182] sm:$0xff]
        %v1465 = vld [vmem:[%s480 + $0x192] sm:$0xff]
        %v1466 = vld [vmem:[%s480 + $0x1a2] sm:$0xff]
        %v1467 = vld [vmem:[%s480 + $0x1b2] sm:$0xff]
        %v1468 = vld [vmem:[%s480 + $0x1e2] sm:$0xff]
        %v1469 = vld [vmem:[%s480 + $0x1f2] sm:$0xff]
        %v1470 = vld [vmem:[%s480 + $0x202] sm:$0xff]
        %v1471 = vld [vmem:[%s480 + $0x212] sm:$0xff]
        %v1472 = vld [vmem:[%s480 + $0x222] sm:$0xff]
        %v1473 = vld [vmem:[%s480 + $0x232] sm:$0xff]
        %v1474 = vld [vmem:[%s480 + $0x242] sm:$0xff]
        %v1475 = vld [vmem:[%s480 + $0x252] sm:$0xff]
        %v1476 = vld [vmem:[%s480 + $0x282] sm:$0xff]
        %v1477 = vld [vmem:[%s480 + $0x292] sm:$0xff]
        %v1478 = vld [vmem:[%s480 + $0x2a2] sm:$0xff]
        %v1479 = vld [vmem:[%s480 + $0x2b2] sm:$0xff]
        %v1480 = vld [vmem:[%s480 + $0x2c2] sm:$0xff]
        %v1481 = vld [vmem:[%s480 + $0x2d2] sm:$0xff]
        %v1482 = vld [vmem:[%s480 + $0x2e2] sm:$0xff]
        %v1483 = vld [vmem:[%s480 + $0x2f2] sm:$0xff]
        %v1484 = vld [vmem:[%s480 + $0x322] sm:$0xff]
        %v1485 = vld [vmem:[%s480 + $0x332] sm:$0xff]
        %v1486 = vld [vmem:[%s480 + $0x342] sm:$0xff]
        %v1487 = vld [vmem:[%s480 + $0x352] sm:$0xff]
        %v1488 = vld [vmem:[%s480 + $0x362] sm:$0xff]
        %v1489 = vld [vmem:[%s480 + $0x372] sm:$0xff]
        %v1490 = vld [vmem:[%s480 + $0x382] sm:$0xff]
        %v1491 = vld [vmem:[%s480 + $0x392] sm:$0xff]
        %v1492 = vld [vmem:[%s480 + $0x3c2] sm:$0xff]
        %v1493 = vld [vmem:[%s480 + $0x3d2] sm:$0xff]
        %v1494 = vld [vmem:[%s480 + $0x3e2] sm:$0xff]
        %v1495 = vld [vmem:[%s480 + $0x3f2] sm:$0xff]
        %v1496 = vld [vmem:[%s480 + $0x402] sm:$0xff]
        %v1497 = vld [vmem:[%s480 + $0x412] sm:$0xff]
        %v1498 = vld [vmem:[%s480 + $0x422] sm:$0xff]
        %v1499 = vld [vmem:[%s480 + $0x432] sm:$0xff]
        %v1500 = vld [vmem:[%s480 + $0x462] sm:$0xff]
        %v1501 = vld [vmem:[%s480 + $0x472] sm:$0xff]
        %v1502 = vld [vmem:[%s480 + $0x482] sm:$0xff]
        %v1503 = vld [vmem:[%s480 + $0x492] sm:$0xff]
        %v1504 = vld [vmem:[%s480 + $0x4a2] sm:$0xff]
        %v1505 = vld [vmem:[%s480 + $0x4b2] sm:$0xff]
        %v1506 = vld [vmem:[%s480 + $0x4c2] sm:$0xff]
        %v1507 = vld [vmem:[%s480 + $0x4d2] sm:$0xff]
        %s1508 = scalar_lea.vmem [#allocation2], 192
        %v1509 = vld [vmem:[%s1508] sm:$0xff]
        %v1510 = vld [vmem:[%s1508 + $0x10] sm:$0xff]
        %v1511 = vld [vmem:[%s1508 + $0x20] sm:$0xff]
        %v1512 = vld [vmem:[%s1508 + $0x30] sm:$0xff]
        %v1513 = vld [vmem:[%s1508 + $0x40] sm:$0xff]
        %v1514 = vld [vmem:[%s1508 + $0x50] sm:$0xff]
        %v1515 = vld [vmem:[%s1508 + $0x60] sm:$0xff]
        %v1516 = vld [vmem:[%s1508 + $0x70] sm:$0xff]
        %v1517 = vld [vmem:[%s1508 + $0xa0] sm:$0xff]
        %v1518 = vld [vmem:[%s1508 + $0xb0] sm:$0xff]
        %v1519 = vld [vmem:[%s1508 + $0xc0] sm:$0xff]
        %v1520 = vld [vmem:[%s1508 + $0xd0] sm:$0xff]
        %v1521 = vld [vmem:[%s1508 + $0xe0] sm:$0xff]
        %v1522 = vld [vmem:[%s1508 + $0xf0] sm:$0xff]
        %v1523 = vld [vmem:[%s1508 + $0x100] sm:$0xff]
        %v1524 = vld [vmem:[%s1508 + $0x110] sm:$0xff]
        %v1525 = vld [vmem:[%s1508 + $0x140] sm:$0xff]
        %v1526 = vld [vmem:[%s1508 + $0x150] sm:$0xff]
        %v1527 = vld [vmem:[%s1508 + $0x160] sm:$0xff]
        %v1528 = vld [vmem:[%s1508 + $0x170] sm:$0xff]
        %v1529 = vld [vmem:[%s1508 + $0x180] sm:$0xff]
        %v1530 = vld [vmem:[%s1508 + $0x190] sm:$0xff]
        %v1531 = vld [vmem:[%s1508 + $0x1a0] sm:$0xff]
        %v1532 = vld [vmem:[%s1508 + $0x1b0] sm:$0xff]
        %v1533 = vld [vmem:[%s1508 + $0x1e0] sm:$0xff]
        %v1534 = vld [vmem:[%s1508 + $0x1f0] sm:$0xff]
        %v1535 = vld [vmem:[%s1508 + $0x200] sm:$0xff]
        %v1536 = vld [vmem:[%s1508 + $0x210] sm:$0xff]
        %v1537 = vld [vmem:[%s1508 + $0x220] sm:$0xff]
        %v1538 = vld [vmem:[%s1508 + $0x230] sm:$0xff]
        %v1539 = vld [vmem:[%s1508 + $0x240] sm:$0xff]
        %v1540 = vld [vmem:[%s1508 + $0x250] sm:$0xff]
        %v1541 = vld [vmem:[%s1508 + $0x280] sm:$0xff]
        %v1542 = vld [vmem:[%s1508 + $0x290] sm:$0xff]
        %v1543 = vld [vmem:[%s1508 + $0x2a0] sm:$0xff]
        %v1544 = vld [vmem:[%s1508 + $0x2b0] sm:$0xff]
        %v1545 = vld [vmem:[%s1508 + $0x2c0] sm:$0xff]
        %v1546 = vld [vmem:[%s1508 + $0x2d0] sm:$0xff]
        %v1547 = vld [vmem:[%s1508 + $0x2e0] sm:$0xff]
        %v1548 = vld [vmem:[%s1508 + $0x2f0] sm:$0xff]
        %v1549 = vld [vmem:[%s1508 + $0x320] sm:$0xff]
        %v1550 = vld [vmem:[%s1508 + $0x330] sm:$0xff]
        %v1551 = vld [vmem:[%s1508 + $0x340] sm:$0xff]
        %v1552 = vld [vmem:[%s1508 + $0x350] sm:$0xff]
        %v1553 = vld [vmem:[%s1508 + $0x360] sm:$0xff]
        %v1554 = vld [vmem:[%s1508 + $0x370] sm:$0xff]
        %v1555 = vld [vmem:[%s1508 + $0x380] sm:$0xff]
        %v1556 = vld [vmem:[%s1508 + $0x390] sm:$0xff]
        %v1557 = vld [vmem:[%s1508 + $0x3c0] sm:$0xff]
        %v1558 = vld [vmem:[%s1508 + $0x3d0] sm:$0xff]
        %v1559 = vld [vmem:[%s1508 + $0x3e0] sm:$0xff]
        %v1560 = vld [vmem:[%s1508 + $0x3f0] sm:$0xff]
        %v1561 = vld [vmem:[%s1508 + $0x400] sm:$0xff]
        %v1562 = vld [vmem:[%s1508 + $0x410] sm:$0xff]
        %v1563 = vld [vmem:[%s1508 + $0x420] sm:$0xff]
        %v1564 = vld [vmem:[%s1508 + $0x430] sm:$0xff]
        %v1565 = vld [vmem:[%s1508 + $0x460] sm:$0xff]
        %v1566 = vld [vmem:[%s1508 + $0x470] sm:$0xff]
        %v1567 = vld [vmem:[%s1508 + $0x480] sm:$0xff]
        %v1568 = vld [vmem:[%s1508 + $0x490] sm:$0xff]
        %v1569 = vld [vmem:[%s1508 + $0x4a0] sm:$0xff]
        %v1570 = vld [vmem:[%s1508 + $0x4b0] sm:$0xff]
        %v1571 = vld [vmem:[%s1508 + $0x4c0] sm:$0xff]
        %v1572 = vld [vmem:[%s1508 + $0x4d0] sm:$0xff]
        %v1573 = vld [vmem:[%s1508 + $0x1] sm:$0xff]
        %v1574 = vld [vmem:[%s1508 + $0x11] sm:$0xff]
        %v1575 = vld [vmem:[%s1508 + $0x21] sm:$0xff]
        %v1576 = vld [vmem:[%s1508 + $0x31] sm:$0xff]
        %v1577 = vld [vmem:[%s1508 + $0x41] sm:$0xff]
        %v1578 = vld [vmem:[%s1508 + $0x51] sm:$0xff]
        %v1579 = vld [vmem:[%s1508 + $0x61] sm:$0xff]
        %v1580 = vld [vmem:[%s1508 + $0x71] sm:$0xff]
        %v1581 = vld [vmem:[%s1508 + $0xa1] sm:$0xff]
        %v1582 = vld [vmem:[%s1508 + $0xb1] sm:$0xff]
        %v1583 = vld [vmem:[%s1508 + $0xc1] sm:$0xff]
        %v1584 = vld [vmem:[%s1508 + $0xd1] sm:$0xff]
        %v1585 = vld [vmem:[%s1508 + $0xe1] sm:$0xff]
        %v1586 = vld [vmem:[%s1508 + $0xf1] sm:$0xff]
        %v1587 = vld [vmem:[%s1508 + $0x101] sm:$0xff]
        %v1588 = vld [vmem:[%s1508 + $0x111] sm:$0xff]
        %v1589 = vld [vmem:[%s1508 + $0x141] sm:$0xff]
        %v1590 = vld [vmem:[%s1508 + $0x151] sm:$0xff]
        %v1591 = vld [vmem:[%s1508 + $0x161] sm:$0xff]
        %v1592 = vld [vmem:[%s1508 + $0x171] sm:$0xff]
        %v1593 = vld [vmem:[%s1508 + $0x181] sm:$0xff]
        %v1594 = vld [vmem:[%s1508 + $0x191] sm:$0xff]
        %v1595 = vld [vmem:[%s1508 + $0x1a1] sm:$0xff]
        %v1596 = vld [vmem:[%s1508 + $0x1b1] sm:$0xff]
        %v1597 = vld [vmem:[%s1508 + $0x1e1] sm:$0xff]
        %v1598 = vld [vmem:[%s1508 + $0x1f1] sm:$0xff]
        %v1599 = vld [vmem:[%s1508 + $0x201] sm:$0xff]
        %v1600 = vld [vmem:[%s1508 + $0x211] sm:$0xff]
        %v1601 = vld [vmem:[%s1508 + $0x221] sm:$0xff]
        %v1602 = vld [vmem:[%s1508 + $0x231] sm:$0xff]
        %v1603 = vld [vmem:[%s1508 + $0x241] sm:$0xff]
        %v1604 = vld [vmem:[%s1508 + $0x251] sm:$0xff]
        %v1605 = vld [vmem:[%s1508 + $0x281] sm:$0xff]
        %v1606 = vld [vmem:[%s1508 + $0x291] sm:$0xff]
        %v1607 = vld [vmem:[%s1508 + $0x2a1] sm:$0xff]
        %v1608 = vld [vmem:[%s1508 + $0x2b1] sm:$0xff]
        %v1609 = vld [vmem:[%s1508 + $0x2c1] sm:$0xff]
        %v1610 = vld [vmem:[%s1508 + $0x2d1] sm:$0xff]
        %v1611 = vld [vmem:[%s1508 + $0x2e1] sm:$0xff]
        %v1612 = vld [vmem:[%s1508 + $0x2f1] sm:$0xff]
        %v1613 = vld [vmem:[%s1508 + $0x321] sm:$0xff]
        %v1614 = vld [vmem:[%s1508 + $0x331] sm:$0xff]
        %v1615 = vld [vmem:[%s1508 + $0x341] sm:$0xff]
        %v1616 = vld [vmem:[%s1508 + $0x351] sm:$0xff]
        %v1617 = vld [vmem:[%s1508 + $0x361] sm:$0xff]
        %v1618 = vld [vmem:[%s1508 + $0x371] sm:$0xff]
        %v1619 = vld [vmem:[%s1508 + $0x381] sm:$0xff]
        %v1620 = vld [vmem:[%s1508 + $0x391] sm:$0xff]
        %v1621 = vld [vmem:[%s1508 + $0x3c1] sm:$0xff]
        %v1622 = vld [vmem:[%s1508 + $0x3d1] sm:$0xff]
        %v1623 = vld [vmem:[%s1508 + $0x3e1] sm:$0xff]
        %v1624 = vld [vmem:[%s1508 + $0x3f1] sm:$0xff]
        %v1625 = vld [vmem:[%s1508 + $0x401] sm:$0xff]
        %v1626 = vld [vmem:[%s1508 + $0x411] sm:$0xff]
        %v1627 = vld [vmem:[%s1508 + $0x421] sm:$0xff]
        %v1628 = vld [vmem:[%s1508 + $0x431] sm:$0xff]
        %v1629 = vld [vmem:[%s1508 + $0x461] sm:$0xff]
        %v1630 = vld [vmem:[%s1508 + $0x471] sm:$0xff]
        %v1631 = vld [vmem:[%s1508 + $0x481] sm:$0xff]
        %v1632 = vld [vmem:[%s1508 + $0x491] sm:$0xff]
        %v1633 = vld [vmem:[%s1508 + $0x4a1] sm:$0xff]
        %v1634 = vld [vmem:[%s1508 + $0x4b1] sm:$0xff]
        %v1635 = vld [vmem:[%s1508 + $0x4c1] sm:$0xff]
        %v1636 = vld [vmem:[%s1508 + $0x4d1] sm:$0xff]
        %v1637 = vld [vmem:[%s1508 + $0x2] sm:$0xff]
        %v1638 = vld [vmem:[%s1508 + $0x12] sm:$0xff]
        %v1639 = vld [vmem:[%s1508 + $0x22] sm:$0xff]
        %v1640 = vld [vmem:[%s1508 + $0x32] sm:$0xff]
        %v1641 = vld [vmem:[%s1508 + $0x42] sm:$0xff]
        %v1642 = vld [vmem:[%s1508 + $0x52] sm:$0xff]
        %v1643 = vld [vmem:[%s1508 + $0x62] sm:$0xff]
        %v1644 = vld [vmem:[%s1508 + $0x72] sm:$0xff]
        %v1645 = vld [vmem:[%s1508 + $0xa2] sm:$0xff]
        %v1646 = vld [vmem:[%s1508 + $0xb2] sm:$0xff]
        %v1647 = vld [vmem:[%s1508 + $0xc2] sm:$0xff]
        %v1648 = vld [vmem:[%s1508 + $0xd2] sm:$0xff]
        %v1649 = vld [vmem:[%s1508 + $0xe2] sm:$0xff]
        %v1650 = vld [vmem:[%s1508 + $0xf2] sm:$0xff]
        %v1651 = vld [vmem:[%s1508 + $0x102] sm:$0xff]
        %v1652 = vld [vmem:[%s1508 + $0x112] sm:$0xff]
        %v1653 = vld [vmem:[%s1508 + $0x142] sm:$0xff]
        %v1654 = vld [vmem:[%s1508 + $0x152] sm:$0xff]
        %v1655 = vld [vmem:[%s1508 + $0x162] sm:$0xff]
        %v1656 = vld [vmem:[%s1508 + $0x172] sm:$0xff]
        %v1657 = vld [vmem:[%s1508 + $0x182] sm:$0xff]
        %v1658 = vld [vmem:[%s1508 + $0x192] sm:$0xff]
        %v1659 = vld [vmem:[%s1508 + $0x1a2] sm:$0xff]
        %v1660 = vld [vmem:[%s1508 + $0x1b2] sm:$0xff]
        %v1661 = vld [vmem:[%s1508 + $0x1e2] sm:$0xff]
        %v1662 = vld [vmem:[%s1508 + $0x1f2] sm:$0xff]
        %v1663 = vld [vmem:[%s1508 + $0x202] sm:$0xff]
        %v1664 = vld [vmem:[%s1508 + $0x212] sm:$0xff]
        %v1665 = vld [vmem:[%s1508 + $0x222] sm:$0xff]
        %v1666 = vld [vmem:[%s1508 + $0x232] sm:$0xff]
        %v1667 = vld [vmem:[%s1508 + $0x242] sm:$0xff]
        %v1668 = vld [vmem:[%s1508 + $0x252] sm:$0xff]
        %v1669 = vld [vmem:[%s1508 + $0x282] sm:$0xff]
        %v1670 = vld [vmem:[%s1508 + $0x292] sm:$0xff]
        %v1671 = vld [vmem:[%s1508 + $0x2a2] sm:$0xff]
        %v1672 = vld [vmem:[%s1508 + $0x2b2] sm:$0xff]
        %v1673 = vld [vmem:[%s1508 + $0x2c2] sm:$0xff]
        %v1674 = vld [vmem:[%s1508 + $0x2d2] sm:$0xff]
        %v1675 = vld [vmem:[%s1508 + $0x2e2] sm:$0xff]
        %v1676 = vld [vmem:[%s1508 + $0x2f2] sm:$0xff]
        %v1677 = vld [vmem:[%s1508 + $0x322] sm:$0xff]
        %v1678 = vld [vmem:[%s1508 + $0x332] sm:$0xff]
        %v1679 = vld [vmem:[%s1508 + $0x342] sm:$0xff]
        %v1680 = vld [vmem:[%s1508 + $0x352] sm:$0xff]
        %v1681 = vld [vmem:[%s1508 + $0x362] sm:$0xff]
        %v1682 = vld [vmem:[%s1508 + $0x372] sm:$0xff]
        %v1683 = vld [vmem:[%s1508 + $0x382] sm:$0xff]
        %v1684 = vld [vmem:[%s1508 + $0x392] sm:$0xff]
        %v1685 = vld [vmem:[%s1508 + $0x3c2] sm:$0xff]
        %v1686 = vld [vmem:[%s1508 + $0x3d2] sm:$0xff]
        %v1687 = vld [vmem:[%s1508 + $0x3e2] sm:$0xff]
        %v1688 = vld [vmem:[%s1508 + $0x3f2] sm:$0xff]
        %v1689 = vld [vmem:[%s1508 + $0x402] sm:$0xff]
        %v1690 = vld [vmem:[%s1508 + $0x412] sm:$0xff]
        %v1691 = vld [vmem:[%s1508 + $0x422] sm:$0xff]
        %v1692 = vld [vmem:[%s1508 + $0x432] sm:$0xff]
        %v1693 = vld [vmem:[%s1508 + $0x462] sm:$0xff]
        %v1694 = vld [vmem:[%s1508 + $0x472] sm:$0xff]
        %v1695 = vld [vmem:[%s1508 + $0x482] sm:$0xff]
        %v1696 = vld [vmem:[%s1508 + $0x492] sm:$0xff]
        %v1697 = vld [vmem:[%s1508 + $0x4a2] sm:$0xff]
        %v1698 = vld [vmem:[%s1508 + $0x4b2] sm:$0xff]
        %v1699 = vld [vmem:[%s1508 + $0x4c2] sm:$0xff]
        %v1700 = vld [vmem:[%s1508 + $0x4d2] sm:$0xff]
        %s1701 = scalar_lea.vmem [#allocation2], 320
        %v1702 = vld [vmem:[%s1701] sm:$0xff]
        %v1703 = vld [vmem:[%s1701 + $0x10] sm:$0xff]
        %v1704 = vld [vmem:[%s1701 + $0x20] sm:$0xff]
        %v1705 = vld [vmem:[%s1701 + $0x30] sm:$0xff]
        %v1706 = vld [vmem:[%s1701 + $0x40] sm:$0xff]
        %v1707 = vld [vmem:[%s1701 + $0x50] sm:$0xff]
        %v1708 = vld [vmem:[%s1701 + $0x60] sm:$0xff]
        %v1709 = vld [vmem:[%s1701 + $0x70] sm:$0xff]
        %v1710 = vld [vmem:[%s1701 + $0xa0] sm:$0xff]
        %v1711 = vld [vmem:[%s1701 + $0xb0] sm:$0xff]
        %v1712 = vld [vmem:[%s1701 + $0xc0] sm:$0xff]
        %v1713 = vld [vmem:[%s1701 + $0xd0] sm:$0xff]
        %v1714 = vld [vmem:[%s1701 + $0xe0] sm:$0xff]
        %v1715 = vld [vmem:[%s1701 + $0xf0] sm:$0xff]
        %v1716 = vld [vmem:[%s1701 + $0x100] sm:$0xff]
        %v1717 = vld [vmem:[%s1701 + $0x110] sm:$0xff]
        %v1718 = vld [vmem:[%s1701 + $0x140] sm:$0xff]
        %v1719 = vld [vmem:[%s1701 + $0x150] sm:$0xff]
        %v1720 = vld [vmem:[%s1701 + $0x160] sm:$0xff]
        %v1721 = vld [vmem:[%s1701 + $0x170] sm:$0xff]
        %v1722 = vld [vmem:[%s1701 + $0x180] sm:$0xff]
        %v1723 = vld [vmem:[%s1701 + $0x190] sm:$0xff]
        %v1724 = vld [vmem:[%s1701 + $0x1a0] sm:$0xff]
        %v1725 = vld [vmem:[%s1701 + $0x1b0] sm:$0xff]
        %v1726 = vld [vmem:[%s1701 + $0x1e0] sm:$0xff]
        %v1727 = vld [vmem:[%s1701 + $0x1f0] sm:$0xff]
        %v1728 = vld [vmem:[%s1701 + $0x200] sm:$0xff]
        %v1729 = vld [vmem:[%s1701 + $0x210] sm:$0xff]
        %v1730 = vld [vmem:[%s1701 + $0x220] sm:$0xff]
        %v1731 = vld [vmem:[%s1701 + $0x230] sm:$0xff]
        %v1732 = vld [vmem:[%s1701 + $0x240] sm:$0xff]
        %v1733 = vld [vmem:[%s1701 + $0x250] sm:$0xff]
        %v1734 = vld [vmem:[%s1701 + $0x280] sm:$0xff]
        %v1735 = vld [vmem:[%s1701 + $0x290] sm:$0xff]
        %v1736 = vld [vmem:[%s1701 + $0x2a0] sm:$0xff]
        %v1737 = vld [vmem:[%s1701 + $0x2b0] sm:$0xff]
        %v1738 = vld [vmem:[%s1701 + $0x2c0] sm:$0xff]
        %v1739 = vld [vmem:[%s1701 + $0x2d0] sm:$0xff]
        %v1740 = vld [vmem:[%s1701 + $0x2e0] sm:$0xff]
        %v1741 = vld [vmem:[%s1701 + $0x2f0] sm:$0xff]
        %v1742 = vld [vmem:[%s1701 + $0x320] sm:$0xff]
        %v1743 = vld [vmem:[%s1701 + $0x330] sm:$0xff]
        %v1744 = vld [vmem:[%s1701 + $0x340] sm:$0xff]
        %v1745 = vld [vmem:[%s1701 + $0x350] sm:$0xff]
        %v1746 = vld [vmem:[%s1701 + $0x360] sm:$0xff]
        %v1747 = vld [vmem:[%s1701 + $0x370] sm:$0xff]
        %v1748 = vld [vmem:[%s1701 + $0x380] sm:$0xff]
        %v1749 = vld [vmem:[%s1701 + $0x390] sm:$0xff]
        %v1750 = vld [vmem:[%s1701 + $0x3c0] sm:$0xff]
        %v1751 = vld [vmem:[%s1701 + $0x3d0] sm:$0xff]
        %v1752 = vld [vmem:[%s1701 + $0x3e0] sm:$0xff]
        %v1753 = vld [vmem:[%s1701 + $0x3f0] sm:$0xff]
        %v1754 = vld [vmem:[%s1701 + $0x400] sm:$0xff]
        %v1755 = vld [vmem:[%s1701 + $0x410] sm:$0xff]
        %v1756 = vld [vmem:[%s1701 + $0x420] sm:$0xff]
        %v1757 = vld [vmem:[%s1701 + $0x430] sm:$0xff]
        %v1758 = vld [vmem:[%s1701 + $0x460] sm:$0xff]
        %v1759 = vld [vmem:[%s1701 + $0x470] sm:$0xff]
        %v1760 = vld [vmem:[%s1701 + $0x480] sm:$0xff]
        %v1761 = vld [vmem:[%s1701 + $0x490] sm:$0xff]
        %v1762 = vld [vmem:[%s1701 + $0x4a0] sm:$0xff]
        %v1763 = vld [vmem:[%s1701 + $0x4b0] sm:$0xff]
        %v1764 = vld [vmem:[%s1701 + $0x4c0] sm:$0xff]
        %v1765 = vld [vmem:[%s1701 + $0x4d0] sm:$0xff]
        %v1766 = vld [vmem:[%s1701 + $0x1] sm:$0xff]
        %v1767 = vld [vmem:[%s1701 + $0x11] sm:$0xff]
        %v1768 = vld [vmem:[%s1701 + $0x21] sm:$0xff]
        %v1769 = vld [vmem:[%s1701 + $0x31] sm:$0xff]
        %v1770 = vld [vmem:[%s1701 + $0x41] sm:$0xff]
        %v1771 = vld [vmem:[%s1701 + $0x51] sm:$0xff]
        %v1772 = vld [vmem:[%s1701 + $0x61] sm:$0xff]
        %v1773 = vld [vmem:[%s1701 + $0x71] sm:$0xff]
        %v1774 = vld [vmem:[%s1701 + $0xa1] sm:$0xff]
        %v1775 = vld [vmem:[%s1701 + $0xb1] sm:$0xff]
        %v1776 = vld [vmem:[%s1701 + $0xc1] sm:$0xff]
        %v1777 = vld [vmem:[%s1701 + $0xd1] sm:$0xff]
        %v1778 = vld [vmem:[%s1701 + $0xe1] sm:$0xff]
        %v1779 = vld [vmem:[%s1701 + $0xf1] sm:$0xff]
        %v1780 = vld [vmem:[%s1701 + $0x101] sm:$0xff]
        %v1781 = vld [vmem:[%s1701 + $0x111] sm:$0xff]
        %v1782 = vld [vmem:[%s1701 + $0x141] sm:$0xff]
        %v1783 = vld [vmem:[%s1701 + $0x151] sm:$0xff]
        %v1784 = vld [vmem:[%s1701 + $0x161] sm:$0xff]
        %v1785 = vld [vmem:[%s1701 + $0x171] sm:$0xff]
        %v1786 = vld [vmem:[%s1701 + $0x181] sm:$0xff]
        %v1787 = vld [vmem:[%s1701 + $0x191] sm:$0xff]
        %v1788 = vld [vmem:[%s1701 + $0x1a1] sm:$0xff]
        %v1789 = vld [vmem:[%s1701 + $0x1b1] sm:$0xff]
        %v1790 = vld [vmem:[%s1701 + $0x1e1] sm:$0xff]
        %v1791 = vld [vmem:[%s1701 + $0x1f1] sm:$0xff]
        %v1792 = vld [vmem:[%s1701 + $0x201] sm:$0xff]
        %v1793 = vld [vmem:[%s1701 + $0x211] sm:$0xff]
        %v1794 = vld [vmem:[%s1701 + $0x221] sm:$0xff]
        %v1795 = vld [vmem:[%s1701 + $0x231] sm:$0xff]
        %v1796 = vld [vmem:[%s1701 + $0x241] sm:$0xff]
        %v1797 = vld [vmem:[%s1701 + $0x251] sm:$0xff]
        %v1798 = vld [vmem:[%s1701 + $0x281] sm:$0xff]
        %v1799 = vld [vmem:[%s1701 + $0x291] sm:$0xff]
        %v1800 = vld [vmem:[%s1701 + $0x2a1] sm:$0xff]
        %v1801 = vld [vmem:[%s1701 + $0x2b1] sm:$0xff]
        %v1802 = vld [vmem:[%s1701 + $0x2c1] sm:$0xff]
        %v1803 = vld [vmem:[%s1701 + $0x2d1] sm:$0xff]
        %v1804 = vld [vmem:[%s1701 + $0x2e1] sm:$0xff]
        %v1805 = vld [vmem:[%s1701 + $0x2f1] sm:$0xff]
        %v1806 = vld [vmem:[%s1701 + $0x321] sm:$0xff]
        %v1807 = vld [vmem:[%s1701 + $0x331] sm:$0xff]
        %v1808 = vld [vmem:[%s1701 + $0x341] sm:$0xff]
        %v1809 = vld [vmem:[%s1701 + $0x351] sm:$0xff]
        %v1810 = vld [vmem:[%s1701 + $0x361] sm:$0xff]
        %v1811 = vld [vmem:[%s1701 + $0x371] sm:$0xff]
        %v1812 = vld [vmem:[%s1701 + $0x381] sm:$0xff]
        %v1813 = vld [vmem:[%s1701 + $0x391] sm:$0xff]
        %v1814 = vld [vmem:[%s1701 + $0x3c1] sm:$0xff]
        %v1815 = vld [vmem:[%s1701 + $0x3d1] sm:$0xff]
        %v1816 = vld [vmem:[%s1701 + $0x3e1] sm:$0xff]
        %v1817 = vld [vmem:[%s1701 + $0x3f1] sm:$0xff]
        %v1818 = vld [vmem:[%s1701 + $0x401] sm:$0xff]
        %v1819 = vld [vmem:[%s1701 + $0x411] sm:$0xff]
        %v1820 = vld [vmem:[%s1701 + $0x421] sm:$0xff]
        %v1821 = vld [vmem:[%s1701 + $0x431] sm:$0xff]
        %v1822 = vld [vmem:[%s1701 + $0x461] sm:$0xff]
        %v1823 = vld [vmem:[%s1701 + $0x471] sm:$0xff]
        %v1824 = vld [vmem:[%s1701 + $0x481] sm:$0xff]
        %v1825 = vld [vmem:[%s1701 + $0x491] sm:$0xff]
        %v1826 = vld [vmem:[%s1701 + $0x4a1] sm:$0xff]
        %v1827 = vld [vmem:[%s1701 + $0x4b1] sm:$0xff]
        %v1828 = vld [vmem:[%s1701 + $0x4c1] sm:$0xff]
        %v1829 = vld [vmem:[%s1701 + $0x4d1] sm:$0xff]
        %v1830 = vld [vmem:[%s1701 + $0x2] sm:$0xff]
        %v1831 = vld [vmem:[%s1701 + $0x12] sm:$0xff]
        %v1832 = vld [vmem:[%s1701 + $0x22] sm:$0xff]
        %v1833 = vld [vmem:[%s1701 + $0x32] sm:$0xff]
        %v1834 = vld [vmem:[%s1701 + $0x42] sm:$0xff]
        %v1835 = vld [vmem:[%s1701 + $0x52] sm:$0xff]
        %v1836 = vld [vmem:[%s1701 + $0x62] sm:$0xff]
        %v1837 = vld [vmem:[%s1701 + $0x72] sm:$0xff]
        %v1838 = vld [vmem:[%s1701 + $0xa2] sm:$0xff]
        %v1839 = vld [vmem:[%s1701 + $0xb2] sm:$0xff]
        %v1840 = vld [vmem:[%s1701 + $0xc2] sm:$0xff]
        %v1841 = vld [vmem:[%s1701 + $0xd2] sm:$0xff]
        %v1842 = vld [vmem:[%s1701 + $0xe2] sm:$0xff]
        %v1843 = vld [vmem:[%s1701 + $0xf2] sm:$0xff]
        %v1844 = vld [vmem:[%s1701 + $0x102] sm:$0xff]
        %v1845 = vld [vmem:[%s1701 + $0x112] sm:$0xff]
        %v1846 = vld [vmem:[%s1701 + $0x142] sm:$0xff]
        %v1847 = vld [vmem:[%s1701 + $0x152] sm:$0xff]
        %v1848 = vld [vmem:[%s1701 + $0x162] sm:$0xff]
        %v1849 = vld [vmem:[%s1701 + $0x172] sm:$0xff]
        %v1850 = vld [vmem:[%s1701 + $0x182] sm:$0xff]
        %v1851 = vld [vmem:[%s1701 + $0x192] sm:$0xff]
        %v1852 = vld [vmem:[%s1701 + $0x1a2] sm:$0xff]
        %v1853 = vld [vmem:[%s1701 + $0x1b2] sm:$0xff]
        %v1854 = vld [vmem:[%s1701 + $0x1e2] sm:$0xff]
        %v1855 = vld [vmem:[%s1701 + $0x1f2] sm:$0xff]
        %v1856 = vld [vmem:[%s1701 + $0x202] sm:$0xff]
        %v1857 = vld [vmem:[%s1701 + $0x212] sm:$0xff]
        %v1858 = vld [vmem:[%s1701 + $0x222] sm:$0xff]
        %v1859 = vld [vmem:[%s1701 + $0x232] sm:$0xff]
        %v1860 = vld [vmem:[%s1701 + $0x242] sm:$0xff]
        %v1861 = vld [vmem:[%s1701 + $0x252] sm:$0xff]
        %v1862 = vld [vmem:[%s1701 + $0x282] sm:$0xff]
        %v1863 = vld [vmem:[%s1701 + $0x292] sm:$0xff]
        %v1864 = vld [vmem:[%s1701 + $0x2a2] sm:$0xff]
        %v1865 = vld [vmem:[%s1701 + $0x2b2] sm:$0xff]
        %v1866 = vld [vmem:[%s1701 + $0x2c2] sm:$0xff]
        %v1867 = vld [vmem:[%s1701 + $0x2d2] sm:$0xff]
        %v1868 = vld [vmem:[%s1701 + $0x2e2] sm:$0xff]
        %v1869 = vld [vmem:[%s1701 + $0x2f2] sm:$0xff]
        %v1870 = vld [vmem:[%s1701 + $0x322] sm:$0xff]
        %v1871 = vld [vmem:[%s1701 + $0x332] sm:$0xff]
        %v1872 = vld [vmem:[%s1701 + $0x342] sm:$0xff]
        %v1873 = vld [vmem:[%s1701 + $0x352] sm:$0xff]
        %v1874 = vld [vmem:[%s1701 + $0x362] sm:$0xff]
        %v1875 = vld [vmem:[%s1701 + $0x372] sm:$0xff]
        %v1876 = vld [vmem:[%s1701 + $0x382] sm:$0xff]
        %v1877 = vld [vmem:[%s1701 + $0x392] sm:$0xff]
        %v1878 = vld [vmem:[%s1701 + $0x3c2] sm:$0xff]
        %v1879 = vld [vmem:[%s1701 + $0x3d2] sm:$0xff]
        %v1880 = vld [vmem:[%s1701 + $0x3e2] sm:$0xff]
        %v1881 = vld [vmem:[%s1701 + $0x3f2] sm:$0xff]
        %v1882 = vld [vmem:[%s1701 + $0x402] sm:$0xff]
        %v1883 = vld [vmem:[%s1701 + $0x412] sm:$0xff]
        %v1884 = vld [vmem:[%s1701 + $0x422] sm:$0xff]
        %v1885 = vld [vmem:[%s1701 + $0x432] sm:$0xff]
        %v1886 = vld [vmem:[%s1701 + $0x462] sm:$0xff]
        %v1887 = vld [vmem:[%s1701 + $0x472] sm:$0xff]
        %v1888 = vld [vmem:[%s1701 + $0x482] sm:$0xff]
        %v1889 = vld [vmem:[%s1701 + $0x492] sm:$0xff]
        %v1890 = vld [vmem:[%s1701 + $0x4a2] sm:$0xff]
        %v1891 = vld [vmem:[%s1701 + $0x4b2] sm:$0xff]
        %v1892 = vld [vmem:[%s1701 + $0x4c2] sm:$0xff]
        %v1893 = vld [vmem:[%s1701 + $0x4d2] sm:$0xff]
        %s1894 = scalar_lea.vmem [#allocation2], 336
        %v1895 = vld [vmem:[%s1894] sm:$0xff]
        %v1896 = vld [vmem:[%s1894 + $0x10] sm:$0xff]
        %v1897 = vld [vmem:[%s1894 + $0x20] sm:$0xff]
        %v1898 = vld [vmem:[%s1894 + $0x30] sm:$0xff]
        %v1899 = vld [vmem:[%s1894 + $0x40] sm:$0xff]
        %v1900 = vld [vmem:[%s1894 + $0x50] sm:$0xff]
        %v1901 = vld [vmem:[%s1894 + $0x60] sm:$0xff]
        %v1902 = vld [vmem:[%s1894 + $0x70] sm:$0xff]
        %v1903 = vld [vmem:[%s1894 + $0xa0] sm:$0xff]
        %v1904 = vld [vmem:[%s1894 + $0xb0] sm:$0xff]
        %v1905 = vld [vmem:[%s1894 + $0xc0] sm:$0xff]
        %v1906 = vld [vmem:[%s1894 + $0xd0] sm:$0xff]
        %v1907 = vld [vmem:[%s1894 + $0xe0] sm:$0xff]
        %v1908 = vld [vmem:[%s1894 + $0xf0] sm:$0xff]
        %v1909 = vld [vmem:[%s1894 + $0x100] sm:$0xff]
        %v1910 = vld [vmem:[%s1894 + $0x110] sm:$0xff]
        %v1911 = vld [vmem:[%s1894 + $0x140] sm:$0xff]
        %v1912 = vld [vmem:[%s1894 + $0x150] sm:$0xff]
        %v1913 = vld [vmem:[%s1894 + $0x160] sm:$0xff]
        %v1914 = vld [vmem:[%s1894 + $0x170] sm:$0xff]
        %v1915 = vld [vmem:[%s1894 + $0x180] sm:$0xff]
        %v1916 = vld [vmem:[%s1894 + $0x190] sm:$0xff]
        %v1917 = vld [vmem:[%s1894 + $0x1a0] sm:$0xff]
        %v1918 = vld [vmem:[%s1894 + $0x1b0] sm:$0xff]
        %v1919 = vld [vmem:[%s1894 + $0x1e0] sm:$0xff]
        %v1920 = vld [vmem:[%s1894 + $0x1f0] sm:$0xff]
        %v1921 = vld [vmem:[%s1894 + $0x200] sm:$0xff]
        %v1922 = vld [vmem:[%s1894 + $0x210] sm:$0xff]
        %v1923 = vld [vmem:[%s1894 + $0x220] sm:$0xff]
        %v1924 = vld [vmem:[%s1894 + $0x230] sm:$0xff]
        %v1925 = vld [vmem:[%s1894 + $0x240] sm:$0xff]
        %v1926 = vld [vmem:[%s1894 + $0x250] sm:$0xff]
        %v1927 = vld [vmem:[%s1894 + $0x280] sm:$0xff]
        %v1928 = vld [vmem:[%s1894 + $0x290] sm:$0xff]
        %v1929 = vld [vmem:[%s1894 + $0x2a0] sm:$0xff]
        %v1930 = vld [vmem:[%s1894 + $0x2b0] sm:$0xff]
        %v1931 = vld [vmem:[%s1894 + $0x2c0] sm:$0xff]
        %v1932 = vld [vmem:[%s1894 + $0x2d0] sm:$0xff]
        %v1933 = vld [vmem:[%s1894 + $0x2e0] sm:$0xff]
        %v1934 = vld [vmem:[%s1894 + $0x2f0] sm:$0xff]
        %v1935 = vld [vmem:[%s1894 + $0x320] sm:$0xff]
        %v1936 = vld [vmem:[%s1894 + $0x330] sm:$0xff]
        %v1937 = vld [vmem:[%s1894 + $0x340] sm:$0xff]
        %v1938 = vld [vmem:[%s1894 + $0x350] sm:$0xff]
        %v1939 = vld [vmem:[%s1894 + $0x360] sm:$0xff]
        %v1940 = vld [vmem:[%s1894 + $0x370] sm:$0xff]
        %v1941 = vld [vmem:[%s1894 + $0x380] sm:$0xff]
        %v1942 = vld [vmem:[%s1894 + $0x390] sm:$0xff]
        %v1943 = vld [vmem:[%s1894 + $0x3c0] sm:$0xff]
        %v1944 = vld [vmem:[%s1894 + $0x3d0] sm:$0xff]
        %v1945 = vld [vmem:[%s1894 + $0x3e0] sm:$0xff]
        %v1946 = vld [vmem:[%s1894 + $0x3f0] sm:$0xff]
        %v1947 = vld [vmem:[%s1894 + $0x400] sm:$0xff]
        %v1948 = vld [vmem:[%s1894 + $0x410] sm:$0xff]
        %v1949 = vld [vmem:[%s1894 + $0x420] sm:$0xff]
        %v1950 = vld [vmem:[%s1894 + $0x430] sm:$0xff]
        %v1951 = vld [vmem:[%s1894 + $0x460] sm:$0xff]
        %v1952 = vld [vmem:[%s1894 + $0x470] sm:$0xff]
        %v1953 = vld [vmem:[%s1894 + $0x480] sm:$0xff]
        %v1954 = vld [vmem:[%s1894 + $0x490] sm:$0xff]
        %v1955 = vld [vmem:[%s1894 + $0x4a0] sm:$0xff]
        %v1956 = vld [vmem:[%s1894 + $0x4b0] sm:$0xff]
        %v1957 = vld [vmem:[%s1894 + $0x4c0] sm:$0xff]
        %v1958 = vld [vmem:[%s1894 + $0x4d0] sm:$0xff]
        %v1959 = vld [vmem:[%s1894 + $0x1] sm:$0xff]
        %v1960 = vld [vmem:[%s1894 + $0x11] sm:$0xff]
        %v1961 = vld [vmem:[%s1894 + $0x21] sm:$0xff]
        %v1962 = vld [vmem:[%s1894 + $0x31] sm:$0xff]
        %v1963 = vld [vmem:[%s1894 + $0x41] sm:$0xff]
        %v1964 = vld [vmem:[%s1894 + $0x51] sm:$0xff]
        %v1965 = vld [vmem:[%s1894 + $0x61] sm:$0xff]
        %v1966 = vld [vmem:[%s1894 + $0x71] sm:$0xff]
        %v1967 = vld [vmem:[%s1894 + $0xa1] sm:$0xff]
        %v1968 = vld [vmem:[%s1894 + $0xb1] sm:$0xff]
        %v1969 = vld [vmem:[%s1894 + $0xc1] sm:$0xff]
        %v1970 = vld [vmem:[%s1894 + $0xd1] sm:$0xff]
        %v1971 = vld [vmem:[%s1894 + $0xe1] sm:$0xff]
        %v1972 = vld [vmem:[%s1894 + $0xf1] sm:$0xff]
        %v1973 = vld [vmem:[%s1894 + $0x101] sm:$0xff]
        %v1974 = vld [vmem:[%s1894 + $0x111] sm:$0xff]
        %v1975 = vld [vmem:[%s1894 + $0x141] sm:$0xff]
        %v1976 = vld [vmem:[%s1894 + $0x151] sm:$0xff]
        %v1977 = vld [vmem:[%s1894 + $0x161] sm:$0xff]
        %v1978 = vld [vmem:[%s1894 + $0x171] sm:$0xff]
        %v1979 = vld [vmem:[%s1894 + $0x181] sm:$0xff]
        %v1980 = vld [vmem:[%s1894 + $0x191] sm:$0xff]
        %v1981 = vld [vmem:[%s1894 + $0x1a1] sm:$0xff]
        %v1982 = vld [vmem:[%s1894 + $0x1b1] sm:$0xff]
        %v1983 = vld [vmem:[%s1894 + $0x1e1] sm:$0xff]
        %v1984 = vld [vmem:[%s1894 + $0x1f1] sm:$0xff]
        %v1985 = vld [vmem:[%s1894 + $0x201] sm:$0xff]
        %v1986 = vld [vmem:[%s1894 + $0x211] sm:$0xff]
        %v1987 = vld [vmem:[%s1894 + $0x221] sm:$0xff]
        %v1988 = vld [vmem:[%s1894 + $0x231] sm:$0xff]
        %v1989 = vld [vmem:[%s1894 + $0x241] sm:$0xff]
        %v1990 = vld [vmem:[%s1894 + $0x251] sm:$0xff]
        %v1991 = vld [vmem:[%s1894 + $0x281] sm:$0xff]
        %v1992 = vld [vmem:[%s1894 + $0x291] sm:$0xff]
        %v1993 = vld [vmem:[%s1894 + $0x2a1] sm:$0xff]
        %v1994 = vld [vmem:[%s1894 + $0x2b1] sm:$0xff]
        %v1995 = vld [vmem:[%s1894 + $0x2c1] sm:$0xff]
        %v1996 = vld [vmem:[%s1894 + $0x2d1] sm:$0xff]
        %v1997 = vld [vmem:[%s1894 + $0x2e1] sm:$0xff]
        %v1998 = vld [vmem:[%s1894 + $0x2f1] sm:$0xff]
        %v1999 = vld [vmem:[%s1894 + $0x321] sm:$0xff]
        %v2000 = vld [vmem:[%s1894 + $0x331] sm:$0xff]
        %v2001 = vld [vmem:[%s1894 + $0x341] sm:$0xff]
        %v2002 = vld [vmem:[%s1894 + $0x351] sm:$0xff]
        %v2003 = vld [vmem:[%s1894 + $0x361] sm:$0xff]
        %v2004 = vld [vmem:[%s1894 + $0x371] sm:$0xff]
        %v2005 = vld [vmem:[%s1894 + $0x381] sm:$0xff]
        %v2006 = vld [vmem:[%s1894 + $0x391] sm:$0xff]
        %v2007 = vld [vmem:[%s1894 + $0x3c1] sm:$0xff]
        %v2008 = vld [vmem:[%s1894 + $0x3d1] sm:$0xff]
        %v2009 = vld [vmem:[%s1894 + $0x3e1] sm:$0xff]
        %v2010 = vld [vmem:[%s1894 + $0x3f1] sm:$0xff]
        %v2011 = vld [vmem:[%s1894 + $0x401] sm:$0xff]
        %v2012 = vld [vmem:[%s1894 + $0x411] sm:$0xff]
        %v2013 = vld [vmem:[%s1894 + $0x421] sm:$0xff]
        %v2014 = vld [vmem:[%s1894 + $0x431] sm:$0xff]
        %v2015 = vld [vmem:[%s1894 + $0x461] sm:$0xff]
        %v2016 = vld [vmem:[%s1894 + $0x471] sm:$0xff]
        %v2017 = vld [vmem:[%s1894 + $0x481] sm:$0xff]
        %v2018 = vld [vmem:[%s1894 + $0x491] sm:$0xff]
        %v2019 = vld [vmem:[%s1894 + $0x4a1] sm:$0xff]
        %v2020 = vld [vmem:[%s1894 + $0x4b1] sm:$0xff]
        %v2021 = vld [vmem:[%s1894 + $0x4c1] sm:$0xff]
        %v2022 = vld [vmem:[%s1894 + $0x4d1] sm:$0xff]
        %v2023 = vld [vmem:[%s1894 + $0x2] sm:$0xff]
        %v2024 = vld [vmem:[%s1894 + $0x12] sm:$0xff]
        %v2025 = vld [vmem:[%s1894 + $0x22] sm:$0xff]
        %v2026 = vld [vmem:[%s1894 + $0x32] sm:$0xff]
        %v2027 = vld [vmem:[%s1894 + $0x42] sm:$0xff]
        %v2028 = vld [vmem:[%s1894 + $0x52] sm:$0xff]
        %v2029 = vld [vmem:[%s1894 + $0x62] sm:$0xff]
        %v2030 = vld [vmem:[%s1894 + $0x72] sm:$0xff]
        %v2031 = vld [vmem:[%s1894 + $0xa2] sm:$0xff]
        %v2032 = vld [vmem:[%s1894 + $0xb2] sm:$0xff]
        %v2033 = vld [vmem:[%s1894 + $0xc2] sm:$0xff]
        %v2034 = vld [vmem:[%s1894 + $0xd2] sm:$0xff]
        %v2035 = vld [vmem:[%s1894 + $0xe2] sm:$0xff]
        %v2036 = vld [vmem:[%s1894 + $0xf2] sm:$0xff]
        %v2037 = vld [vmem:[%s1894 + $0x102] sm:$0xff]
        %v2038 = vld [vmem:[%s1894 + $0x112] sm:$0xff]
        %v2039 = vld [vmem:[%s1894 + $0x142] sm:$0xff]
        %v2040 = vld [vmem:[%s1894 + $0x152] sm:$0xff]
        %v2041 = vld [vmem:[%s1894 + $0x162] sm:$0xff]
        %v2042 = vld [vmem:[%s1894 + $0x172] sm:$0xff]
        %v2043 = vld [vmem:[%s1894 + $0x182] sm:$0xff]
        %v2044 = vld [vmem:[%s1894 + $0x192] sm:$0xff]
        %v2045 = vld [vmem:[%s1894 + $0x1a2] sm:$0xff]
        %v2046 = vld [vmem:[%s1894 + $0x1b2] sm:$0xff]
        %v2047 = vld [vmem:[%s1894 + $0x1e2] sm:$0xff]
        %v2048 = vld [vmem:[%s1894 + $0x1f2] sm:$0xff]
        %v2049 = vld [vmem:[%s1894 + $0x202] sm:$0xff]
        %v2050 = vld [vmem:[%s1894 + $0x212] sm:$0xff]
        %v2051 = vld [vmem:[%s1894 + $0x222] sm:$0xff]
        %v2052 = vld [vmem:[%s1894 + $0x232] sm:$0xff]
        %v2053 = vld [vmem:[%s1894 + $0x242] sm:$0xff]
        %v2054 = vld [vmem:[%s1894 + $0x252] sm:$0xff]
        %v2055 = vld [vmem:[%s1894 + $0x282] sm:$0xff]
        %v2056 = vld [vmem:[%s1894 + $0x292] sm:$0xff]
        %v2057 = vld [vmem:[%s1894 + $0x2a2] sm:$0xff]
        %v2058 = vld [vmem:[%s1894 + $0x2b2] sm:$0xff]
        %v2059 = vld [vmem:[%s1894 + $0x2c2] sm:$0xff]
        %v2060 = vld [vmem:[%s1894 + $0x2d2] sm:$0xff]
        %v2061 = vld [vmem:[%s1894 + $0x2e2] sm:$0xff]
        %v2062 = vld [vmem:[%s1894 + $0x2f2] sm:$0xff]
        %v2063 = vld [vmem:[%s1894 + $0x322] sm:$0xff]
        %v2064 = vld [vmem:[%s1894 + $0x332] sm:$0xff]
        %v2065 = vld [vmem:[%s1894 + $0x342] sm:$0xff]
        %v2066 = vld [vmem:[%s1894 + $0x352] sm:$0xff]
        %v2067 = vld [vmem:[%s1894 + $0x362] sm:$0xff]
        %v2068 = vld [vmem:[%s1894 + $0x372] sm:$0xff]
        %v2069 = vld [vmem:[%s1894 + $0x382] sm:$0xff]
        %v2070 = vld [vmem:[%s1894 + $0x392] sm:$0xff]
        %v2071 = vld [vmem:[%s1894 + $0x3c2] sm:$0xff]
        %v2072 = vld [vmem:[%s1894 + $0x3d2] sm:$0xff]
        %v2073 = vld [vmem:[%s1894 + $0x3e2] sm:$0xff]
        %v2074 = vld [vmem:[%s1894 + $0x3f2] sm:$0xff]
        %v2075 = vld [vmem:[%s1894 + $0x402] sm:$0xff]
        %v2076 = vld [vmem:[%s1894 + $0x412] sm:$0xff]
        %v2077 = vld [vmem:[%s1894 + $0x422] sm:$0xff]
        %v2078 = vld [vmem:[%s1894 + $0x432] sm:$0xff]
        %v2079 = vld [vmem:[%s1894 + $0x462] sm:$0xff]
        %v2080 = vld [vmem:[%s1894 + $0x472] sm:$0xff]
        %v2081 = vld [vmem:[%s1894 + $0x482] sm:$0xff]
        %v2082 = vld [vmem:[%s1894 + $0x492] sm:$0xff]
        %v2083 = vld [vmem:[%s1894 + $0x4a2] sm:$0xff]
        %v2084 = vld [vmem:[%s1894 + $0x4b2] sm:$0xff]
        %v2085 = vld [vmem:[%s1894 + $0x4c2] sm:$0xff]
        %v2086 = vld [vmem:[%s1894 + $0x4d2] sm:$0xff]
        %s2087 = scalar_lea.vmem [#allocation2], 352
        %v2088 = vld [vmem:[%s2087] sm:$0xff]
        %v2089 = vld [vmem:[%s2087 + $0x10] sm:$0xff]
        %v2090 = vld [vmem:[%s2087 + $0x20] sm:$0xff]
        %v2091 = vld [vmem:[%s2087 + $0x30] sm:$0xff]
        %v2092 = vld [vmem:[%s2087 + $0x40] sm:$0xff]
        %v2093 = vld [vmem:[%s2087 + $0x50] sm:$0xff]
        %v2094 = vld [vmem:[%s2087 + $0x60] sm:$0xff]
        %v2095 = vld [vmem:[%s2087 + $0x70] sm:$0xff]
        %v2096 = vld [vmem:[%s2087 + $0xa0] sm:$0xff]
        %v2097 = vld [vmem:[%s2087 + $0xb0] sm:$0xff]
        %v2098 = vld [vmem:[%s2087 + $0xc0] sm:$0xff]
        %v2099 = vld [vmem:[%s2087 + $0xd0] sm:$0xff]
        %v2100 = vld [vmem:[%s2087 + $0xe0] sm:$0xff]
        %v2101 = vld [vmem:[%s2087 + $0xf0] sm:$0xff]
        %v2102 = vld [vmem:[%s2087 + $0x100] sm:$0xff]
        %v2103 = vld [vmem:[%s2087 + $0x110] sm:$0xff]
        %v2104 = vld [vmem:[%s2087 + $0x140] sm:$0xff]
        %v2105 = vld [vmem:[%s2087 + $0x150] sm:$0xff]
        %v2106 = vld [vmem:[%s2087 + $0x160] sm:$0xff]
        %v2107 = vld [vmem:[%s2087 + $0x170] sm:$0xff]
        %v2108 = vld [vmem:[%s2087 + $0x180] sm:$0xff]
        %v2109 = vld [vmem:[%s2087 + $0x190] sm:$0xff]
        %v2110 = vld [vmem:[%s2087 + $0x1a0] sm:$0xff]
        %v2111 = vld [vmem:[%s2087 + $0x1b0] sm:$0xff]
        %v2112 = vld [vmem:[%s2087 + $0x1e0] sm:$0xff]
        %v2113 = vld [vmem:[%s2087 + $0x1f0] sm:$0xff]
        %v2114 = vld [vmem:[%s2087 + $0x200] sm:$0xff]
        %v2115 = vld [vmem:[%s2087 + $0x210] sm:$0xff]
        %v2116 = vld [vmem:[%s2087 + $0x220] sm:$0xff]
        %v2117 = vld [vmem:[%s2087 + $0x230] sm:$0xff]
        %v2118 = vld [vmem:[%s2087 + $0x240] sm:$0xff]
        %v2119 = vld [vmem:[%s2087 + $0x250] sm:$0xff]
        %v2120 = vld [vmem:[%s2087 + $0x280] sm:$0xff]
        %v2121 = vld [vmem:[%s2087 + $0x290] sm:$0xff]
        %v2122 = vld [vmem:[%s2087 + $0x2a0] sm:$0xff]
        %v2123 = vld [vmem:[%s2087 + $0x2b0] sm:$0xff]
        %v2124 = vld [vmem:[%s2087 + $0x2c0] sm:$0xff]
        %v2125 = vld [vmem:[%s2087 + $0x2d0] sm:$0xff]
        %v2126 = vld [vmem:[%s2087 + $0x2e0] sm:$0xff]
        %v2127 = vld [vmem:[%s2087 + $0x2f0] sm:$0xff]
        %v2128 = vld [vmem:[%s2087 + $0x320] sm:$0xff]
        %v2129 = vld [vmem:[%s2087 + $0x330] sm:$0xff]
        %v2130 = vld [vmem:[%s2087 + $0x340] sm:$0xff]
        %v2131 = vld [vmem:[%s2087 + $0x350] sm:$0xff]
        %v2132 = vld [vmem:[%s2087 + $0x360] sm:$0xff]
        %v2133 = vld [vmem:[%s2087 + $0x370] sm:$0xff]
        %v2134 = vld [vmem:[%s2087 + $0x380] sm:$0xff]
        %v2135 = vld [vmem:[%s2087 + $0x390] sm:$0xff]
        %v2136 = vld [vmem:[%s2087 + $0x3c0] sm:$0xff]
        %v2137 = vld [vmem:[%s2087 + $0x3d0] sm:$0xff]
        %v2138 = vld [vmem:[%s2087 + $0x3e0] sm:$0xff]
        %v2139 = vld [vmem:[%s2087 + $0x3f0] sm:$0xff]
        %v2140 = vld [vmem:[%s2087 + $0x400] sm:$0xff]
        %v2141 = vld [vmem:[%s2087 + $0x410] sm:$0xff]
        %v2142 = vld [vmem:[%s2087 + $0x420] sm:$0xff]
        %v2143 = vld [vmem:[%s2087 + $0x430] sm:$0xff]
        %v2144 = vld [vmem:[%s2087 + $0x460] sm:$0xff]
        %v2145 = vld [vmem:[%s2087 + $0x470] sm:$0xff]
        %v2146 = vld [vmem:[%s2087 + $0x480] sm:$0xff]
        %v2147 = vld [vmem:[%s2087 + $0x490] sm:$0xff]
        %v2148 = vld [vmem:[%s2087 + $0x4a0] sm:$0xff]
        %v2149 = vld [vmem:[%s2087 + $0x4b0] sm:$0xff]
        %v2150 = vld [vmem:[%s2087 + $0x4c0] sm:$0xff]
        %v2151 = vld [vmem:[%s2087 + $0x4d0] sm:$0xff]
        %v2152 = vld [vmem:[%s2087 + $0x1] sm:$0xff]
        %v2153 = vld [vmem:[%s2087 + $0x11] sm:$0xff]
        %v2154 = vld [vmem:[%s2087 + $0x21] sm:$0xff]
        %v2155 = vld [vmem:[%s2087 + $0x31] sm:$0xff]
        %v2156 = vld [vmem:[%s2087 + $0x41] sm:$0xff]
        %v2157 = vld [vmem:[%s2087 + $0x51] sm:$0xff]
        %v2158 = vld [vmem:[%s2087 + $0x61] sm:$0xff]
        %v2159 = vld [vmem:[%s2087 + $0x71] sm:$0xff]
        %v2160 = vld [vmem:[%s2087 + $0xa1] sm:$0xff]
        %v2161 = vld [vmem:[%s2087 + $0xb1] sm:$0xff]
        %v2162 = vld [vmem:[%s2087 + $0xc1] sm:$0xff]
        %v2163 = vld [vmem:[%s2087 + $0xd1] sm:$0xff]
        %v2164 = vld [vmem:[%s2087 + $0xe1] sm:$0xff]
        %v2165 = vld [vmem:[%s2087 + $0xf1] sm:$0xff]
        %v2166 = vld [vmem:[%s2087 + $0x101] sm:$0xff]
        %v2167 = vld [vmem:[%s2087 + $0x111] sm:$0xff]
        %v2168 = vld [vmem:[%s2087 + $0x141] sm:$0xff]
        %v2169 = vld [vmem:[%s2087 + $0x151] sm:$0xff]
        %v2170 = vld [vmem:[%s2087 + $0x161] sm:$0xff]
        %v2171 = vld [vmem:[%s2087 + $0x171] sm:$0xff]
        %v2172 = vld [vmem:[%s2087 + $0x181] sm:$0xff]
        %v2173 = vld [vmem:[%s2087 + $0x191] sm:$0xff]
        %v2174 = vld [vmem:[%s2087 + $0x1a1] sm:$0xff]
        %v2175 = vld [vmem:[%s2087 + $0x1b1] sm:$0xff]
        %v2176 = vld [vmem:[%s2087 + $0x1e1] sm:$0xff]
        %v2177 = vld [vmem:[%s2087 + $0x1f1] sm:$0xff]
        %v2178 = vld [vmem:[%s2087 + $0x201] sm:$0xff]
        %v2179 = vld [vmem:[%s2087 + $0x211] sm:$0xff]
        %v2180 = vld [vmem:[%s2087 + $0x221] sm:$0xff]
        %v2181 = vld [vmem:[%s2087 + $0x231] sm:$0xff]
        %v2182 = vld [vmem:[%s2087 + $0x241] sm:$0xff]
        %v2183 = vld [vmem:[%s2087 + $0x251] sm:$0xff]
        %v2184 = vld [vmem:[%s2087 + $0x281] sm:$0xff]
        %v2185 = vld [vmem:[%s2087 + $0x291] sm:$0xff]
        %v2186 = vld [vmem:[%s2087 + $0x2a1] sm:$0xff]
        %v2187 = vld [vmem:[%s2087 + $0x2b1] sm:$0xff]
        %v2188 = vld [vmem:[%s2087 + $0x2c1] sm:$0xff]
        %v2189 = vld [vmem:[%s2087 + $0x2d1] sm:$0xff]
        %v2190 = vld [vmem:[%s2087 + $0x2e1] sm:$0xff]
        %v2191 = vld [vmem:[%s2087 + $0x2f1] sm:$0xff]
        %v2192 = vld [vmem:[%s2087 + $0x321] sm:$0xff]
        %v2193 = vld [vmem:[%s2087 + $0x331] sm:$0xff]
        %v2194 = vld [vmem:[%s2087 + $0x341] sm:$0xff]
        %v2195 = vld [vmem:[%s2087 + $0x351] sm:$0xff]
        %v2196 = vld [vmem:[%s2087 + $0x361] sm:$0xff]
        %v2197 = vld [vmem:[%s2087 + $0x371] sm:$0xff]
        %v2198 = vld [vmem:[%s2087 + $0x381] sm:$0xff]
        %v2199 = vld [vmem:[%s2087 + $0x391] sm:$0xff]
        %v2200 = vld [vmem:[%s2087 + $0x3c1] sm:$0xff]
        %v2201 = vld [vmem:[%s2087 + $0x3d1] sm:$0xff]
        %v2202 = vld [vmem:[%s2087 + $0x3e1] sm:$0xff]
        %v2203 = vld [vmem:[%s2087 + $0x3f1] sm:$0xff]
        %v2204 = vld [vmem:[%s2087 + $0x401] sm:$0xff]
        %v2205 = vld [vmem:[%s2087 + $0x411] sm:$0xff]
        %v2206 = vld [vmem:[%s2087 + $0x421] sm:$0xff]
        %v2207 = vld [vmem:[%s2087 + $0x431] sm:$0xff]
        %v2208 = vld [vmem:[%s2087 + $0x461] sm:$0xff]
        %v2209 = vld [vmem:[%s2087 + $0x471] sm:$0xff]
        %v2210 = vld [vmem:[%s2087 + $0x481] sm:$0xff]
        %v2211 = vld [vmem:[%s2087 + $0x491] sm:$0xff]
        %v2212 = vld [vmem:[%s2087 + $0x4a1] sm:$0xff]
        %v2213 = vld [vmem:[%s2087 + $0x4b1] sm:$0xff]
        %v2214 = vld [vmem:[%s2087 + $0x4c1] sm:$0xff]
        %v2215 = vld [vmem:[%s2087 + $0x4d1] sm:$0xff]
        %v2216 = vld [vmem:[%s2087 + $0x2] sm:$0xff]
        %v2217 = vld [vmem:[%s2087 + $0x12] sm:$0xff]
        %v2218 = vld [vmem:[%s2087 + $0x22] sm:$0xff]
        %v2219 = vld [vmem:[%s2087 + $0x32] sm:$0xff]
        %v2220 = vld [vmem:[%s2087 + $0x42] sm:$0xff]
        %v2221 = vld [vmem:[%s2087 + $0x52] sm:$0xff]
        %v2222 = vld [vmem:[%s2087 + $0x62] sm:$0xff]
        %v2223 = vld [vmem:[%s2087 + $0x72] sm:$0xff]
        %v2224 = vld [vmem:[%s2087 + $0xa2] sm:$0xff]
        %v2225 = vld [vmem:[%s2087 + $0xb2] sm:$0xff]
        %v2226 = vld [vmem:[%s2087 + $0xc2] sm:$0xff]
        %v2227 = vld [vmem:[%s2087 + $0xd2] sm:$0xff]
        %v2228 = vld [vmem:[%s2087 + $0xe2] sm:$0xff]
        %v2229 = vld [vmem:[%s2087 + $0xf2] sm:$0xff]
        %v2230 = vld [vmem:[%s2087 + $0x102] sm:$0xff]
        %v2231 = vld [vmem:[%s2087 + $0x112] sm:$0xff]
        %v2232 = vld [vmem:[%s2087 + $0x142] sm:$0xff]
        %v2233 = vld [vmem:[%s2087 + $0x152] sm:$0xff]
        %v2234 = vld [vmem:[%s2087 + $0x162] sm:$0xff]
        %v2235 = vld [vmem:[%s2087 + $0x172] sm:$0xff]
        %v2236 = vld [vmem:[%s2087 + $0x182] sm:$0xff]
        %v2237 = vld [vmem:[%s2087 + $0x192] sm:$0xff]
        %v2238 = vld [vmem:[%s2087 + $0x1a2] sm:$0xff]
        %v2239 = vld [vmem:[%s2087 + $0x1b2] sm:$0xff]
        %v2240 = vld [vmem:[%s2087 + $0x1e2] sm:$0xff]
        %v2241 = vld [vmem:[%s2087 + $0x1f2] sm:$0xff]
        %v2242 = vld [vmem:[%s2087 + $0x202] sm:$0xff]
        %v2243 = vld [vmem:[%s2087 + $0x212] sm:$0xff]
        %v2244 = vld [vmem:[%s2087 + $0x222] sm:$0xff]
        %v2245 = vld [vmem:[%s2087 + $0x232] sm:$0xff]
        %v2246 = vld [vmem:[%s2087 + $0x242] sm:$0xff]
        %v2247 = vld [vmem:[%s2087 + $0x252] sm:$0xff]
        %v2248 = vld [vmem:[%s2087 + $0x282] sm:$0xff]
        %v2249 = vld [vmem:[%s2087 + $0x292] sm:$0xff]
        %v2250 = vld [vmem:[%s2087 + $0x2a2] sm:$0xff]
        %v2251 = vld [vmem:[%s2087 + $0x2b2] sm:$0xff]
        %v2252 = vld [vmem:[%s2087 + $0x2c2] sm:$0xff]
        %v2253 = vld [vmem:[%s2087 + $0x2d2] sm:$0xff]
        %v2254 = vld [vmem:[%s2087 + $0x2e2] sm:$0xff]
        %v2255 = vld [vmem:[%s2087 + $0x2f2] sm:$0xff]
        %v2256 = vld [vmem:[%s2087 + $0x322] sm:$0xff]
        %v2257 = vld [vmem:[%s2087 + $0x332] sm:$0xff]
        %v2258 = vld [vmem:[%s2087 + $0x342] sm:$0xff]
        %v2259 = vld [vmem:[%s2087 + $0x352] sm:$0xff]
        %v2260 = vld [vmem:[%s2087 + $0x362] sm:$0xff]
        %v2261 = vld [vmem:[%s2087 + $0x372] sm:$0xff]
        %v2262 = vld [vmem:[%s2087 + $0x382] sm:$0xff]
        %v2263 = vld [vmem:[%s2087 + $0x392] sm:$0xff]
        %v2264 = vld [vmem:[%s2087 + $0x3c2] sm:$0xff]
        %v2265 = vld [vmem:[%s2087 + $0x3d2] sm:$0xff]
        %v2266 = vld [vmem:[%s2087 + $0x3e2] sm:$0xff]
        %v2267 = vld [vmem:[%s2087 + $0x3f2] sm:$0xff]
        %v2268 = vld [vmem:[%s2087 + $0x402] sm:$0xff]
        %v2269 = vld [vmem:[%s2087 + $0x412] sm:$0xff]
        %v2270 = vld [vmem:[%s2087 + $0x422] sm:$0xff]
        %v2271 = vld [vmem:[%s2087 + $0x432] sm:$0xff]
        %v2272 = vld [vmem:[%s2087 + $0x462] sm:$0xff]
        %v2273 = vld [vmem:[%s2087 + $0x472] sm:$0xff]
        %v2274 = vld [vmem:[%s2087 + $0x482] sm:$0xff]
        %v2275 = vld [vmem:[%s2087 + $0x492] sm:$0xff]
        %v2276 = vld [vmem:[%s2087 + $0x4a2] sm:$0xff]
        %v2277 = vld [vmem:[%s2087 + $0x4b2] sm:$0xff]
        %v2278 = vld [vmem:[%s2087 + $0x4c2] sm:$0xff]
        %v2279 = vld [vmem:[%s2087 + $0x4d2] sm:$0xff]
        %2344 = vrot.lane.b32.xlu0 %v609, 4
        %v2345 = vpop.permute.xlu0 %2344
        %2346 = vrot.lane.b32.xlu0 %v610, 4
        %v2347 = vpop.permute.xlu0 %2346
        %2348 = vrot.lane.b32.xlu0 %v611, 4
        %v2349 = vpop.permute.xlu0 %2348
        %2350 = vrot.lane.b32.xlu0 %v612, 4
        %v2351 = vpop.permute.xlu0 %2350
        %2352 = vrot.lane.b32.xlu0 %v613, 4
        %v2353 = vpop.permute.xlu0 %2352
        %2354 = vrot.lane.b32.xlu0 %v614, 4
        %v2355 = vpop.permute.xlu0 %2354
        %2356 = vrot.lane.b32.xlu0 %v615, 4
        %v2357 = vpop.permute.xlu0 %2356
        %2358 = vrot.lane.b32.xlu0 %v616, 4
        %v2359 = vpop.permute.xlu0 %2358
        %2360 = vrot.lane.b32.xlu0 %v617, 4
        %v2361 = vpop.permute.xlu0 %2360
        %2362 = vrot.lane.b32.xlu0 %v618, 4
        %v2363 = vpop.permute.xlu0 %2362
        %2364 = vrot.lane.b32.xlu0 %v619, 4
        %v2365 = vpop.permute.xlu0 %2364
        %2366 = vrot.lane.b32.xlu0 %v620, 4
        %v2367 = vpop.permute.xlu0 %2366
        %2368 = vrot.lane.b32.xlu0 %v621, 4
        %v2369 = vpop.permute.xlu0 %2368
        %2370 = vrot.lane.b32.xlu0 %v622, 4
        %v2371 = vpop.permute.xlu0 %2370
        %2372 = vrot.lane.b32.xlu0 %v623, 4
        %v2373 = vpop.permute.xlu0 %2372
        %2374 = vrot.lane.b32.xlu0 %v624, 4
        %v2375 = vpop.permute.xlu0 %2374
        %2376 = vrot.lane.b32.xlu0 %v625, 4
        %v2377 = vpop.permute.xlu0 %2376
        %2378 = vrot.lane.b32.xlu0 %v626, 4
        %v2379 = vpop.permute.xlu0 %2378
        %2380 = vrot.lane.b32.xlu0 %v627, 4
        %v2381 = vpop.permute.xlu0 %2380
        %2382 = vrot.lane.b32.xlu0 %v628, 4
        %v2383 = vpop.permute.xlu0 %2382
        %2384 = vrot.lane.b32.xlu0 %v629, 4
        %v2385 = vpop.permute.xlu0 %2384
        %2386 = vrot.lane.b32.xlu0 %v630, 4
        %v2387 = vpop.permute.xlu0 %2386
        %2388 = vrot.lane.b32.xlu0 %v631, 4
        %v2389 = vpop.permute.xlu0 %2388
        %2390 = vrot.lane.b32.xlu0 %v632, 4
        %v2391 = vpop.permute.xlu0 %2390
        %2392 = vrot.lane.b32.xlu0 %v633, 4
        %v2393 = vpop.permute.xlu0 %2392
        %2394 = vrot.lane.b32.xlu0 %v634, 4
        %v2395 = vpop.permute.xlu0 %2394
        %2396 = vrot.lane.b32.xlu0 %v635, 4
        %v2397 = vpop.permute.xlu0 %2396
        %2398 = vrot.lane.b32.xlu0 %v636, 4
        %v2399 = vpop.permute.xlu0 %2398
        %2400 = vrot.lane.b32.xlu0 %v637, 4
        %v2401 = vpop.permute.xlu0 %2400
        %2402 = vrot.lane.b32.xlu0 %v638, 4
        %v2403 = vpop.permute.xlu0 %2402
        %2404 = vrot.lane.b32.xlu0 %v639, 4
        %v2405 = vpop.permute.xlu0 %2404
        %2406 = vrot.lane.b32.xlu0 %v640, 4
        %v2407 = vpop.permute.xlu0 %2406
        %2408 = vrot.lane.b32.xlu0 %v641, 4
        %v2409 = vpop.permute.xlu0 %2408
        %2410 = vrot.lane.b32.xlu0 %v642, 4
        %v2411 = vpop.permute.xlu0 %2410
        %2412 = vrot.lane.b32.xlu0 %v643, 4
        %v2413 = vpop.permute.xlu0 %2412
        %2414 = vrot.lane.b32.xlu0 %v644, 4
        %v2415 = vpop.permute.xlu0 %2414
        %2416 = vrot.lane.b32.xlu0 %v645, 4
        %v2417 = vpop.permute.xlu0 %2416
        %2418 = vrot.lane.b32.xlu0 %v646, 4
        %v2419 = vpop.permute.xlu0 %2418
        %2420 = vrot.lane.b32.xlu0 %v647, 4
        %v2421 = vpop.permute.xlu0 %2420
        %2422 = vrot.lane.b32.xlu0 %v648, 4
        %v2423 = vpop.permute.xlu0 %2422
        %2424 = vrot.lane.b32.xlu0 %v649, 4
        %v2425 = vpop.permute.xlu0 %2424
        %2426 = vrot.lane.b32.xlu0 %v650, 4
        %v2427 = vpop.permute.xlu0 %2426
        %2428 = vrot.lane.b32.xlu0 %v651, 4
        %v2429 = vpop.permute.xlu0 %2428
        %2430 = vrot.lane.b32.xlu0 %v652, 4
        %v2431 = vpop.permute.xlu0 %2430
        %2432 = vrot.lane.b32.xlu0 %v653, 4
        %v2433 = vpop.permute.xlu0 %2432
        %2434 = vrot.lane.b32.xlu0 %v654, 4
        %v2435 = vpop.permute.xlu0 %2434
        %2436 = vrot.lane.b32.xlu0 %v655, 4
        %v2437 = vpop.permute.xlu0 %2436
        %2438 = vrot.lane.b32.xlu0 %v656, 4
        %v2439 = vpop.permute.xlu0 %2438
        %2440 = vrot.lane.b32.xlu0 %v657, 4
        %v2441 = vpop.permute.xlu0 %2440
        %2442 = vrot.lane.b32.xlu0 %v658, 4
        %v2443 = vpop.permute.xlu0 %2442
        %2444 = vrot.lane.b32.xlu0 %v659, 4
        %v2445 = vpop.permute.xlu0 %2444
        %2446 = vrot.lane.b32.xlu0 %v660, 4
        %v2447 = vpop.permute.xlu0 %2446
        %2448 = vrot.lane.b32.xlu0 %v661, 4
        %v2449 = vpop.permute.xlu0 %2448
        %2450 = vrot.lane.b32.xlu0 %v662, 4
        %v2451 = vpop.permute.xlu0 %2450
        %2452 = vrot.lane.b32.xlu0 %v663, 4
        %v2453 = vpop.permute.xlu0 %2452
        %2454 = vrot.lane.b32.xlu0 %v664, 4
        %v2455 = vpop.permute.xlu0 %2454
        %2456 = vrot.lane.b32.xlu0 %v665, 4
        %v2457 = vpop.permute.xlu0 %2456
        %2458 = vrot.lane.b32.xlu0 %v666, 4
        %v2459 = vpop.permute.xlu0 %2458
        %2460 = vrot.lane.b32.xlu0 %v667, 4
        %v2461 = vpop.permute.xlu0 %2460
        %2462 = vrot.lane.b32.xlu0 %v668, 4
        %v2463 = vpop.permute.xlu0 %2462
        %2464 = vrot.lane.b32.xlu0 %v669, 4
        %v2465 = vpop.permute.xlu0 %2464
        %2466 = vrot.lane.b32.xlu0 %v670, 4
        %v2467 = vpop.permute.xlu0 %2466
        %2468 = vrot.lane.b32.xlu0 %v671, 4
        %v2469 = vpop.permute.xlu0 %2468
        %2470 = vrot.lane.b32.xlu0 %v672, 4
        %v2471 = vpop.permute.xlu0 %2470
        %2600 = vrot.lane.b32.xlu0 %v673, 8
        %v2601 = vpop.permute.xlu0 %2600
        %2602 = vrot.lane.b32.xlu0 %v674, 8
        %v2603 = vpop.permute.xlu0 %2602
        %2604 = vrot.lane.b32.xlu0 %v675, 8
        %v2605 = vpop.permute.xlu0 %2604
        %2606 = vrot.lane.b32.xlu0 %v676, 8
        %v2607 = vpop.permute.xlu0 %2606
        %2608 = vrot.lane.b32.xlu0 %v677, 8
        %v2609 = vpop.permute.xlu0 %2608
        %2610 = vrot.lane.b32.xlu0 %v678, 8
        %v2611 = vpop.permute.xlu0 %2610
        %2612 = vrot.lane.b32.xlu0 %v679, 8
        %v2613 = vpop.permute.xlu0 %2612
        %2614 = vrot.lane.b32.xlu0 %v680, 8
        %v2615 = vpop.permute.xlu0 %2614
        %2616 = vrot.lane.b32.xlu0 %v681, 8
        %v2617 = vpop.permute.xlu0 %2616
        %2618 = vrot.lane.b32.xlu0 %v682, 8
        %v2619 = vpop.permute.xlu0 %2618
        %2620 = vrot.lane.b32.xlu0 %v683, 8
        %v2621 = vpop.permute.xlu0 %2620
        %2622 = vrot.lane.b32.xlu0 %v684, 8
        %v2623 = vpop.permute.xlu0 %2622
        %2624 = vrot.lane.b32.xlu0 %v685, 8
        %v2625 = vpop.permute.xlu0 %2624
        %2626 = vrot.lane.b32.xlu0 %v686, 8
        %v2627 = vpop.permute.xlu0 %2626
        %2628 = vrot.lane.b32.xlu0 %v687, 8
        %v2629 = vpop.permute.xlu0 %2628
        %2630 = vrot.lane.b32.xlu0 %v688, 8
        %v2631 = vpop.permute.xlu0 %2630
        %2632 = vrot.lane.b32.xlu0 %v689, 8
        %v2633 = vpop.permute.xlu0 %2632
        %2634 = vrot.lane.b32.xlu0 %v690, 8
        %v2635 = vpop.permute.xlu0 %2634
        %2636 = vrot.lane.b32.xlu0 %v691, 8
        %v2637 = vpop.permute.xlu0 %2636
        %2638 = vrot.lane.b32.xlu0 %v692, 8
        %v2639 = vpop.permute.xlu0 %2638
        %2640 = vrot.lane.b32.xlu0 %v693, 8
        %v2641 = vpop.permute.xlu0 %2640
        %2642 = vrot.lane.b32.xlu0 %v694, 8
        %v2643 = vpop.permute.xlu0 %2642
        %2644 = vrot.lane.b32.xlu0 %v695, 8
        %v2645 = vpop.permute.xlu0 %2644
        %2646 = vrot.lane.b32.xlu0 %v696, 8
        %v2647 = vpop.permute.xlu0 %2646
        %2648 = vrot.lane.b32.xlu0 %v697, 8
        %v2649 = vpop.permute.xlu0 %2648
        %2650 = vrot.lane.b32.xlu0 %v698, 8
        %v2651 = vpop.permute.xlu0 %2650
        %2652 = vrot.lane.b32.xlu0 %v699, 8
        %v2653 = vpop.permute.xlu0 %2652
        %2654 = vrot.lane.b32.xlu0 %v700, 8
        %v2655 = vpop.permute.xlu0 %2654
        %2656 = vrot.lane.b32.xlu0 %v701, 8
        %v2657 = vpop.permute.xlu0 %2656
        %2658 = vrot.lane.b32.xlu0 %v702, 8
        %v2659 = vpop.permute.xlu0 %2658
        %2660 = vrot.lane.b32.xlu0 %v703, 8
        %v2661 = vpop.permute.xlu0 %2660
        %2662 = vrot.lane.b32.xlu0 %v704, 8
        %v2663 = vpop.permute.xlu0 %2662
        %2664 = vrot.lane.b32.xlu0 %v705, 8
        %v2665 = vpop.permute.xlu0 %2664
        %2666 = vrot.lane.b32.xlu0 %v706, 8
        %v2667 = vpop.permute.xlu0 %2666
        %2668 = vrot.lane.b32.xlu0 %v707, 8
        %v2669 = vpop.permute.xlu0 %2668
        %2670 = vrot.lane.b32.xlu0 %v708, 8
        %v2671 = vpop.permute.xlu0 %2670
        %2672 = vrot.lane.b32.xlu0 %v709, 8
        %v2673 = vpop.permute.xlu0 %2672
        %2674 = vrot.lane.b32.xlu0 %v710, 8
        %v2675 = vpop.permute.xlu0 %2674
        %2676 = vrot.lane.b32.xlu0 %v711, 8
        %v2677 = vpop.permute.xlu0 %2676
        %2678 = vrot.lane.b32.xlu0 %v712, 8
        %v2679 = vpop.permute.xlu0 %2678
        %2680 = vrot.lane.b32.xlu0 %v713, 8
        %v2681 = vpop.permute.xlu0 %2680
        %2682 = vrot.lane.b32.xlu0 %v714, 8
        %v2683 = vpop.permute.xlu0 %2682
        %2684 = vrot.lane.b32.xlu0 %v715, 8
        %v2685 = vpop.permute.xlu0 %2684
        %2686 = vrot.lane.b32.xlu0 %v716, 8
        %v2687 = vpop.permute.xlu0 %2686
        %2688 = vrot.lane.b32.xlu0 %v717, 8
        %v2689 = vpop.permute.xlu0 %2688
        %2690 = vrot.lane.b32.xlu0 %v718, 8
        %v2691 = vpop.permute.xlu0 %2690
        %2692 = vrot.lane.b32.xlu0 %v719, 8
        %v2693 = vpop.permute.xlu0 %2692
        %2694 = vrot.lane.b32.xlu0 %v720, 8
        %v2695 = vpop.permute.xlu0 %2694
        %2696 = vrot.lane.b32.xlu0 %v721, 8
        %v2697 = vpop.permute.xlu0 %2696
        %2698 = vrot.lane.b32.xlu0 %v722, 8
        %v2699 = vpop.permute.xlu0 %2698
        %2700 = vrot.lane.b32.xlu0 %v723, 8
        %v2701 = vpop.permute.xlu0 %2700
        %2702 = vrot.lane.b32.xlu0 %v724, 8
        %v2703 = vpop.permute.xlu0 %2702
        %2704 = vrot.lane.b32.xlu0 %v725, 8
        %v2705 = vpop.permute.xlu0 %2704
        %2706 = vrot.lane.b32.xlu0 %v726, 8
        %v2707 = vpop.permute.xlu0 %2706
        %2708 = vrot.lane.b32.xlu0 %v727, 8
        %v2709 = vpop.permute.xlu0 %2708
        %2710 = vrot.lane.b32.xlu0 %v728, 8
        %v2711 = vpop.permute.xlu0 %2710
        %2712 = vrot.lane.b32.xlu0 %v729, 8
        %v2713 = vpop.permute.xlu0 %2712
        %2714 = vrot.lane.b32.xlu0 %v730, 8
        %v2715 = vpop.permute.xlu0 %2714
        %2716 = vrot.lane.b32.xlu0 %v731, 8
        %v2717 = vpop.permute.xlu0 %2716
        %2718 = vrot.lane.b32.xlu0 %v732, 8
        %v2719 = vpop.permute.xlu0 %2718
        %2720 = vrot.lane.b32.xlu0 %v733, 8
        %v2721 = vpop.permute.xlu0 %2720
        %2722 = vrot.lane.b32.xlu0 %v734, 8
        %v2723 = vpop.permute.xlu0 %2722
        %2724 = vrot.lane.b32.xlu0 %v735, 8
        %v2725 = vpop.permute.xlu0 %2724
        %2726 = vrot.lane.b32.xlu0 %v736, 8
        %v2727 = vpop.permute.xlu0 %2726
        %2856 = vrot.lane.b32.xlu0 %v738, 12
        %v2857 = vpop.permute.xlu0 %2856
        %2858 = vrot.lane.b32.xlu0 %v739, 12
        %v2859 = vpop.permute.xlu0 %2858
        %2860 = vrot.lane.b32.xlu0 %v740, 12
        %v2861 = vpop.permute.xlu0 %2860
        %2862 = vrot.lane.b32.xlu0 %v741, 12
        %v2863 = vpop.permute.xlu0 %2862
        %2864 = vrot.lane.b32.xlu0 %v742, 12
        %v2865 = vpop.permute.xlu0 %2864
        %2866 = vrot.lane.b32.xlu0 %v743, 12
        %v2867 = vpop.permute.xlu0 %2866
        %2868 = vrot.lane.b32.xlu0 %v744, 12
        %v2869 = vpop.permute.xlu0 %2868
        %2870 = vrot.lane.b32.xlu0 %v745, 12
        %v2871 = vpop.permute.xlu0 %2870
        %2872 = vrot.lane.b32.xlu0 %v746, 12
        %v2873 = vpop.permute.xlu0 %2872
        %2874 = vrot.lane.b32.xlu0 %v747, 12
        %v2875 = vpop.permute.xlu0 %2874
        %2876 = vrot.lane.b32.xlu0 %v748, 12
        %v2877 = vpop.permute.xlu0 %2876
        %2878 = vrot.lane.b32.xlu0 %v749, 12
        %v2879 = vpop.permute.xlu0 %2878
        %2880 = vrot.lane.b32.xlu0 %v750, 12
        %v2881 = vpop.permute.xlu0 %2880
        %2882 = vrot.lane.b32.xlu0 %v751, 12
        %v2883 = vpop.permute.xlu0 %2882
        %2884 = vrot.lane.b32.xlu0 %v752, 12
        %v2885 = vpop.permute.xlu0 %2884
        %2886 = vrot.lane.b32.xlu0 %v753, 12
        %v2887 = vpop.permute.xlu0 %2886
        %2888 = vrot.lane.b32.xlu0 %v754, 12
        %v2889 = vpop.permute.xlu0 %2888
        %2890 = vrot.lane.b32.xlu0 %v755, 12
        %v2891 = vpop.permute.xlu0 %2890
        %2892 = vrot.lane.b32.xlu0 %v756, 12
        %v2893 = vpop.permute.xlu0 %2892
        %2894 = vrot.lane.b32.xlu0 %v757, 12
        %v2895 = vpop.permute.xlu0 %2894
        %2896 = vrot.lane.b32.xlu0 %v758, 12
        %v2897 = vpop.permute.xlu0 %2896
        %2898 = vrot.lane.b32.xlu0 %v759, 12
        %v2899 = vpop.permute.xlu0 %2898
        %2900 = vrot.lane.b32.xlu0 %v760, 12
        %v2901 = vpop.permute.xlu0 %2900
        %2902 = vrot.lane.b32.xlu0 %v761, 12
        %v2903 = vpop.permute.xlu0 %2902
        %2904 = vrot.lane.b32.xlu0 %v762, 12
        %v2905 = vpop.permute.xlu0 %2904
        %2906 = vrot.lane.b32.xlu0 %v763, 12
        %v2907 = vpop.permute.xlu0 %2906
        %2908 = vrot.lane.b32.xlu0 %v764, 12
        %v2909 = vpop.permute.xlu0 %2908
        %2910 = vrot.lane.b32.xlu0 %v765, 12
        %v2911 = vpop.permute.xlu0 %2910
        %2912 = vrot.lane.b32.xlu0 %v766, 12
        %v2913 = vpop.permute.xlu0 %2912
        %2914 = vrot.lane.b32.xlu0 %v767, 12
        %v2915 = vpop.permute.xlu0 %2914
        %2916 = vrot.lane.b32.xlu0 %v768, 12
        %v2917 = vpop.permute.xlu0 %2916
        %2918 = vrot.lane.b32.xlu0 %v769, 12
        %v2919 = vpop.permute.xlu0 %2918
        %2920 = vrot.lane.b32.xlu0 %v770, 12
        %v2921 = vpop.permute.xlu0 %2920
        %2922 = vrot.lane.b32.xlu0 %v771, 12
        %v2923 = vpop.permute.xlu0 %2922
        %2924 = vrot.lane.b32.xlu0 %v772, 12
        %v2925 = vpop.permute.xlu0 %2924
        %2926 = vrot.lane.b32.xlu0 %v773, 12
        %v2927 = vpop.permute.xlu0 %2926
        %2928 = vrot.lane.b32.xlu0 %v774, 12
        %v2929 = vpop.permute.xlu0 %2928
        %2930 = vrot.lane.b32.xlu0 %v775, 12
        %v2931 = vpop.permute.xlu0 %2930
        %2932 = vrot.lane.b32.xlu0 %v776, 12
        %v2933 = vpop.permute.xlu0 %2932
        %2934 = vrot.lane.b32.xlu0 %v777, 12
        %v2935 = vpop.permute.xlu0 %2934
        %2936 = vrot.lane.b32.xlu0 %v778, 12
        %v2937 = vpop.permute.xlu0 %2936
        %2938 = vrot.lane.b32.xlu0 %v779, 12
        %v2939 = vpop.permute.xlu0 %2938
        %2940 = vrot.lane.b32.xlu0 %v780, 12
        %v2941 = vpop.permute.xlu0 %2940
        %2942 = vrot.lane.b32.xlu0 %v781, 12
        %v2943 = vpop.permute.xlu0 %2942
        %2944 = vrot.lane.b32.xlu0 %v782, 12
        %v2945 = vpop.permute.xlu0 %2944
        %2946 = vrot.lane.b32.xlu0 %v783, 12
        %v2947 = vpop.permute.xlu0 %2946
        %2948 = vrot.lane.b32.xlu0 %v784, 12
        %v2949 = vpop.permute.xlu0 %2948
        %2950 = vrot.lane.b32.xlu0 %v785, 12
        %v2951 = vpop.permute.xlu0 %2950
        %2952 = vrot.lane.b32.xlu0 %v786, 12
        %v2953 = vpop.permute.xlu0 %2952
        %2954 = vrot.lane.b32.xlu0 %v787, 12
        %v2955 = vpop.permute.xlu0 %2954
        %2956 = vrot.lane.b32.xlu0 %v788, 12
        %v2957 = vpop.permute.xlu0 %2956
        %2958 = vrot.lane.b32.xlu0 %v789, 12
        %v2959 = vpop.permute.xlu0 %2958
        %2960 = vrot.lane.b32.xlu0 %v790, 12
        %v2961 = vpop.permute.xlu0 %2960
        %2962 = vrot.lane.b32.xlu0 %v791, 12
        %v2963 = vpop.permute.xlu0 %2962
        %2964 = vrot.lane.b32.xlu0 %v792, 12
        %v2965 = vpop.permute.xlu0 %2964
        %2966 = vrot.lane.b32.xlu0 %v793, 12
        %v2967 = vpop.permute.xlu0 %2966
        %2968 = vrot.lane.b32.xlu0 %v794, 12
        %v2969 = vpop.permute.xlu0 %2968
        %2970 = vrot.lane.b32.xlu0 %v795, 12
        %v2971 = vpop.permute.xlu0 %2970
        %2972 = vrot.lane.b32.xlu0 %v796, 12
        %v2973 = vpop.permute.xlu0 %2972
        %2974 = vrot.lane.b32.xlu0 %v797, 12
        %v2975 = vpop.permute.xlu0 %2974
        %2976 = vrot.lane.b32.xlu0 %v798, 12
        %v2977 = vpop.permute.xlu0 %2976
        %2978 = vrot.lane.b32.xlu0 %v799, 12
        %v2979 = vpop.permute.xlu0 %2978
        %2980 = vrot.lane.b32.xlu0 %v800, 12
        %v2981 = vpop.permute.xlu0 %2980
        %2982 = vrot.lane.b32.xlu0 %v801, 12
        %v2983 = vpop.permute.xlu0 %2982
        %3112 = vrot.lane.b32.xlu0 %v802, 16
        %v3113 = vpop.permute.xlu0 %3112
        %3114 = vrot.lane.b32.xlu0 %v803, 16
        %v3115 = vpop.permute.xlu0 %3114
        %3116 = vrot.lane.b32.xlu0 %v804, 16
        %v3117 = vpop.permute.xlu0 %3116
        %3118 = vrot.lane.b32.xlu0 %v805, 16
        %v3119 = vpop.permute.xlu0 %3118
        %3120 = vrot.lane.b32.xlu0 %v806, 16
        %v3121 = vpop.permute.xlu0 %3120
        %3122 = vrot.lane.b32.xlu0 %v807, 16
        %v3123 = vpop.permute.xlu0 %3122
        %3124 = vrot.lane.b32.xlu0 %v808, 16
        %v3125 = vpop.permute.xlu0 %3124
        %3126 = vrot.lane.b32.xlu0 %v809, 16
        %v3127 = vpop.permute.xlu0 %3126
        %3128 = vrot.lane.b32.xlu0 %v810, 16
        %v3129 = vpop.permute.xlu0 %3128
        %3130 = vrot.lane.b32.xlu0 %v811, 16
        %v3131 = vpop.permute.xlu0 %3130
        %3132 = vrot.lane.b32.xlu0 %v812, 16
        %v3133 = vpop.permute.xlu0 %3132
        %3134 = vrot.lane.b32.xlu0 %v813, 16
        %v3135 = vpop.permute.xlu0 %3134
        %3136 = vrot.lane.b32.xlu0 %v814, 16
        %v3137 = vpop.permute.xlu0 %3136
        %3138 = vrot.lane.b32.xlu0 %v815, 16
        %v3139 = vpop.permute.xlu0 %3138
        %3140 = vrot.lane.b32.xlu0 %v816, 16
        %v3141 = vpop.permute.xlu0 %3140
        %3142 = vrot.lane.b32.xlu0 %v817, 16
        %v3143 = vpop.permute.xlu0 %3142
        %3144 = vrot.lane.b32.xlu0 %v818, 16
        %v3145 = vpop.permute.xlu0 %3144
        %3146 = vrot.lane.b32.xlu0 %v819, 16
        %v3147 = vpop.permute.xlu0 %3146
        %3148 = vrot.lane.b32.xlu0 %v820, 16
        %v3149 = vpop.permute.xlu0 %3148
        %3150 = vrot.lane.b32.xlu0 %v821, 16
        %v3151 = vpop.permute.xlu0 %3150
        %3152 = vrot.lane.b32.xlu0 %v822, 16
        %v3153 = vpop.permute.xlu0 %3152
        %3154 = vrot.lane.b32.xlu0 %v823, 16
        %v3155 = vpop.permute.xlu0 %3154
        %3156 = vrot.lane.b32.xlu0 %v824, 16
        %v3157 = vpop.permute.xlu0 %3156
        %3158 = vrot.lane.b32.xlu0 %v825, 16
        %v3159 = vpop.permute.xlu0 %3158
        %3160 = vrot.lane.b32.xlu0 %v826, 16
        %v3161 = vpop.permute.xlu0 %3160
        %3162 = vrot.lane.b32.xlu0 %v827, 16
        %v3163 = vpop.permute.xlu0 %3162
        %3164 = vrot.lane.b32.xlu0 %v828, 16
        %v3165 = vpop.permute.xlu0 %3164
        %3166 = vrot.lane.b32.xlu0 %v829, 16
        %v3167 = vpop.permute.xlu0 %3166
        %3168 = vrot.lane.b32.xlu0 %v830, 16
        %v3169 = vpop.permute.xlu0 %3168
        %3170 = vrot.lane.b32.xlu0 %v831, 16
        %v3171 = vpop.permute.xlu0 %3170
        %3172 = vrot.lane.b32.xlu0 %v832, 16
        %v3173 = vpop.permute.xlu0 %3172
        %3174 = vrot.lane.b32.xlu0 %v833, 16
        %v3175 = vpop.permute.xlu0 %3174
        %3176 = vrot.lane.b32.xlu0 %v834, 16
        %v3177 = vpop.permute.xlu0 %3176
        %3178 = vrot.lane.b32.xlu0 %v835, 16
        %v3179 = vpop.permute.xlu0 %3178
        %3180 = vrot.lane.b32.xlu0 %v836, 16
        %v3181 = vpop.permute.xlu0 %3180
        %3182 = vrot.lane.b32.xlu0 %v837, 16
        %v3183 = vpop.permute.xlu0 %3182
        %3184 = vrot.lane.b32.xlu0 %v838, 16
        %v3185 = vpop.permute.xlu0 %3184
        %3186 = vrot.lane.b32.xlu0 %v839, 16
        %v3187 = vpop.permute.xlu0 %3186
        %3188 = vrot.lane.b32.xlu0 %v840, 16
        %v3189 = vpop.permute.xlu0 %3188
        %3190 = vrot.lane.b32.xlu0 %v841, 16
        %v3191 = vpop.permute.xlu0 %3190
        %3192 = vrot.lane.b32.xlu0 %v842, 16
        %v3193 = vpop.permute.xlu0 %3192
        %3194 = vrot.lane.b32.xlu0 %v843, 16
        %v3195 = vpop.permute.xlu0 %3194
        %3196 = vrot.lane.b32.xlu0 %v844, 16
        %v3197 = vpop.permute.xlu0 %3196
        %3198 = vrot.lane.b32.xlu0 %v845, 16
        %v3199 = vpop.permute.xlu0 %3198
        %3200 = vrot.lane.b32.xlu0 %v846, 16
        %v3201 = vpop.permute.xlu0 %3200
        %3202 = vrot.lane.b32.xlu0 %v847, 16
        %v3203 = vpop.permute.xlu0 %3202
        %3204 = vrot.lane.b32.xlu0 %v848, 16
        %v3205 = vpop.permute.xlu0 %3204
        %3206 = vrot.lane.b32.xlu0 %v849, 16
        %v3207 = vpop.permute.xlu0 %3206
        %3208 = vrot.lane.b32.xlu0 %v850, 16
        %v3209 = vpop.permute.xlu0 %3208
        %3210 = vrot.lane.b32.xlu0 %v851, 16
        %v3211 = vpop.permute.xlu0 %3210
        %3212 = vrot.lane.b32.xlu0 %v852, 16
        %v3213 = vpop.permute.xlu0 %3212
        %3214 = vrot.lane.b32.xlu0 %v853, 16
        %v3215 = vpop.permute.xlu0 %3214
        %3216 = vrot.lane.b32.xlu0 %v854, 16
        %v3217 = vpop.permute.xlu0 %3216
        %3218 = vrot.lane.b32.xlu0 %v855, 16
        %v3219 = vpop.permute.xlu0 %3218
        %3220 = vrot.lane.b32.xlu0 %v856, 16
        %v3221 = vpop.permute.xlu0 %3220
        %3222 = vrot.lane.b32.xlu0 %v857, 16
        %v3223 = vpop.permute.xlu0 %3222
        %3224 = vrot.lane.b32.xlu0 %v858, 16
        %v3225 = vpop.permute.xlu0 %3224
        %3226 = vrot.lane.b32.xlu0 %v859, 16
        %v3227 = vpop.permute.xlu0 %3226
        %3228 = vrot.lane.b32.xlu0 %v860, 16
        %v3229 = vpop.permute.xlu0 %3228
        %3230 = vrot.lane.b32.xlu0 %v861, 16
        %v3231 = vpop.permute.xlu0 %3230
        %3232 = vrot.lane.b32.xlu0 %v862, 16
        %v3233 = vpop.permute.xlu0 %3232
        %3234 = vrot.lane.b32.xlu0 %v863, 16
        %v3235 = vpop.permute.xlu0 %3234
        %3236 = vrot.lane.b32.xlu0 %v864, 16
        %v3237 = vpop.permute.xlu0 %3236
        %3238 = vrot.lane.b32.xlu0 %v865, 16
        %v3239 = vpop.permute.xlu0 %3238
        %3368 = vrot.lane.b32.xlu0 %v866, 20
        %v3369 = vpop.permute.xlu0 %3368
        %3370 = vrot.lane.b32.xlu0 %v867, 20
        %v3371 = vpop.permute.xlu0 %3370
        %3372 = vrot.lane.b32.xlu0 %v868, 20
        %v3373 = vpop.permute.xlu0 %3372
        %3374 = vrot.lane.b32.xlu0 %v869, 20
        %v3375 = vpop.permute.xlu0 %3374
        %3376 = vrot.lane.b32.xlu0 %v870, 20
        %v3377 = vpop.permute.xlu0 %3376
        %3378 = vrot.lane.b32.xlu0 %v871, 20
        %v3379 = vpop.permute.xlu0 %3378
        %3380 = vrot.lane.b32.xlu0 %v872, 20
        %v3381 = vpop.permute.xlu0 %3380
        %3382 = vrot.lane.b32.xlu0 %v873, 20
        %v3383 = vpop.permute.xlu0 %3382
        %3384 = vrot.lane.b32.xlu0 %v874, 20
        %v3385 = vpop.permute.xlu0 %3384
        %3386 = vrot.lane.b32.xlu0 %v875, 20
        %v3387 = vpop.permute.xlu0 %3386
        %3388 = vrot.lane.b32.xlu0 %v876, 20
        %v3389 = vpop.permute.xlu0 %3388
        %3390 = vrot.lane.b32.xlu0 %v877, 20
        %v3391 = vpop.permute.xlu0 %3390
        %3392 = vrot.lane.b32.xlu0 %v878, 20
        %v3393 = vpop.permute.xlu0 %3392
        %3394 = vrot.lane.b32.xlu0 %v879, 20
        %v3395 = vpop.permute.xlu0 %3394
        %3396 = vrot.lane.b32.xlu0 %v880, 20
        %v3397 = vpop.permute.xlu0 %3396
        %3398 = vrot.lane.b32.xlu0 %v881, 20
        %v3399 = vpop.permute.xlu0 %3398
        %3400 = vrot.lane.b32.xlu0 %v882, 20
        %v3401 = vpop.permute.xlu0 %3400
        %3402 = vrot.lane.b32.xlu0 %v883, 20
        %v3403 = vpop.permute.xlu0 %3402
        %3404 = vrot.lane.b32.xlu0 %v884, 20
        %v3405 = vpop.permute.xlu0 %3404
        %3406 = vrot.lane.b32.xlu0 %v885, 20
        %v3407 = vpop.permute.xlu0 %3406
        %3408 = vrot.lane.b32.xlu0 %v886, 20
        %v3409 = vpop.permute.xlu0 %3408
        %3410 = vrot.lane.b32.xlu0 %v887, 20
        %v3411 = vpop.permute.xlu0 %3410
        %3412 = vrot.lane.b32.xlu0 %v888, 20
        %v3413 = vpop.permute.xlu0 %3412
        %3414 = vrot.lane.b32.xlu0 %v889, 20
        %v3415 = vpop.permute.xlu0 %3414
        %3416 = vrot.lane.b32.xlu0 %v890, 20
        %v3417 = vpop.permute.xlu0 %3416
        %3418 = vrot.lane.b32.xlu0 %v891, 20
        %v3419 = vpop.permute.xlu0 %3418
        %3420 = vrot.lane.b32.xlu0 %v892, 20
        %v3421 = vpop.permute.xlu0 %3420
        %3422 = vrot.lane.b32.xlu0 %v893, 20
        %v3423 = vpop.permute.xlu0 %3422
        %3424 = vrot.lane.b32.xlu0 %v894, 20
        %v3425 = vpop.permute.xlu0 %3424
        %3426 = vrot.lane.b32.xlu0 %v895, 20
        %v3427 = vpop.permute.xlu0 %3426
        %3428 = vrot.lane.b32.xlu0 %v896, 20
        %v3429 = vpop.permute.xlu0 %3428
        %3430 = vrot.lane.b32.xlu0 %v897, 20
        %v3431 = vpop.permute.xlu0 %3430
        %3432 = vrot.lane.b32.xlu0 %v898, 20
        %v3433 = vpop.permute.xlu0 %3432
        %3434 = vrot.lane.b32.xlu0 %v899, 20
        %v3435 = vpop.permute.xlu0 %3434
        %3436 = vrot.lane.b32.xlu0 %v900, 20
        %v3437 = vpop.permute.xlu0 %3436
        %3438 = vrot.lane.b32.xlu0 %v901, 20
        %v3439 = vpop.permute.xlu0 %3438
        %3440 = vrot.lane.b32.xlu0 %v902, 20
        %v3441 = vpop.permute.xlu0 %3440
        %3442 = vrot.lane.b32.xlu0 %v903, 20
        %v3443 = vpop.permute.xlu0 %3442
        %3444 = vrot.lane.b32.xlu0 %v904, 20
        %v3445 = vpop.permute.xlu0 %3444
        %3446 = vrot.lane.b32.xlu0 %v905, 20
        %v3447 = vpop.permute.xlu0 %3446
        %3448 = vrot.lane.b32.xlu0 %v906, 20
        %v3449 = vpop.permute.xlu0 %3448
        %3450 = vrot.lane.b32.xlu0 %v907, 20
        %v3451 = vpop.permute.xlu0 %3450
        %3452 = vrot.lane.b32.xlu0 %v908, 20
        %v3453 = vpop.permute.xlu0 %3452
        %3454 = vrot.lane.b32.xlu0 %v909, 20
        %v3455 = vpop.permute.xlu0 %3454
        %3456 = vrot.lane.b32.xlu0 %v910, 20
        %v3457 = vpop.permute.xlu0 %3456
        %3458 = vrot.lane.b32.xlu0 %v911, 20
        %v3459 = vpop.permute.xlu0 %3458
        %3460 = vrot.lane.b32.xlu0 %v912, 20
        %v3461 = vpop.permute.xlu0 %3460
        %3462 = vrot.lane.b32.xlu0 %v913, 20
        %v3463 = vpop.permute.xlu0 %3462
        %3464 = vrot.lane.b32.xlu0 %v914, 20
        %v3465 = vpop.permute.xlu0 %3464
        %3466 = vrot.lane.b32.xlu0 %v915, 20
        %v3467 = vpop.permute.xlu0 %3466
        %3468 = vrot.lane.b32.xlu0 %v916, 20
        %v3469 = vpop.permute.xlu0 %3468
        %3470 = vrot.lane.b32.xlu0 %v917, 20
        %v3471 = vpop.permute.xlu0 %3470
        %3472 = vrot.lane.b32.xlu0 %v918, 20
        %v3473 = vpop.permute.xlu0 %3472
        %3474 = vrot.lane.b32.xlu0 %v919, 20
        %v3475 = vpop.permute.xlu0 %3474
        %3476 = vrot.lane.b32.xlu0 %v920, 20
        %v3477 = vpop.permute.xlu0 %3476
        %3478 = vrot.lane.b32.xlu0 %v921, 20
        %v3479 = vpop.permute.xlu0 %3478
        %3480 = vrot.lane.b32.xlu0 %v922, 20
        %v3481 = vpop.permute.xlu0 %3480
        %3482 = vrot.lane.b32.xlu0 %v923, 20
        %v3483 = vpop.permute.xlu0 %3482
        %3484 = vrot.lane.b32.xlu0 %v924, 20
        %v3485 = vpop.permute.xlu0 %3484
        %3486 = vrot.lane.b32.xlu0 %v925, 20
        %v3487 = vpop.permute.xlu0 %3486
        %3488 = vrot.lane.b32.xlu0 %v926, 20
        %v3489 = vpop.permute.xlu0 %3488
        %3490 = vrot.lane.b32.xlu0 %v927, 20
        %v3491 = vpop.permute.xlu0 %3490
        %3492 = vrot.lane.b32.xlu0 %v928, 20
        %v3493 = vpop.permute.xlu0 %3492
        %3494 = vrot.lane.b32.xlu0 %v929, 20
        %v3495 = vpop.permute.xlu0 %3494
        %3624 = vrot.lane.b32.xlu0 %v931, 24
        %v3625 = vpop.permute.xlu0 %3624
        %3626 = vrot.lane.b32.xlu0 %v932, 24
        %v3627 = vpop.permute.xlu0 %3626
        %3628 = vrot.lane.b32.xlu0 %v933, 24
        %v3629 = vpop.permute.xlu0 %3628
        %3630 = vrot.lane.b32.xlu0 %v934, 24
        %v3631 = vpop.permute.xlu0 %3630
        %3632 = vrot.lane.b32.xlu0 %v935, 24
        %v3633 = vpop.permute.xlu0 %3632
        %3634 = vrot.lane.b32.xlu0 %v936, 24
        %v3635 = vpop.permute.xlu0 %3634
        %3636 = vrot.lane.b32.xlu0 %v937, 24
        %v3637 = vpop.permute.xlu0 %3636
        %3638 = vrot.lane.b32.xlu0 %v938, 24
        %v3639 = vpop.permute.xlu0 %3638
        %3640 = vrot.lane.b32.xlu0 %v939, 24
        %v3641 = vpop.permute.xlu0 %3640
        %3642 = vrot.lane.b32.xlu0 %v940, 24
        %v3643 = vpop.permute.xlu0 %3642
        %3644 = vrot.lane.b32.xlu0 %v941, 24
        %v3645 = vpop.permute.xlu0 %3644
        %3646 = vrot.lane.b32.xlu0 %v942, 24
        %v3647 = vpop.permute.xlu0 %3646
        %3648 = vrot.lane.b32.xlu0 %v943, 24
        %v3649 = vpop.permute.xlu0 %3648
        %3650 = vrot.lane.b32.xlu0 %v944, 24
        %v3651 = vpop.permute.xlu0 %3650
        %3652 = vrot.lane.b32.xlu0 %v945, 24
        %v3653 = vpop.permute.xlu0 %3652
        %3654 = vrot.lane.b32.xlu0 %v946, 24
        %v3655 = vpop.permute.xlu0 %3654
        %3656 = vrot.lane.b32.xlu0 %v947, 24
        %v3657 = vpop.permute.xlu0 %3656
        %3658 = vrot.lane.b32.xlu0 %v948, 24
        %v3659 = vpop.permute.xlu0 %3658
        %3660 = vrot.lane.b32.xlu0 %v949, 24
        %v3661 = vpop.permute.xlu0 %3660
        %3662 = vrot.lane.b32.xlu0 %v950, 24
        %v3663 = vpop.permute.xlu0 %3662
        %3664 = vrot.lane.b32.xlu0 %v951, 24
        %v3665 = vpop.permute.xlu0 %3664
        %3666 = vrot.lane.b32.xlu0 %v952, 24
        %v3667 = vpop.permute.xlu0 %3666
        %3668 = vrot.lane.b32.xlu0 %v953, 24
        %v3669 = vpop.permute.xlu0 %3668
        %3670 = vrot.lane.b32.xlu0 %v954, 24
        %v3671 = vpop.permute.xlu0 %3670
        %3672 = vrot.lane.b32.xlu0 %v955, 24
        %v3673 = vpop.permute.xlu0 %3672
        %3674 = vrot.lane.b32.xlu0 %v956, 24
        %v3675 = vpop.permute.xlu0 %3674
        %3676 = vrot.lane.b32.xlu0 %v957, 24
        %v3677 = vpop.permute.xlu0 %3676
        %3678 = vrot.lane.b32.xlu0 %v958, 24
        %v3679 = vpop.permute.xlu0 %3678
        %3680 = vrot.lane.b32.xlu0 %v959, 24
        %v3681 = vpop.permute.xlu0 %3680
        %3682 = vrot.lane.b32.xlu0 %v960, 24
        %v3683 = vpop.permute.xlu0 %3682
        %3684 = vrot.lane.b32.xlu0 %v961, 24
        %v3685 = vpop.permute.xlu0 %3684
        %3686 = vrot.lane.b32.xlu0 %v962, 24
        %v3687 = vpop.permute.xlu0 %3686
        %3688 = vrot.lane.b32.xlu0 %v963, 24
        %v3689 = vpop.permute.xlu0 %3688
        %3690 = vrot.lane.b32.xlu0 %v964, 24
        %v3691 = vpop.permute.xlu0 %3690
        %3692 = vrot.lane.b32.xlu0 %v965, 24
        %v3693 = vpop.permute.xlu0 %3692
        %3694 = vrot.lane.b32.xlu0 %v966, 24
        %v3695 = vpop.permute.xlu0 %3694
        %3696 = vrot.lane.b32.xlu0 %v967, 24
        %v3697 = vpop.permute.xlu0 %3696
        %3698 = vrot.lane.b32.xlu0 %v968, 24
        %v3699 = vpop.permute.xlu0 %3698
        %3700 = vrot.lane.b32.xlu0 %v969, 24
        %v3701 = vpop.permute.xlu0 %3700
        %3702 = vrot.lane.b32.xlu0 %v970, 24
        %v3703 = vpop.permute.xlu0 %3702
        %3704 = vrot.lane.b32.xlu0 %v971, 24
        %v3705 = vpop.permute.xlu0 %3704
        %3706 = vrot.lane.b32.xlu0 %v972, 24
        %v3707 = vpop.permute.xlu0 %3706
        %3708 = vrot.lane.b32.xlu0 %v973, 24
        %v3709 = vpop.permute.xlu0 %3708
        %3710 = vrot.lane.b32.xlu0 %v974, 24
        %v3711 = vpop.permute.xlu0 %3710
        %3712 = vrot.lane.b32.xlu0 %v975, 24
        %v3713 = vpop.permute.xlu0 %3712
        %3714 = vrot.lane.b32.xlu0 %v976, 24
        %v3715 = vpop.permute.xlu0 %3714
        %3716 = vrot.lane.b32.xlu0 %v977, 24
        %v3717 = vpop.permute.xlu0 %3716
        %3718 = vrot.lane.b32.xlu0 %v978, 24
        %v3719 = vpop.permute.xlu0 %3718
        %3720 = vrot.lane.b32.xlu0 %v979, 24
        %v3721 = vpop.permute.xlu0 %3720
        %3722 = vrot.lane.b32.xlu0 %v980, 24
        %v3723 = vpop.permute.xlu0 %3722
        %3724 = vrot.lane.b32.xlu0 %v981, 24
        %v3725 = vpop.permute.xlu0 %3724
        %3726 = vrot.lane.b32.xlu0 %v982, 24
        %v3727 = vpop.permute.xlu0 %3726
        %3728 = vrot.lane.b32.xlu0 %v983, 24
        %v3729 = vpop.permute.xlu0 %3728
        %3730 = vrot.lane.b32.xlu0 %v984, 24
        %v3731 = vpop.permute.xlu0 %3730
        %3732 = vrot.lane.b32.xlu0 %v985, 24
        %v3733 = vpop.permute.xlu0 %3732
        %3734 = vrot.lane.b32.xlu0 %v986, 24
        %v3735 = vpop.permute.xlu0 %3734
        %3736 = vrot.lane.b32.xlu0 %v987, 24
        %v3737 = vpop.permute.xlu0 %3736
        %3738 = vrot.lane.b32.xlu0 %v988, 24
        %v3739 = vpop.permute.xlu0 %3738
        %3740 = vrot.lane.b32.xlu0 %v989, 24
        %v3741 = vpop.permute.xlu0 %3740
        %3742 = vrot.lane.b32.xlu0 %v990, 24
        %v3743 = vpop.permute.xlu0 %3742
        %3744 = vrot.lane.b32.xlu0 %v991, 24
        %v3745 = vpop.permute.xlu0 %3744
        %3746 = vrot.lane.b32.xlu0 %v992, 24
        %v3747 = vpop.permute.xlu0 %3746
        %3748 = vrot.lane.b32.xlu0 %v993, 24
        %v3749 = vpop.permute.xlu0 %3748
        %3750 = vrot.lane.b32.xlu0 %v994, 24
        %v3751 = vpop.permute.xlu0 %3750
        %3880 = vrot.lane.b32.xlu0 %v995, 28
        %v3881 = vpop.permute.xlu0 %3880
        %3882 = vrot.lane.b32.xlu0 %v996, 28
        %v3883 = vpop.permute.xlu0 %3882
        %3884 = vrot.lane.b32.xlu0 %v997, 28
        %v3885 = vpop.permute.xlu0 %3884
        %3886 = vrot.lane.b32.xlu0 %v998, 28
        %v3887 = vpop.permute.xlu0 %3886
        %3888 = vrot.lane.b32.xlu0 %v999, 28
        %v3889 = vpop.permute.xlu0 %3888
        %3890 = vrot.lane.b32.xlu0 %v1000, 28
        %v3891 = vpop.permute.xlu0 %3890
        %3892 = vrot.lane.b32.xlu0 %v1001, 28
        %v3893 = vpop.permute.xlu0 %3892
        %3894 = vrot.lane.b32.xlu0 %v1002, 28
        %v3895 = vpop.permute.xlu0 %3894
        %3896 = vrot.lane.b32.xlu0 %v1003, 28
        %v3897 = vpop.permute.xlu0 %3896
        %3898 = vrot.lane.b32.xlu0 %v1004, 28
        %v3899 = vpop.permute.xlu0 %3898
        %3900 = vrot.lane.b32.xlu0 %v1005, 28
        %v3901 = vpop.permute.xlu0 %3900
        %3902 = vrot.lane.b32.xlu0 %v1006, 28
        %v3903 = vpop.permute.xlu0 %3902
        %3904 = vrot.lane.b32.xlu0 %v1007, 28
        %v3905 = vpop.permute.xlu0 %3904
        %3906 = vrot.lane.b32.xlu0 %v1008, 28
        %v3907 = vpop.permute.xlu0 %3906
        %3908 = vrot.lane.b32.xlu0 %v1009, 28
        %v3909 = vpop.permute.xlu0 %3908
        %3910 = vrot.lane.b32.xlu0 %v1010, 28
        %v3911 = vpop.permute.xlu0 %3910
        %3912 = vrot.lane.b32.xlu0 %v1011, 28
        %v3913 = vpop.permute.xlu0 %3912
        %3914 = vrot.lane.b32.xlu0 %v1012, 28
        %v3915 = vpop.permute.xlu0 %3914
        %3916 = vrot.lane.b32.xlu0 %v1013, 28
        %v3917 = vpop.permute.xlu0 %3916
        %3918 = vrot.lane.b32.xlu0 %v1014, 28
        %v3919 = vpop.permute.xlu0 %3918
        %3920 = vrot.lane.b32.xlu0 %v1015, 28
        %v3921 = vpop.permute.xlu0 %3920
        %3922 = vrot.lane.b32.xlu0 %v1016, 28
        %v3923 = vpop.permute.xlu0 %3922
        %3924 = vrot.lane.b32.xlu0 %v1017, 28
        %v3925 = vpop.permute.xlu0 %3924
        %3926 = vrot.lane.b32.xlu0 %v1018, 28
        %v3927 = vpop.permute.xlu0 %3926
        %3928 = vrot.lane.b32.xlu0 %v1019, 28
        %v3929 = vpop.permute.xlu0 %3928
        %3930 = vrot.lane.b32.xlu0 %v1020, 28
        %v3931 = vpop.permute.xlu0 %3930
        %3932 = vrot.lane.b32.xlu0 %v1021, 28
        %v3933 = vpop.permute.xlu0 %3932
        %3934 = vrot.lane.b32.xlu0 %v1022, 28
        %v3935 = vpop.permute.xlu0 %3934
        %3936 = vrot.lane.b32.xlu0 %v1023, 28
        %v3937 = vpop.permute.xlu0 %3936
        %3938 = vrot.lane.b32.xlu0 %v1024, 28
        %v3939 = vpop.permute.xlu0 %3938
        %3940 = vrot.lane.b32.xlu0 %v1025, 28
        %v3941 = vpop.permute.xlu0 %3940
        %3942 = vrot.lane.b32.xlu0 %v1026, 28
        %v3943 = vpop.permute.xlu0 %3942
        %3944 = vrot.lane.b32.xlu0 %v1027, 28
        %v3945 = vpop.permute.xlu0 %3944
        %3946 = vrot.lane.b32.xlu0 %v1028, 28
        %v3947 = vpop.permute.xlu0 %3946
        %3948 = vrot.lane.b32.xlu0 %v1029, 28
        %v3949 = vpop.permute.xlu0 %3948
        %3950 = vrot.lane.b32.xlu0 %v1030, 28
        %v3951 = vpop.permute.xlu0 %3950
        %3952 = vrot.lane.b32.xlu0 %v1031, 28
        %v3953 = vpop.permute.xlu0 %3952
        %3954 = vrot.lane.b32.xlu0 %v1032, 28
        %v3955 = vpop.permute.xlu0 %3954
        %3956 = vrot.lane.b32.xlu0 %v1033, 28
        %v3957 = vpop.permute.xlu0 %3956
        %3958 = vrot.lane.b32.xlu0 %v1034, 28
        %v3959 = vpop.permute.xlu0 %3958
        %3960 = vrot.lane.b32.xlu0 %v1035, 28
        %v3961 = vpop.permute.xlu0 %3960
        %3962 = vrot.lane.b32.xlu0 %v1036, 28
        %v3963 = vpop.permute.xlu0 %3962
        %3964 = vrot.lane.b32.xlu0 %v1037, 28
        %v3965 = vpop.permute.xlu0 %3964
        %3966 = vrot.lane.b32.xlu0 %v1038, 28
        %v3967 = vpop.permute.xlu0 %3966
        %3968 = vrot.lane.b32.xlu0 %v1039, 28
        %v3969 = vpop.permute.xlu0 %3968
        %3970 = vrot.lane.b32.xlu0 %v1040, 28
        %v3971 = vpop.permute.xlu0 %3970
        %3972 = vrot.lane.b32.xlu0 %v1041, 28
        %v3973 = vpop.permute.xlu0 %3972
        %3974 = vrot.lane.b32.xlu0 %v1042, 28
        %v3975 = vpop.permute.xlu0 %3974
        %3976 = vrot.lane.b32.xlu0 %v1043, 28
        %v3977 = vpop.permute.xlu0 %3976
        %3978 = vrot.lane.b32.xlu0 %v1044, 28
        %v3979 = vpop.permute.xlu0 %3978
        %3980 = vrot.lane.b32.xlu0 %v1045, 28
        %v3981 = vpop.permute.xlu0 %3980
        %3982 = vrot.lane.b32.xlu0 %v1046, 28
        %v3983 = vpop.permute.xlu0 %3982
        %3984 = vrot.lane.b32.xlu0 %v1047, 28
        %v3985 = vpop.permute.xlu0 %3984
        %3986 = vrot.lane.b32.xlu0 %v1048, 28
        %v3987 = vpop.permute.xlu0 %3986
        %3988 = vrot.lane.b32.xlu0 %v1049, 28
        %v3989 = vpop.permute.xlu0 %3988
        %3990 = vrot.lane.b32.xlu0 %v1050, 28
        %v3991 = vpop.permute.xlu0 %3990
        %3992 = vrot.lane.b32.xlu0 %v1051, 28
        %v3993 = vpop.permute.xlu0 %3992
        %3994 = vrot.lane.b32.xlu0 %v1052, 28
        %v3995 = vpop.permute.xlu0 %3994
        %3996 = vrot.lane.b32.xlu0 %v1053, 28
        %v3997 = vpop.permute.xlu0 %3996
        %3998 = vrot.lane.b32.xlu0 %v1054, 28
        %v3999 = vpop.permute.xlu0 %3998
        %4000 = vrot.lane.b32.xlu0 %v1055, 28
        %v4001 = vpop.permute.xlu0 %4000
        %4002 = vrot.lane.b32.xlu0 %v1056, 28
        %v4003 = vpop.permute.xlu0 %4002
        %4004 = vrot.lane.b32.xlu0 %v1057, 28
        %v4005 = vpop.permute.xlu0 %4004
        %4006 = vrot.lane.b32.xlu0 %v1058, 28
        %v4007 = vpop.permute.xlu0 %4006
        %4136 = vrot.lane.b32.xlu0 %v1059, 32
        %v4137 = vpop.permute.xlu0 %4136
        %4138 = vrot.lane.b32.xlu0 %v1060, 32
        %v4139 = vpop.permute.xlu0 %4138
        %4140 = vrot.lane.b32.xlu0 %v1061, 32
        %v4141 = vpop.permute.xlu0 %4140
        %4142 = vrot.lane.b32.xlu0 %v1062, 32
        %v4143 = vpop.permute.xlu0 %4142
        %4144 = vrot.lane.b32.xlu0 %v1063, 32
        %v4145 = vpop.permute.xlu0 %4144
        %4146 = vrot.lane.b32.xlu0 %v1064, 32
        %v4147 = vpop.permute.xlu0 %4146
        %4148 = vrot.lane.b32.xlu0 %v1065, 32
        %v4149 = vpop.permute.xlu0 %4148
        %4150 = vrot.lane.b32.xlu0 %v1066, 32
        %v4151 = vpop.permute.xlu0 %4150
        %4152 = vrot.lane.b32.xlu0 %v1067, 32
        %v4153 = vpop.permute.xlu0 %4152
        %4154 = vrot.lane.b32.xlu0 %v1068, 32
        %v4155 = vpop.permute.xlu0 %4154
        %4156 = vrot.lane.b32.xlu0 %v1069, 32
        %v4157 = vpop.permute.xlu0 %4156
        %4158 = vrot.lane.b32.xlu0 %v1070, 32
        %v4159 = vpop.permute.xlu0 %4158
        %4160 = vrot.lane.b32.xlu0 %v1071, 32
        %v4161 = vpop.permute.xlu0 %4160
        %4162 = vrot.lane.b32.xlu0 %v1072, 32
        %v4163 = vpop.permute.xlu0 %4162
        %4164 = vrot.lane.b32.xlu0 %v1073, 32
        %v4165 = vpop.permute.xlu0 %4164
        %4166 = vrot.lane.b32.xlu0 %v1074, 32
        %v4167 = vpop.permute.xlu0 %4166
        %4168 = vrot.lane.b32.xlu0 %v1075, 32
        %v4169 = vpop.permute.xlu0 %4168
        %4170 = vrot.lane.b32.xlu0 %v1076, 32
        %v4171 = vpop.permute.xlu0 %4170
        %4172 = vrot.lane.b32.xlu0 %v1077, 32
        %v4173 = vpop.permute.xlu0 %4172
        %4174 = vrot.lane.b32.xlu0 %v1078, 32
        %v4175 = vpop.permute.xlu0 %4174
        %4176 = vrot.lane.b32.xlu0 %v1079, 32
        %v4177 = vpop.permute.xlu0 %4176
        %4178 = vrot.lane.b32.xlu0 %v1080, 32
        %v4179 = vpop.permute.xlu0 %4178
        %4180 = vrot.lane.b32.xlu0 %v1081, 32
        %v4181 = vpop.permute.xlu0 %4180
        %4182 = vrot.lane.b32.xlu0 %v1082, 32
        %v4183 = vpop.permute.xlu0 %4182
        %4184 = vrot.lane.b32.xlu0 %v1083, 32
        %v4185 = vpop.permute.xlu0 %4184
        %4186 = vrot.lane.b32.xlu0 %v1084, 32
        %v4187 = vpop.permute.xlu0 %4186
        %4188 = vrot.lane.b32.xlu0 %v1085, 32
        %v4189 = vpop.permute.xlu0 %4188
        %4190 = vrot.lane.b32.xlu0 %v1086, 32
        %v4191 = vpop.permute.xlu0 %4190
        %4192 = vrot.lane.b32.xlu0 %v1087, 32
        %v4193 = vpop.permute.xlu0 %4192
        %4194 = vrot.lane.b32.xlu0 %v1088, 32
        %v4195 = vpop.permute.xlu0 %4194
        %4196 = vrot.lane.b32.xlu0 %v1089, 32
        %v4197 = vpop.permute.xlu0 %4196
        %4198 = vrot.lane.b32.xlu0 %v1090, 32
        %v4199 = vpop.permute.xlu0 %4198
        %4200 = vrot.lane.b32.xlu0 %v1091, 32
        %v4201 = vpop.permute.xlu0 %4200
        %4202 = vrot.lane.b32.xlu0 %v1092, 32
        %v4203 = vpop.permute.xlu0 %4202
        %4204 = vrot.lane.b32.xlu0 %v1093, 32
        %v4205 = vpop.permute.xlu0 %4204
        %4206 = vrot.lane.b32.xlu0 %v1094, 32
        %v4207 = vpop.permute.xlu0 %4206
        %4208 = vrot.lane.b32.xlu0 %v1095, 32
        %v4209 = vpop.permute.xlu0 %4208
        %4210 = vrot.lane.b32.xlu0 %v1096, 32
        %v4211 = vpop.permute.xlu0 %4210
        %4212 = vrot.lane.b32.xlu0 %v1097, 32
        %v4213 = vpop.permute.xlu0 %4212
        %4214 = vrot.lane.b32.xlu0 %v1098, 32
        %v4215 = vpop.permute.xlu0 %4214
        %4216 = vrot.lane.b32.xlu0 %v1099, 32
        %v4217 = vpop.permute.xlu0 %4216
        %4218 = vrot.lane.b32.xlu0 %v1100, 32
        %v4219 = vpop.permute.xlu0 %4218
        %4220 = vrot.lane.b32.xlu0 %v1101, 32
        %v4221 = vpop.permute.xlu0 %4220
        %4222 = vrot.lane.b32.xlu0 %v1102, 32
        %v4223 = vpop.permute.xlu0 %4222
        %4224 = vrot.lane.b32.xlu0 %v1103, 32
        %v4225 = vpop.permute.xlu0 %4224
        %4226 = vrot.lane.b32.xlu0 %v1104, 32
        %v4227 = vpop.permute.xlu0 %4226
        %4228 = vrot.lane.b32.xlu0 %v1105, 32
        %v4229 = vpop.permute.xlu0 %4228
        %4230 = vrot.lane.b32.xlu0 %v1106, 32
        %v4231 = vpop.permute.xlu0 %4230
        %4232 = vrot.lane.b32.xlu0 %v1107, 32
        %v4233 = vpop.permute.xlu0 %4232
        %4234 = vrot.lane.b32.xlu0 %v1108, 32
        %v4235 = vpop.permute.xlu0 %4234
        %4236 = vrot.lane.b32.xlu0 %v1109, 32
        %v4237 = vpop.permute.xlu0 %4236
        %4238 = vrot.lane.b32.xlu0 %v1110, 32
        %v4239 = vpop.permute.xlu0 %4238
        %4240 = vrot.lane.b32.xlu0 %v1111, 32
        %v4241 = vpop.permute.xlu0 %4240
        %4242 = vrot.lane.b32.xlu0 %v1112, 32
        %v4243 = vpop.permute.xlu0 %4242
        %4244 = vrot.lane.b32.xlu0 %v1113, 32
        %v4245 = vpop.permute.xlu0 %4244
        %4246 = vrot.lane.b32.xlu0 %v1114, 32
        %v4247 = vpop.permute.xlu0 %4246
        %4248 = vrot.lane.b32.xlu0 %v1115, 32
        %v4249 = vpop.permute.xlu0 %4248
        %4250 = vrot.lane.b32.xlu0 %v1116, 32
        %v4251 = vpop.permute.xlu0 %4250
        %4252 = vrot.lane.b32.xlu0 %v1117, 32
        %v4253 = vpop.permute.xlu0 %4252
        %4254 = vrot.lane.b32.xlu0 %v1118, 32
        %v4255 = vpop.permute.xlu0 %4254
        %4256 = vrot.lane.b32.xlu0 %v1119, 32
        %v4257 = vpop.permute.xlu0 %4256
        %4258 = vrot.lane.b32.xlu0 %v1120, 32
        %v4259 = vpop.permute.xlu0 %4258
        %4260 = vrot.lane.b32.xlu0 %v1121, 32
        %v4261 = vpop.permute.xlu0 %4260
        %4262 = vrot.lane.b32.xlu0 %v1122, 32
        %v4263 = vpop.permute.xlu0 %4262
        %4392 = vrot.lane.b32.xlu0 %v1124, 36
        %v4393 = vpop.permute.xlu0 %4392
        %4394 = vrot.lane.b32.xlu0 %v1125, 36
        %v4395 = vpop.permute.xlu0 %4394
        %4396 = vrot.lane.b32.xlu0 %v1126, 36
        %v4397 = vpop.permute.xlu0 %4396
        %4398 = vrot.lane.b32.xlu0 %v1127, 36
        %v4399 = vpop.permute.xlu0 %4398
        %4400 = vrot.lane.b32.xlu0 %v1128, 36
        %v4401 = vpop.permute.xlu0 %4400
        %4402 = vrot.lane.b32.xlu0 %v1129, 36
        %v4403 = vpop.permute.xlu0 %4402
        %4404 = vrot.lane.b32.xlu0 %v1130, 36
        %v4405 = vpop.permute.xlu0 %4404
        %4406 = vrot.lane.b32.xlu0 %v1131, 36
        %v4407 = vpop.permute.xlu0 %4406
        %4408 = vrot.lane.b32.xlu0 %v1132, 36
        %v4409 = vpop.permute.xlu0 %4408
        %4410 = vrot.lane.b32.xlu0 %v1133, 36
        %v4411 = vpop.permute.xlu0 %4410
        %4412 = vrot.lane.b32.xlu0 %v1134, 36
        %v4413 = vpop.permute.xlu0 %4412
        %4414 = vrot.lane.b32.xlu0 %v1135, 36
        %v4415 = vpop.permute.xlu0 %4414
        %4416 = vrot.lane.b32.xlu0 %v1136, 36
        %v4417 = vpop.permute.xlu0 %4416
        %4418 = vrot.lane.b32.xlu0 %v1137, 36
        %v4419 = vpop.permute.xlu0 %4418
        %4420 = vrot.lane.b32.xlu0 %v1138, 36
        %v4421 = vpop.permute.xlu0 %4420
        %4422 = vrot.lane.b32.xlu0 %v1139, 36
        %v4423 = vpop.permute.xlu0 %4422
        %4424 = vrot.lane.b32.xlu0 %v1140, 36
        %v4425 = vpop.permute.xlu0 %4424
        %4426 = vrot.lane.b32.xlu0 %v1141, 36
        %v4427 = vpop.permute.xlu0 %4426
        %4428 = vrot.lane.b32.xlu0 %v1142, 36
        %v4429 = vpop.permute.xlu0 %4428
        %4430 = vrot.lane.b32.xlu0 %v1143, 36
        %v4431 = vpop.permute.xlu0 %4430
        %4432 = vrot.lane.b32.xlu0 %v1144, 36
        %v4433 = vpop.permute.xlu0 %4432
        %4434 = vrot.lane.b32.xlu0 %v1145, 36
        %v4435 = vpop.permute.xlu0 %4434
        %4436 = vrot.lane.b32.xlu0 %v1146, 36
        %v4437 = vpop.permute.xlu0 %4436
        %4438 = vrot.lane.b32.xlu0 %v1147, 36
        %v4439 = vpop.permute.xlu0 %4438
        %4440 = vrot.lane.b32.xlu0 %v1148, 36
        %v4441 = vpop.permute.xlu0 %4440
        %4442 = vrot.lane.b32.xlu0 %v1149, 36
        %v4443 = vpop.permute.xlu0 %4442
        %4444 = vrot.lane.b32.xlu0 %v1150, 36
        %v4445 = vpop.permute.xlu0 %4444
        %4446 = vrot.lane.b32.xlu0 %v1151, 36
        %v4447 = vpop.permute.xlu0 %4446
        %4448 = vrot.lane.b32.xlu0 %v1152, 36
        %v4449 = vpop.permute.xlu0 %4448
        %4450 = vrot.lane.b32.xlu0 %v1153, 36
        %v4451 = vpop.permute.xlu0 %4450
        %4452 = vrot.lane.b32.xlu0 %v1154, 36
        %v4453 = vpop.permute.xlu0 %4452
        %4454 = vrot.lane.b32.xlu0 %v1155, 36
        %v4455 = vpop.permute.xlu0 %4454
        %4456 = vrot.lane.b32.xlu0 %v1156, 36
        %v4457 = vpop.permute.xlu0 %4456
        %4458 = vrot.lane.b32.xlu0 %v1157, 36
        %v4459 = vpop.permute.xlu0 %4458
        %4460 = vrot.lane.b32.xlu0 %v1158, 36
        %v4461 = vpop.permute.xlu0 %4460
        %4462 = vrot.lane.b32.xlu0 %v1159, 36
        %v4463 = vpop.permute.xlu0 %4462
        %4464 = vrot.lane.b32.xlu0 %v1160, 36
        %v4465 = vpop.permute.xlu0 %4464
        %4466 = vrot.lane.b32.xlu0 %v1161, 36
        %v4467 = vpop.permute.xlu0 %4466
        %4468 = vrot.lane.b32.xlu0 %v1162, 36
        %v4469 = vpop.permute.xlu0 %4468
        %4470 = vrot.lane.b32.xlu0 %v1163, 36
        %v4471 = vpop.permute.xlu0 %4470
        %4472 = vrot.lane.b32.xlu0 %v1164, 36
        %v4473 = vpop.permute.xlu0 %4472
        %4474 = vrot.lane.b32.xlu0 %v1165, 36
        %v4475 = vpop.permute.xlu0 %4474
        %4476 = vrot.lane.b32.xlu0 %v1166, 36
        %v4477 = vpop.permute.xlu0 %4476
        %4478 = vrot.lane.b32.xlu0 %v1167, 36
        %v4479 = vpop.permute.xlu0 %4478
        %4480 = vrot.lane.b32.xlu0 %v1168, 36
        %v4481 = vpop.permute.xlu0 %4480
        %4482 = vrot.lane.b32.xlu0 %v1169, 36
        %v4483 = vpop.permute.xlu0 %4482
        %4484 = vrot.lane.b32.xlu0 %v1170, 36
        %v4485 = vpop.permute.xlu0 %4484
        %4486 = vrot.lane.b32.xlu0 %v1171, 36
        %v4487 = vpop.permute.xlu0 %4486
        %4488 = vrot.lane.b32.xlu0 %v1172, 36
        %v4489 = vpop.permute.xlu0 %4488
        %4490 = vrot.lane.b32.xlu0 %v1173, 36
        %v4491 = vpop.permute.xlu0 %4490
        %4492 = vrot.lane.b32.xlu0 %v1174, 36
        %v4493 = vpop.permute.xlu0 %4492
        %4494 = vrot.lane.b32.xlu0 %v1175, 36
        %v4495 = vpop.permute.xlu0 %4494
        %4496 = vrot.lane.b32.xlu0 %v1176, 36
        %v4497 = vpop.permute.xlu0 %4496
        %4498 = vrot.lane.b32.xlu0 %v1177, 36
        %v4499 = vpop.permute.xlu0 %4498
        %4500 = vrot.lane.b32.xlu0 %v1178, 36
        %v4501 = vpop.permute.xlu0 %4500
        %4502 = vrot.lane.b32.xlu0 %v1179, 36
        %v4503 = vpop.permute.xlu0 %4502
        %4504 = vrot.lane.b32.xlu0 %v1180, 36
        %v4505 = vpop.permute.xlu0 %4504
        %4506 = vrot.lane.b32.xlu0 %v1181, 36
        %v4507 = vpop.permute.xlu0 %4506
        %4508 = vrot.lane.b32.xlu0 %v1182, 36
        %v4509 = vpop.permute.xlu0 %4508
        %4510 = vrot.lane.b32.xlu0 %v1183, 36
        %v4511 = vpop.permute.xlu0 %4510
        %4512 = vrot.lane.b32.xlu0 %v1184, 36
        %v4513 = vpop.permute.xlu0 %4512
        %4514 = vrot.lane.b32.xlu0 %v1185, 36
        %v4515 = vpop.permute.xlu0 %4514
        %4516 = vrot.lane.b32.xlu0 %v1186, 36
        %v4517 = vpop.permute.xlu0 %4516
        %4518 = vrot.lane.b32.xlu0 %v1187, 36
        %v4519 = vpop.permute.xlu0 %4518
        %4648 = vrot.lane.b32.xlu0 %v1188, 40
        %v4649 = vpop.permute.xlu0 %4648
        %4650 = vrot.lane.b32.xlu0 %v1189, 40
        %v4651 = vpop.permute.xlu0 %4650
        %4652 = vrot.lane.b32.xlu0 %v1190, 40
        %v4653 = vpop.permute.xlu0 %4652
        %4654 = vrot.lane.b32.xlu0 %v1191, 40
        %v4655 = vpop.permute.xlu0 %4654
        %4656 = vrot.lane.b32.xlu0 %v1192, 40
        %v4657 = vpop.permute.xlu0 %4656
        %4658 = vrot.lane.b32.xlu0 %v1193, 40
        %v4659 = vpop.permute.xlu0 %4658
        %4660 = vrot.lane.b32.xlu0 %v1194, 40
        %v4661 = vpop.permute.xlu0 %4660
        %4662 = vrot.lane.b32.xlu0 %v1195, 40
        %v4663 = vpop.permute.xlu0 %4662
        %4664 = vrot.lane.b32.xlu0 %v1196, 40
        %v4665 = vpop.permute.xlu0 %4664
        %4666 = vrot.lane.b32.xlu0 %v1197, 40
        %v4667 = vpop.permute.xlu0 %4666
        %4668 = vrot.lane.b32.xlu0 %v1198, 40
        %v4669 = vpop.permute.xlu0 %4668
        %4670 = vrot.lane.b32.xlu0 %v1199, 40
        %v4671 = vpop.permute.xlu0 %4670
        %4672 = vrot.lane.b32.xlu0 %v1200, 40
        %v4673 = vpop.permute.xlu0 %4672
        %4674 = vrot.lane.b32.xlu0 %v1201, 40
        %v4675 = vpop.permute.xlu0 %4674
        %4676 = vrot.lane.b32.xlu0 %v1202, 40
        %v4677 = vpop.permute.xlu0 %4676
        %4678 = vrot.lane.b32.xlu0 %v1203, 40
        %v4679 = vpop.permute.xlu0 %4678
        %4680 = vrot.lane.b32.xlu0 %v1204, 40
        %v4681 = vpop.permute.xlu0 %4680
        %4682 = vrot.lane.b32.xlu0 %v1205, 40
        %v4683 = vpop.permute.xlu0 %4682
        %4684 = vrot.lane.b32.xlu0 %v1206, 40
        %v4685 = vpop.permute.xlu0 %4684
        %4686 = vrot.lane.b32.xlu0 %v1207, 40
        %v4687 = vpop.permute.xlu0 %4686
        %4688 = vrot.lane.b32.xlu0 %v1208, 40
        %v4689 = vpop.permute.xlu0 %4688
        %4690 = vrot.lane.b32.xlu0 %v1209, 40
        %v4691 = vpop.permute.xlu0 %4690
        %4692 = vrot.lane.b32.xlu0 %v1210, 40
        %v4693 = vpop.permute.xlu0 %4692
        %4694 = vrot.lane.b32.xlu0 %v1211, 40
        %v4695 = vpop.permute.xlu0 %4694
        %4696 = vrot.lane.b32.xlu0 %v1212, 40
        %v4697 = vpop.permute.xlu0 %4696
        %4698 = vrot.lane.b32.xlu0 %v1213, 40
        %v4699 = vpop.permute.xlu0 %4698
        %4700 = vrot.lane.b32.xlu0 %v1214, 40
        %v4701 = vpop.permute.xlu0 %4700
        %4702 = vrot.lane.b32.xlu0 %v1215, 40
        %v4703 = vpop.permute.xlu0 %4702
        %4704 = vrot.lane.b32.xlu0 %v1216, 40
        %v4705 = vpop.permute.xlu0 %4704
        %4706 = vrot.lane.b32.xlu0 %v1217, 40
        %v4707 = vpop.permute.xlu0 %4706
        %4708 = vrot.lane.b32.xlu0 %v1218, 40
        %v4709 = vpop.permute.xlu0 %4708
        %4710 = vrot.lane.b32.xlu0 %v1219, 40
        %v4711 = vpop.permute.xlu0 %4710
        %4712 = vrot.lane.b32.xlu0 %v1220, 40
        %v4713 = vpop.permute.xlu0 %4712
        %4714 = vrot.lane.b32.xlu0 %v1221, 40
        %v4715 = vpop.permute.xlu0 %4714
        %4716 = vrot.lane.b32.xlu0 %v1222, 40
        %v4717 = vpop.permute.xlu0 %4716
        %4718 = vrot.lane.b32.xlu0 %v1223, 40
        %v4719 = vpop.permute.xlu0 %4718
        %4720 = vrot.lane.b32.xlu0 %v1224, 40
        %v4721 = vpop.permute.xlu0 %4720
        %4722 = vrot.lane.b32.xlu0 %v1225, 40
        %v4723 = vpop.permute.xlu0 %4722
        %4724 = vrot.lane.b32.xlu0 %v1226, 40
        %v4725 = vpop.permute.xlu0 %4724
        %4726 = vrot.lane.b32.xlu0 %v1227, 40
        %v4727 = vpop.permute.xlu0 %4726
        %4728 = vrot.lane.b32.xlu0 %v1228, 40
        %v4729 = vpop.permute.xlu0 %4728
        %4730 = vrot.lane.b32.xlu0 %v1229, 40
        %v4731 = vpop.permute.xlu0 %4730
        %4732 = vrot.lane.b32.xlu0 %v1230, 40
        %v4733 = vpop.permute.xlu0 %4732
        %4734 = vrot.lane.b32.xlu0 %v1231, 40
        %v4735 = vpop.permute.xlu0 %4734
        %4736 = vrot.lane.b32.xlu0 %v1232, 40
        %v4737 = vpop.permute.xlu0 %4736
        %4738 = vrot.lane.b32.xlu0 %v1233, 40
        %v4739 = vpop.permute.xlu0 %4738
        %4740 = vrot.lane.b32.xlu0 %v1234, 40
        %v4741 = vpop.permute.xlu0 %4740
        %4742 = vrot.lane.b32.xlu0 %v1235, 40
        %v4743 = vpop.permute.xlu0 %4742
        %4744 = vrot.lane.b32.xlu0 %v1236, 40
        %v4745 = vpop.permute.xlu0 %4744
        %4746 = vrot.lane.b32.xlu0 %v1237, 40
        %v4747 = vpop.permute.xlu0 %4746
        %4748 = vrot.lane.b32.xlu0 %v1238, 40
        %v4749 = vpop.permute.xlu0 %4748
        %4750 = vrot.lane.b32.xlu0 %v1239, 40
        %v4751 = vpop.permute.xlu0 %4750
        %4752 = vrot.lane.b32.xlu0 %v1240, 40
        %v4753 = vpop.permute.xlu0 %4752
        %4754 = vrot.lane.b32.xlu0 %v1241, 40
        %v4755 = vpop.permute.xlu0 %4754
        %4756 = vrot.lane.b32.xlu0 %v1242, 40
        %v4757 = vpop.permute.xlu0 %4756
        %4758 = vrot.lane.b32.xlu0 %v1243, 40
        %v4759 = vpop.permute.xlu0 %4758
        %4760 = vrot.lane.b32.xlu0 %v1244, 40
        %v4761 = vpop.permute.xlu0 %4760
        %4762 = vrot.lane.b32.xlu0 %v1245, 40
        %v4763 = vpop.permute.xlu0 %4762
        %4764 = vrot.lane.b32.xlu0 %v1246, 40
        %v4765 = vpop.permute.xlu0 %4764
        %4766 = vrot.lane.b32.xlu0 %v1247, 40
        %v4767 = vpop.permute.xlu0 %4766
        %4768 = vrot.lane.b32.xlu0 %v1248, 40
        %v4769 = vpop.permute.xlu0 %4768
        %4770 = vrot.lane.b32.xlu0 %v1249, 40
        %v4771 = vpop.permute.xlu0 %4770
        %4772 = vrot.lane.b32.xlu0 %v1250, 40
        %v4773 = vpop.permute.xlu0 %4772
        %4774 = vrot.lane.b32.xlu0 %v1251, 40
        %v4775 = vpop.permute.xlu0 %4774
        %4904 = vrot.lane.b32.xlu0 %v1252, 44
        %v4905 = vpop.permute.xlu0 %4904
        %4906 = vrot.lane.b32.xlu0 %v1253, 44
        %v4907 = vpop.permute.xlu0 %4906
        %4908 = vrot.lane.b32.xlu0 %v1254, 44
        %v4909 = vpop.permute.xlu0 %4908
        %4910 = vrot.lane.b32.xlu0 %v1255, 44
        %v4911 = vpop.permute.xlu0 %4910
        %4912 = vrot.lane.b32.xlu0 %v1256, 44
        %v4913 = vpop.permute.xlu0 %4912
        %4914 = vrot.lane.b32.xlu0 %v1257, 44
        %v4915 = vpop.permute.xlu0 %4914
        %4916 = vrot.lane.b32.xlu0 %v1258, 44
        %v4917 = vpop.permute.xlu0 %4916
        %4918 = vrot.lane.b32.xlu0 %v1259, 44
        %v4919 = vpop.permute.xlu0 %4918
        %4920 = vrot.lane.b32.xlu0 %v1260, 44
        %v4921 = vpop.permute.xlu0 %4920
        %4922 = vrot.lane.b32.xlu0 %v1261, 44
        %v4923 = vpop.permute.xlu0 %4922
        %4924 = vrot.lane.b32.xlu0 %v1262, 44
        %v4925 = vpop.permute.xlu0 %4924
        %4926 = vrot.lane.b32.xlu0 %v1263, 44
        %v4927 = vpop.permute.xlu0 %4926
        %4928 = vrot.lane.b32.xlu0 %v1264, 44
        %v4929 = vpop.permute.xlu0 %4928
        %4930 = vrot.lane.b32.xlu0 %v1265, 44
        %v4931 = vpop.permute.xlu0 %4930
        %4932 = vrot.lane.b32.xlu0 %v1266, 44
        %v4933 = vpop.permute.xlu0 %4932
        %4934 = vrot.lane.b32.xlu0 %v1267, 44
        %v4935 = vpop.permute.xlu0 %4934
        %4936 = vrot.lane.b32.xlu0 %v1268, 44
        %v4937 = vpop.permute.xlu0 %4936
        %4938 = vrot.lane.b32.xlu0 %v1269, 44
        %v4939 = vpop.permute.xlu0 %4938
        %4940 = vrot.lane.b32.xlu0 %v1270, 44
        %v4941 = vpop.permute.xlu0 %4940
        %4942 = vrot.lane.b32.xlu0 %v1271, 44
        %v4943 = vpop.permute.xlu0 %4942
        %4944 = vrot.lane.b32.xlu0 %v1272, 44
        %v4945 = vpop.permute.xlu0 %4944
        %4946 = vrot.lane.b32.xlu0 %v1273, 44
        %v4947 = vpop.permute.xlu0 %4946
        %4948 = vrot.lane.b32.xlu0 %v1274, 44
        %v4949 = vpop.permute.xlu0 %4948
        %4950 = vrot.lane.b32.xlu0 %v1275, 44
        %v4951 = vpop.permute.xlu0 %4950
        %4952 = vrot.lane.b32.xlu0 %v1276, 44
        %v4953 = vpop.permute.xlu0 %4952
        %4954 = vrot.lane.b32.xlu0 %v1277, 44
        %v4955 = vpop.permute.xlu0 %4954
        %4956 = vrot.lane.b32.xlu0 %v1278, 44
        %v4957 = vpop.permute.xlu0 %4956
        %4958 = vrot.lane.b32.xlu0 %v1279, 44
        %v4959 = vpop.permute.xlu0 %4958
        %4960 = vrot.lane.b32.xlu0 %v1280, 44
        %v4961 = vpop.permute.xlu0 %4960
        %4962 = vrot.lane.b32.xlu0 %v1281, 44
        %v4963 = vpop.permute.xlu0 %4962
        %4964 = vrot.lane.b32.xlu0 %v1282, 44
        %v4965 = vpop.permute.xlu0 %4964
        %4966 = vrot.lane.b32.xlu0 %v1283, 44
        %v4967 = vpop.permute.xlu0 %4966
        %4968 = vrot.lane.b32.xlu0 %v1284, 44
        %v4969 = vpop.permute.xlu0 %4968
        %4970 = vrot.lane.b32.xlu0 %v1285, 44
        %v4971 = vpop.permute.xlu0 %4970
        %4972 = vrot.lane.b32.xlu0 %v1286, 44
        %v4973 = vpop.permute.xlu0 %4972
        %4974 = vrot.lane.b32.xlu0 %v1287, 44
        %v4975 = vpop.permute.xlu0 %4974
        %4976 = vrot.lane.b32.xlu0 %v1288, 44
        %v4977 = vpop.permute.xlu0 %4976
        %4978 = vrot.lane.b32.xlu0 %v1289, 44
        %v4979 = vpop.permute.xlu0 %4978
        %4980 = vrot.lane.b32.xlu0 %v1290, 44
        %v4981 = vpop.permute.xlu0 %4980
        %4982 = vrot.lane.b32.xlu0 %v1291, 44
        %v4983 = vpop.permute.xlu0 %4982
        %4984 = vrot.lane.b32.xlu0 %v1292, 44
        %v4985 = vpop.permute.xlu0 %4984
        %4986 = vrot.lane.b32.xlu0 %v1293, 44
        %v4987 = vpop.permute.xlu0 %4986
        %4988 = vrot.lane.b32.xlu0 %v1294, 44
        %v4989 = vpop.permute.xlu0 %4988
        %4990 = vrot.lane.b32.xlu0 %v1295, 44
        %v4991 = vpop.permute.xlu0 %4990
        %4992 = vrot.lane.b32.xlu0 %v1296, 44
        %v4993 = vpop.permute.xlu0 %4992
        %4994 = vrot.lane.b32.xlu0 %v1297, 44
        %v4995 = vpop.permute.xlu0 %4994
        %4996 = vrot.lane.b32.xlu0 %v1298, 44
        %v4997 = vpop.permute.xlu0 %4996
        %4998 = vrot.lane.b32.xlu0 %v1299, 44
        %v4999 = vpop.permute.xlu0 %4998
        %5000 = vrot.lane.b32.xlu0 %v1300, 44
        %v5001 = vpop.permute.xlu0 %5000
        %5002 = vrot.lane.b32.xlu0 %v1301, 44
        %v5003 = vpop.permute.xlu0 %5002
        %5004 = vrot.lane.b32.xlu0 %v1302, 44
        %v5005 = vpop.permute.xlu0 %5004
        %5006 = vrot.lane.b32.xlu0 %v1303, 44
        %v5007 = vpop.permute.xlu0 %5006
        %5008 = vrot.lane.b32.xlu0 %v1304, 44
        %v5009 = vpop.permute.xlu0 %5008
        %5010 = vrot.lane.b32.xlu0 %v1305, 44
        %v5011 = vpop.permute.xlu0 %5010
        %5012 = vrot.lane.b32.xlu0 %v1306, 44
        %v5013 = vpop.permute.xlu0 %5012
        %5014 = vrot.lane.b32.xlu0 %v1307, 44
        %v5015 = vpop.permute.xlu0 %5014
        %5016 = vrot.lane.b32.xlu0 %v1308, 44
        %v5017 = vpop.permute.xlu0 %5016
        %5018 = vrot.lane.b32.xlu0 %v1309, 44
        %v5019 = vpop.permute.xlu0 %5018
        %5020 = vrot.lane.b32.xlu0 %v1310, 44
        %v5021 = vpop.permute.xlu0 %5020
        %5022 = vrot.lane.b32.xlu0 %v1311, 44
        %v5023 = vpop.permute.xlu0 %5022
        %5024 = vrot.lane.b32.xlu0 %v1312, 44
        %v5025 = vpop.permute.xlu0 %5024
        %5026 = vrot.lane.b32.xlu0 %v1313, 44
        %v5027 = vpop.permute.xlu0 %5026
        %5028 = vrot.lane.b32.xlu0 %v1314, 44
        %v5029 = vpop.permute.xlu0 %5028
        %5030 = vrot.lane.b32.xlu0 %v1315, 44
        %v5031 = vpop.permute.xlu0 %5030
        %5160 = vrot.lane.b32.xlu0 %v1316, 48
        %v5161 = vpop.permute.xlu0 %5160
        %5162 = vrot.lane.b32.xlu0 %v1317, 48
        %v5163 = vpop.permute.xlu0 %5162
        %5164 = vrot.lane.b32.xlu0 %v1318, 48
        %v5165 = vpop.permute.xlu0 %5164
        %5166 = vrot.lane.b32.xlu0 %v1319, 48
        %v5167 = vpop.permute.xlu0 %5166
        %5168 = vrot.lane.b32.xlu0 %v1320, 48
        %v5169 = vpop.permute.xlu0 %5168
        %5170 = vrot.lane.b32.xlu0 %v1321, 48
        %v5171 = vpop.permute.xlu0 %5170
        %5172 = vrot.lane.b32.xlu0 %v1322, 48
        %v5173 = vpop.permute.xlu0 %5172
        %5174 = vrot.lane.b32.xlu0 %v1323, 48
        %v5175 = vpop.permute.xlu0 %5174
        %5176 = vrot.lane.b32.xlu0 %v1324, 48
        %v5177 = vpop.permute.xlu0 %5176
        %5178 = vrot.lane.b32.xlu0 %v1325, 48
        %v5179 = vpop.permute.xlu0 %5178
        %5180 = vrot.lane.b32.xlu0 %v1326, 48
        %v5181 = vpop.permute.xlu0 %5180
        %5182 = vrot.lane.b32.xlu0 %v1327, 48
        %v5183 = vpop.permute.xlu0 %5182
        %5184 = vrot.lane.b32.xlu0 %v1328, 48
        %v5185 = vpop.permute.xlu0 %5184
        %5186 = vrot.lane.b32.xlu0 %v1329, 48
        %v5187 = vpop.permute.xlu0 %5186
        %5188 = vrot.lane.b32.xlu0 %v1330, 48
        %v5189 = vpop.permute.xlu0 %5188
        %5190 = vrot.lane.b32.xlu0 %v1331, 48
        %v5191 = vpop.permute.xlu0 %5190
        %5192 = vrot.lane.b32.xlu0 %v1332, 48
        %v5193 = vpop.permute.xlu0 %5192
        %5194 = vrot.lane.b32.xlu0 %v1333, 48
        %v5195 = vpop.permute.xlu0 %5194
        %5196 = vrot.lane.b32.xlu0 %v1334, 48
        %v5197 = vpop.permute.xlu0 %5196
        %5198 = vrot.lane.b32.xlu0 %v1335, 48
        %v5199 = vpop.permute.xlu0 %5198
        %5200 = vrot.lane.b32.xlu0 %v1336, 48
        %v5201 = vpop.permute.xlu0 %5200
        %5202 = vrot.lane.b32.xlu0 %v1337, 48
        %v5203 = vpop.permute.xlu0 %5202
        %5204 = vrot.lane.b32.xlu0 %v1338, 48
        %v5205 = vpop.permute.xlu0 %5204
        %5206 = vrot.lane.b32.xlu0 %v1339, 48
        %v5207 = vpop.permute.xlu0 %5206
        %5208 = vrot.lane.b32.xlu0 %v1340, 48
        %v5209 = vpop.permute.xlu0 %5208
        %5210 = vrot.lane.b32.xlu0 %v1341, 48
        %v5211 = vpop.permute.xlu0 %5210
        %5212 = vrot.lane.b32.xlu0 %v1342, 48
        %v5213 = vpop.permute.xlu0 %5212
        %5214 = vrot.lane.b32.xlu0 %v1343, 48
        %v5215 = vpop.permute.xlu0 %5214
        %5216 = vrot.lane.b32.xlu0 %v1344, 48
        %v5217 = vpop.permute.xlu0 %5216
        %5218 = vrot.lane.b32.xlu0 %v1345, 48
        %v5219 = vpop.permute.xlu0 %5218
        %5220 = vrot.lane.b32.xlu0 %v1346, 48
        %v5221 = vpop.permute.xlu0 %5220
        %5222 = vrot.lane.b32.xlu0 %v1347, 48
        %v5223 = vpop.permute.xlu0 %5222
        %5224 = vrot.lane.b32.xlu0 %v1348, 48
        %v5225 = vpop.permute.xlu0 %5224
        %5226 = vrot.lane.b32.xlu0 %v1349, 48
        %v5227 = vpop.permute.xlu0 %5226
        %5228 = vrot.lane.b32.xlu0 %v1350, 48
        %v5229 = vpop.permute.xlu0 %5228
        %5230 = vrot.lane.b32.xlu0 %v1351, 48
        %v5231 = vpop.permute.xlu0 %5230
        %5232 = vrot.lane.b32.xlu0 %v1352, 48
        %v5233 = vpop.permute.xlu0 %5232
        %5234 = vrot.lane.b32.xlu0 %v1353, 48
        %v5235 = vpop.permute.xlu0 %5234
        %5236 = vrot.lane.b32.xlu0 %v1354, 48
        %v5237 = vpop.permute.xlu0 %5236
        %5238 = vrot.lane.b32.xlu0 %v1355, 48
        %v5239 = vpop.permute.xlu0 %5238
        %5240 = vrot.lane.b32.xlu0 %v1356, 48
        %v5241 = vpop.permute.xlu0 %5240
        %5242 = vrot.lane.b32.xlu0 %v1357, 48
        %v5243 = vpop.permute.xlu0 %5242
        %5244 = vrot.lane.b32.xlu0 %v1358, 48
        %v5245 = vpop.permute.xlu0 %5244
        %5246 = vrot.lane.b32.xlu0 %v1359, 48
        %v5247 = vpop.permute.xlu0 %5246
        %5248 = vrot.lane.b32.xlu0 %v1360, 48
        %v5249 = vpop.permute.xlu0 %5248
        %5250 = vrot.lane.b32.xlu0 %v1361, 48
        %v5251 = vpop.permute.xlu0 %5250
        %5252 = vrot.lane.b32.xlu0 %v1362, 48
        %v5253 = vpop.permute.xlu0 %5252
        %5254 = vrot.lane.b32.xlu0 %v1363, 48
        %v5255 = vpop.permute.xlu0 %5254
        %5256 = vrot.lane.b32.xlu0 %v1364, 48
        %v5257 = vpop.permute.xlu0 %5256
        %5258 = vrot.lane.b32.xlu0 %v1365, 48
        %v5259 = vpop.permute.xlu0 %5258
        %5260 = vrot.lane.b32.xlu0 %v1366, 48
        %v5261 = vpop.permute.xlu0 %5260
        %5262 = vrot.lane.b32.xlu0 %v1367, 48
        %v5263 = vpop.permute.xlu0 %5262
        %5264 = vrot.lane.b32.xlu0 %v1368, 48
        %v5265 = vpop.permute.xlu0 %5264
        %5266 = vrot.lane.b32.xlu0 %v1369, 48
        %v5267 = vpop.permute.xlu0 %5266
        %5268 = vrot.lane.b32.xlu0 %v1370, 48
        %v5269 = vpop.permute.xlu0 %5268
        %5270 = vrot.lane.b32.xlu0 %v1371, 48
        %v5271 = vpop.permute.xlu0 %5270
        %5272 = vrot.lane.b32.xlu0 %v1372, 48
        %v5273 = vpop.permute.xlu0 %5272
        %5274 = vrot.lane.b32.xlu0 %v1373, 48
        %v5275 = vpop.permute.xlu0 %5274
        %5276 = vrot.lane.b32.xlu0 %v1374, 48
        %v5277 = vpop.permute.xlu0 %5276
        %5278 = vrot.lane.b32.xlu0 %v1375, 48
        %v5279 = vpop.permute.xlu0 %5278
        %5280 = vrot.lane.b32.xlu0 %v1376, 48
        %v5281 = vpop.permute.xlu0 %5280
        %5282 = vrot.lane.b32.xlu0 %v1377, 48
        %v5283 = vpop.permute.xlu0 %5282
        %5284 = vrot.lane.b32.xlu0 %v1378, 48
        %v5285 = vpop.permute.xlu0 %5284
        %5286 = vrot.lane.b32.xlu0 %v1379, 48
        %v5287 = vpop.permute.xlu0 %5286
        %5416 = vrot.lane.b32.xlu0 %v1380, 52
        %v5417 = vpop.permute.xlu0 %5416
        %5418 = vrot.lane.b32.xlu0 %v1381, 52
        %v5419 = vpop.permute.xlu0 %5418
        %5420 = vrot.lane.b32.xlu0 %v1382, 52
        %v5421 = vpop.permute.xlu0 %5420
        %5422 = vrot.lane.b32.xlu0 %v1383, 52
        %v5423 = vpop.permute.xlu0 %5422
        %5424 = vrot.lane.b32.xlu0 %v1384, 52
        %v5425 = vpop.permute.xlu0 %5424
        %5426 = vrot.lane.b32.xlu0 %v1385, 52
        %v5427 = vpop.permute.xlu0 %5426
        %5428 = vrot.lane.b32.xlu0 %v1386, 52
        %v5429 = vpop.permute.xlu0 %5428
        %5430 = vrot.lane.b32.xlu0 %v1387, 52
        %v5431 = vpop.permute.xlu0 %5430
        %5432 = vrot.lane.b32.xlu0 %v1388, 52
        %v5433 = vpop.permute.xlu0 %5432
        %5434 = vrot.lane.b32.xlu0 %v1389, 52
        %v5435 = vpop.permute.xlu0 %5434
        %5436 = vrot.lane.b32.xlu0 %v1390, 52
        %v5437 = vpop.permute.xlu0 %5436
        %5438 = vrot.lane.b32.xlu0 %v1391, 52
        %v5439 = vpop.permute.xlu0 %5438
        %5440 = vrot.lane.b32.xlu0 %v1392, 52
        %v5441 = vpop.permute.xlu0 %5440
        %5442 = vrot.lane.b32.xlu0 %v1393, 52
        %v5443 = vpop.permute.xlu0 %5442
        %5444 = vrot.lane.b32.xlu0 %v1394, 52
        %v5445 = vpop.permute.xlu0 %5444
        %5446 = vrot.lane.b32.xlu0 %v1395, 52
        %v5447 = vpop.permute.xlu0 %5446
        %5448 = vrot.lane.b32.xlu0 %v1396, 52
        %v5449 = vpop.permute.xlu0 %5448
        %5450 = vrot.lane.b32.xlu0 %v1397, 52
        %v5451 = vpop.permute.xlu0 %5450
        %5452 = vrot.lane.b32.xlu0 %v1398, 52
        %v5453 = vpop.permute.xlu0 %5452
        %5454 = vrot.lane.b32.xlu0 %v1399, 52
        %v5455 = vpop.permute.xlu0 %5454
        %5456 = vrot.lane.b32.xlu0 %v1400, 52
        %v5457 = vpop.permute.xlu0 %5456
        %5458 = vrot.lane.b32.xlu0 %v1401, 52
        %v5459 = vpop.permute.xlu0 %5458
        %5460 = vrot.lane.b32.xlu0 %v1402, 52
        %v5461 = vpop.permute.xlu0 %5460
        %5462 = vrot.lane.b32.xlu0 %v1403, 52
        %v5463 = vpop.permute.xlu0 %5462
        %5464 = vrot.lane.b32.xlu0 %v1404, 52
        %v5465 = vpop.permute.xlu0 %5464
        %5466 = vrot.lane.b32.xlu0 %v1405, 52
        %v5467 = vpop.permute.xlu0 %5466
        %5468 = vrot.lane.b32.xlu0 %v1406, 52
        %v5469 = vpop.permute.xlu0 %5468
        %5470 = vrot.lane.b32.xlu0 %v1407, 52
        %v5471 = vpop.permute.xlu0 %5470
        %5472 = vrot.lane.b32.xlu0 %v1408, 52
        %v5473 = vpop.permute.xlu0 %5472
        %5474 = vrot.lane.b32.xlu0 %v1409, 52
        %v5475 = vpop.permute.xlu0 %5474
        %5476 = vrot.lane.b32.xlu0 %v1410, 52
        %v5477 = vpop.permute.xlu0 %5476
        %5478 = vrot.lane.b32.xlu0 %v1411, 52
        %v5479 = vpop.permute.xlu0 %5478
        %5480 = vrot.lane.b32.xlu0 %v1412, 52
        %v5481 = vpop.permute.xlu0 %5480
        %5482 = vrot.lane.b32.xlu0 %v1413, 52
        %v5483 = vpop.permute.xlu0 %5482
        %5484 = vrot.lane.b32.xlu0 %v1414, 52
        %v5485 = vpop.permute.xlu0 %5484
        %5486 = vrot.lane.b32.xlu0 %v1415, 52
        %v5487 = vpop.permute.xlu0 %5486
        %5488 = vrot.lane.b32.xlu0 %v1416, 52
        %v5489 = vpop.permute.xlu0 %5488
        %5490 = vrot.lane.b32.xlu0 %v1417, 52
        %v5491 = vpop.permute.xlu0 %5490
        %5492 = vrot.lane.b32.xlu0 %v1418, 52
        %v5493 = vpop.permute.xlu0 %5492
        %5494 = vrot.lane.b32.xlu0 %v1419, 52
        %v5495 = vpop.permute.xlu0 %5494
        %5496 = vrot.lane.b32.xlu0 %v1420, 52
        %v5497 = vpop.permute.xlu0 %5496
        %5498 = vrot.lane.b32.xlu0 %v1421, 52
        %v5499 = vpop.permute.xlu0 %5498
        %5500 = vrot.lane.b32.xlu0 %v1422, 52
        %v5501 = vpop.permute.xlu0 %5500
        %5502 = vrot.lane.b32.xlu0 %v1423, 52
        %v5503 = vpop.permute.xlu0 %5502
        %5504 = vrot.lane.b32.xlu0 %v1424, 52
        %v5505 = vpop.permute.xlu0 %5504
        %5506 = vrot.lane.b32.xlu0 %v1425, 52
        %v5507 = vpop.permute.xlu0 %5506
        %5508 = vrot.lane.b32.xlu0 %v1426, 52
        %v5509 = vpop.permute.xlu0 %5508
        %5510 = vrot.lane.b32.xlu0 %v1427, 52
        %v5511 = vpop.permute.xlu0 %5510
        %5512 = vrot.lane.b32.xlu0 %v1428, 52
        %v5513 = vpop.permute.xlu0 %5512
        %5514 = vrot.lane.b32.xlu0 %v1429, 52
        %v5515 = vpop.permute.xlu0 %5514
        %5516 = vrot.lane.b32.xlu0 %v1430, 52
        %v5517 = vpop.permute.xlu0 %5516
        %5518 = vrot.lane.b32.xlu0 %v1431, 52
        %v5519 = vpop.permute.xlu0 %5518
        %5520 = vrot.lane.b32.xlu0 %v1432, 52
        %v5521 = vpop.permute.xlu0 %5520
        %5522 = vrot.lane.b32.xlu0 %v1433, 52
        %v5523 = vpop.permute.xlu0 %5522
        %5524 = vrot.lane.b32.xlu0 %v1434, 52
        %v5525 = vpop.permute.xlu0 %5524
        %5526 = vrot.lane.b32.xlu0 %v1435, 52
        %v5527 = vpop.permute.xlu0 %5526
        %5528 = vrot.lane.b32.xlu0 %v1436, 52
        %v5529 = vpop.permute.xlu0 %5528
        %5530 = vrot.lane.b32.xlu0 %v1437, 52
        %v5531 = vpop.permute.xlu0 %5530
        %5532 = vrot.lane.b32.xlu0 %v1438, 52
        %v5533 = vpop.permute.xlu0 %5532
        %5534 = vrot.lane.b32.xlu0 %v1439, 52
        %v5535 = vpop.permute.xlu0 %5534
        %5536 = vrot.lane.b32.xlu0 %v1440, 52
        %v5537 = vpop.permute.xlu0 %5536
        %5538 = vrot.lane.b32.xlu0 %v1441, 52
        %v5539 = vpop.permute.xlu0 %5538
        %5540 = vrot.lane.b32.xlu0 %v1442, 52
        %v5541 = vpop.permute.xlu0 %5540
        %5542 = vrot.lane.b32.xlu0 %v1443, 52
        %v5543 = vpop.permute.xlu0 %5542
        %5672 = vrot.lane.b32.xlu0 %v1444, 56
        %v5673 = vpop.permute.xlu0 %5672
        %5674 = vrot.lane.b32.xlu0 %v1445, 56
        %v5675 = vpop.permute.xlu0 %5674
        %5676 = vrot.lane.b32.xlu0 %v1446, 56
        %v5677 = vpop.permute.xlu0 %5676
        %5678 = vrot.lane.b32.xlu0 %v1447, 56
        %v5679 = vpop.permute.xlu0 %5678
        %5680 = vrot.lane.b32.xlu0 %v1448, 56
        %v5681 = vpop.permute.xlu0 %5680
        %5682 = vrot.lane.b32.xlu0 %v1449, 56
        %v5683 = vpop.permute.xlu0 %5682
        %5684 = vrot.lane.b32.xlu0 %v1450, 56
        %v5685 = vpop.permute.xlu0 %5684
        %5686 = vrot.lane.b32.xlu0 %v1451, 56
        %v5687 = vpop.permute.xlu0 %5686
        %5688 = vrot.lane.b32.xlu0 %v1452, 56
        %v5689 = vpop.permute.xlu0 %5688
        %5690 = vrot.lane.b32.xlu0 %v1453, 56
        %v5691 = vpop.permute.xlu0 %5690
        %5692 = vrot.lane.b32.xlu0 %v1454, 56
        %v5693 = vpop.permute.xlu0 %5692
        %5694 = vrot.lane.b32.xlu0 %v1455, 56
        %v5695 = vpop.permute.xlu0 %5694
        %5696 = vrot.lane.b32.xlu0 %v1456, 56
        %v5697 = vpop.permute.xlu0 %5696
        %5698 = vrot.lane.b32.xlu0 %v1457, 56
        %v5699 = vpop.permute.xlu0 %5698
        %5700 = vrot.lane.b32.xlu0 %v1458, 56
        %v5701 = vpop.permute.xlu0 %5700
        %5702 = vrot.lane.b32.xlu0 %v1459, 56
        %v5703 = vpop.permute.xlu0 %5702
        %5704 = vrot.lane.b32.xlu0 %v1460, 56
        %v5705 = vpop.permute.xlu0 %5704
        %5706 = vrot.lane.b32.xlu0 %v1461, 56
        %v5707 = vpop.permute.xlu0 %5706
        %5708 = vrot.lane.b32.xlu0 %v1462, 56
        %v5709 = vpop.permute.xlu0 %5708
        %5710 = vrot.lane.b32.xlu0 %v1463, 56
        %v5711 = vpop.permute.xlu0 %5710
        %5712 = vrot.lane.b32.xlu0 %v1464, 56
        %v5713 = vpop.permute.xlu0 %5712
        %5714 = vrot.lane.b32.xlu0 %v1465, 56
        %v5715 = vpop.permute.xlu0 %5714
        %5716 = vrot.lane.b32.xlu0 %v1466, 56
        %v5717 = vpop.permute.xlu0 %5716
        %5718 = vrot.lane.b32.xlu0 %v1467, 56
        %v5719 = vpop.permute.xlu0 %5718
        %5720 = vrot.lane.b32.xlu0 %v1468, 56
        %v5721 = vpop.permute.xlu0 %5720
        %5722 = vrot.lane.b32.xlu0 %v1469, 56
        %v5723 = vpop.permute.xlu0 %5722
        %5724 = vrot.lane.b32.xlu0 %v1470, 56
        %v5725 = vpop.permute.xlu0 %5724
        %5726 = vrot.lane.b32.xlu0 %v1471, 56
        %v5727 = vpop.permute.xlu0 %5726
        %5728 = vrot.lane.b32.xlu0 %v1472, 56
        %v5729 = vpop.permute.xlu0 %5728
        %5730 = vrot.lane.b32.xlu0 %v1473, 56
        %v5731 = vpop.permute.xlu0 %5730
        %5732 = vrot.lane.b32.xlu0 %v1474, 56
        %v5733 = vpop.permute.xlu0 %5732
        %5734 = vrot.lane.b32.xlu0 %v1475, 56
        %v5735 = vpop.permute.xlu0 %5734
        %5736 = vrot.lane.b32.xlu0 %v1476, 56
        %v5737 = vpop.permute.xlu0 %5736
        %5738 = vrot.lane.b32.xlu0 %v1477, 56
        %v5739 = vpop.permute.xlu0 %5738
        %5740 = vrot.lane.b32.xlu0 %v1478, 56
        %v5741 = vpop.permute.xlu0 %5740
        %5742 = vrot.lane.b32.xlu0 %v1479, 56
        %v5743 = vpop.permute.xlu0 %5742
        %5744 = vrot.lane.b32.xlu0 %v1480, 56
        %v5745 = vpop.permute.xlu0 %5744
        %5746 = vrot.lane.b32.xlu0 %v1481, 56
        %v5747 = vpop.permute.xlu0 %5746
        %5748 = vrot.lane.b32.xlu0 %v1482, 56
        %v5749 = vpop.permute.xlu0 %5748
        %5750 = vrot.lane.b32.xlu0 %v1483, 56
        %v5751 = vpop.permute.xlu0 %5750
        %5752 = vrot.lane.b32.xlu0 %v1484, 56
        %v5753 = vpop.permute.xlu0 %5752
        %5754 = vrot.lane.b32.xlu0 %v1485, 56
        %v5755 = vpop.permute.xlu0 %5754
        %5756 = vrot.lane.b32.xlu0 %v1486, 56
        %v5757 = vpop.permute.xlu0 %5756
        %5758 = vrot.lane.b32.xlu0 %v1487, 56
        %v5759 = vpop.permute.xlu0 %5758
        %5760 = vrot.lane.b32.xlu0 %v1488, 56
        %v5761 = vpop.permute.xlu0 %5760
        %5762 = vrot.lane.b32.xlu0 %v1489, 56
        %v5763 = vpop.permute.xlu0 %5762
        %5764 = vrot.lane.b32.xlu0 %v1490, 56
        %v5765 = vpop.permute.xlu0 %5764
        %5766 = vrot.lane.b32.xlu0 %v1491, 56
        %v5767 = vpop.permute.xlu0 %5766
        %5768 = vrot.lane.b32.xlu0 %v1492, 56
        %v5769 = vpop.permute.xlu0 %5768
        %5770 = vrot.lane.b32.xlu0 %v1493, 56
        %v5771 = vpop.permute.xlu0 %5770
        %5772 = vrot.lane.b32.xlu0 %v1494, 56
        %v5773 = vpop.permute.xlu0 %5772
        %5774 = vrot.lane.b32.xlu0 %v1495, 56
        %v5775 = vpop.permute.xlu0 %5774
        %5776 = vrot.lane.b32.xlu0 %v1496, 56
        %v5777 = vpop.permute.xlu0 %5776
        %5778 = vrot.lane.b32.xlu0 %v1497, 56
        %v5779 = vpop.permute.xlu0 %5778
        %5780 = vrot.lane.b32.xlu0 %v1498, 56
        %v5781 = vpop.permute.xlu0 %5780
        %5782 = vrot.lane.b32.xlu0 %v1499, 56
        %v5783 = vpop.permute.xlu0 %5782
        %5784 = vrot.lane.b32.xlu0 %v1500, 56
        %v5785 = vpop.permute.xlu0 %5784
        %5786 = vrot.lane.b32.xlu0 %v1501, 56
        %v5787 = vpop.permute.xlu0 %5786
        %5788 = vrot.lane.b32.xlu0 %v1502, 56
        %v5789 = vpop.permute.xlu0 %5788
        %5790 = vrot.lane.b32.xlu0 %v1503, 56
        %v5791 = vpop.permute.xlu0 %5790
        %5792 = vrot.lane.b32.xlu0 %v1504, 56
        %v5793 = vpop.permute.xlu0 %5792
        %5794 = vrot.lane.b32.xlu0 %v1505, 56
        %v5795 = vpop.permute.xlu0 %5794
        %5796 = vrot.lane.b32.xlu0 %v1506, 56
        %v5797 = vpop.permute.xlu0 %5796
        %5798 = vrot.lane.b32.xlu0 %v1507, 56
        %v5799 = vpop.permute.xlu0 %5798
        %5928 = vrot.lane.b32.xlu0 %v1509, 60
        %v5929 = vpop.permute.xlu0 %5928
        %5930 = vrot.lane.b32.xlu0 %v1510, 60
        %v5931 = vpop.permute.xlu0 %5930
        %5932 = vrot.lane.b32.xlu0 %v1511, 60
        %v5933 = vpop.permute.xlu0 %5932
        %5934 = vrot.lane.b32.xlu0 %v1512, 60
        %v5935 = vpop.permute.xlu0 %5934
        %5936 = vrot.lane.b32.xlu0 %v1513, 60
        %v5937 = vpop.permute.xlu0 %5936
        %5938 = vrot.lane.b32.xlu0 %v1514, 60
        %v5939 = vpop.permute.xlu0 %5938
        %5940 = vrot.lane.b32.xlu0 %v1515, 60
        %v5941 = vpop.permute.xlu0 %5940
        %5942 = vrot.lane.b32.xlu0 %v1516, 60
        %v5943 = vpop.permute.xlu0 %5942
        %5944 = vrot.lane.b32.xlu0 %v1517, 60
        %v5945 = vpop.permute.xlu0 %5944
        %5946 = vrot.lane.b32.xlu0 %v1518, 60
        %v5947 = vpop.permute.xlu0 %5946
        %5948 = vrot.lane.b32.xlu0 %v1519, 60
        %v5949 = vpop.permute.xlu0 %5948
        %5950 = vrot.lane.b32.xlu0 %v1520, 60
        %v5951 = vpop.permute.xlu0 %5950
        %5952 = vrot.lane.b32.xlu0 %v1521, 60
        %v5953 = vpop.permute.xlu0 %5952
        %5954 = vrot.lane.b32.xlu0 %v1522, 60
        %v5955 = vpop.permute.xlu0 %5954
        %5956 = vrot.lane.b32.xlu0 %v1523, 60
        %v5957 = vpop.permute.xlu0 %5956
        %5958 = vrot.lane.b32.xlu0 %v1524, 60
        %v5959 = vpop.permute.xlu0 %5958
        %5960 = vrot.lane.b32.xlu0 %v1525, 60
        %v5961 = vpop.permute.xlu0 %5960
        %5962 = vrot.lane.b32.xlu0 %v1526, 60
        %v5963 = vpop.permute.xlu0 %5962
        %5964 = vrot.lane.b32.xlu0 %v1527, 60
        %v5965 = vpop.permute.xlu0 %5964
        %5966 = vrot.lane.b32.xlu0 %v1528, 60
        %v5967 = vpop.permute.xlu0 %5966
        %5968 = vrot.lane.b32.xlu0 %v1529, 60
        %v5969 = vpop.permute.xlu0 %5968
        %5970 = vrot.lane.b32.xlu0 %v1530, 60
        %v5971 = vpop.permute.xlu0 %5970
        %5972 = vrot.lane.b32.xlu0 %v1531, 60
        %v5973 = vpop.permute.xlu0 %5972
        %5974 = vrot.lane.b32.xlu0 %v1532, 60
        %v5975 = vpop.permute.xlu0 %5974
        %5976 = vrot.lane.b32.xlu0 %v1533, 60
        %v5977 = vpop.permute.xlu0 %5976
        %5978 = vrot.lane.b32.xlu0 %v1534, 60
        %v5979 = vpop.permute.xlu0 %5978
        %5980 = vrot.lane.b32.xlu0 %v1535, 60
        %v5981 = vpop.permute.xlu0 %5980
        %5982 = vrot.lane.b32.xlu0 %v1536, 60
        %v5983 = vpop.permute.xlu0 %5982
        %5984 = vrot.lane.b32.xlu0 %v1537, 60
        %v5985 = vpop.permute.xlu0 %5984
        %5986 = vrot.lane.b32.xlu0 %v1538, 60
        %v5987 = vpop.permute.xlu0 %5986
        %5988 = vrot.lane.b32.xlu0 %v1539, 60
        %v5989 = vpop.permute.xlu0 %5988
        %5990 = vrot.lane.b32.xlu0 %v1540, 60
        %v5991 = vpop.permute.xlu0 %5990
        %5992 = vrot.lane.b32.xlu0 %v1541, 60
        %v5993 = vpop.permute.xlu0 %5992
        %5994 = vrot.lane.b32.xlu0 %v1542, 60
        %v5995 = vpop.permute.xlu0 %5994
        %5996 = vrot.lane.b32.xlu0 %v1543, 60
        %v5997 = vpop.permute.xlu0 %5996
        %5998 = vrot.lane.b32.xlu0 %v1544, 60
        %v5999 = vpop.permute.xlu0 %5998
        %6000 = vrot.lane.b32.xlu0 %v1545, 60
        %v6001 = vpop.permute.xlu0 %6000
        %6002 = vrot.lane.b32.xlu0 %v1546, 60
        %v6003 = vpop.permute.xlu0 %6002
        %6004 = vrot.lane.b32.xlu0 %v1547, 60
        %v6005 = vpop.permute.xlu0 %6004
        %6006 = vrot.lane.b32.xlu0 %v1548, 60
        %v6007 = vpop.permute.xlu0 %6006
        %6008 = vrot.lane.b32.xlu0 %v1549, 60
        %v6009 = vpop.permute.xlu0 %6008
        %6010 = vrot.lane.b32.xlu0 %v1550, 60
        %v6011 = vpop.permute.xlu0 %6010
        %6012 = vrot.lane.b32.xlu0 %v1551, 60
        %v6013 = vpop.permute.xlu0 %6012
        %6014 = vrot.lane.b32.xlu0 %v1552, 60
        %v6015 = vpop.permute.xlu0 %6014
        %6016 = vrot.lane.b32.xlu0 %v1553, 60
        %v6017 = vpop.permute.xlu0 %6016
        %6018 = vrot.lane.b32.xlu0 %v1554, 60
        %v6019 = vpop.permute.xlu0 %6018
        %6020 = vrot.lane.b32.xlu0 %v1555, 60
        %v6021 = vpop.permute.xlu0 %6020
        %6022 = vrot.lane.b32.xlu0 %v1556, 60
        %v6023 = vpop.permute.xlu0 %6022
        %6024 = vrot.lane.b32.xlu0 %v1557, 60
        %v6025 = vpop.permute.xlu0 %6024
        %6026 = vrot.lane.b32.xlu0 %v1558, 60
        %v6027 = vpop.permute.xlu0 %6026
        %6028 = vrot.lane.b32.xlu0 %v1559, 60
        %v6029 = vpop.permute.xlu0 %6028
        %6030 = vrot.lane.b32.xlu0 %v1560, 60
        %v6031 = vpop.permute.xlu0 %6030
        %6032 = vrot.lane.b32.xlu0 %v1561, 60
        %v6033 = vpop.permute.xlu0 %6032
        %6034 = vrot.lane.b32.xlu0 %v1562, 60
        %v6035 = vpop.permute.xlu0 %6034
        %6036 = vrot.lane.b32.xlu0 %v1563, 60
        %v6037 = vpop.permute.xlu0 %6036
        %6038 = vrot.lane.b32.xlu0 %v1564, 60
        %v6039 = vpop.permute.xlu0 %6038
        %6040 = vrot.lane.b32.xlu0 %v1565, 60
        %v6041 = vpop.permute.xlu0 %6040
        %6042 = vrot.lane.b32.xlu0 %v1566, 60
        %v6043 = vpop.permute.xlu0 %6042
        %6044 = vrot.lane.b32.xlu0 %v1567, 60
        %v6045 = vpop.permute.xlu0 %6044
        %6046 = vrot.lane.b32.xlu0 %v1568, 60
        %v6047 = vpop.permute.xlu0 %6046
        %6048 = vrot.lane.b32.xlu0 %v1569, 60
        %v6049 = vpop.permute.xlu0 %6048
        %6050 = vrot.lane.b32.xlu0 %v1570, 60
        %v6051 = vpop.permute.xlu0 %6050
        %6052 = vrot.lane.b32.xlu0 %v1571, 60
        %v6053 = vpop.permute.xlu0 %6052
        %6054 = vrot.lane.b32.xlu0 %v1572, 60
        %v6055 = vpop.permute.xlu0 %6054
        %v6120 = vsel %vm214, %v545, %v2345
        %v6121 = vsel %vm214, %v546, %v2347
        %v6122 = vsel %vm214, %v547, %v2349
        %v6123 = vsel %vm214, %v548, %v2351
        %v6124 = vsel %vm214, %v549, %v2353
        %v6125 = vsel %vm214, %v550, %v2355
        %v6126 = vsel %vm214, %v551, %v2357
        %v6127 = vsel %vm214, %v552, %v2359
        %v6128 = vsel %vm214, %v553, %v2361
        %v6129 = vsel %vm214, %v554, %v2363
        %v6130 = vsel %vm214, %v555, %v2365
        %v6131 = vsel %vm214, %v556, %v2367
        %v6132 = vsel %vm214, %v557, %v2369
        %v6133 = vsel %vm214, %v558, %v2371
        %v6134 = vsel %vm214, %v559, %v2373
        %v6135 = vsel %vm214, %v560, %v2375
        %v6136 = vsel %vm214, %v561, %v2377
        %v6137 = vsel %vm214, %v562, %v2379
        %v6138 = vsel %vm214, %v563, %v2381
        %v6139 = vsel %vm214, %v564, %v2383
        %v6140 = vsel %vm214, %v565, %v2385
        %v6141 = vsel %vm214, %v566, %v2387
        %v6142 = vsel %vm214, %v567, %v2389
        %v6143 = vsel %vm214, %v568, %v2391
        %v6144 = vsel %vm214, %v569, %v2393
        %v6145 = vsel %vm214, %v570, %v2395
        %v6146 = vsel %vm214, %v571, %v2397
        %v6147 = vsel %vm214, %v572, %v2399
        %v6148 = vsel %vm214, %v573, %v2401
        %v6149 = vsel %vm214, %v574, %v2403
        %v6150 = vsel %vm214, %v575, %v2405
        %v6151 = vsel %vm214, %v576, %v2407
        %v6152 = vsel %vm214, %v577, %v2409
        %v6153 = vsel %vm214, %v578, %v2411
        %v6154 = vsel %vm214, %v579, %v2413
        %v6155 = vsel %vm214, %v580, %v2415
        %v6156 = vsel %vm214, %v581, %v2417
        %v6157 = vsel %vm214, %v582, %v2419
        %v6158 = vsel %vm214, %v583, %v2421
        %v6159 = vsel %vm214, %v584, %v2423
        %v6160 = vsel %vm214, %v585, %v2425
        %v6161 = vsel %vm214, %v586, %v2427
        %v6162 = vsel %vm214, %v587, %v2429
        %v6163 = vsel %vm214, %v588, %v2431
        %v6164 = vsel %vm214, %v589, %v2433
        %v6165 = vsel %vm214, %v590, %v2435
        %v6166 = vsel %vm214, %v591, %v2437
        %v6167 = vsel %vm214, %v592, %v2439
        %v6168 = vsel %vm214, %v593, %v2441
        %v6169 = vsel %vm214, %v594, %v2443
        %v6170 = vsel %vm214, %v595, %v2445
        %v6171 = vsel %vm214, %v596, %v2447
        %v6172 = vsel %vm214, %v597, %v2449
        %v6173 = vsel %vm214, %v598, %v2451
        %v6174 = vsel %vm214, %v599, %v2453
        %v6175 = vsel %vm214, %v600, %v2455
        %v6176 = vsel %vm214, %v601, %v2457
        %v6177 = vsel %vm214, %v602, %v2459
        %v6178 = vsel %vm214, %v603, %v2461
        %v6179 = vsel %vm214, %v604, %v2463
        %v6180 = vsel %vm214, %v605, %v2465
        %v6181 = vsel %vm214, %v606, %v2467
        %v6182 = vsel %vm214, %v607, %v2469
        %v6183 = vsel %vm214, %v608, %v2471
        %vm6184 = vcmask 64512
        %v6185 = vsel %vm6184, %v6120, %v2601
        %v6186 = vsel %vm6184, %v6121, %v2603
        %v6187 = vsel %vm6184, %v6122, %v2605
        %v6188 = vsel %vm6184, %v6123, %v2607
        %v6189 = vsel %vm6184, %v6124, %v2609
        %v6190 = vsel %vm6184, %v6125, %v2611
        %v6191 = vsel %vm6184, %v6126, %v2613
        %v6192 = vsel %vm6184, %v6127, %v2615
        %v6193 = vsel %vm6184, %v6128, %v2617
        %v6194 = vsel %vm6184, %v6129, %v2619
        %v6195 = vsel %vm6184, %v6130, %v2621
        %v6196 = vsel %vm6184, %v6131, %v2623
        %v6197 = vsel %vm6184, %v6132, %v2625
        %v6198 = vsel %vm6184, %v6133, %v2627
        %v6199 = vsel %vm6184, %v6134, %v2629
        %v6200 = vsel %vm6184, %v6135, %v2631
        %v6201 = vsel %vm6184, %v6136, %v2633
        %v6202 = vsel %vm6184, %v6137, %v2635
        %v6203 = vsel %vm6184, %v6138, %v2637
        %v6204 = vsel %vm6184, %v6139, %v2639
        %v6205 = vsel %vm6184, %v6140, %v2641
        %v6206 = vsel %vm6184, %v6141, %v2643
        %v6207 = vsel %vm6184, %v6142, %v2645
        %v6208 = vsel %vm6184, %v6143, %v2647
        %v6209 = vsel %vm6184, %v6144, %v2649
        %v6210 = vsel %vm6184, %v6145, %v2651
        %v6211 = vsel %vm6184, %v6146, %v2653
        %v6212 = vsel %vm6184, %v6147, %v2655
        %v6213 = vsel %vm6184, %v6148, %v2657
        %v6214 = vsel %vm6184, %v6149, %v2659
        %v6215 = vsel %vm6184, %v6150, %v2661
        %v6216 = vsel %vm6184, %v6151, %v2663
        %v6217 = vsel %vm6184, %v6152, %v2665
        %v6218 = vsel %vm6184, %v6153, %v2667
        %v6219 = vsel %vm6184, %v6154, %v2669
        %v6220 = vsel %vm6184, %v6155, %v2671
        %v6221 = vsel %vm6184, %v6156, %v2673
        %v6222 = vsel %vm6184, %v6157, %v2675
        %v6223 = vsel %vm6184, %v6158, %v2677
        %v6224 = vsel %vm6184, %v6159, %v2679
        %v6225 = vsel %vm6184, %v6160, %v2681
        %v6226 = vsel %vm6184, %v6161, %v2683
        %v6227 = vsel %vm6184, %v6162, %v2685
        %v6228 = vsel %vm6184, %v6163, %v2687
        %v6229 = vsel %vm6184, %v6164, %v2689
        %v6230 = vsel %vm6184, %v6165, %v2691
        %v6231 = vsel %vm6184, %v6166, %v2693
        %v6232 = vsel %vm6184, %v6167, %v2695
        %v6233 = vsel %vm6184, %v6168, %v2697
        %v6234 = vsel %vm6184, %v6169, %v2699
        %v6235 = vsel %vm6184, %v6170, %v2701
        %v6236 = vsel %vm6184, %v6171, %v2703
        %v6237 = vsel %vm6184, %v6172, %v2705
        %v6238 = vsel %vm6184, %v6173, %v2707
        %v6239 = vsel %vm6184, %v6174, %v2709
        %v6240 = vsel %vm6184, %v6175, %v2711
        %v6241 = vsel %vm6184, %v6176, %v2713
        %v6242 = vsel %vm6184, %v6177, %v2715
        %v6243 = vsel %vm6184, %v6178, %v2717
        %v6244 = vsel %vm6184, %v6179, %v2719
        %v6245 = vsel %vm6184, %v6180, %v2721
        %v6246 = vsel %vm6184, %v6181, %v2723
        %v6247 = vsel %vm6184, %v6182, %v2725
        %v6248 = vsel %vm6184, %v6183, %v2727
        %vm6249 = vcmask 97280
        %v6250 = vsel %vm6249, %v6185, %v2857
        %v6251 = vsel %vm6249, %v6186, %v2859
        %v6252 = vsel %vm6249, %v6187, %v2861
        %v6253 = vsel %vm6249, %v6188, %v2863
        %v6254 = vsel %vm6249, %v6189, %v2865
        %v6255 = vsel %vm6249, %v6190, %v2867
        %v6256 = vsel %vm6249, %v6191, %v2869
        %v6257 = vsel %vm6249, %v6192, %v2871
        %v6258 = vsel %vm6249, %v6193, %v2873
        %v6259 = vsel %vm6249, %v6194, %v2875
        %v6260 = vsel %vm6249, %v6195, %v2877
        %v6261 = vsel %vm6249, %v6196, %v2879
        %v6262 = vsel %vm6249, %v6197, %v2881
        %v6263 = vsel %vm6249, %v6198, %v2883
        %v6264 = vsel %vm6249, %v6199, %v2885
        %v6265 = vsel %vm6249, %v6200, %v2887
        %v6266 = vsel %vm6249, %v6201, %v2889
        %v6267 = vsel %vm6249, %v6202, %v2891
        %v6268 = vsel %vm6249, %v6203, %v2893
        %v6269 = vsel %vm6249, %v6204, %v2895
        %v6270 = vsel %vm6249, %v6205, %v2897
        %v6271 = vsel %vm6249, %v6206, %v2899
        %v6272 = vsel %vm6249, %v6207, %v2901
        %v6273 = vsel %vm6249, %v6208, %v2903
        %v6274 = vsel %vm6249, %v6209, %v2905
        %v6275 = vsel %vm6249, %v6210, %v2907
        %v6276 = vsel %vm6249, %v6211, %v2909
        %v6277 = vsel %vm6249, %v6212, %v2911
        %v6278 = vsel %vm6249, %v6213, %v2913
        %v6279 = vsel %vm6249, %v6214, %v2915
        %v6280 = vsel %vm6249, %v6215, %v2917
        %v6281 = vsel %vm6249, %v6216, %v2919
        %v6282 = vsel %vm6249, %v6217, %v2921
        %v6283 = vsel %vm6249, %v6218, %v2923
        %v6284 = vsel %vm6249, %v6219, %v2925
        %v6285 = vsel %vm6249, %v6220, %v2927
        %v6286 = vsel %vm6249, %v6221, %v2929
        %v6287 = vsel %vm6249, %v6222, %v2931
        %v6288 = vsel %vm6249, %v6223, %v2933
        %v6289 = vsel %vm6249, %v6224, %v2935
        %v6290 = vsel %vm6249, %v6225, %v2937
        %v6291 = vsel %vm6249, %v6226, %v2939
        %v6292 = vsel %vm6249, %v6227, %v2941
        %v6293 = vsel %vm6249, %v6228, %v2943
        %v6294 = vsel %vm6249, %v6229, %v2945
        %v6295 = vsel %vm6249, %v6230, %v2947
        %v6296 = vsel %vm6249, %v6231, %v2949
        %v6297 = vsel %vm6249, %v6232, %v2951
        %v6298 = vsel %vm6249, %v6233, %v2953
        %v6299 = vsel %vm6249, %v6234, %v2955
        %v6300 = vsel %vm6249, %v6235, %v2957
        %v6301 = vsel %vm6249, %v6236, %v2959
        %v6302 = vsel %vm6249, %v6237, %v2961
        %v6303 = vsel %vm6249, %v6238, %v2963
        %v6304 = vsel %vm6249, %v6239, %v2965
        %v6305 = vsel %vm6249, %v6240, %v2967
        %v6306 = vsel %vm6249, %v6241, %v2969
        %v6307 = vsel %vm6249, %v6242, %v2971
        %v6308 = vsel %vm6249, %v6243, %v2973
        %v6309 = vsel %vm6249, %v6244, %v2975
        %v6310 = vsel %vm6249, %v6245, %v2977
        %v6311 = vsel %vm6249, %v6246, %v2979
        %v6312 = vsel %vm6249, %v6247, %v2981
        %v6313 = vsel %vm6249, %v6248, %v2983
        %vm6314 = vcmask 130048
        %v6315 = vsel %vm6314, %v6250, %v3113
        %v6316 = vsel %vm6314, %v6251, %v3115
        %v6317 = vsel %vm6314, %v6252, %v3117
        %v6318 = vsel %vm6314, %v6253, %v3119
        %v6319 = vsel %vm6314, %v6254, %v3121
        %v6320 = vsel %vm6314, %v6255, %v3123
        %v6321 = vsel %vm6314, %v6256, %v3125
        %v6322 = vsel %vm6314, %v6257, %v3127
        %v6323 = vsel %vm6314, %v6258, %v3129
        %v6324 = vsel %vm6314, %v6259, %v3131
        %v6325 = vsel %vm6314, %v6260, %v3133
        %v6326 = vsel %vm6314, %v6261, %v3135
        %v6327 = vsel %vm6314, %v6262, %v3137
        %v6328 = vsel %vm6314, %v6263, %v3139
        %v6329 = vsel %vm6314, %v6264, %v3141
        %v6330 = vsel %vm6314, %v6265, %v3143
        %v6331 = vsel %vm6314, %v6266, %v3145
        %v6332 = vsel %vm6314, %v6267, %v3147
        %v6333 = vsel %vm6314, %v6268, %v3149
        %v6334 = vsel %vm6314, %v6269, %v3151
        %v6335 = vsel %vm6314, %v6270, %v3153
        %v6336 = vsel %vm6314, %v6271, %v3155
        %v6337 = vsel %vm6314, %v6272, %v3157
        %v6338 = vsel %vm6314, %v6273, %v3159
        %v6339 = vsel %vm6314, %v6274, %v3161
        %v6340 = vsel %vm6314, %v6275, %v3163
        %v6341 = vsel %vm6314, %v6276, %v3165
        %v6342 = vsel %vm6314, %v6277, %v3167
        %v6343 = vsel %vm6314, %v6278, %v3169
        %v6344 = vsel %vm6314, %v6279, %v3171
        %v6345 = vsel %vm6314, %v6280, %v3173
        %v6346 = vsel %vm6314, %v6281, %v3175
        %v6347 = vsel %vm6314, %v6282, %v3177
        %v6348 = vsel %vm6314, %v6283, %v3179
        %v6349 = vsel %vm6314, %v6284, %v3181
        %v6350 = vsel %vm6314, %v6285, %v3183
        %v6351 = vsel %vm6314, %v6286, %v3185
        %v6352 = vsel %vm6314, %v6287, %v3187
        %v6353 = vsel %vm6314, %v6288, %v3189
        %v6354 = vsel %vm6314, %v6289, %v3191
        %v6355 = vsel %vm6314, %v6290, %v3193
        %v6356 = vsel %vm6314, %v6291, %v3195
        %v6357 = vsel %vm6314, %v6292, %v3197
        %v6358 = vsel %vm6314, %v6293, %v3199
        %v6359 = vsel %vm6314, %v6294, %v3201
        %v6360 = vsel %vm6314, %v6295, %v3203
        %v6361 = vsel %vm6314, %v6296, %v3205
        %v6362 = vsel %vm6314, %v6297, %v3207
        %v6363 = vsel %vm6314, %v6298, %v3209
        %v6364 = vsel %vm6314, %v6299, %v3211
        %v6365 = vsel %vm6314, %v6300, %v3213
        %v6366 = vsel %vm6314, %v6301, %v3215
        %v6367 = vsel %vm6314, %v6302, %v3217
        %v6368 = vsel %vm6314, %v6303, %v3219
        %v6369 = vsel %vm6314, %v6304, %v3221
        %v6370 = vsel %vm6314, %v6305, %v3223
        %v6371 = vsel %vm6314, %v6306, %v3225
        %v6372 = vsel %vm6314, %v6307, %v3227
        %v6373 = vsel %vm6314, %v6308, %v3229
        %v6374 = vsel %vm6314, %v6309, %v3231
        %v6375 = vsel %vm6314, %v6310, %v3233
        %v6376 = vsel %vm6314, %v6311, %v3235
        %v6377 = vsel %vm6314, %v6312, %v3237
        %v6378 = vsel %vm6314, %v6313, %v3239
        %vm6379 = vcmask 162816
        %v6380 = vsel %vm6379, %v6315, %v3369
        %v6381 = vsel %vm6379, %v6316, %v3371
        %v6382 = vsel %vm6379, %v6317, %v3373
        %v6383 = vsel %vm6379, %v6318, %v3375
        %v6384 = vsel %vm6379, %v6319, %v3377
        %v6385 = vsel %vm6379, %v6320, %v3379
        %v6386 = vsel %vm6379, %v6321, %v3381
        %v6387 = vsel %vm6379, %v6322, %v3383
        %v6388 = vsel %vm6379, %v6323, %v3385
        %v6389 = vsel %vm6379, %v6324, %v3387
        %v6390 = vsel %vm6379, %v6325, %v3389
        %v6391 = vsel %vm6379, %v6326, %v3391
        %v6392 = vsel %vm6379, %v6327, %v3393
        %v6393 = vsel %vm6379, %v6328, %v3395
        %v6394 = vsel %vm6379, %v6329, %v3397
        %v6395 = vsel %vm6379, %v6330, %v3399
        %v6396 = vsel %vm6379, %v6331, %v3401
        %v6397 = vsel %vm6379, %v6332, %v3403
        %v6398 = vsel %vm6379, %v6333, %v3405
        %v6399 = vsel %vm6379, %v6334, %v3407
        %v6400 = vsel %vm6379, %v6335, %v3409
        %v6401 = vsel %vm6379, %v6336, %v3411
        %v6402 = vsel %vm6379, %v6337, %v3413
        %v6403 = vsel %vm6379, %v6338, %v3415
        %v6404 = vsel %vm6379, %v6339, %v3417
        %v6405 = vsel %vm6379, %v6340, %v3419
        %v6406 = vsel %vm6379, %v6341, %v3421
        %v6407 = vsel %vm6379, %v6342, %v3423
        %v6408 = vsel %vm6379, %v6343, %v3425
        %v6409 = vsel %vm6379, %v6344, %v3427
        %v6410 = vsel %vm6379, %v6345, %v3429
        %v6411 = vsel %vm6379, %v6346, %v3431
        %v6412 = vsel %vm6379, %v6347, %v3433
        %v6413 = vsel %vm6379, %v6348, %v3435
        %v6414 = vsel %vm6379, %v6349, %v3437
        %v6415 = vsel %vm6379, %v6350, %v3439
        %v6416 = vsel %vm6379, %v6351, %v3441
        %v6417 = vsel %vm6379, %v6352, %v3443
        %v6418 = vsel %vm6379, %v6353, %v3445
        %v6419 = vsel %vm6379, %v6354, %v3447
        %v6420 = vsel %vm6379, %v6355, %v3449
        %v6421 = vsel %vm6379, %v6356, %v3451
        %v6422 = vsel %vm6379, %v6357, %v3453
        %v6423 = vsel %vm6379, %v6358, %v3455
        %v6424 = vsel %vm6379, %v6359, %v3457
        %v6425 = vsel %vm6379, %v6360, %v3459
        %v6426 = vsel %vm6379, %v6361, %v3461
        %v6427 = vsel %vm6379, %v6362, %v3463
        %v6428 = vsel %vm6379, %v6363, %v3465
        %v6429 = vsel %vm6379, %v6364, %v3467
        %v6430 = vsel %vm6379, %v6365, %v3469
        %v6431 = vsel %vm6379, %v6366, %v3471
        %v6432 = vsel %vm6379, %v6367, %v3473
        %v6433 = vsel %vm6379, %v6368, %v3475
        %v6434 = vsel %vm6379, %v6369, %v3477
        %v6435 = vsel %vm6379, %v6370, %v3479
        %v6436 = vsel %vm6379, %v6371, %v3481
        %v6437 = vsel %vm6379, %v6372, %v3483
        %v6438 = vsel %vm6379, %v6373, %v3485
        %v6439 = vsel %vm6379, %v6374, %v3487
        %v6440 = vsel %vm6379, %v6375, %v3489
        %v6441 = vsel %vm6379, %v6376, %v3491
        %v6442 = vsel %vm6379, %v6377, %v3493
        %v6443 = vsel %vm6379, %v6378, %v3495
        %vm6444 = vcmask 195584
        %v6445 = vsel %vm6444, %v6380, %v3625
        %v6446 = vsel %vm6444, %v6381, %v3627
        %v6447 = vsel %vm6444, %v6382, %v3629
        %v6448 = vsel %vm6444, %v6383, %v3631
        %v6449 = vsel %vm6444, %v6384, %v3633
        %v6450 = vsel %vm6444, %v6385, %v3635
        %v6451 = vsel %vm6444, %v6386, %v3637
        %v6452 = vsel %vm6444, %v6387, %v3639
        %v6453 = vsel %vm6444, %v6388, %v3641
        %v6454 = vsel %vm6444, %v6389, %v3643
        %v6455 = vsel %vm6444, %v6390, %v3645
        %v6456 = vsel %vm6444, %v6391, %v3647
        %v6457 = vsel %vm6444, %v6392, %v3649
        %v6458 = vsel %vm6444, %v6393, %v3651
        %v6459 = vsel %vm6444, %v6394, %v3653
        %v6460 = vsel %vm6444, %v6395, %v3655
        %v6461 = vsel %vm6444, %v6396, %v3657
        %v6462 = vsel %vm6444, %v6397, %v3659
        %v6463 = vsel %vm6444, %v6398, %v3661
        %v6464 = vsel %vm6444, %v6399, %v3663
        %v6465 = vsel %vm6444, %v6400, %v3665
        %v6466 = vsel %vm6444, %v6401, %v3667
        %v6467 = vsel %vm6444, %v6402, %v3669
        %v6468 = vsel %vm6444, %v6403, %v3671
        %v6469 = vsel %vm6444, %v6404, %v3673
        %v6470 = vsel %vm6444, %v6405, %v3675
        %v6471 = vsel %vm6444, %v6406, %v3677
        %v6472 = vsel %vm6444, %v6407, %v3679
        %v6473 = vsel %vm6444, %v6408, %v3681
        %v6474 = vsel %vm6444, %v6409, %v3683
        %v6475 = vsel %vm6444, %v6410, %v3685
        %v6476 = vsel %vm6444, %v6411, %v3687
        %v6477 = vsel %vm6444, %v6412, %v3689
        %v6478 = vsel %vm6444, %v6413, %v3691
        %v6479 = vsel %vm6444, %v6414, %v3693
        %v6480 = vsel %vm6444, %v6415, %v3695
        %v6481 = vsel %vm6444, %v6416, %v3697
        %v6482 = vsel %vm6444, %v6417, %v3699
        %v6483 = vsel %vm6444, %v6418, %v3701
        %v6484 = vsel %vm6444, %v6419, %v3703
        %v6485 = vsel %vm6444, %v6420, %v3705
        %v6486 = vsel %vm6444, %v6421, %v3707
        %v6487 = vsel %vm6444, %v6422, %v3709
        %v6488 = vsel %vm6444, %v6423, %v3711
        %v6489 = vsel %vm6444, %v6424, %v3713
        %v6490 = vsel %vm6444, %v6425, %v3715
        %v6491 = vsel %vm6444, %v6426, %v3717
        %v6492 = vsel %vm6444, %v6427, %v3719
        %v6493 = vsel %vm6444, %v6428, %v3721
        %v6494 = vsel %vm6444, %v6429, %v3723
        %v6495 = vsel %vm6444, %v6430, %v3725
        %v6496 = vsel %vm6444, %v6431, %v3727
        %v6497 = vsel %vm6444, %v6432, %v3729
        %v6498 = vsel %vm6444, %v6433, %v3731
        %v6499 = vsel %vm6444, %v6434, %v3733
        %v6500 = vsel %vm6444, %v6435, %v3735
        %v6501 = vsel %vm6444, %v6436, %v3737
        %v6502 = vsel %vm6444, %v6437, %v3739
        %v6503 = vsel %vm6444, %v6438, %v3741
        %v6504 = vsel %vm6444, %v6439, %v3743
        %v6505 = vsel %vm6444, %v6440, %v3745
        %v6506 = vsel %vm6444, %v6441, %v3747
        %v6507 = vsel %vm6444, %v6442, %v3749
        %v6508 = vsel %vm6444, %v6443, %v3751
        %vm6509 = vcmask 228352
        %v6510 = vsel %vm6509, %v6445, %v3881
        %v6511 = vsel %vm6509, %v6446, %v3883
        %v6512 = vsel %vm6509, %v6447, %v3885
        %v6513 = vsel %vm6509, %v6448, %v3887
        %v6514 = vsel %vm6509, %v6449, %v3889
        %v6515 = vsel %vm6509, %v6450, %v3891
        %v6516 = vsel %vm6509, %v6451, %v3893
        %v6517 = vsel %vm6509, %v6452, %v3895
        %v6518 = vsel %vm6509, %v6453, %v3897
        %v6519 = vsel %vm6509, %v6454, %v3899
        %v6520 = vsel %vm6509, %v6455, %v3901
        %v6521 = vsel %vm6509, %v6456, %v3903
        %v6522 = vsel %vm6509, %v6457, %v3905
        %v6523 = vsel %vm6509, %v6458, %v3907
        %v6524 = vsel %vm6509, %v6459, %v3909
        %v6525 = vsel %vm6509, %v6460, %v3911
        %v6526 = vsel %vm6509, %v6461, %v3913
        %v6527 = vsel %vm6509, %v6462, %v3915
        %v6528 = vsel %vm6509, %v6463, %v3917
        %v6529 = vsel %vm6509, %v6464, %v3919
        %v6530 = vsel %vm6509, %v6465, %v3921
        %v6531 = vsel %vm6509, %v6466, %v3923
        %v6532 = vsel %vm6509, %v6467, %v3925
        %v6533 = vsel %vm6509, %v6468, %v3927
        %v6534 = vsel %vm6509, %v6469, %v3929
        %v6535 = vsel %vm6509, %v6470, %v3931
        %v6536 = vsel %vm6509, %v6471, %v3933
        %v6537 = vsel %vm6509, %v6472, %v3935
        %v6538 = vsel %vm6509, %v6473, %v3937
        %v6539 = vsel %vm6509, %v6474, %v3939
        %v6540 = vsel %vm6509, %v6475, %v3941
        %v6541 = vsel %vm6509, %v6476, %v3943
        %v6542 = vsel %vm6509, %v6477, %v3945
        %v6543 = vsel %vm6509, %v6478, %v3947
        %v6544 = vsel %vm6509, %v6479, %v3949
        %v6545 = vsel %vm6509, %v6480, %v3951
        %v6546 = vsel %vm6509, %v6481, %v3953
        %v6547 = vsel %vm6509, %v6482, %v3955
        %v6548 = vsel %vm6509, %v6483, %v3957
        %v6549 = vsel %vm6509, %v6484, %v3959
        %v6550 = vsel %vm6509, %v6485, %v3961
        %v6551 = vsel %vm6509, %v6486, %v3963
        %v6552 = vsel %vm6509, %v6487, %v3965
        %v6553 = vsel %vm6509, %v6488, %v3967
        %v6554 = vsel %vm6509, %v6489, %v3969
        %v6555 = vsel %vm6509, %v6490, %v3971
        %v6556 = vsel %vm6509, %v6491, %v3973
        %v6557 = vsel %vm6509, %v6492, %v3975
        %v6558 = vsel %vm6509, %v6493, %v3977
        %v6559 = vsel %vm6509, %v6494, %v3979
        %v6560 = vsel %vm6509, %v6495, %v3981
        %v6561 = vsel %vm6509, %v6496, %v3983
        %v6562 = vsel %vm6509, %v6497, %v3985
        %v6563 = vsel %vm6509, %v6498, %v3987
        %v6564 = vsel %vm6509, %v6499, %v3989
        %v6565 = vsel %vm6509, %v6500, %v3991
        %v6566 = vsel %vm6509, %v6501, %v3993
        %v6567 = vsel %vm6509, %v6502, %v3995
        %v6568 = vsel %vm6509, %v6503, %v3997
        %v6569 = vsel %vm6509, %v6504, %v3999
        %v6570 = vsel %vm6509, %v6505, %v4001
        %v6571 = vsel %vm6509, %v6506, %v4003
        %v6572 = vsel %vm6509, %v6507, %v4005
        %v6573 = vsel %vm6509, %v6508, %v4007
        %vm6574 = vcmask 261120
        %v6575 = vsel %vm6574, %v6510, %v4137
        %v6576 = vsel %vm6574, %v6511, %v4139
        %v6577 = vsel %vm6574, %v6512, %v4141
        %v6578 = vsel %vm6574, %v6513, %v4143
        %v6579 = vsel %vm6574, %v6514, %v4145
        %v6580 = vsel %vm6574, %v6515, %v4147
        %v6581 = vsel %vm6574, %v6516, %v4149
        %v6582 = vsel %vm6574, %v6517, %v4151
        %v6583 = vsel %vm6574, %v6518, %v4153
        %v6584 = vsel %vm6574, %v6519, %v4155
        %v6585 = vsel %vm6574, %v6520, %v4157
        %v6586 = vsel %vm6574, %v6521, %v4159
        %v6587 = vsel %vm6574, %v6522, %v4161
        %v6588 = vsel %vm6574, %v6523, %v4163
        %v6589 = vsel %vm6574, %v6524, %v4165
        %v6590 = vsel %vm6574, %v6525, %v4167
        %v6591 = vsel %vm6574, %v6526, %v4169
        %v6592 = vsel %vm6574, %v6527, %v4171
        %v6593 = vsel %vm6574, %v6528, %v4173
        %v6594 = vsel %vm6574, %v6529, %v4175
        %v6595 = vsel %vm6574, %v6530, %v4177
        %v6596 = vsel %vm6574, %v6531, %v4179
        %v6597 = vsel %vm6574, %v6532, %v4181
        %v6598 = vsel %vm6574, %v6533, %v4183
        %v6599 = vsel %vm6574, %v6534, %v4185
        %v6600 = vsel %vm6574, %v6535, %v4187
        %v6601 = vsel %vm6574, %v6536, %v4189
        %v6602 = vsel %vm6574, %v6537, %v4191
        %v6603 = vsel %vm6574, %v6538, %v4193
        %v6604 = vsel %vm6574, %v6539, %v4195
        %v6605 = vsel %vm6574, %v6540, %v4197
        %v6606 = vsel %vm6574, %v6541, %v4199
        %v6607 = vsel %vm6574, %v6542, %v4201
        %v6608 = vsel %vm6574, %v6543, %v4203
        %v6609 = vsel %vm6574, %v6544, %v4205
        %v6610 = vsel %vm6574, %v6545, %v4207
        %v6611 = vsel %vm6574, %v6546, %v4209
        %v6612 = vsel %vm6574, %v6547, %v4211
        %v6613 = vsel %vm6574, %v6548, %v4213
        %v6614 = vsel %vm6574, %v6549, %v4215
        %v6615 = vsel %vm6574, %v6550, %v4217
        %v6616 = vsel %vm6574, %v6551, %v4219
        %v6617 = vsel %vm6574, %v6552, %v4221
        %v6618 = vsel %vm6574, %v6553, %v4223
        %v6619 = vsel %vm6574, %v6554, %v4225
        %v6620 = vsel %vm6574, %v6555, %v4227
        %v6621 = vsel %vm6574, %v6556, %v4229
        %v6622 = vsel %vm6574, %v6557, %v4231
        %v6623 = vsel %vm6574, %v6558, %v4233
        %v6624 = vsel %vm6574, %v6559, %v4235
        %v6625 = vsel %vm6574, %v6560, %v4237
        %v6626 = vsel %vm6574, %v6561, %v4239
        %v6627 = vsel %vm6574, %v6562, %v4241
        %v6628 = vsel %vm6574, %v6563, %v4243
        %v6629 = vsel %vm6574, %v6564, %v4245
        %v6630 = vsel %vm6574, %v6565, %v4247
        %v6631 = vsel %vm6574, %v6566, %v4249
        %v6632 = vsel %vm6574, %v6567, %v4251
        %v6633 = vsel %vm6574, %v6568, %v4253
        %v6634 = vsel %vm6574, %v6569, %v4255
        %v6635 = vsel %vm6574, %v6570, %v4257
        %v6636 = vsel %vm6574, %v6571, %v4259
        %v6637 = vsel %vm6574, %v6572, %v4261
        %v6638 = vsel %vm6574, %v6573, %v4263
        %vm6639 = vcmask 293888
        %v6640 = vsel %vm6639, %v6575, %v4393
        %v6641 = vsel %vm6639, %v6576, %v4395
        %v6642 = vsel %vm6639, %v6577, %v4397
        %v6643 = vsel %vm6639, %v6578, %v4399
        %v6644 = vsel %vm6639, %v6579, %v4401
        %v6645 = vsel %vm6639, %v6580, %v4403
        %v6646 = vsel %vm6639, %v6581, %v4405
        %v6647 = vsel %vm6639, %v6582, %v4407
        %v6648 = vsel %vm6639, %v6583, %v4409
        %v6649 = vsel %vm6639, %v6584, %v4411
        %v6650 = vsel %vm6639, %v6585, %v4413
        %v6651 = vsel %vm6639, %v6586, %v4415
        %v6652 = vsel %vm6639, %v6587, %v4417
        %v6653 = vsel %vm6639, %v6588, %v4419
        %v6654 = vsel %vm6639, %v6589, %v4421
        %v6655 = vsel %vm6639, %v6590, %v4423
        %v6656 = vsel %vm6639, %v6591, %v4425
        %v6657 = vsel %vm6639, %v6592, %v4427
        %v6658 = vsel %vm6639, %v6593, %v4429
        %v6659 = vsel %vm6639, %v6594, %v4431
        %v6660 = vsel %vm6639, %v6595, %v4433
        %v6661 = vsel %vm6639, %v6596, %v4435
        %v6662 = vsel %vm6639, %v6597, %v4437
        %v6663 = vsel %vm6639, %v6598, %v4439
        %v6664 = vsel %vm6639, %v6599, %v4441
        %v6665 = vsel %vm6639, %v6600, %v4443
        %v6666 = vsel %vm6639, %v6601, %v4445
        %v6667 = vsel %vm6639, %v6602, %v4447
        %v6668 = vsel %vm6639, %v6603, %v4449
        %v6669 = vsel %vm6639, %v6604, %v4451
        %v6670 = vsel %vm6639, %v6605, %v4453
        %v6671 = vsel %vm6639, %v6606, %v4455
        %v6672 = vsel %vm6639, %v6607, %v4457
        %v6673 = vsel %vm6639, %v6608, %v4459
        %v6674 = vsel %vm6639, %v6609, %v4461
        %v6675 = vsel %vm6639, %v6610, %v4463
        %v6676 = vsel %vm6639, %v6611, %v4465
        %v6677 = vsel %vm6639, %v6612, %v4467
        %v6678 = vsel %vm6639, %v6613, %v4469
        %v6679 = vsel %vm6639, %v6614, %v4471
        %v6680 = vsel %vm6639, %v6615, %v4473
        %v6681 = vsel %vm6639, %v6616, %v4475
        %v6682 = vsel %vm6639, %v6617, %v4477
        %v6683 = vsel %vm6639, %v6618, %v4479
        %v6684 = vsel %vm6639, %v6619, %v4481
        %v6685 = vsel %vm6639, %v6620, %v4483
        %v6686 = vsel %vm6639, %v6621, %v4485
        %v6687 = vsel %vm6639, %v6622, %v4487
        %v6688 = vsel %vm6639, %v6623, %v4489
        %v6689 = vsel %vm6639, %v6624, %v4491
        %v6690 = vsel %vm6639, %v6625, %v4493
        %v6691 = vsel %vm6639, %v6626, %v4495
        %v6692 = vsel %vm6639, %v6627, %v4497
        %v6693 = vsel %vm6639, %v6628, %v4499
        %v6694 = vsel %vm6639, %v6629, %v4501
        %v6695 = vsel %vm6639, %v6630, %v4503
        %v6696 = vsel %vm6639, %v6631, %v4505
        %v6697 = vsel %vm6639, %v6632, %v4507
        %v6698 = vsel %vm6639, %v6633, %v4509
        %v6699 = vsel %vm6639, %v6634, %v4511
        %v6700 = vsel %vm6639, %v6635, %v4513
        %v6701 = vsel %vm6639, %v6636, %v4515
        %v6702 = vsel %vm6639, %v6637, %v4517
        %v6703 = vsel %vm6639, %v6638, %v4519
        %vm6704 = vcmask 326656
        %v6705 = vsel %vm6704, %v6640, %v4649
        %v6706 = vsel %vm6704, %v6641, %v4651
        %v6707 = vsel %vm6704, %v6642, %v4653
        %v6708 = vsel %vm6704, %v6643, %v4655
        %v6709 = vsel %vm6704, %v6644, %v4657
        %v6710 = vsel %vm6704, %v6645, %v4659
        %v6711 = vsel %vm6704, %v6646, %v4661
        %v6712 = vsel %vm6704, %v6647, %v4663
        %v6713 = vsel %vm6704, %v6648, %v4665
        %v6714 = vsel %vm6704, %v6649, %v4667
        %v6715 = vsel %vm6704, %v6650, %v4669
        %v6716 = vsel %vm6704, %v6651, %v4671
        %v6717 = vsel %vm6704, %v6652, %v4673
        %v6718 = vsel %vm6704, %v6653, %v4675
        %v6719 = vsel %vm6704, %v6654, %v4677
        %v6720 = vsel %vm6704, %v6655, %v4679
        %v6721 = vsel %vm6704, %v6656, %v4681
        %v6722 = vsel %vm6704, %v6657, %v4683
        %v6723 = vsel %vm6704, %v6658, %v4685
        %v6724 = vsel %vm6704, %v6659, %v4687
        %v6725 = vsel %vm6704, %v6660, %v4689
        %v6726 = vsel %vm6704, %v6661, %v4691
        %v6727 = vsel %vm6704, %v6662, %v4693
        %v6728 = vsel %vm6704, %v6663, %v4695
        %v6729 = vsel %vm6704, %v6664, %v4697
        %v6730 = vsel %vm6704, %v6665, %v4699
        %v6731 = vsel %vm6704, %v6666, %v4701
        %v6732 = vsel %vm6704, %v6667, %v4703
        %v6733 = vsel %vm6704, %v6668, %v4705
        %v6734 = vsel %vm6704, %v6669, %v4707
        %v6735 = vsel %vm6704, %v6670, %v4709
        %v6736 = vsel %vm6704, %v6671, %v4711
        %v6737 = vsel %vm6704, %v6672, %v4713
        %v6738 = vsel %vm6704, %v6673, %v4715
        %v6739 = vsel %vm6704, %v6674, %v4717
        %v6740 = vsel %vm6704, %v6675, %v4719
        %v6741 = vsel %vm6704, %v6676, %v4721
        %v6742 = vsel %vm6704, %v6677, %v4723
        %v6743 = vsel %vm6704, %v6678, %v4725
        %v6744 = vsel %vm6704, %v6679, %v4727
        %v6745 = vsel %vm6704, %v6680, %v4729
        %v6746 = vsel %vm6704, %v6681, %v4731
        %v6747 = vsel %vm6704, %v6682, %v4733
        %v6748 = vsel %vm6704, %v6683, %v4735
        %v6749 = vsel %vm6704, %v6684, %v4737
        %v6750 = vsel %vm6704, %v6685, %v4739
        %v6751 = vsel %vm6704, %v6686, %v4741
        %v6752 = vsel %vm6704, %v6687, %v4743
        %v6753 = vsel %vm6704, %v6688, %v4745
        %v6754 = vsel %vm6704, %v6689, %v4747
        %v6755 = vsel %vm6704, %v6690, %v4749
        %v6756 = vsel %vm6704, %v6691, %v4751
        %v6757 = vsel %vm6704, %v6692, %v4753
        %v6758 = vsel %vm6704, %v6693, %v4755
        %v6759 = vsel %vm6704, %v6694, %v4757
        %v6760 = vsel %vm6704, %v6695, %v4759
        %v6761 = vsel %vm6704, %v6696, %v4761
        %v6762 = vsel %vm6704, %v6697, %v4763
        %v6763 = vsel %vm6704, %v6698, %v4765
        %v6764 = vsel %vm6704, %v6699, %v4767
        %v6765 = vsel %vm6704, %v6700, %v4769
        %v6766 = vsel %vm6704, %v6701, %v4771
        %v6767 = vsel %vm6704, %v6702, %v4773
        %v6768 = vsel %vm6704, %v6703, %v4775
        %vm6769 = vcmask 359424
        %v6770 = vsel %vm6769, %v6705, %v4905
        %v6771 = vsel %vm6769, %v6706, %v4907
        %v6772 = vsel %vm6769, %v6707, %v4909
        %v6773 = vsel %vm6769, %v6708, %v4911
        %v6774 = vsel %vm6769, %v6709, %v4913
        %v6775 = vsel %vm6769, %v6710, %v4915
        %v6776 = vsel %vm6769, %v6711, %v4917
        %v6777 = vsel %vm6769, %v6712, %v4919
        %v6778 = vsel %vm6769, %v6713, %v4921
        %v6779 = vsel %vm6769, %v6714, %v4923
        %v6780 = vsel %vm6769, %v6715, %v4925
        %v6781 = vsel %vm6769, %v6716, %v4927
        %v6782 = vsel %vm6769, %v6717, %v4929
        %v6783 = vsel %vm6769, %v6718, %v4931
        %v6784 = vsel %vm6769, %v6719, %v4933
        %v6785 = vsel %vm6769, %v6720, %v4935
        %v6786 = vsel %vm6769, %v6721, %v4937
        %v6787 = vsel %vm6769, %v6722, %v4939
        %v6788 = vsel %vm6769, %v6723, %v4941
        %v6789 = vsel %vm6769, %v6724, %v4943
        %v6790 = vsel %vm6769, %v6725, %v4945
        %v6791 = vsel %vm6769, %v6726, %v4947
        %v6792 = vsel %vm6769, %v6727, %v4949
        %v6793 = vsel %vm6769, %v6728, %v4951
        %v6794 = vsel %vm6769, %v6729, %v4953
        %v6795 = vsel %vm6769, %v6730, %v4955
        %v6796 = vsel %vm6769, %v6731, %v4957
        %v6797 = vsel %vm6769, %v6732, %v4959
        %v6798 = vsel %vm6769, %v6733, %v4961
        %v6799 = vsel %vm6769, %v6734, %v4963
        %v6800 = vsel %vm6769, %v6735, %v4965
        %v6801 = vsel %vm6769, %v6736, %v4967
        %v6802 = vsel %vm6769, %v6737, %v4969
        %v6803 = vsel %vm6769, %v6738, %v4971
        %v6804 = vsel %vm6769, %v6739, %v4973
        %v6805 = vsel %vm6769, %v6740, %v4975
        %v6806 = vsel %vm6769, %v6741, %v4977
        %v6807 = vsel %vm6769, %v6742, %v4979
        %v6808 = vsel %vm6769, %v6743, %v4981
        %v6809 = vsel %vm6769, %v6744, %v4983
        %v6810 = vsel %vm6769, %v6745, %v4985
        %v6811 = vsel %vm6769, %v6746, %v4987
        %v6812 = vsel %vm6769, %v6747, %v4989
        %v6813 = vsel %vm6769, %v6748, %v4991
        %v6814 = vsel %vm6769, %v6749, %v4993
        %v6815 = vsel %vm6769, %v6750, %v4995
        %v6816 = vsel %vm6769, %v6751, %v4997
        %v6817 = vsel %vm6769, %v6752, %v4999
        %v6818 = vsel %vm6769, %v6753, %v5001
        %v6819 = vsel %vm6769, %v6754, %v5003
        %v6820 = vsel %vm6769, %v6755, %v5005
        %v6821 = vsel %vm6769, %v6756, %v5007
        %v6822 = vsel %vm6769, %v6757, %v5009
        %v6823 = vsel %vm6769, %v6758, %v5011
        %v6824 = vsel %vm6769, %v6759, %v5013
        %v6825 = vsel %vm6769, %v6760, %v5015
        %v6826 = vsel %vm6769, %v6761, %v5017
        %v6827 = vsel %vm6769, %v6762, %v5019
        %v6828 = vsel %vm6769, %v6763, %v5021
        %v6829 = vsel %vm6769, %v6764, %v5023
        %v6830 = vsel %vm6769, %v6765, %v5025
        %v6831 = vsel %vm6769, %v6766, %v5027
        %v6832 = vsel %vm6769, %v6767, %v5029
        %v6833 = vsel %vm6769, %v6768, %v5031
        %vm6834 = vcmask 392192
        %v6835 = vsel %vm6834, %v6770, %v5161
        %v6836 = vsel %vm6834, %v6771, %v5163
        %v6837 = vsel %vm6834, %v6772, %v5165
        %v6838 = vsel %vm6834, %v6773, %v5167
        %v6839 = vsel %vm6834, %v6774, %v5169
        %v6840 = vsel %vm6834, %v6775, %v5171
        %v6841 = vsel %vm6834, %v6776, %v5173
        %v6842 = vsel %vm6834, %v6777, %v5175
        %v6843 = vsel %vm6834, %v6778, %v5177
        %v6844 = vsel %vm6834, %v6779, %v5179
        %v6845 = vsel %vm6834, %v6780, %v5181
        %v6846 = vsel %vm6834, %v6781, %v5183
        %v6847 = vsel %vm6834, %v6782, %v5185
        %v6848 = vsel %vm6834, %v6783, %v5187
        %v6849 = vsel %vm6834, %v6784, %v5189
        %v6850 = vsel %vm6834, %v6785, %v5191
        %v6851 = vsel %vm6834, %v6786, %v5193
        %v6852 = vsel %vm6834, %v6787, %v5195
        %v6853 = vsel %vm6834, %v6788, %v5197
        %v6854 = vsel %vm6834, %v6789, %v5199
        %v6855 = vsel %vm6834, %v6790, %v5201
        %v6856 = vsel %vm6834, %v6791, %v5203
        %v6857 = vsel %vm6834, %v6792, %v5205
        %v6858 = vsel %vm6834, %v6793, %v5207
        %v6859 = vsel %vm6834, %v6794, %v5209
        %v6860 = vsel %vm6834, %v6795, %v5211
        %v6861 = vsel %vm6834, %v6796, %v5213
        %v6862 = vsel %vm6834, %v6797, %v5215
        %v6863 = vsel %vm6834, %v6798, %v5217
        %v6864 = vsel %vm6834, %v6799, %v5219
        %v6865 = vsel %vm6834, %v6800, %v5221
        %v6866 = vsel %vm6834, %v6801, %v5223
        %v6867 = vsel %vm6834, %v6802, %v5225
        %v6868 = vsel %vm6834, %v6803, %v5227
        %v6869 = vsel %vm6834, %v6804, %v5229
        %v6870 = vsel %vm6834, %v6805, %v5231
        %v6871 = vsel %vm6834, %v6806, %v5233
        %v6872 = vsel %vm6834, %v6807, %v5235
        %v6873 = vsel %vm6834, %v6808, %v5237
        %v6874 = vsel %vm6834, %v6809, %v5239
        %v6875 = vsel %vm6834, %v6810, %v5241
        %v6876 = vsel %vm6834, %v6811, %v5243
        %v6877 = vsel %vm6834, %v6812, %v5245
        %v6878 = vsel %vm6834, %v6813, %v5247
        %v6879 = vsel %vm6834, %v6814, %v5249
        %v6880 = vsel %vm6834, %v6815, %v5251
        %v6881 = vsel %vm6834, %v6816, %v5253
        %v6882 = vsel %vm6834, %v6817, %v5255
        %v6883 = vsel %vm6834, %v6818, %v5257
        %v6884 = vsel %vm6834, %v6819, %v5259
        %v6885 = vsel %vm6834, %v6820, %v5261
        %v6886 = vsel %vm6834, %v6821, %v5263
        %v6887 = vsel %vm6834, %v6822, %v5265
        %v6888 = vsel %vm6834, %v6823, %v5267
        %v6889 = vsel %vm6834, %v6824, %v5269
        %v6890 = vsel %vm6834, %v6825, %v5271
        %v6891 = vsel %vm6834, %v6826, %v5273
        %v6892 = vsel %vm6834, %v6827, %v5275
        %v6893 = vsel %vm6834, %v6828, %v5277
        %v6894 = vsel %vm6834, %v6829, %v5279
        %v6895 = vsel %vm6834, %v6830, %v5281
        %v6896 = vsel %vm6834, %v6831, %v5283
        %v6897 = vsel %vm6834, %v6832, %v5285
        %v6898 = vsel %vm6834, %v6833, %v5287
        %vm6899 = vcmask 424960
        %v6900 = vsel %vm6899, %v6835, %v5417
        %v6901 = vsel %vm6899, %v6836, %v5419
        %v6902 = vsel %vm6899, %v6837, %v5421
        %v6903 = vsel %vm6899, %v6838, %v5423
        %v6904 = vsel %vm6899, %v6839, %v5425
        %v6905 = vsel %vm6899, %v6840, %v5427
        %v6906 = vsel %vm6899, %v6841, %v5429
        %v6907 = vsel %vm6899, %v6842, %v5431
        %v6908 = vsel %vm6899, %v6843, %v5433
        %v6909 = vsel %vm6899, %v6844, %v5435
        %v6910 = vsel %vm6899, %v6845, %v5437
        %v6911 = vsel %vm6899, %v6846, %v5439
        %v6912 = vsel %vm6899, %v6847, %v5441
        %v6913 = vsel %vm6899, %v6848, %v5443
        %v6914 = vsel %vm6899, %v6849, %v5445
        %v6915 = vsel %vm6899, %v6850, %v5447
        %v6916 = vsel %vm6899, %v6851, %v5449
        %v6917 = vsel %vm6899, %v6852, %v5451
        %v6918 = vsel %vm6899, %v6853, %v5453
        %v6919 = vsel %vm6899, %v6854, %v5455
        %v6920 = vsel %vm6899, %v6855, %v5457
        %v6921 = vsel %vm6899, %v6856, %v5459
        %v6922 = vsel %vm6899, %v6857, %v5461
        %v6923 = vsel %vm6899, %v6858, %v5463
        %v6924 = vsel %vm6899, %v6859, %v5465
        %v6925 = vsel %vm6899, %v6860, %v5467
        %v6926 = vsel %vm6899, %v6861, %v5469
        %v6927 = vsel %vm6899, %v6862, %v5471
        %v6928 = vsel %vm6899, %v6863, %v5473
        %v6929 = vsel %vm6899, %v6864, %v5475
        %v6930 = vsel %vm6899, %v6865, %v5477
        %v6931 = vsel %vm6899, %v6866, %v5479
        %v6932 = vsel %vm6899, %v6867, %v5481
        %v6933 = vsel %vm6899, %v6868, %v5483
        %v6934 = vsel %vm6899, %v6869, %v5485
        %v6935 = vsel %vm6899, %v6870, %v5487
        %v6936 = vsel %vm6899, %v6871, %v5489
        %v6937 = vsel %vm6899, %v6872, %v5491
        %v6938 = vsel %vm6899, %v6873, %v5493
        %v6939 = vsel %vm6899, %v6874, %v5495
        %v6940 = vsel %vm6899, %v6875, %v5497
        %v6941 = vsel %vm6899, %v6876, %v5499
        %v6942 = vsel %vm6899, %v6877, %v5501
        %v6943 = vsel %vm6899, %v6878, %v5503
        %v6944 = vsel %vm6899, %v6879, %v5505
        %v6945 = vsel %vm6899, %v6880, %v5507
        %v6946 = vsel %vm6899, %v6881, %v5509
        %v6947 = vsel %vm6899, %v6882, %v5511
        %v6948 = vsel %vm6899, %v6883, %v5513
        %v6949 = vsel %vm6899, %v6884, %v5515
        %v6950 = vsel %vm6899, %v6885, %v5517
        %v6951 = vsel %vm6899, %v6886, %v5519
        %v6952 = vsel %vm6899, %v6887, %v5521
        %v6953 = vsel %vm6899, %v6888, %v5523
        %v6954 = vsel %vm6899, %v6889, %v5525
        %v6955 = vsel %vm6899, %v6890, %v5527
        %v6956 = vsel %vm6899, %v6891, %v5529
        %v6957 = vsel %vm6899, %v6892, %v5531
        %v6958 = vsel %vm6899, %v6893, %v5533
        %v6959 = vsel %vm6899, %v6894, %v5535
        %v6960 = vsel %vm6899, %v6895, %v5537
        %v6961 = vsel %vm6899, %v6896, %v5539
        %v6962 = vsel %vm6899, %v6897, %v5541
        %v6963 = vsel %vm6899, %v6898, %v5543
        %vm6964 = vcmask 457728
        %v6965 = vsel %vm6964, %v6900, %v5673
        %v6966 = vsel %vm6964, %v6901, %v5675
        %v6967 = vsel %vm6964, %v6902, %v5677
        %v6968 = vsel %vm6964, %v6903, %v5679
        %v6969 = vsel %vm6964, %v6904, %v5681
        %v6970 = vsel %vm6964, %v6905, %v5683
        %v6971 = vsel %vm6964, %v6906, %v5685
        %v6972 = vsel %vm6964, %v6907, %v5687
        %v6973 = vsel %vm6964, %v6908, %v5689
        %v6974 = vsel %vm6964, %v6909, %v5691
        %v6975 = vsel %vm6964, %v6910, %v5693
        %v6976 = vsel %vm6964, %v6911, %v5695
        %v6977 = vsel %vm6964, %v6912, %v5697
        %v6978 = vsel %vm6964, %v6913, %v5699
        %v6979 = vsel %vm6964, %v6914, %v5701
        %v6980 = vsel %vm6964, %v6915, %v5703
        %v6981 = vsel %vm6964, %v6916, %v5705
        %v6982 = vsel %vm6964, %v6917, %v5707
        %v6983 = vsel %vm6964, %v6918, %v5709
        %v6984 = vsel %vm6964, %v6919, %v5711
        %v6985 = vsel %vm6964, %v6920, %v5713
        %v6986 = vsel %vm6964, %v6921, %v5715
        %v6987 = vsel %vm6964, %v6922, %v5717
        %v6988 = vsel %vm6964, %v6923, %v5719
        %v6989 = vsel %vm6964, %v6924, %v5721
        %v6990 = vsel %vm6964, %v6925, %v5723
        %v6991 = vsel %vm6964, %v6926, %v5725
        %v6992 = vsel %vm6964, %v6927, %v5727
        %v6993 = vsel %vm6964, %v6928, %v5729
        %v6994 = vsel %vm6964, %v6929, %v5731
        %v6995 = vsel %vm6964, %v6930, %v5733
        %v6996 = vsel %vm6964, %v6931, %v5735
        %v6997 = vsel %vm6964, %v6932, %v5737
        %v6998 = vsel %vm6964, %v6933, %v5739
        %v6999 = vsel %vm6964, %v6934, %v5741
        %v7000 = vsel %vm6964, %v6935, %v5743
        %v7001 = vsel %vm6964, %v6936, %v5745
        %v7002 = vsel %vm6964, %v6937, %v5747
        %v7003 = vsel %vm6964, %v6938, %v5749
        %v7004 = vsel %vm6964, %v6939, %v5751
        %v7005 = vsel %vm6964, %v6940, %v5753
        %v7006 = vsel %vm6964, %v6941, %v5755
        %v7007 = vsel %vm6964, %v6942, %v5757
        %v7008 = vsel %vm6964, %v6943, %v5759
        %v7009 = vsel %vm6964, %v6944, %v5761
        %v7010 = vsel %vm6964, %v6945, %v5763
        %v7011 = vsel %vm6964, %v6946, %v5765
        %v7012 = vsel %vm6964, %v6947, %v5767
        %v7013 = vsel %vm6964, %v6948, %v5769
        %v7014 = vsel %vm6964, %v6949, %v5771
        %v7015 = vsel %vm6964, %v6950, %v5773
        %v7016 = vsel %vm6964, %v6951, %v5775
        %v7017 = vsel %vm6964, %v6952, %v5777
        %v7018 = vsel %vm6964, %v6953, %v5779
        %v7019 = vsel %vm6964, %v6954, %v5781
        %v7020 = vsel %vm6964, %v6955, %v5783
        %v7021 = vsel %vm6964, %v6956, %v5785
        %v7022 = vsel %vm6964, %v6957, %v5787
        %v7023 = vsel %vm6964, %v6958, %v5789
        %v7024 = vsel %vm6964, %v6959, %v5791
        %v7025 = vsel %vm6964, %v6960, %v5793
        %v7026 = vsel %vm6964, %v6961, %v5795
        %v7027 = vsel %vm6964, %v6962, %v5797
        %v7028 = vsel %vm6964, %v6963, %v5799
        %vm7029 = vcmask 490496
        %v7030 = vsel %vm7029, %v6965, %v5929
        %v7031 = vsel %vm7029, %v6966, %v5931
        %v7032 = vsel %vm7029, %v6967, %v5933
        %v7033 = vsel %vm7029, %v6968, %v5935
        %v7034 = vsel %vm7029, %v6969, %v5937
        %v7035 = vsel %vm7029, %v6970, %v5939
        %v7036 = vsel %vm7029, %v6971, %v5941
        %v7037 = vsel %vm7029, %v6972, %v5943
        %v7038 = vsel %vm7029, %v6973, %v5945
        %v7039 = vsel %vm7029, %v6974, %v5947
        %v7040 = vsel %vm7029, %v6975, %v5949
        %v7041 = vsel %vm7029, %v6976, %v5951
        %v7042 = vsel %vm7029, %v6977, %v5953
        %v7043 = vsel %vm7029, %v6978, %v5955
        %v7044 = vsel %vm7029, %v6979, %v5957
        %v7045 = vsel %vm7029, %v6980, %v5959
        %v7046 = vsel %vm7029, %v6981, %v5961
        %v7047 = vsel %vm7029, %v6982, %v5963
        %v7048 = vsel %vm7029, %v6983, %v5965
        %v7049 = vsel %vm7029, %v6984, %v5967
        %v7050 = vsel %vm7029, %v6985, %v5969
        %v7051 = vsel %vm7029, %v6986, %v5971
        %v7052 = vsel %vm7029, %v6987, %v5973
        %v7053 = vsel %vm7029, %v6988, %v5975
        %v7054 = vsel %vm7029, %v6989, %v5977
        %v7055 = vsel %vm7029, %v6990, %v5979
        %v7056 = vsel %vm7029, %v6991, %v5981
        %v7057 = vsel %vm7029, %v6992, %v5983
        %v7058 = vsel %vm7029, %v6993, %v5985
        %v7059 = vsel %vm7029, %v6994, %v5987
        %v7060 = vsel %vm7029, %v6995, %v5989
        %v7061 = vsel %vm7029, %v6996, %v5991
        %v7062 = vsel %vm7029, %v6997, %v5993
        %v7063 = vsel %vm7029, %v6998, %v5995
        %v7064 = vsel %vm7029, %v6999, %v5997
        %v7065 = vsel %vm7029, %v7000, %v5999
        %v7066 = vsel %vm7029, %v7001, %v6001
        %v7067 = vsel %vm7029, %v7002, %v6003
        %v7068 = vsel %vm7029, %v7003, %v6005
        %v7069 = vsel %vm7029, %v7004, %v6007
        %v7070 = vsel %vm7029, %v7005, %v6009
        %v7071 = vsel %vm7029, %v7006, %v6011
        %v7072 = vsel %vm7029, %v7007, %v6013
        %v7073 = vsel %vm7029, %v7008, %v6015
        %v7074 = vsel %vm7029, %v7009, %v6017
        %v7075 = vsel %vm7029, %v7010, %v6019
        %v7076 = vsel %vm7029, %v7011, %v6021
        %v7077 = vsel %vm7029, %v7012, %v6023
        %v7078 = vsel %vm7029, %v7013, %v6025
        %v7079 = vsel %vm7029, %v7014, %v6027
        %v7080 = vsel %vm7029, %v7015, %v6029
        %v7081 = vsel %vm7029, %v7016, %v6031
        %v7082 = vsel %vm7029, %v7017, %v6033
        %v7083 = vsel %vm7029, %v7018, %v6035
        %v7084 = vsel %vm7029, %v7019, %v6037
        %v7085 = vsel %vm7029, %v7020, %v6039
        %v7086 = vsel %vm7029, %v7021, %v6041
        %v7087 = vsel %vm7029, %v7022, %v6043
        %v7088 = vsel %vm7029, %v7023, %v6045
        %v7089 = vsel %vm7029, %v7024, %v6047
        %v7090 = vsel %vm7029, %v7025, %v6049
        %v7091 = vsel %vm7029, %v7026, %v6051
        %v7092 = vsel %vm7029, %v7027, %v6053
        %v7093 = vsel %vm7029, %v7028, %v6055
        %7158 = vrot.lane.b32.xlu0 %v1637, 4
        %v7159 = vpop.permute.xlu0 %7158
        %7160 = vrot.lane.b32.xlu0 %v1638, 4
        %v7161 = vpop.permute.xlu0 %7160
        %7162 = vrot.lane.b32.xlu0 %v1639, 4
        %v7163 = vpop.permute.xlu0 %7162
        %7164 = vrot.lane.b32.xlu0 %v1640, 4
        %v7165 = vpop.permute.xlu0 %7164
        %7166 = vrot.lane.b32.xlu0 %v1641, 4
        %v7167 = vpop.permute.xlu0 %7166
        %7168 = vrot.lane.b32.xlu0 %v1642, 4
        %v7169 = vpop.permute.xlu0 %7168
        %7170 = vrot.lane.b32.xlu0 %v1643, 4
        %v7171 = vpop.permute.xlu0 %7170
        %7172 = vrot.lane.b32.xlu0 %v1644, 4
        %v7173 = vpop.permute.xlu0 %7172
        %7174 = vrot.lane.b32.xlu0 %v1645, 4
        %v7175 = vpop.permute.xlu0 %7174
        %7176 = vrot.lane.b32.xlu0 %v1646, 4
        %v7177 = vpop.permute.xlu0 %7176
        %7178 = vrot.lane.b32.xlu0 %v1647, 4
        %v7179 = vpop.permute.xlu0 %7178
        %7180 = vrot.lane.b32.xlu0 %v1648, 4
        %v7181 = vpop.permute.xlu0 %7180
        %7182 = vrot.lane.b32.xlu0 %v1649, 4
        %v7183 = vpop.permute.xlu0 %7182
        %7184 = vrot.lane.b32.xlu0 %v1650, 4
        %v7185 = vpop.permute.xlu0 %7184
        %7186 = vrot.lane.b32.xlu0 %v1651, 4
        %v7187 = vpop.permute.xlu0 %7186
        %7188 = vrot.lane.b32.xlu0 %v1652, 4
        %v7189 = vpop.permute.xlu0 %7188
        %7190 = vrot.lane.b32.xlu0 %v1653, 4
        %v7191 = vpop.permute.xlu0 %7190
        %7192 = vrot.lane.b32.xlu0 %v1654, 4
        %v7193 = vpop.permute.xlu0 %7192
        %7194 = vrot.lane.b32.xlu0 %v1655, 4
        %v7195 = vpop.permute.xlu0 %7194
        %7196 = vrot.lane.b32.xlu0 %v1656, 4
        %v7197 = vpop.permute.xlu0 %7196
        %7198 = vrot.lane.b32.xlu0 %v1657, 4
        %v7199 = vpop.permute.xlu0 %7198
        %7200 = vrot.lane.b32.xlu0 %v1658, 4
        %v7201 = vpop.permute.xlu0 %7200
        %7202 = vrot.lane.b32.xlu0 %v1659, 4
        %v7203 = vpop.permute.xlu0 %7202
        %7204 = vrot.lane.b32.xlu0 %v1660, 4
        %v7205 = vpop.permute.xlu0 %7204
        %7206 = vrot.lane.b32.xlu0 %v1661, 4
        %v7207 = vpop.permute.xlu0 %7206
        %7208 = vrot.lane.b32.xlu0 %v1662, 4
        %v7209 = vpop.permute.xlu0 %7208
        %7210 = vrot.lane.b32.xlu0 %v1663, 4
        %v7211 = vpop.permute.xlu0 %7210
        %7212 = vrot.lane.b32.xlu0 %v1664, 4
        %v7213 = vpop.permute.xlu0 %7212
        %7214 = vrot.lane.b32.xlu0 %v1665, 4
        %v7215 = vpop.permute.xlu0 %7214
        %7216 = vrot.lane.b32.xlu0 %v1666, 4
        %v7217 = vpop.permute.xlu0 %7216
        %7218 = vrot.lane.b32.xlu0 %v1667, 4
        %v7219 = vpop.permute.xlu0 %7218
        %7220 = vrot.lane.b32.xlu0 %v1668, 4
        %v7221 = vpop.permute.xlu0 %7220
        %7222 = vrot.lane.b32.xlu0 %v1669, 4
        %v7223 = vpop.permute.xlu0 %7222
        %7224 = vrot.lane.b32.xlu0 %v1670, 4
        %v7225 = vpop.permute.xlu0 %7224
        %7226 = vrot.lane.b32.xlu0 %v1671, 4
        %v7227 = vpop.permute.xlu0 %7226
        %7228 = vrot.lane.b32.xlu0 %v1672, 4
        %v7229 = vpop.permute.xlu0 %7228
        %7230 = vrot.lane.b32.xlu0 %v1673, 4
        %v7231 = vpop.permute.xlu0 %7230
        %7232 = vrot.lane.b32.xlu0 %v1674, 4
        %v7233 = vpop.permute.xlu0 %7232
        %7234 = vrot.lane.b32.xlu0 %v1675, 4
        %v7235 = vpop.permute.xlu0 %7234
        %7236 = vrot.lane.b32.xlu0 %v1676, 4
        %v7237 = vpop.permute.xlu0 %7236
        %7238 = vrot.lane.b32.xlu0 %v1677, 4
        %v7239 = vpop.permute.xlu0 %7238
        %7240 = vrot.lane.b32.xlu0 %v1678, 4
        %v7241 = vpop.permute.xlu0 %7240
        %7242 = vrot.lane.b32.xlu0 %v1679, 4
        %v7243 = vpop.permute.xlu0 %7242
        %7244 = vrot.lane.b32.xlu0 %v1680, 4
        %v7245 = vpop.permute.xlu0 %7244
        %7246 = vrot.lane.b32.xlu0 %v1681, 4
        %v7247 = vpop.permute.xlu0 %7246
        %7248 = vrot.lane.b32.xlu0 %v1682, 4
        %v7249 = vpop.permute.xlu0 %7248
        %7250 = vrot.lane.b32.xlu0 %v1683, 4
        %v7251 = vpop.permute.xlu0 %7250
        %7252 = vrot.lane.b32.xlu0 %v1684, 4
        %v7253 = vpop.permute.xlu0 %7252
        %7254 = vrot.lane.b32.xlu0 %v1685, 4
        %v7255 = vpop.permute.xlu0 %7254
        %7256 = vrot.lane.b32.xlu0 %v1686, 4
        %v7257 = vpop.permute.xlu0 %7256
        %7258 = vrot.lane.b32.xlu0 %v1687, 4
        %v7259 = vpop.permute.xlu0 %7258
        %7260 = vrot.lane.b32.xlu0 %v1688, 4
        %v7261 = vpop.permute.xlu0 %7260
        %7262 = vrot.lane.b32.xlu0 %v1689, 4
        %v7263 = vpop.permute.xlu0 %7262
        %7264 = vrot.lane.b32.xlu0 %v1690, 4
        %v7265 = vpop.permute.xlu0 %7264
        %7266 = vrot.lane.b32.xlu0 %v1691, 4
        %v7267 = vpop.permute.xlu0 %7266
        %7268 = vrot.lane.b32.xlu0 %v1692, 4
        %v7269 = vpop.permute.xlu0 %7268
        %7270 = vrot.lane.b32.xlu0 %v1693, 4
        %v7271 = vpop.permute.xlu0 %7270
        %7272 = vrot.lane.b32.xlu0 %v1694, 4
        %v7273 = vpop.permute.xlu0 %7272
        %7274 = vrot.lane.b32.xlu0 %v1695, 4
        %v7275 = vpop.permute.xlu0 %7274
        %7276 = vrot.lane.b32.xlu0 %v1696, 4
        %v7277 = vpop.permute.xlu0 %7276
        %7278 = vrot.lane.b32.xlu0 %v1697, 4
        %v7279 = vpop.permute.xlu0 %7278
        %7280 = vrot.lane.b32.xlu0 %v1698, 4
        %v7281 = vpop.permute.xlu0 %7280
        %7282 = vrot.lane.b32.xlu0 %v1699, 4
        %v7283 = vpop.permute.xlu0 %7282
        %7284 = vrot.lane.b32.xlu0 %v1700, 4
        %v7285 = vpop.permute.xlu0 %7284
        %7414 = vrot.lane.b32.xlu0 %v1702, 8
        %v7415 = vpop.permute.xlu0 %7414
        %7416 = vrot.lane.b32.xlu0 %v1703, 8
        %v7417 = vpop.permute.xlu0 %7416
        %7418 = vrot.lane.b32.xlu0 %v1704, 8
        %v7419 = vpop.permute.xlu0 %7418
        %7420 = vrot.lane.b32.xlu0 %v1705, 8
        %v7421 = vpop.permute.xlu0 %7420
        %7422 = vrot.lane.b32.xlu0 %v1706, 8
        %v7423 = vpop.permute.xlu0 %7422
        %7424 = vrot.lane.b32.xlu0 %v1707, 8
        %v7425 = vpop.permute.xlu0 %7424
        %7426 = vrot.lane.b32.xlu0 %v1708, 8
        %v7427 = vpop.permute.xlu0 %7426
        %7428 = vrot.lane.b32.xlu0 %v1709, 8
        %v7429 = vpop.permute.xlu0 %7428
        %7430 = vrot.lane.b32.xlu0 %v1710, 8
        %v7431 = vpop.permute.xlu0 %7430
        %7432 = vrot.lane.b32.xlu0 %v1711, 8
        %v7433 = vpop.permute.xlu0 %7432
        %7434 = vrot.lane.b32.xlu0 %v1712, 8
        %v7435 = vpop.permute.xlu0 %7434
        %7436 = vrot.lane.b32.xlu0 %v1713, 8
        %v7437 = vpop.permute.xlu0 %7436
        %7438 = vrot.lane.b32.xlu0 %v1714, 8
        %v7439 = vpop.permute.xlu0 %7438
        %7440 = vrot.lane.b32.xlu0 %v1715, 8
        %v7441 = vpop.permute.xlu0 %7440
        %7442 = vrot.lane.b32.xlu0 %v1716, 8
        %v7443 = vpop.permute.xlu0 %7442
        %7444 = vrot.lane.b32.xlu0 %v1717, 8
        %v7445 = vpop.permute.xlu0 %7444
        %7446 = vrot.lane.b32.xlu0 %v1718, 8
        %v7447 = vpop.permute.xlu0 %7446
        %7448 = vrot.lane.b32.xlu0 %v1719, 8
        %v7449 = vpop.permute.xlu0 %7448
        %7450 = vrot.lane.b32.xlu0 %v1720, 8
        %v7451 = vpop.permute.xlu0 %7450
        %7452 = vrot.lane.b32.xlu0 %v1721, 8
        %v7453 = vpop.permute.xlu0 %7452
        %7454 = vrot.lane.b32.xlu0 %v1722, 8
        %v7455 = vpop.permute.xlu0 %7454
        %7456 = vrot.lane.b32.xlu0 %v1723, 8
        %v7457 = vpop.permute.xlu0 %7456
        %7458 = vrot.lane.b32.xlu0 %v1724, 8
        %v7459 = vpop.permute.xlu0 %7458
        %7460 = vrot.lane.b32.xlu0 %v1725, 8
        %v7461 = vpop.permute.xlu0 %7460
        %7462 = vrot.lane.b32.xlu0 %v1726, 8
        %v7463 = vpop.permute.xlu0 %7462
        %7464 = vrot.lane.b32.xlu0 %v1727, 8
        %v7465 = vpop.permute.xlu0 %7464
        %7466 = vrot.lane.b32.xlu0 %v1728, 8
        %v7467 = vpop.permute.xlu0 %7466
        %7468 = vrot.lane.b32.xlu0 %v1729, 8
        %v7469 = vpop.permute.xlu0 %7468
        %7470 = vrot.lane.b32.xlu0 %v1730, 8
        %v7471 = vpop.permute.xlu0 %7470
        %7472 = vrot.lane.b32.xlu0 %v1731, 8
        %v7473 = vpop.permute.xlu0 %7472
        %7474 = vrot.lane.b32.xlu0 %v1732, 8
        %v7475 = vpop.permute.xlu0 %7474
        %7476 = vrot.lane.b32.xlu0 %v1733, 8
        %v7477 = vpop.permute.xlu0 %7476
        %7478 = vrot.lane.b32.xlu0 %v1734, 8
        %v7479 = vpop.permute.xlu0 %7478
        %7480 = vrot.lane.b32.xlu0 %v1735, 8
        %v7481 = vpop.permute.xlu0 %7480
        %7482 = vrot.lane.b32.xlu0 %v1736, 8
        %v7483 = vpop.permute.xlu0 %7482
        %7484 = vrot.lane.b32.xlu0 %v1737, 8
        %v7485 = vpop.permute.xlu0 %7484
        %7486 = vrot.lane.b32.xlu0 %v1738, 8
        %v7487 = vpop.permute.xlu0 %7486
        %7488 = vrot.lane.b32.xlu0 %v1739, 8
        %v7489 = vpop.permute.xlu0 %7488
        %7490 = vrot.lane.b32.xlu0 %v1740, 8
        %v7491 = vpop.permute.xlu0 %7490
        %7492 = vrot.lane.b32.xlu0 %v1741, 8
        %v7493 = vpop.permute.xlu0 %7492
        %7494 = vrot.lane.b32.xlu0 %v1742, 8
        %v7495 = vpop.permute.xlu0 %7494
        %7496 = vrot.lane.b32.xlu0 %v1743, 8
        %v7497 = vpop.permute.xlu0 %7496
        %7498 = vrot.lane.b32.xlu0 %v1744, 8
        %v7499 = vpop.permute.xlu0 %7498
        %7500 = vrot.lane.b32.xlu0 %v1745, 8
        %v7501 = vpop.permute.xlu0 %7500
        %7502 = vrot.lane.b32.xlu0 %v1746, 8
        %v7503 = vpop.permute.xlu0 %7502
        %7504 = vrot.lane.b32.xlu0 %v1747, 8
        %v7505 = vpop.permute.xlu0 %7504
        %7506 = vrot.lane.b32.xlu0 %v1748, 8
        %v7507 = vpop.permute.xlu0 %7506
        %7508 = vrot.lane.b32.xlu0 %v1749, 8
        %v7509 = vpop.permute.xlu0 %7508
        %7510 = vrot.lane.b32.xlu0 %v1750, 8
        %v7511 = vpop.permute.xlu0 %7510
        %7512 = vrot.lane.b32.xlu0 %v1751, 8
        %v7513 = vpop.permute.xlu0 %7512
        %7514 = vrot.lane.b32.xlu0 %v1752, 8
        %v7515 = vpop.permute.xlu0 %7514
        %7516 = vrot.lane.b32.xlu0 %v1753, 8
        %v7517 = vpop.permute.xlu0 %7516
        %7518 = vrot.lane.b32.xlu0 %v1754, 8
        %v7519 = vpop.permute.xlu0 %7518
        %7520 = vrot.lane.b32.xlu0 %v1755, 8
        %v7521 = vpop.permute.xlu0 %7520
        %7522 = vrot.lane.b32.xlu0 %v1756, 8
        %v7523 = vpop.permute.xlu0 %7522
        %7524 = vrot.lane.b32.xlu0 %v1757, 8
        %v7525 = vpop.permute.xlu0 %7524
        %7526 = vrot.lane.b32.xlu0 %v1758, 8
        %v7527 = vpop.permute.xlu0 %7526
        %7528 = vrot.lane.b32.xlu0 %v1759, 8
        %v7529 = vpop.permute.xlu0 %7528
        %7530 = vrot.lane.b32.xlu0 %v1760, 8
        %v7531 = vpop.permute.xlu0 %7530
        %7532 = vrot.lane.b32.xlu0 %v1761, 8
        %v7533 = vpop.permute.xlu0 %7532
        %7534 = vrot.lane.b32.xlu0 %v1762, 8
        %v7535 = vpop.permute.xlu0 %7534
        %7536 = vrot.lane.b32.xlu0 %v1763, 8
        %v7537 = vpop.permute.xlu0 %7536
        %7538 = vrot.lane.b32.xlu0 %v1764, 8
        %v7539 = vpop.permute.xlu0 %7538
        %7540 = vrot.lane.b32.xlu0 %v1765, 8
        %v7541 = vpop.permute.xlu0 %7540
        %7670 = vrot.lane.b32.xlu0 %v1766, 12
        %v7671 = vpop.permute.xlu0 %7670
        %7672 = vrot.lane.b32.xlu0 %v1767, 12
        %v7673 = vpop.permute.xlu0 %7672
        %7674 = vrot.lane.b32.xlu0 %v1768, 12
        %v7675 = vpop.permute.xlu0 %7674
        %7676 = vrot.lane.b32.xlu0 %v1769, 12
        %v7677 = vpop.permute.xlu0 %7676
        %7678 = vrot.lane.b32.xlu0 %v1770, 12
        %v7679 = vpop.permute.xlu0 %7678
        %7680 = vrot.lane.b32.xlu0 %v1771, 12
        %v7681 = vpop.permute.xlu0 %7680
        %7682 = vrot.lane.b32.xlu0 %v1772, 12
        %v7683 = vpop.permute.xlu0 %7682
        %7684 = vrot.lane.b32.xlu0 %v1773, 12
        %v7685 = vpop.permute.xlu0 %7684
        %7686 = vrot.lane.b32.xlu0 %v1774, 12
        %v7687 = vpop.permute.xlu0 %7686
        %7688 = vrot.lane.b32.xlu0 %v1775, 12
        %v7689 = vpop.permute.xlu0 %7688
        %7690 = vrot.lane.b32.xlu0 %v1776, 12
        %v7691 = vpop.permute.xlu0 %7690
        %7692 = vrot.lane.b32.xlu0 %v1777, 12
        %v7693 = vpop.permute.xlu0 %7692
        %7694 = vrot.lane.b32.xlu0 %v1778, 12
        %v7695 = vpop.permute.xlu0 %7694
        %7696 = vrot.lane.b32.xlu0 %v1779, 12
        %v7697 = vpop.permute.xlu0 %7696
        %7698 = vrot.lane.b32.xlu0 %v1780, 12
        %v7699 = vpop.permute.xlu0 %7698
        %7700 = vrot.lane.b32.xlu0 %v1781, 12
        %v7701 = vpop.permute.xlu0 %7700
        %7702 = vrot.lane.b32.xlu0 %v1782, 12
        %v7703 = vpop.permute.xlu0 %7702
        %7704 = vrot.lane.b32.xlu0 %v1783, 12
        %v7705 = vpop.permute.xlu0 %7704
        %7706 = vrot.lane.b32.xlu0 %v1784, 12
        %v7707 = vpop.permute.xlu0 %7706
        %7708 = vrot.lane.b32.xlu0 %v1785, 12
        %v7709 = vpop.permute.xlu0 %7708
        %7710 = vrot.lane.b32.xlu0 %v1786, 12
        %v7711 = vpop.permute.xlu0 %7710
        %7712 = vrot.lane.b32.xlu0 %v1787, 12
        %v7713 = vpop.permute.xlu0 %7712
        %7714 = vrot.lane.b32.xlu0 %v1788, 12
        %v7715 = vpop.permute.xlu0 %7714
        %7716 = vrot.lane.b32.xlu0 %v1789, 12
        %v7717 = vpop.permute.xlu0 %7716
        %7718 = vrot.lane.b32.xlu0 %v1790, 12
        %v7719 = vpop.permute.xlu0 %7718
        %7720 = vrot.lane.b32.xlu0 %v1791, 12
        %v7721 = vpop.permute.xlu0 %7720
        %7722 = vrot.lane.b32.xlu0 %v1792, 12
        %v7723 = vpop.permute.xlu0 %7722
        %7724 = vrot.lane.b32.xlu0 %v1793, 12
        %v7725 = vpop.permute.xlu0 %7724
        %7726 = vrot.lane.b32.xlu0 %v1794, 12
        %v7727 = vpop.permute.xlu0 %7726
        %7728 = vrot.lane.b32.xlu0 %v1795, 12
        %v7729 = vpop.permute.xlu0 %7728
        %7730 = vrot.lane.b32.xlu0 %v1796, 12
        %v7731 = vpop.permute.xlu0 %7730
        %7732 = vrot.lane.b32.xlu0 %v1797, 12
        %v7733 = vpop.permute.xlu0 %7732
        %7734 = vrot.lane.b32.xlu0 %v1798, 12
        %v7735 = vpop.permute.xlu0 %7734
        %7736 = vrot.lane.b32.xlu0 %v1799, 12
        %v7737 = vpop.permute.xlu0 %7736
        %7738 = vrot.lane.b32.xlu0 %v1800, 12
        %v7739 = vpop.permute.xlu0 %7738
        %7740 = vrot.lane.b32.xlu0 %v1801, 12
        %v7741 = vpop.permute.xlu0 %7740
        %7742 = vrot.lane.b32.xlu0 %v1802, 12
        %v7743 = vpop.permute.xlu0 %7742
        %7744 = vrot.lane.b32.xlu0 %v1803, 12
        %v7745 = vpop.permute.xlu0 %7744
        %7746 = vrot.lane.b32.xlu0 %v1804, 12
        %v7747 = vpop.permute.xlu0 %7746
        %7748 = vrot.lane.b32.xlu0 %v1805, 12
        %v7749 = vpop.permute.xlu0 %7748
        %7750 = vrot.lane.b32.xlu0 %v1806, 12
        %v7751 = vpop.permute.xlu0 %7750
        %7752 = vrot.lane.b32.xlu0 %v1807, 12
        %v7753 = vpop.permute.xlu0 %7752
        %7754 = vrot.lane.b32.xlu0 %v1808, 12
        %v7755 = vpop.permute.xlu0 %7754
        %7756 = vrot.lane.b32.xlu0 %v1809, 12
        %v7757 = vpop.permute.xlu0 %7756
        %7758 = vrot.lane.b32.xlu0 %v1810, 12
        %v7759 = vpop.permute.xlu0 %7758
        %7760 = vrot.lane.b32.xlu0 %v1811, 12
        %v7761 = vpop.permute.xlu0 %7760
        %7762 = vrot.lane.b32.xlu0 %v1812, 12
        %v7763 = vpop.permute.xlu0 %7762
        %7764 = vrot.lane.b32.xlu0 %v1813, 12
        %v7765 = vpop.permute.xlu0 %7764
        %7766 = vrot.lane.b32.xlu0 %v1814, 12
        %v7767 = vpop.permute.xlu0 %7766
        %7768 = vrot.lane.b32.xlu0 %v1815, 12
        %v7769 = vpop.permute.xlu0 %7768
        %7770 = vrot.lane.b32.xlu0 %v1816, 12
        %v7771 = vpop.permute.xlu0 %7770
        %7772 = vrot.lane.b32.xlu0 %v1817, 12
        %v7773 = vpop.permute.xlu0 %7772
        %7774 = vrot.lane.b32.xlu0 %v1818, 12
        %v7775 = vpop.permute.xlu0 %7774
        %7776 = vrot.lane.b32.xlu0 %v1819, 12
        %v7777 = vpop.permute.xlu0 %7776
        %7778 = vrot.lane.b32.xlu0 %v1820, 12
        %v7779 = vpop.permute.xlu0 %7778
        %7780 = vrot.lane.b32.xlu0 %v1821, 12
        %v7781 = vpop.permute.xlu0 %7780
        %7782 = vrot.lane.b32.xlu0 %v1822, 12
        %v7783 = vpop.permute.xlu0 %7782
        %7784 = vrot.lane.b32.xlu0 %v1823, 12
        %v7785 = vpop.permute.xlu0 %7784
        %7786 = vrot.lane.b32.xlu0 %v1824, 12
        %v7787 = vpop.permute.xlu0 %7786
        %7788 = vrot.lane.b32.xlu0 %v1825, 12
        %v7789 = vpop.permute.xlu0 %7788
        %7790 = vrot.lane.b32.xlu0 %v1826, 12
        %v7791 = vpop.permute.xlu0 %7790
        %7792 = vrot.lane.b32.xlu0 %v1827, 12
        %v7793 = vpop.permute.xlu0 %7792
        %7794 = vrot.lane.b32.xlu0 %v1828, 12
        %v7795 = vpop.permute.xlu0 %7794
        %7796 = vrot.lane.b32.xlu0 %v1829, 12
        %v7797 = vpop.permute.xlu0 %7796
        %7926 = vrot.lane.b32.xlu0 %v1830, 16
        %v7927 = vpop.permute.xlu0 %7926
        %7928 = vrot.lane.b32.xlu0 %v1831, 16
        %v7929 = vpop.permute.xlu0 %7928
        %7930 = vrot.lane.b32.xlu0 %v1832, 16
        %v7931 = vpop.permute.xlu0 %7930
        %7932 = vrot.lane.b32.xlu0 %v1833, 16
        %v7933 = vpop.permute.xlu0 %7932
        %7934 = vrot.lane.b32.xlu0 %v1834, 16
        %v7935 = vpop.permute.xlu0 %7934
        %7936 = vrot.lane.b32.xlu0 %v1835, 16
        %v7937 = vpop.permute.xlu0 %7936
        %7938 = vrot.lane.b32.xlu0 %v1836, 16
        %v7939 = vpop.permute.xlu0 %7938
        %7940 = vrot.lane.b32.xlu0 %v1837, 16
        %v7941 = vpop.permute.xlu0 %7940
        %7942 = vrot.lane.b32.xlu0 %v1838, 16
        %v7943 = vpop.permute.xlu0 %7942
        %7944 = vrot.lane.b32.xlu0 %v1839, 16
        %v7945 = vpop.permute.xlu0 %7944
        %7946 = vrot.lane.b32.xlu0 %v1840, 16
        %v7947 = vpop.permute.xlu0 %7946
        %7948 = vrot.lane.b32.xlu0 %v1841, 16
        %v7949 = vpop.permute.xlu0 %7948
        %7950 = vrot.lane.b32.xlu0 %v1842, 16
        %v7951 = vpop.permute.xlu0 %7950
        %7952 = vrot.lane.b32.xlu0 %v1843, 16
        %v7953 = vpop.permute.xlu0 %7952
        %7954 = vrot.lane.b32.xlu0 %v1844, 16
        %v7955 = vpop.permute.xlu0 %7954
        %7956 = vrot.lane.b32.xlu0 %v1845, 16
        %v7957 = vpop.permute.xlu0 %7956
        %7958 = vrot.lane.b32.xlu0 %v1846, 16
        %v7959 = vpop.permute.xlu0 %7958
        %7960 = vrot.lane.b32.xlu0 %v1847, 16
        %v7961 = vpop.permute.xlu0 %7960
        %7962 = vrot.lane.b32.xlu0 %v1848, 16
        %v7963 = vpop.permute.xlu0 %7962
        %7964 = vrot.lane.b32.xlu0 %v1849, 16
        %v7965 = vpop.permute.xlu0 %7964
        %7966 = vrot.lane.b32.xlu0 %v1850, 16
        %v7967 = vpop.permute.xlu0 %7966
        %7968 = vrot.lane.b32.xlu0 %v1851, 16
        %v7969 = vpop.permute.xlu0 %7968
        %7970 = vrot.lane.b32.xlu0 %v1852, 16
        %v7971 = vpop.permute.xlu0 %7970
        %7972 = vrot.lane.b32.xlu0 %v1853, 16
        %v7973 = vpop.permute.xlu0 %7972
        %7974 = vrot.lane.b32.xlu0 %v1854, 16
        %v7975 = vpop.permute.xlu0 %7974
        %7976 = vrot.lane.b32.xlu0 %v1855, 16
        %v7977 = vpop.permute.xlu0 %7976
        %7978 = vrot.lane.b32.xlu0 %v1856, 16
        %v7979 = vpop.permute.xlu0 %7978
        %7980 = vrot.lane.b32.xlu0 %v1857, 16
        %v7981 = vpop.permute.xlu0 %7980
        %7982 = vrot.lane.b32.xlu0 %v1858, 16
        %v7983 = vpop.permute.xlu0 %7982
        %7984 = vrot.lane.b32.xlu0 %v1859, 16
        %v7985 = vpop.permute.xlu0 %7984
        %7986 = vrot.lane.b32.xlu0 %v1860, 16
        %v7987 = vpop.permute.xlu0 %7986
        %7988 = vrot.lane.b32.xlu0 %v1861, 16
        %v7989 = vpop.permute.xlu0 %7988
        %7990 = vrot.lane.b32.xlu0 %v1862, 16
        %v7991 = vpop.permute.xlu0 %7990
        %7992 = vrot.lane.b32.xlu0 %v1863, 16
        %v7993 = vpop.permute.xlu0 %7992
        %7994 = vrot.lane.b32.xlu0 %v1864, 16
        %v7995 = vpop.permute.xlu0 %7994
        %7996 = vrot.lane.b32.xlu0 %v1865, 16
        %v7997 = vpop.permute.xlu0 %7996
        %7998 = vrot.lane.b32.xlu0 %v1866, 16
        %v7999 = vpop.permute.xlu0 %7998
        %8000 = vrot.lane.b32.xlu0 %v1867, 16
        %v8001 = vpop.permute.xlu0 %8000
        %8002 = vrot.lane.b32.xlu0 %v1868, 16
        %v8003 = vpop.permute.xlu0 %8002
        %8004 = vrot.lane.b32.xlu0 %v1869, 16
        %v8005 = vpop.permute.xlu0 %8004
        %8006 = vrot.lane.b32.xlu0 %v1870, 16
        %v8007 = vpop.permute.xlu0 %8006
        %8008 = vrot.lane.b32.xlu0 %v1871, 16
        %v8009 = vpop.permute.xlu0 %8008
        %8010 = vrot.lane.b32.xlu0 %v1872, 16
        %v8011 = vpop.permute.xlu0 %8010
        %8012 = vrot.lane.b32.xlu0 %v1873, 16
        %v8013 = vpop.permute.xlu0 %8012
        %8014 = vrot.lane.b32.xlu0 %v1874, 16
        %v8015 = vpop.permute.xlu0 %8014
        %8016 = vrot.lane.b32.xlu0 %v1875, 16
        %v8017 = vpop.permute.xlu0 %8016
        %8018 = vrot.lane.b32.xlu0 %v1876, 16
        %v8019 = vpop.permute.xlu0 %8018
        %8020 = vrot.lane.b32.xlu0 %v1877, 16
        %v8021 = vpop.permute.xlu0 %8020
        %8022 = vrot.lane.b32.xlu0 %v1878, 16
        %v8023 = vpop.permute.xlu0 %8022
        %8024 = vrot.lane.b32.xlu0 %v1879, 16
        %v8025 = vpop.permute.xlu0 %8024
        %8026 = vrot.lane.b32.xlu0 %v1880, 16
        %v8027 = vpop.permute.xlu0 %8026
        %8028 = vrot.lane.b32.xlu0 %v1881, 16
        %v8029 = vpop.permute.xlu0 %8028
        %8030 = vrot.lane.b32.xlu0 %v1882, 16
        %v8031 = vpop.permute.xlu0 %8030
        %8032 = vrot.lane.b32.xlu0 %v1883, 16
        %v8033 = vpop.permute.xlu0 %8032
        %8034 = vrot.lane.b32.xlu0 %v1884, 16
        %v8035 = vpop.permute.xlu0 %8034
        %8036 = vrot.lane.b32.xlu0 %v1885, 16
        %v8037 = vpop.permute.xlu0 %8036
        %8038 = vrot.lane.b32.xlu0 %v1886, 16
        %v8039 = vpop.permute.xlu0 %8038
        %8040 = vrot.lane.b32.xlu0 %v1887, 16
        %v8041 = vpop.permute.xlu0 %8040
        %8042 = vrot.lane.b32.xlu0 %v1888, 16
        %v8043 = vpop.permute.xlu0 %8042
        %8044 = vrot.lane.b32.xlu0 %v1889, 16
        %v8045 = vpop.permute.xlu0 %8044
        %8046 = vrot.lane.b32.xlu0 %v1890, 16
        %v8047 = vpop.permute.xlu0 %8046
        %8048 = vrot.lane.b32.xlu0 %v1891, 16
        %v8049 = vpop.permute.xlu0 %8048
        %8050 = vrot.lane.b32.xlu0 %v1892, 16
        %v8051 = vpop.permute.xlu0 %8050
        %8052 = vrot.lane.b32.xlu0 %v1893, 16
        %v8053 = vpop.permute.xlu0 %8052
        %8182 = vrot.lane.b32.xlu0 %v1895, 20
        %v8183 = vpop.permute.xlu0 %8182
        %8184 = vrot.lane.b32.xlu0 %v1896, 20
        %v8185 = vpop.permute.xlu0 %8184
        %8186 = vrot.lane.b32.xlu0 %v1897, 20
        %v8187 = vpop.permute.xlu0 %8186
        %8188 = vrot.lane.b32.xlu0 %v1898, 20
        %v8189 = vpop.permute.xlu0 %8188
        %8190 = vrot.lane.b32.xlu0 %v1899, 20
        %v8191 = vpop.permute.xlu0 %8190
        %8192 = vrot.lane.b32.xlu0 %v1900, 20
        %v8193 = vpop.permute.xlu0 %8192
        %8194 = vrot.lane.b32.xlu0 %v1901, 20
        %v8195 = vpop.permute.xlu0 %8194
        %8196 = vrot.lane.b32.xlu0 %v1902, 20
        %v8197 = vpop.permute.xlu0 %8196
        %8198 = vrot.lane.b32.xlu0 %v1903, 20
        %v8199 = vpop.permute.xlu0 %8198
        %8200 = vrot.lane.b32.xlu0 %v1904, 20
        %v8201 = vpop.permute.xlu0 %8200
        %8202 = vrot.lane.b32.xlu0 %v1905, 20
        %v8203 = vpop.permute.xlu0 %8202
        %8204 = vrot.lane.b32.xlu0 %v1906, 20
        %v8205 = vpop.permute.xlu0 %8204
        %8206 = vrot.lane.b32.xlu0 %v1907, 20
        %v8207 = vpop.permute.xlu0 %8206
        %8208 = vrot.lane.b32.xlu0 %v1908, 20
        %v8209 = vpop.permute.xlu0 %8208
        %8210 = vrot.lane.b32.xlu0 %v1909, 20
        %v8211 = vpop.permute.xlu0 %8210
        %8212 = vrot.lane.b32.xlu0 %v1910, 20
        %v8213 = vpop.permute.xlu0 %8212
        %8214 = vrot.lane.b32.xlu0 %v1911, 20
        %v8215 = vpop.permute.xlu0 %8214
        %8216 = vrot.lane.b32.xlu0 %v1912, 20
        %v8217 = vpop.permute.xlu0 %8216
        %8218 = vrot.lane.b32.xlu0 %v1913, 20
        %v8219 = vpop.permute.xlu0 %8218
        %8220 = vrot.lane.b32.xlu0 %v1914, 20
        %v8221 = vpop.permute.xlu0 %8220
        %8222 = vrot.lane.b32.xlu0 %v1915, 20
        %v8223 = vpop.permute.xlu0 %8222
        %8224 = vrot.lane.b32.xlu0 %v1916, 20
        %v8225 = vpop.permute.xlu0 %8224
        %8226 = vrot.lane.b32.xlu0 %v1917, 20
        %v8227 = vpop.permute.xlu0 %8226
        %8228 = vrot.lane.b32.xlu0 %v1918, 20
        %v8229 = vpop.permute.xlu0 %8228
        %8230 = vrot.lane.b32.xlu0 %v1919, 20
        %v8231 = vpop.permute.xlu0 %8230
        %8232 = vrot.lane.b32.xlu0 %v1920, 20
        %v8233 = vpop.permute.xlu0 %8232
        %8234 = vrot.lane.b32.xlu0 %v1921, 20
        %v8235 = vpop.permute.xlu0 %8234
        %8236 = vrot.lane.b32.xlu0 %v1922, 20
        %v8237 = vpop.permute.xlu0 %8236
        %8238 = vrot.lane.b32.xlu0 %v1923, 20
        %v8239 = vpop.permute.xlu0 %8238
        %8240 = vrot.lane.b32.xlu0 %v1924, 20
        %v8241 = vpop.permute.xlu0 %8240
        %8242 = vrot.lane.b32.xlu0 %v1925, 20
        %v8243 = vpop.permute.xlu0 %8242
        %8244 = vrot.lane.b32.xlu0 %v1926, 20
        %v8245 = vpop.permute.xlu0 %8244
        %8246 = vrot.lane.b32.xlu0 %v1927, 20
        %v8247 = vpop.permute.xlu0 %8246
        %8248 = vrot.lane.b32.xlu0 %v1928, 20
        %v8249 = vpop.permute.xlu0 %8248
        %8250 = vrot.lane.b32.xlu0 %v1929, 20
        %v8251 = vpop.permute.xlu0 %8250
        %8252 = vrot.lane.b32.xlu0 %v1930, 20
        %v8253 = vpop.permute.xlu0 %8252
        %8254 = vrot.lane.b32.xlu0 %v1931, 20
        %v8255 = vpop.permute.xlu0 %8254
        %8256 = vrot.lane.b32.xlu0 %v1932, 20
        %v8257 = vpop.permute.xlu0 %8256
        %8258 = vrot.lane.b32.xlu0 %v1933, 20
        %v8259 = vpop.permute.xlu0 %8258
        %8260 = vrot.lane.b32.xlu0 %v1934, 20
        %v8261 = vpop.permute.xlu0 %8260
        %8262 = vrot.lane.b32.xlu0 %v1935, 20
        %v8263 = vpop.permute.xlu0 %8262
        %8264 = vrot.lane.b32.xlu0 %v1936, 20
        %v8265 = vpop.permute.xlu0 %8264
        %8266 = vrot.lane.b32.xlu0 %v1937, 20
        %v8267 = vpop.permute.xlu0 %8266
        %8268 = vrot.lane.b32.xlu0 %v1938, 20
        %v8269 = vpop.permute.xlu0 %8268
        %8270 = vrot.lane.b32.xlu0 %v1939, 20
        %v8271 = vpop.permute.xlu0 %8270
        %8272 = vrot.lane.b32.xlu0 %v1940, 20
        %v8273 = vpop.permute.xlu0 %8272
        %8274 = vrot.lane.b32.xlu0 %v1941, 20
        %v8275 = vpop.permute.xlu0 %8274
        %8276 = vrot.lane.b32.xlu0 %v1942, 20
        %v8277 = vpop.permute.xlu0 %8276
        %8278 = vrot.lane.b32.xlu0 %v1943, 20
        %v8279 = vpop.permute.xlu0 %8278
        %8280 = vrot.lane.b32.xlu0 %v1944, 20
        %v8281 = vpop.permute.xlu0 %8280
        %8282 = vrot.lane.b32.xlu0 %v1945, 20
        %v8283 = vpop.permute.xlu0 %8282
        %8284 = vrot.lane.b32.xlu0 %v1946, 20
        %v8285 = vpop.permute.xlu0 %8284
        %8286 = vrot.lane.b32.xlu0 %v1947, 20
        %v8287 = vpop.permute.xlu0 %8286
        %8288 = vrot.lane.b32.xlu0 %v1948, 20
        %v8289 = vpop.permute.xlu0 %8288
        %8290 = vrot.lane.b32.xlu0 %v1949, 20
        %v8291 = vpop.permute.xlu0 %8290
        %8292 = vrot.lane.b32.xlu0 %v1950, 20
        %v8293 = vpop.permute.xlu0 %8292
        %8294 = vrot.lane.b32.xlu0 %v1951, 20
        %v8295 = vpop.permute.xlu0 %8294
        %8296 = vrot.lane.b32.xlu0 %v1952, 20
        %v8297 = vpop.permute.xlu0 %8296
        %8298 = vrot.lane.b32.xlu0 %v1953, 20
        %v8299 = vpop.permute.xlu0 %8298
        %8300 = vrot.lane.b32.xlu0 %v1954, 20
        %v8301 = vpop.permute.xlu0 %8300
        %8302 = vrot.lane.b32.xlu0 %v1955, 20
        %v8303 = vpop.permute.xlu0 %8302
        %8304 = vrot.lane.b32.xlu0 %v1956, 20
        %v8305 = vpop.permute.xlu0 %8304
        %8306 = vrot.lane.b32.xlu0 %v1957, 20
        %v8307 = vpop.permute.xlu0 %8306
        %8308 = vrot.lane.b32.xlu0 %v1958, 20
        %v8309 = vpop.permute.xlu0 %8308
        %8438 = vrot.lane.b32.xlu0 %v1959, 24
        %v8439 = vpop.permute.xlu0 %8438
        %8440 = vrot.lane.b32.xlu0 %v1960, 24
        %v8441 = vpop.permute.xlu0 %8440
        %8442 = vrot.lane.b32.xlu0 %v1961, 24
        %v8443 = vpop.permute.xlu0 %8442
        %8444 = vrot.lane.b32.xlu0 %v1962, 24
        %v8445 = vpop.permute.xlu0 %8444
        %8446 = vrot.lane.b32.xlu0 %v1963, 24
        %v8447 = vpop.permute.xlu0 %8446
        %8448 = vrot.lane.b32.xlu0 %v1964, 24
        %v8449 = vpop.permute.xlu0 %8448
        %8450 = vrot.lane.b32.xlu0 %v1965, 24
        %v8451 = vpop.permute.xlu0 %8450
        %8452 = vrot.lane.b32.xlu0 %v1966, 24
        %v8453 = vpop.permute.xlu0 %8452
        %8454 = vrot.lane.b32.xlu0 %v1967, 24
        %v8455 = vpop.permute.xlu0 %8454
        %8456 = vrot.lane.b32.xlu0 %v1968, 24
        %v8457 = vpop.permute.xlu0 %8456
        %8458 = vrot.lane.b32.xlu0 %v1969, 24
        %v8459 = vpop.permute.xlu0 %8458
        %8460 = vrot.lane.b32.xlu0 %v1970, 24
        %v8461 = vpop.permute.xlu0 %8460
        %8462 = vrot.lane.b32.xlu0 %v1971, 24
        %v8463 = vpop.permute.xlu0 %8462
        %8464 = vrot.lane.b32.xlu0 %v1972, 24
        %v8465 = vpop.permute.xlu0 %8464
        %8466 = vrot.lane.b32.xlu0 %v1973, 24
        %v8467 = vpop.permute.xlu0 %8466
        %8468 = vrot.lane.b32.xlu0 %v1974, 24
        %v8469 = vpop.permute.xlu0 %8468
        %8470 = vrot.lane.b32.xlu0 %v1975, 24
        %v8471 = vpop.permute.xlu0 %8470
        %8472 = vrot.lane.b32.xlu0 %v1976, 24
        %v8473 = vpop.permute.xlu0 %8472
        %8474 = vrot.lane.b32.xlu0 %v1977, 24
        %v8475 = vpop.permute.xlu0 %8474
        %8476 = vrot.lane.b32.xlu0 %v1978, 24
        %v8477 = vpop.permute.xlu0 %8476
        %8478 = vrot.lane.b32.xlu0 %v1979, 24
        %v8479 = vpop.permute.xlu0 %8478
        %8480 = vrot.lane.b32.xlu0 %v1980, 24
        %v8481 = vpop.permute.xlu0 %8480
        %8482 = vrot.lane.b32.xlu0 %v1981, 24
        %v8483 = vpop.permute.xlu0 %8482
        %8484 = vrot.lane.b32.xlu0 %v1982, 24
        %v8485 = vpop.permute.xlu0 %8484
        %8486 = vrot.lane.b32.xlu0 %v1983, 24
        %v8487 = vpop.permute.xlu0 %8486
        %8488 = vrot.lane.b32.xlu0 %v1984, 24
        %v8489 = vpop.permute.xlu0 %8488
        %8490 = vrot.lane.b32.xlu0 %v1985, 24
        %v8491 = vpop.permute.xlu0 %8490
        %8492 = vrot.lane.b32.xlu0 %v1986, 24
        %v8493 = vpop.permute.xlu0 %8492
        %8494 = vrot.lane.b32.xlu0 %v1987, 24
        %v8495 = vpop.permute.xlu0 %8494
        %8496 = vrot.lane.b32.xlu0 %v1988, 24
        %v8497 = vpop.permute.xlu0 %8496
        %8498 = vrot.lane.b32.xlu0 %v1989, 24
        %v8499 = vpop.permute.xlu0 %8498
        %8500 = vrot.lane.b32.xlu0 %v1990, 24
        %v8501 = vpop.permute.xlu0 %8500
        %8502 = vrot.lane.b32.xlu0 %v1991, 24
        %v8503 = vpop.permute.xlu0 %8502
        %8504 = vrot.lane.b32.xlu0 %v1992, 24
        %v8505 = vpop.permute.xlu0 %8504
        %8506 = vrot.lane.b32.xlu0 %v1993, 24
        %v8507 = vpop.permute.xlu0 %8506
        %8508 = vrot.lane.b32.xlu0 %v1994, 24
        %v8509 = vpop.permute.xlu0 %8508
        %8510 = vrot.lane.b32.xlu0 %v1995, 24
        %v8511 = vpop.permute.xlu0 %8510
        %8512 = vrot.lane.b32.xlu0 %v1996, 24
        %v8513 = vpop.permute.xlu0 %8512
        %8514 = vrot.lane.b32.xlu0 %v1997, 24
        %v8515 = vpop.permute.xlu0 %8514
        %8516 = vrot.lane.b32.xlu0 %v1998, 24
        %v8517 = vpop.permute.xlu0 %8516
        %8518 = vrot.lane.b32.xlu0 %v1999, 24
        %v8519 = vpop.permute.xlu0 %8518
        %8520 = vrot.lane.b32.xlu0 %v2000, 24
        %v8521 = vpop.permute.xlu0 %8520
        %8522 = vrot.lane.b32.xlu0 %v2001, 24
        %v8523 = vpop.permute.xlu0 %8522
        %8524 = vrot.lane.b32.xlu0 %v2002, 24
        %v8525 = vpop.permute.xlu0 %8524
        %8526 = vrot.lane.b32.xlu0 %v2003, 24
        %v8527 = vpop.permute.xlu0 %8526
        %8528 = vrot.lane.b32.xlu0 %v2004, 24
        %v8529 = vpop.permute.xlu0 %8528
        %8530 = vrot.lane.b32.xlu0 %v2005, 24
        %v8531 = vpop.permute.xlu0 %8530
        %8532 = vrot.lane.b32.xlu0 %v2006, 24
        %v8533 = vpop.permute.xlu0 %8532
        %8534 = vrot.lane.b32.xlu0 %v2007, 24
        %v8535 = vpop.permute.xlu0 %8534
        %8536 = vrot.lane.b32.xlu0 %v2008, 24
        %v8537 = vpop.permute.xlu0 %8536
        %8538 = vrot.lane.b32.xlu0 %v2009, 24
        %v8539 = vpop.permute.xlu0 %8538
        %8540 = vrot.lane.b32.xlu0 %v2010, 24
        %v8541 = vpop.permute.xlu0 %8540
        %8542 = vrot.lane.b32.xlu0 %v2011, 24
        %v8543 = vpop.permute.xlu0 %8542
        %8544 = vrot.lane.b32.xlu0 %v2012, 24
        %v8545 = vpop.permute.xlu0 %8544
        %8546 = vrot.lane.b32.xlu0 %v2013, 24
        %v8547 = vpop.permute.xlu0 %8546
        %8548 = vrot.lane.b32.xlu0 %v2014, 24
        %v8549 = vpop.permute.xlu0 %8548
        %8550 = vrot.lane.b32.xlu0 %v2015, 24
        %v8551 = vpop.permute.xlu0 %8550
        %8552 = vrot.lane.b32.xlu0 %v2016, 24
        %v8553 = vpop.permute.xlu0 %8552
        %8554 = vrot.lane.b32.xlu0 %v2017, 24
        %v8555 = vpop.permute.xlu0 %8554
        %8556 = vrot.lane.b32.xlu0 %v2018, 24
        %v8557 = vpop.permute.xlu0 %8556
        %8558 = vrot.lane.b32.xlu0 %v2019, 24
        %v8559 = vpop.permute.xlu0 %8558
        %8560 = vrot.lane.b32.xlu0 %v2020, 24
        %v8561 = vpop.permute.xlu0 %8560
        %8562 = vrot.lane.b32.xlu0 %v2021, 24
        %v8563 = vpop.permute.xlu0 %8562
        %8564 = vrot.lane.b32.xlu0 %v2022, 24
        %v8565 = vpop.permute.xlu0 %8564
        %8694 = vrot.lane.b32.xlu0 %v2023, 28
        %v8695 = vpop.permute.xlu0 %8694
        %8696 = vrot.lane.b32.xlu0 %v2024, 28
        %v8697 = vpop.permute.xlu0 %8696
        %8698 = vrot.lane.b32.xlu0 %v2025, 28
        %v8699 = vpop.permute.xlu0 %8698
        %8700 = vrot.lane.b32.xlu0 %v2026, 28
        %v8701 = vpop.permute.xlu0 %8700
        %8702 = vrot.lane.b32.xlu0 %v2027, 28
        %v8703 = vpop.permute.xlu0 %8702
        %8704 = vrot.lane.b32.xlu0 %v2028, 28
        %v8705 = vpop.permute.xlu0 %8704
        %8706 = vrot.lane.b32.xlu0 %v2029, 28
        %v8707 = vpop.permute.xlu0 %8706
        %8708 = vrot.lane.b32.xlu0 %v2030, 28
        %v8709 = vpop.permute.xlu0 %8708
        %8710 = vrot.lane.b32.xlu0 %v2031, 28
        %v8711 = vpop.permute.xlu0 %8710
        %8712 = vrot.lane.b32.xlu0 %v2032, 28
        %v8713 = vpop.permute.xlu0 %8712
        %8714 = vrot.lane.b32.xlu0 %v2033, 28
        %v8715 = vpop.permute.xlu0 %8714
        %8716 = vrot.lane.b32.xlu0 %v2034, 28
        %v8717 = vpop.permute.xlu0 %8716
        %8718 = vrot.lane.b32.xlu0 %v2035, 28
        %v8719 = vpop.permute.xlu0 %8718
        %8720 = vrot.lane.b32.xlu0 %v2036, 28
        %v8721 = vpop.permute.xlu0 %8720
        %8722 = vrot.lane.b32.xlu0 %v2037, 28
        %v8723 = vpop.permute.xlu0 %8722
        %8724 = vrot.lane.b32.xlu0 %v2038, 28
        %v8725 = vpop.permute.xlu0 %8724
        %8726 = vrot.lane.b32.xlu0 %v2039, 28
        %v8727 = vpop.permute.xlu0 %8726
        %8728 = vrot.lane.b32.xlu0 %v2040, 28
        %v8729 = vpop.permute.xlu0 %8728
        %8730 = vrot.lane.b32.xlu0 %v2041, 28
        %v8731 = vpop.permute.xlu0 %8730
        %8732 = vrot.lane.b32.xlu0 %v2042, 28
        %v8733 = vpop.permute.xlu0 %8732
        %8734 = vrot.lane.b32.xlu0 %v2043, 28
        %v8735 = vpop.permute.xlu0 %8734
        %8736 = vrot.lane.b32.xlu0 %v2044, 28
        %v8737 = vpop.permute.xlu0 %8736
        %8738 = vrot.lane.b32.xlu0 %v2045, 28
        %v8739 = vpop.permute.xlu0 %8738
        %8740 = vrot.lane.b32.xlu0 %v2046, 28
        %v8741 = vpop.permute.xlu0 %8740
        %8742 = vrot.lane.b32.xlu0 %v2047, 28
        %v8743 = vpop.permute.xlu0 %8742
        %8744 = vrot.lane.b32.xlu0 %v2048, 28
        %v8745 = vpop.permute.xlu0 %8744
        %8746 = vrot.lane.b32.xlu0 %v2049, 28
        %v8747 = vpop.permute.xlu0 %8746
        %8748 = vrot.lane.b32.xlu0 %v2050, 28
        %v8749 = vpop.permute.xlu0 %8748
        %8750 = vrot.lane.b32.xlu0 %v2051, 28
        %v8751 = vpop.permute.xlu0 %8750
        %8752 = vrot.lane.b32.xlu0 %v2052, 28
        %v8753 = vpop.permute.xlu0 %8752
        %8754 = vrot.lane.b32.xlu0 %v2053, 28
        %v8755 = vpop.permute.xlu0 %8754
        %8756 = vrot.lane.b32.xlu0 %v2054, 28
        %v8757 = vpop.permute.xlu0 %8756
        %8758 = vrot.lane.b32.xlu0 %v2055, 28
        %v8759 = vpop.permute.xlu0 %8758
        %8760 = vrot.lane.b32.xlu0 %v2056, 28
        %v8761 = vpop.permute.xlu0 %8760
        %8762 = vrot.lane.b32.xlu0 %v2057, 28
        %v8763 = vpop.permute.xlu0 %8762
        %8764 = vrot.lane.b32.xlu0 %v2058, 28
        %v8765 = vpop.permute.xlu0 %8764
        %8766 = vrot.lane.b32.xlu0 %v2059, 28
        %v8767 = vpop.permute.xlu0 %8766
        %8768 = vrot.lane.b32.xlu0 %v2060, 28
        %v8769 = vpop.permute.xlu0 %8768
        %8770 = vrot.lane.b32.xlu0 %v2061, 28
        %v8771 = vpop.permute.xlu0 %8770
        %8772 = vrot.lane.b32.xlu0 %v2062, 28
        %v8773 = vpop.permute.xlu0 %8772
        %8774 = vrot.lane.b32.xlu0 %v2063, 28
        %v8775 = vpop.permute.xlu0 %8774
        %8776 = vrot.lane.b32.xlu0 %v2064, 28
        %v8777 = vpop.permute.xlu0 %8776
        %8778 = vrot.lane.b32.xlu0 %v2065, 28
        %v8779 = vpop.permute.xlu0 %8778
        %8780 = vrot.lane.b32.xlu0 %v2066, 28
        %v8781 = vpop.permute.xlu0 %8780
        %8782 = vrot.lane.b32.xlu0 %v2067, 28
        %v8783 = vpop.permute.xlu0 %8782
        %8784 = vrot.lane.b32.xlu0 %v2068, 28
        %v8785 = vpop.permute.xlu0 %8784
        %8786 = vrot.lane.b32.xlu0 %v2069, 28
        %v8787 = vpop.permute.xlu0 %8786
        %8788 = vrot.lane.b32.xlu0 %v2070, 28
        %v8789 = vpop.permute.xlu0 %8788
        %8790 = vrot.lane.b32.xlu0 %v2071, 28
        %v8791 = vpop.permute.xlu0 %8790
        %8792 = vrot.lane.b32.xlu0 %v2072, 28
        %v8793 = vpop.permute.xlu0 %8792
        %8794 = vrot.lane.b32.xlu0 %v2073, 28
        %v8795 = vpop.permute.xlu0 %8794
        %8796 = vrot.lane.b32.xlu0 %v2074, 28
        %v8797 = vpop.permute.xlu0 %8796
        %8798 = vrot.lane.b32.xlu0 %v2075, 28
        %v8799 = vpop.permute.xlu0 %8798
        %8800 = vrot.lane.b32.xlu0 %v2076, 28
        %v8801 = vpop.permute.xlu0 %8800
        %8802 = vrot.lane.b32.xlu0 %v2077, 28
        %v8803 = vpop.permute.xlu0 %8802
        %8804 = vrot.lane.b32.xlu0 %v2078, 28
        %v8805 = vpop.permute.xlu0 %8804
        %8806 = vrot.lane.b32.xlu0 %v2079, 28
        %v8807 = vpop.permute.xlu0 %8806
        %8808 = vrot.lane.b32.xlu0 %v2080, 28
        %v8809 = vpop.permute.xlu0 %8808
        %8810 = vrot.lane.b32.xlu0 %v2081, 28
        %v8811 = vpop.permute.xlu0 %8810
        %8812 = vrot.lane.b32.xlu0 %v2082, 28
        %v8813 = vpop.permute.xlu0 %8812
        %8814 = vrot.lane.b32.xlu0 %v2083, 28
        %v8815 = vpop.permute.xlu0 %8814
        %8816 = vrot.lane.b32.xlu0 %v2084, 28
        %v8817 = vpop.permute.xlu0 %8816
        %8818 = vrot.lane.b32.xlu0 %v2085, 28
        %v8819 = vpop.permute.xlu0 %8818
        %8820 = vrot.lane.b32.xlu0 %v2086, 28
        %v8821 = vpop.permute.xlu0 %8820
        %8950 = vrot.lane.b32.xlu0 %v2088, 32
        %v8951 = vpop.permute.xlu0 %8950
        %8952 = vrot.lane.b32.xlu0 %v2089, 32
        %v8953 = vpop.permute.xlu0 %8952
        %8954 = vrot.lane.b32.xlu0 %v2090, 32
        %v8955 = vpop.permute.xlu0 %8954
        %8956 = vrot.lane.b32.xlu0 %v2091, 32
        %v8957 = vpop.permute.xlu0 %8956
        %8958 = vrot.lane.b32.xlu0 %v2092, 32
        %v8959 = vpop.permute.xlu0 %8958
        %8960 = vrot.lane.b32.xlu0 %v2093, 32
        %v8961 = vpop.permute.xlu0 %8960
        %8962 = vrot.lane.b32.xlu0 %v2094, 32
        %v8963 = vpop.permute.xlu0 %8962
        %8964 = vrot.lane.b32.xlu0 %v2095, 32
        %v8965 = vpop.permute.xlu0 %8964
        %8966 = vrot.lane.b32.xlu0 %v2096, 32
        %v8967 = vpop.permute.xlu0 %8966
        %8968 = vrot.lane.b32.xlu0 %v2097, 32
        %v8969 = vpop.permute.xlu0 %8968
        %8970 = vrot.lane.b32.xlu0 %v2098, 32
        %v8971 = vpop.permute.xlu0 %8970
        %8972 = vrot.lane.b32.xlu0 %v2099, 32
        %v8973 = vpop.permute.xlu0 %8972
        %8974 = vrot.lane.b32.xlu0 %v2100, 32
        %v8975 = vpop.permute.xlu0 %8974
        %8976 = vrot.lane.b32.xlu0 %v2101, 32
        %v8977 = vpop.permute.xlu0 %8976
        %8978 = vrot.lane.b32.xlu0 %v2102, 32
        %v8979 = vpop.permute.xlu0 %8978
        %8980 = vrot.lane.b32.xlu0 %v2103, 32
        %v8981 = vpop.permute.xlu0 %8980
        %8982 = vrot.lane.b32.xlu0 %v2104, 32
        %v8983 = vpop.permute.xlu0 %8982
        %8984 = vrot.lane.b32.xlu0 %v2105, 32
        %v8985 = vpop.permute.xlu0 %8984
        %8986 = vrot.lane.b32.xlu0 %v2106, 32
        %v8987 = vpop.permute.xlu0 %8986
        %8988 = vrot.lane.b32.xlu0 %v2107, 32
        %v8989 = vpop.permute.xlu0 %8988
        %8990 = vrot.lane.b32.xlu0 %v2108, 32
        %v8991 = vpop.permute.xlu0 %8990
        %8992 = vrot.lane.b32.xlu0 %v2109, 32
        %v8993 = vpop.permute.xlu0 %8992
        %8994 = vrot.lane.b32.xlu0 %v2110, 32
        %v8995 = vpop.permute.xlu0 %8994
        %8996 = vrot.lane.b32.xlu0 %v2111, 32
        %v8997 = vpop.permute.xlu0 %8996
        %8998 = vrot.lane.b32.xlu0 %v2112, 32
        %v8999 = vpop.permute.xlu0 %8998
        %9000 = vrot.lane.b32.xlu0 %v2113, 32
        %v9001 = vpop.permute.xlu0 %9000
        %9002 = vrot.lane.b32.xlu0 %v2114, 32
        %v9003 = vpop.permute.xlu0 %9002
        %9004 = vrot.lane.b32.xlu0 %v2115, 32
        %v9005 = vpop.permute.xlu0 %9004
        %9006 = vrot.lane.b32.xlu0 %v2116, 32
        %v9007 = vpop.permute.xlu0 %9006
        %9008 = vrot.lane.b32.xlu0 %v2117, 32
        %v9009 = vpop.permute.xlu0 %9008
        %9010 = vrot.lane.b32.xlu0 %v2118, 32
        %v9011 = vpop.permute.xlu0 %9010
        %9012 = vrot.lane.b32.xlu0 %v2119, 32
        %v9013 = vpop.permute.xlu0 %9012
        %9014 = vrot.lane.b32.xlu0 %v2120, 32
        %v9015 = vpop.permute.xlu0 %9014
        %9016 = vrot.lane.b32.xlu0 %v2121, 32
        %v9017 = vpop.permute.xlu0 %9016
        %9018 = vrot.lane.b32.xlu0 %v2122, 32
        %v9019 = vpop.permute.xlu0 %9018
        %9020 = vrot.lane.b32.xlu0 %v2123, 32
        %v9021 = vpop.permute.xlu0 %9020
        %9022 = vrot.lane.b32.xlu0 %v2124, 32
        %v9023 = vpop.permute.xlu0 %9022
        %9024 = vrot.lane.b32.xlu0 %v2125, 32
        %v9025 = vpop.permute.xlu0 %9024
        %9026 = vrot.lane.b32.xlu0 %v2126, 32
        %v9027 = vpop.permute.xlu0 %9026
        %9028 = vrot.lane.b32.xlu0 %v2127, 32
        %v9029 = vpop.permute.xlu0 %9028
        %9030 = vrot.lane.b32.xlu0 %v2128, 32
        %v9031 = vpop.permute.xlu0 %9030
        %9032 = vrot.lane.b32.xlu0 %v2129, 32
        %v9033 = vpop.permute.xlu0 %9032
        %9034 = vrot.lane.b32.xlu0 %v2130, 32
        %v9035 = vpop.permute.xlu0 %9034
        %9036 = vrot.lane.b32.xlu0 %v2131, 32
        %v9037 = vpop.permute.xlu0 %9036
        %9038 = vrot.lane.b32.xlu0 %v2132, 32
        %v9039 = vpop.permute.xlu0 %9038
        %9040 = vrot.lane.b32.xlu0 %v2133, 32
        %v9041 = vpop.permute.xlu0 %9040
        %9042 = vrot.lane.b32.xlu0 %v2134, 32
        %v9043 = vpop.permute.xlu0 %9042
        %9044 = vrot.lane.b32.xlu0 %v2135, 32
        %v9045 = vpop.permute.xlu0 %9044
        %9046 = vrot.lane.b32.xlu0 %v2136, 32
        %v9047 = vpop.permute.xlu0 %9046
        %9048 = vrot.lane.b32.xlu0 %v2137, 32
        %v9049 = vpop.permute.xlu0 %9048
        %9050 = vrot.lane.b32.xlu0 %v2138, 32
        %v9051 = vpop.permute.xlu0 %9050
        %9052 = vrot.lane.b32.xlu0 %v2139, 32
        %v9053 = vpop.permute.xlu0 %9052
        %9054 = vrot.lane.b32.xlu0 %v2140, 32
        %v9055 = vpop.permute.xlu0 %9054
        %9056 = vrot.lane.b32.xlu0 %v2141, 32
        %v9057 = vpop.permute.xlu0 %9056
        %9058 = vrot.lane.b32.xlu0 %v2142, 32
        %v9059 = vpop.permute.xlu0 %9058
        %9060 = vrot.lane.b32.xlu0 %v2143, 32
        %v9061 = vpop.permute.xlu0 %9060
        %9062 = vrot.lane.b32.xlu0 %v2144, 32
        %v9063 = vpop.permute.xlu0 %9062
        %9064 = vrot.lane.b32.xlu0 %v2145, 32
        %v9065 = vpop.permute.xlu0 %9064
        %9066 = vrot.lane.b32.xlu0 %v2146, 32
        %v9067 = vpop.permute.xlu0 %9066
        %9068 = vrot.lane.b32.xlu0 %v2147, 32
        %v9069 = vpop.permute.xlu0 %9068
        %9070 = vrot.lane.b32.xlu0 %v2148, 32
        %v9071 = vpop.permute.xlu0 %9070
        %9072 = vrot.lane.b32.xlu0 %v2149, 32
        %v9073 = vpop.permute.xlu0 %9072
        %9074 = vrot.lane.b32.xlu0 %v2150, 32
        %v9075 = vpop.permute.xlu0 %9074
        %9076 = vrot.lane.b32.xlu0 %v2151, 32
        %v9077 = vpop.permute.xlu0 %9076
        %9206 = vrot.lane.b32.xlu0 %v2152, 36
        %v9207 = vpop.permute.xlu0 %9206
        %9208 = vrot.lane.b32.xlu0 %v2153, 36
        %v9209 = vpop.permute.xlu0 %9208
        %9210 = vrot.lane.b32.xlu0 %v2154, 36
        %v9211 = vpop.permute.xlu0 %9210
        %9212 = vrot.lane.b32.xlu0 %v2155, 36
        %v9213 = vpop.permute.xlu0 %9212
        %9214 = vrot.lane.b32.xlu0 %v2156, 36
        %v9215 = vpop.permute.xlu0 %9214
        %9216 = vrot.lane.b32.xlu0 %v2157, 36
        %v9217 = vpop.permute.xlu0 %9216
        %9218 = vrot.lane.b32.xlu0 %v2158, 36
        %v9219 = vpop.permute.xlu0 %9218
        %9220 = vrot.lane.b32.xlu0 %v2159, 36
        %v9221 = vpop.permute.xlu0 %9220
        %9222 = vrot.lane.b32.xlu0 %v2160, 36
        %v9223 = vpop.permute.xlu0 %9222
        %9224 = vrot.lane.b32.xlu0 %v2161, 36
        %v9225 = vpop.permute.xlu0 %9224
        %9226 = vrot.lane.b32.xlu0 %v2162, 36
        %v9227 = vpop.permute.xlu0 %9226
        %9228 = vrot.lane.b32.xlu0 %v2163, 36
        %v9229 = vpop.permute.xlu0 %9228
        %9230 = vrot.lane.b32.xlu0 %v2164, 36
        %v9231 = vpop.permute.xlu0 %9230
        %9232 = vrot.lane.b32.xlu0 %v2165, 36
        %v9233 = vpop.permute.xlu0 %9232
        %9234 = vrot.lane.b32.xlu0 %v2166, 36
        %v9235 = vpop.permute.xlu0 %9234
        %9236 = vrot.lane.b32.xlu0 %v2167, 36
        %v9237 = vpop.permute.xlu0 %9236
        %9238 = vrot.lane.b32.xlu0 %v2168, 36
        %v9239 = vpop.permute.xlu0 %9238
        %9240 = vrot.lane.b32.xlu0 %v2169, 36
        %v9241 = vpop.permute.xlu0 %9240
        %9242 = vrot.lane.b32.xlu0 %v2170, 36
        %v9243 = vpop.permute.xlu0 %9242
        %9244 = vrot.lane.b32.xlu0 %v2171, 36
        %v9245 = vpop.permute.xlu0 %9244
        %9246 = vrot.lane.b32.xlu0 %v2172, 36
        %v9247 = vpop.permute.xlu0 %9246
        %9248 = vrot.lane.b32.xlu0 %v2173, 36
        %v9249 = vpop.permute.xlu0 %9248
        %9250 = vrot.lane.b32.xlu0 %v2174, 36
        %v9251 = vpop.permute.xlu0 %9250
        %9252 = vrot.lane.b32.xlu0 %v2175, 36
        %v9253 = vpop.permute.xlu0 %9252
        %9254 = vrot.lane.b32.xlu0 %v2176, 36
        %v9255 = vpop.permute.xlu0 %9254
        %9256 = vrot.lane.b32.xlu0 %v2177, 36
        %v9257 = vpop.permute.xlu0 %9256
        %9258 = vrot.lane.b32.xlu0 %v2178, 36
        %v9259 = vpop.permute.xlu0 %9258
        %9260 = vrot.lane.b32.xlu0 %v2179, 36
        %v9261 = vpop.permute.xlu0 %9260
        %9262 = vrot.lane.b32.xlu0 %v2180, 36
        %v9263 = vpop.permute.xlu0 %9262
        %9264 = vrot.lane.b32.xlu0 %v2181, 36
        %v9265 = vpop.permute.xlu0 %9264
        %9266 = vrot.lane.b32.xlu0 %v2182, 36
        %v9267 = vpop.permute.xlu0 %9266
        %9268 = vrot.lane.b32.xlu0 %v2183, 36
        %v9269 = vpop.permute.xlu0 %9268
        %9270 = vrot.lane.b32.xlu0 %v2184, 36
        %v9271 = vpop.permute.xlu0 %9270
        %9272 = vrot.lane.b32.xlu0 %v2185, 36
        %v9273 = vpop.permute.xlu0 %9272
        %9274 = vrot.lane.b32.xlu0 %v2186, 36
        %v9275 = vpop.permute.xlu0 %9274
        %9276 = vrot.lane.b32.xlu0 %v2187, 36
        %v9277 = vpop.permute.xlu0 %9276
        %9278 = vrot.lane.b32.xlu0 %v2188, 36
        %v9279 = vpop.permute.xlu0 %9278
        %9280 = vrot.lane.b32.xlu0 %v2189, 36
        %v9281 = vpop.permute.xlu0 %9280
        %9282 = vrot.lane.b32.xlu0 %v2190, 36
        %v9283 = vpop.permute.xlu0 %9282
        %9284 = vrot.lane.b32.xlu0 %v2191, 36
        %v9285 = vpop.permute.xlu0 %9284
        %9286 = vrot.lane.b32.xlu0 %v2192, 36
        %v9287 = vpop.permute.xlu0 %9286
        %9288 = vrot.lane.b32.xlu0 %v2193, 36
        %v9289 = vpop.permute.xlu0 %9288
        %9290 = vrot.lane.b32.xlu0 %v2194, 36
        %v9291 = vpop.permute.xlu0 %9290
        %9292 = vrot.lane.b32.xlu0 %v2195, 36
        %v9293 = vpop.permute.xlu0 %9292
        %9294 = vrot.lane.b32.xlu0 %v2196, 36
        %v9295 = vpop.permute.xlu0 %9294
        %9296 = vrot.lane.b32.xlu0 %v2197, 36
        %v9297 = vpop.permute.xlu0 %9296
        %9298 = vrot.lane.b32.xlu0 %v2198, 36
        %v9299 = vpop.permute.xlu0 %9298
        %9300 = vrot.lane.b32.xlu0 %v2199, 36
        %v9301 = vpop.permute.xlu0 %9300
        %9302 = vrot.lane.b32.xlu0 %v2200, 36
        %v9303 = vpop.permute.xlu0 %9302
        %9304 = vrot.lane.b32.xlu0 %v2201, 36
        %v9305 = vpop.permute.xlu0 %9304
        %9306 = vrot.lane.b32.xlu0 %v2202, 36
        %v9307 = vpop.permute.xlu0 %9306
        %9308 = vrot.lane.b32.xlu0 %v2203, 36
        %v9309 = vpop.permute.xlu0 %9308
        %9310 = vrot.lane.b32.xlu0 %v2204, 36
        %v9311 = vpop.permute.xlu0 %9310
        %9312 = vrot.lane.b32.xlu0 %v2205, 36
        %v9313 = vpop.permute.xlu0 %9312
        %9314 = vrot.lane.b32.xlu0 %v2206, 36
        %v9315 = vpop.permute.xlu0 %9314
        %9316 = vrot.lane.b32.xlu0 %v2207, 36
        %v9317 = vpop.permute.xlu0 %9316
        %9318 = vrot.lane.b32.xlu0 %v2208, 36
        %v9319 = vpop.permute.xlu0 %9318
        %9320 = vrot.lane.b32.xlu0 %v2209, 36
        %v9321 = vpop.permute.xlu0 %9320
        %9322 = vrot.lane.b32.xlu0 %v2210, 36
        %v9323 = vpop.permute.xlu0 %9322
        %9324 = vrot.lane.b32.xlu0 %v2211, 36
        %v9325 = vpop.permute.xlu0 %9324
        %9326 = vrot.lane.b32.xlu0 %v2212, 36
        %v9327 = vpop.permute.xlu0 %9326
        %9328 = vrot.lane.b32.xlu0 %v2213, 36
        %v9329 = vpop.permute.xlu0 %9328
        %9330 = vrot.lane.b32.xlu0 %v2214, 36
        %v9331 = vpop.permute.xlu0 %9330
        %9332 = vrot.lane.b32.xlu0 %v2215, 36
        %v9333 = vpop.permute.xlu0 %9332
        %9462 = vrot.lane.b32.xlu0 %v2216, 40
        %v9463 = vpop.permute.xlu0 %9462
        %9464 = vrot.lane.b32.xlu0 %v2217, 40
        %v9465 = vpop.permute.xlu0 %9464
        %9466 = vrot.lane.b32.xlu0 %v2218, 40
        %v9467 = vpop.permute.xlu0 %9466
        %9468 = vrot.lane.b32.xlu0 %v2219, 40
        %v9469 = vpop.permute.xlu0 %9468
        %9470 = vrot.lane.b32.xlu0 %v2220, 40
        %v9471 = vpop.permute.xlu0 %9470
        %9472 = vrot.lane.b32.xlu0 %v2221, 40
        %v9473 = vpop.permute.xlu0 %9472
        %9474 = vrot.lane.b32.xlu0 %v2222, 40
        %v9475 = vpop.permute.xlu0 %9474
        %9476 = vrot.lane.b32.xlu0 %v2223, 40
        %v9477 = vpop.permute.xlu0 %9476
        %9478 = vrot.lane.b32.xlu0 %v2224, 40
        %v9479 = vpop.permute.xlu0 %9478
        %9480 = vrot.lane.b32.xlu0 %v2225, 40
        %v9481 = vpop.permute.xlu0 %9480
        %9482 = vrot.lane.b32.xlu0 %v2226, 40
        %v9483 = vpop.permute.xlu0 %9482
        %9484 = vrot.lane.b32.xlu0 %v2227, 40
        %v9485 = vpop.permute.xlu0 %9484
        %9486 = vrot.lane.b32.xlu0 %v2228, 40
        %v9487 = vpop.permute.xlu0 %9486
        %9488 = vrot.lane.b32.xlu0 %v2229, 40
        %v9489 = vpop.permute.xlu0 %9488
        %9490 = vrot.lane.b32.xlu0 %v2230, 40
        %v9491 = vpop.permute.xlu0 %9490
        %9492 = vrot.lane.b32.xlu0 %v2231, 40
        %v9493 = vpop.permute.xlu0 %9492
        %9494 = vrot.lane.b32.xlu0 %v2232, 40
        %v9495 = vpop.permute.xlu0 %9494
        %9496 = vrot.lane.b32.xlu0 %v2233, 40
        %v9497 = vpop.permute.xlu0 %9496
        %9498 = vrot.lane.b32.xlu0 %v2234, 40
        %v9499 = vpop.permute.xlu0 %9498
        %9500 = vrot.lane.b32.xlu0 %v2235, 40
        %v9501 = vpop.permute.xlu0 %9500
        %9502 = vrot.lane.b32.xlu0 %v2236, 40
        %v9503 = vpop.permute.xlu0 %9502
        %9504 = vrot.lane.b32.xlu0 %v2237, 40
        %v9505 = vpop.permute.xlu0 %9504
        %9506 = vrot.lane.b32.xlu0 %v2238, 40
        %v9507 = vpop.permute.xlu0 %9506
        %9508 = vrot.lane.b32.xlu0 %v2239, 40
        %v9509 = vpop.permute.xlu0 %9508
        %9510 = vrot.lane.b32.xlu0 %v2240, 40
        %v9511 = vpop.permute.xlu0 %9510
        %9512 = vrot.lane.b32.xlu0 %v2241, 40
        %v9513 = vpop.permute.xlu0 %9512
        %9514 = vrot.lane.b32.xlu0 %v2242, 40
        %v9515 = vpop.permute.xlu0 %9514
        %9516 = vrot.lane.b32.xlu0 %v2243, 40
        %v9517 = vpop.permute.xlu0 %9516
        %9518 = vrot.lane.b32.xlu0 %v2244, 40
        %v9519 = vpop.permute.xlu0 %9518
        %9520 = vrot.lane.b32.xlu0 %v2245, 40
        %v9521 = vpop.permute.xlu0 %9520
        %9522 = vrot.lane.b32.xlu0 %v2246, 40
        %v9523 = vpop.permute.xlu0 %9522
        %9524 = vrot.lane.b32.xlu0 %v2247, 40
        %v9525 = vpop.permute.xlu0 %9524
        %9526 = vrot.lane.b32.xlu0 %v2248, 40
        %v9527 = vpop.permute.xlu0 %9526
        %9528 = vrot.lane.b32.xlu0 %v2249, 40
        %v9529 = vpop.permute.xlu0 %9528
        %9530 = vrot.lane.b32.xlu0 %v2250, 40
        %v9531 = vpop.permute.xlu0 %9530
        %9532 = vrot.lane.b32.xlu0 %v2251, 40
        %v9533 = vpop.permute.xlu0 %9532
        %9534 = vrot.lane.b32.xlu0 %v2252, 40
        %v9535 = vpop.permute.xlu0 %9534
        %9536 = vrot.lane.b32.xlu0 %v2253, 40
        %v9537 = vpop.permute.xlu0 %9536
        %9538 = vrot.lane.b32.xlu0 %v2254, 40
        %v9539 = vpop.permute.xlu0 %9538
        %9540 = vrot.lane.b32.xlu0 %v2255, 40
        %v9541 = vpop.permute.xlu0 %9540
        %9542 = vrot.lane.b32.xlu0 %v2256, 40
        %v9543 = vpop.permute.xlu0 %9542
        %9544 = vrot.lane.b32.xlu0 %v2257, 40
        %v9545 = vpop.permute.xlu0 %9544
        %9546 = vrot.lane.b32.xlu0 %v2258, 40
        %v9547 = vpop.permute.xlu0 %9546
        %9548 = vrot.lane.b32.xlu0 %v2259, 40
        %v9549 = vpop.permute.xlu0 %9548
        %9550 = vrot.lane.b32.xlu0 %v2260, 40
        %v9551 = vpop.permute.xlu0 %9550
        %9552 = vrot.lane.b32.xlu0 %v2261, 40
        %v9553 = vpop.permute.xlu0 %9552
        %9554 = vrot.lane.b32.xlu0 %v2262, 40
        %v9555 = vpop.permute.xlu0 %9554
        %9556 = vrot.lane.b32.xlu0 %v2263, 40
        %v9557 = vpop.permute.xlu0 %9556
        %9558 = vrot.lane.b32.xlu0 %v2264, 40
        %v9559 = vpop.permute.xlu0 %9558
        %9560 = vrot.lane.b32.xlu0 %v2265, 40
        %v9561 = vpop.permute.xlu0 %9560
        %9562 = vrot.lane.b32.xlu0 %v2266, 40
        %v9563 = vpop.permute.xlu0 %9562
        %9564 = vrot.lane.b32.xlu0 %v2267, 40
        %v9565 = vpop.permute.xlu0 %9564
        %9566 = vrot.lane.b32.xlu0 %v2268, 40
        %v9567 = vpop.permute.xlu0 %9566
        %9568 = vrot.lane.b32.xlu0 %v2269, 40
        %v9569 = vpop.permute.xlu0 %9568
        %9570 = vrot.lane.b32.xlu0 %v2270, 40
        %v9571 = vpop.permute.xlu0 %9570
        %9572 = vrot.lane.b32.xlu0 %v2271, 40
        %v9573 = vpop.permute.xlu0 %9572
        %9574 = vrot.lane.b32.xlu0 %v2272, 40
        %v9575 = vpop.permute.xlu0 %9574
        %9576 = vrot.lane.b32.xlu0 %v2273, 40
        %v9577 = vpop.permute.xlu0 %9576
        %9578 = vrot.lane.b32.xlu0 %v2274, 40
        %v9579 = vpop.permute.xlu0 %9578
        %9580 = vrot.lane.b32.xlu0 %v2275, 40
        %v9581 = vpop.permute.xlu0 %9580
        %9582 = vrot.lane.b32.xlu0 %v2276, 40
        %v9583 = vpop.permute.xlu0 %9582
        %9584 = vrot.lane.b32.xlu0 %v2277, 40
        %v9585 = vpop.permute.xlu0 %9584
        %9586 = vrot.lane.b32.xlu0 %v2278, 40
        %v9587 = vpop.permute.xlu0 %9586
        %9588 = vrot.lane.b32.xlu0 %v2279, 40
        %v9589 = vpop.permute.xlu0 %9588
        %v9654 = vsel %vm214, %v1573, %v7159
        %v9655 = vsel %vm214, %v1574, %v7161
        %v9656 = vsel %vm214, %v1575, %v7163
        %v9657 = vsel %vm214, %v1576, %v7165
        %v9658 = vsel %vm214, %v1577, %v7167
        %v9659 = vsel %vm214, %v1578, %v7169
        %v9660 = vsel %vm214, %v1579, %v7171
        %v9661 = vsel %vm214, %v1580, %v7173
        %v9662 = vsel %vm214, %v1581, %v7175
        %v9663 = vsel %vm214, %v1582, %v7177
        %v9664 = vsel %vm214, %v1583, %v7179
        %v9665 = vsel %vm214, %v1584, %v7181
        %v9666 = vsel %vm214, %v1585, %v7183
        %v9667 = vsel %vm214, %v1586, %v7185
        %v9668 = vsel %vm214, %v1587, %v7187
        %v9669 = vsel %vm214, %v1588, %v7189
        %v9670 = vsel %vm214, %v1589, %v7191
        %v9671 = vsel %vm214, %v1590, %v7193
        %v9672 = vsel %vm214, %v1591, %v7195
        %v9673 = vsel %vm214, %v1592, %v7197
        %v9674 = vsel %vm214, %v1593, %v7199
        %v9675 = vsel %vm214, %v1594, %v7201
        %v9676 = vsel %vm214, %v1595, %v7203
        %v9677 = vsel %vm214, %v1596, %v7205
        %v9678 = vsel %vm214, %v1597, %v7207
        %v9679 = vsel %vm214, %v1598, %v7209
        %v9680 = vsel %vm214, %v1599, %v7211
        %v9681 = vsel %vm214, %v1600, %v7213
        %v9682 = vsel %vm214, %v1601, %v7215
        %v9683 = vsel %vm214, %v1602, %v7217
        %v9684 = vsel %vm214, %v1603, %v7219
        %v9685 = vsel %vm214, %v1604, %v7221
        %v9686 = vsel %vm214, %v1605, %v7223
        %v9687 = vsel %vm214, %v1606, %v7225
        %v9688 = vsel %vm214, %v1607, %v7227
        %v9689 = vsel %vm214, %v1608, %v7229
        %v9690 = vsel %vm214, %v1609, %v7231
        %v9691 = vsel %vm214, %v1610, %v7233
        %v9692 = vsel %vm214, %v1611, %v7235
        %v9693 = vsel %vm214, %v1612, %v7237
        %v9694 = vsel %vm214, %v1613, %v7239
        %v9695 = vsel %vm214, %v1614, %v7241
        %v9696 = vsel %vm214, %v1615, %v7243
        %v9697 = vsel %vm214, %v1616, %v7245
        %v9698 = vsel %vm214, %v1617, %v7247
        %v9699 = vsel %vm214, %v1618, %v7249
        %v9700 = vsel %vm214, %v1619, %v7251
        %v9701 = vsel %vm214, %v1620, %v7253
        %v9702 = vsel %vm214, %v1621, %v7255
        %v9703 = vsel %vm214, %v1622, %v7257
        %v9704 = vsel %vm214, %v1623, %v7259
        %v9705 = vsel %vm214, %v1624, %v7261
        %v9706 = vsel %vm214, %v1625, %v7263
        %v9707 = vsel %vm214, %v1626, %v7265
        %v9708 = vsel %vm214, %v1627, %v7267
        %v9709 = vsel %vm214, %v1628, %v7269
        %v9710 = vsel %vm214, %v1629, %v7271
        %v9711 = vsel %vm214, %v1630, %v7273
        %v9712 = vsel %vm214, %v1631, %v7275
        %v9713 = vsel %vm214, %v1632, %v7277
        %v9714 = vsel %vm214, %v1633, %v7279
        %v9715 = vsel %vm214, %v1634, %v7281
        %v9716 = vsel %vm214, %v1635, %v7283
        %v9717 = vsel %vm214, %v1636, %v7285
        %v9718 = vsel %vm6184, %v9654, %v7415
        %v9719 = vsel %vm6184, %v9655, %v7417
        %v9720 = vsel %vm6184, %v9656, %v7419
        %v9721 = vsel %vm6184, %v9657, %v7421
        %v9722 = vsel %vm6184, %v9658, %v7423
        %v9723 = vsel %vm6184, %v9659, %v7425
        %v9724 = vsel %vm6184, %v9660, %v7427
        %v9725 = vsel %vm6184, %v9661, %v7429
        %v9726 = vsel %vm6184, %v9662, %v7431
        %v9727 = vsel %vm6184, %v9663, %v7433
        %v9728 = vsel %vm6184, %v9664, %v7435
        %v9729 = vsel %vm6184, %v9665, %v7437
        %v9730 = vsel %vm6184, %v9666, %v7439
        %v9731 = vsel %vm6184, %v9667, %v7441
        %v9732 = vsel %vm6184, %v9668, %v7443
        %v9733 = vsel %vm6184, %v9669, %v7445
        %v9734 = vsel %vm6184, %v9670, %v7447
        %v9735 = vsel %vm6184, %v9671, %v7449
        %v9736 = vsel %vm6184, %v9672, %v7451
        %v9737 = vsel %vm6184, %v9673, %v7453
        %v9738 = vsel %vm6184, %v9674, %v7455
        %v9739 = vsel %vm6184, %v9675, %v7457
        %v9740 = vsel %vm6184, %v9676, %v7459
        %v9741 = vsel %vm6184, %v9677, %v7461
        %v9742 = vsel %vm6184, %v9678, %v7463
        %v9743 = vsel %vm6184, %v9679, %v7465
        %v9744 = vsel %vm6184, %v9680, %v7467
        %v9745 = vsel %vm6184, %v9681, %v7469
        %v9746 = vsel %vm6184, %v9682, %v7471
        %v9747 = vsel %vm6184, %v9683, %v7473
        %v9748 = vsel %vm6184, %v9684, %v7475
        %v9749 = vsel %vm6184, %v9685, %v7477
        %v9750 = vsel %vm6184, %v9686, %v7479
        %v9751 = vsel %vm6184, %v9687, %v7481
        %v9752 = vsel %vm6184, %v9688, %v7483
        %v9753 = vsel %vm6184, %v9689, %v7485
        %v9754 = vsel %vm6184, %v9690, %v7487
        %v9755 = vsel %vm6184, %v9691, %v7489
        %v9756 = vsel %vm6184, %v9692, %v7491
        %v9757 = vsel %vm6184, %v9693, %v7493
        %v9758 = vsel %vm6184, %v9694, %v7495
        %v9759 = vsel %vm6184, %v9695, %v7497
        %v9760 = vsel %vm6184, %v9696, %v7499
        %v9761 = vsel %vm6184, %v9697, %v7501
        %v9762 = vsel %vm6184, %v9698, %v7503
        %v9763 = vsel %vm6184, %v9699, %v7505
        %v9764 = vsel %vm6184, %v9700, %v7507
        %v9765 = vsel %vm6184, %v9701, %v7509
        %v9766 = vsel %vm6184, %v9702, %v7511
        %v9767 = vsel %vm6184, %v9703, %v7513
        %v9768 = vsel %vm6184, %v9704, %v7515
        %v9769 = vsel %vm6184, %v9705, %v7517
        %v9770 = vsel %vm6184, %v9706, %v7519
        %v9771 = vsel %vm6184, %v9707, %v7521
        %v9772 = vsel %vm6184, %v9708, %v7523
        %v9773 = vsel %vm6184, %v9709, %v7525
        %v9774 = vsel %vm6184, %v9710, %v7527
        %v9775 = vsel %vm6184, %v9711, %v7529
        %v9776 = vsel %vm6184, %v9712, %v7531
        %v9777 = vsel %vm6184, %v9713, %v7533
        %v9778 = vsel %vm6184, %v9714, %v7535
        %v9779 = vsel %vm6184, %v9715, %v7537
        %v9780 = vsel %vm6184, %v9716, %v7539
        %v9781 = vsel %vm6184, %v9717, %v7541
        %v9782 = vsel %vm6249, %v9718, %v7671
        %v9783 = vsel %vm6249, %v9719, %v7673
        %v9784 = vsel %vm6249, %v9720, %v7675
        %v9785 = vsel %vm6249, %v9721, %v7677
        %v9786 = vsel %vm6249, %v9722, %v7679
        %v9787 = vsel %vm6249, %v9723, %v7681
        %v9788 = vsel %vm6249, %v9724, %v7683
        %v9789 = vsel %vm6249, %v9725, %v7685
        %v9790 = vsel %vm6249, %v9726, %v7687
        %v9791 = vsel %vm6249, %v9727, %v7689
        %v9792 = vsel %vm6249, %v9728, %v7691
        %v9793 = vsel %vm6249, %v9729, %v7693
        %v9794 = vsel %vm6249, %v9730, %v7695
        %v9795 = vsel %vm6249, %v9731, %v7697
        %v9796 = vsel %vm6249, %v9732, %v7699
        %v9797 = vsel %vm6249, %v9733, %v7701
        %v9798 = vsel %vm6249, %v9734, %v7703
        %v9799 = vsel %vm6249, %v9735, %v7705
        %v9800 = vsel %vm6249, %v9736, %v7707
        %v9801 = vsel %vm6249, %v9737, %v7709
        %v9802 = vsel %vm6249, %v9738, %v7711
        %v9803 = vsel %vm6249, %v9739, %v7713
        %v9804 = vsel %vm6249, %v9740, %v7715
        %v9805 = vsel %vm6249, %v9741, %v7717
        %v9806 = vsel %vm6249, %v9742, %v7719
        %v9807 = vsel %vm6249, %v9743, %v7721
        %v9808 = vsel %vm6249, %v9744, %v7723
        %v9809 = vsel %vm6249, %v9745, %v7725
        %v9810 = vsel %vm6249, %v9746, %v7727
        %v9811 = vsel %vm6249, %v9747, %v7729
        %v9812 = vsel %vm6249, %v9748, %v7731
        %v9813 = vsel %vm6249, %v9749, %v7733
        %v9814 = vsel %vm6249, %v9750, %v7735
        %v9815 = vsel %vm6249, %v9751, %v7737
        %v9816 = vsel %vm6249, %v9752, %v7739
        %v9817 = vsel %vm6249, %v9753, %v7741
        %v9818 = vsel %vm6249, %v9754, %v7743
        %v9819 = vsel %vm6249, %v9755, %v7745
        %v9820 = vsel %vm6249, %v9756, %v7747
        %v9821 = vsel %vm6249, %v9757, %v7749
        %v9822 = vsel %vm6249, %v9758, %v7751
        %v9823 = vsel %vm6249, %v9759, %v7753
        %v9824 = vsel %vm6249, %v9760, %v7755
        %v9825 = vsel %vm6249, %v9761, %v7757
        %v9826 = vsel %vm6249, %v9762, %v7759
        %v9827 = vsel %vm6249, %v9763, %v7761
        %v9828 = vsel %vm6249, %v9764, %v7763
        %v9829 = vsel %vm6249, %v9765, %v7765
        %v9830 = vsel %vm6249, %v9766, %v7767
        %v9831 = vsel %vm6249, %v9767, %v7769
        %v9832 = vsel %vm6249, %v9768, %v7771
        %v9833 = vsel %vm6249, %v9769, %v7773
        %v9834 = vsel %vm6249, %v9770, %v7775
        %v9835 = vsel %vm6249, %v9771, %v7777
        %v9836 = vsel %vm6249, %v9772, %v7779
        %v9837 = vsel %vm6249, %v9773, %v7781
        %v9838 = vsel %vm6249, %v9774, %v7783
        %v9839 = vsel %vm6249, %v9775, %v7785
        %v9840 = vsel %vm6249, %v9776, %v7787
        %v9841 = vsel %vm6249, %v9777, %v7789
        %v9842 = vsel %vm6249, %v9778, %v7791
        %v9843 = vsel %vm6249, %v9779, %v7793
        %v9844 = vsel %vm6249, %v9780, %v7795
        %v9845 = vsel %vm6249, %v9781, %v7797
        %v9846 = vsel %vm6314, %v9782, %v7927
        %v9847 = vsel %vm6314, %v9783, %v7929
        %v9848 = vsel %vm6314, %v9784, %v7931
        %v9849 = vsel %vm6314, %v9785, %v7933
        %v9850 = vsel %vm6314, %v9786, %v7935
        %v9851 = vsel %vm6314, %v9787, %v7937
        %v9852 = vsel %vm6314, %v9788, %v7939
        %v9853 = vsel %vm6314, %v9789, %v7941
        %v9854 = vsel %vm6314, %v9790, %v7943
        %v9855 = vsel %vm6314, %v9791, %v7945
        %v9856 = vsel %vm6314, %v9792, %v7947
        %v9857 = vsel %vm6314, %v9793, %v7949
        %v9858 = vsel %vm6314, %v9794, %v7951
        %v9859 = vsel %vm6314, %v9795, %v7953
        %v9860 = vsel %vm6314, %v9796, %v7955
        %v9861 = vsel %vm6314, %v9797, %v7957
        %v9862 = vsel %vm6314, %v9798, %v7959
        %v9863 = vsel %vm6314, %v9799, %v7961
        %v9864 = vsel %vm6314, %v9800, %v7963
        %v9865 = vsel %vm6314, %v9801, %v7965
        %v9866 = vsel %vm6314, %v9802, %v7967
        %v9867 = vsel %vm6314, %v9803, %v7969
        %v9868 = vsel %vm6314, %v9804, %v7971
        %v9869 = vsel %vm6314, %v9805, %v7973
        %v9870 = vsel %vm6314, %v9806, %v7975
        %v9871 = vsel %vm6314, %v9807, %v7977
        %v9872 = vsel %vm6314, %v9808, %v7979
        %v9873 = vsel %vm6314, %v9809, %v7981
        %v9874 = vsel %vm6314, %v9810, %v7983
        %v9875 = vsel %vm6314, %v9811, %v7985
        %v9876 = vsel %vm6314, %v9812, %v7987
        %v9877 = vsel %vm6314, %v9813, %v7989
        %v9878 = vsel %vm6314, %v9814, %v7991
        %v9879 = vsel %vm6314, %v9815, %v7993
        %v9880 = vsel %vm6314, %v9816, %v7995
        %v9881 = vsel %vm6314, %v9817, %v7997
        %v9882 = vsel %vm6314, %v9818, %v7999
        %v9883 = vsel %vm6314, %v9819, %v8001
        %v9884 = vsel %vm6314, %v9820, %v8003
        %v9885 = vsel %vm6314, %v9821, %v8005
        %v9886 = vsel %vm6314, %v9822, %v8007
        %v9887 = vsel %vm6314, %v9823, %v8009
        %v9888 = vsel %vm6314, %v9824, %v8011
        %v9889 = vsel %vm6314, %v9825, %v8013
        %v9890 = vsel %vm6314, %v9826, %v8015
        %v9891 = vsel %vm6314, %v9827, %v8017
        %v9892 = vsel %vm6314, %v9828, %v8019
        %v9893 = vsel %vm6314, %v9829, %v8021
        %v9894 = vsel %vm6314, %v9830, %v8023
        %v9895 = vsel %vm6314, %v9831, %v8025
        %v9896 = vsel %vm6314, %v9832, %v8027
        %v9897 = vsel %vm6314, %v9833, %v8029
        %v9898 = vsel %vm6314, %v9834, %v8031
        %v9899 = vsel %vm6314, %v9835, %v8033
        %v9900 = vsel %vm6314, %v9836, %v8035
        %v9901 = vsel %vm6314, %v9837, %v8037
        %v9902 = vsel %vm6314, %v9838, %v8039
        %v9903 = vsel %vm6314, %v9839, %v8041
        %v9904 = vsel %vm6314, %v9840, %v8043
        %v9905 = vsel %vm6314, %v9841, %v8045
        %v9906 = vsel %vm6314, %v9842, %v8047
        %v9907 = vsel %vm6314, %v9843, %v8049
        %v9908 = vsel %vm6314, %v9844, %v8051
        %v9909 = vsel %vm6314, %v9845, %v8053
        %v9910 = vsel %vm6379, %v9846, %v8183
        %v9911 = vsel %vm6379, %v9847, %v8185
        %v9912 = vsel %vm6379, %v9848, %v8187
        %v9913 = vsel %vm6379, %v9849, %v8189
        %v9914 = vsel %vm6379, %v9850, %v8191
        %v9915 = vsel %vm6379, %v9851, %v8193
        %v9916 = vsel %vm6379, %v9852, %v8195
        %v9917 = vsel %vm6379, %v9853, %v8197
        %v9918 = vsel %vm6379, %v9854, %v8199
        %v9919 = vsel %vm6379, %v9855, %v8201
        %v9920 = vsel %vm6379, %v9856, %v8203
        %v9921 = vsel %vm6379, %v9857, %v8205
        %v9922 = vsel %vm6379, %v9858, %v8207
        %v9923 = vsel %vm6379, %v9859, %v8209
        %v9924 = vsel %vm6379, %v9860, %v8211
        %v9925 = vsel %vm6379, %v9861, %v8213
        %v9926 = vsel %vm6379, %v9862, %v8215
        %v9927 = vsel %vm6379, %v9863, %v8217
        %v9928 = vsel %vm6379, %v9864, %v8219
        %v9929 = vsel %vm6379, %v9865, %v8221
        %v9930 = vsel %vm6379, %v9866, %v8223
        %v9931 = vsel %vm6379, %v9867, %v8225
        %v9932 = vsel %vm6379, %v9868, %v8227
        %v9933 = vsel %vm6379, %v9869, %v8229
        %v9934 = vsel %vm6379, %v9870, %v8231
        %v9935 = vsel %vm6379, %v9871, %v8233
        %v9936 = vsel %vm6379, %v9872, %v8235
        %v9937 = vsel %vm6379, %v9873, %v8237
        %v9938 = vsel %vm6379, %v9874, %v8239
        %v9939 = vsel %vm6379, %v9875, %v8241
        %v9940 = vsel %vm6379, %v9876, %v8243
        %v9941 = vsel %vm6379, %v9877, %v8245
        %v9942 = vsel %vm6379, %v9878, %v8247
        %v9943 = vsel %vm6379, %v9879, %v8249
        %v9944 = vsel %vm6379, %v9880, %v8251
        %v9945 = vsel %vm6379, %v9881, %v8253
        %v9946 = vsel %vm6379, %v9882, %v8255
        %v9947 = vsel %vm6379, %v9883, %v8257
        %v9948 = vsel %vm6379, %v9884, %v8259
        %v9949 = vsel %vm6379, %v9885, %v8261
        %v9950 = vsel %vm6379, %v9886, %v8263
        %v9951 = vsel %vm6379, %v9887, %v8265
        %v9952 = vsel %vm6379, %v9888, %v8267
        %v9953 = vsel %vm6379, %v9889, %v8269
        %v9954 = vsel %vm6379, %v9890, %v8271
        %v9955 = vsel %vm6379, %v9891, %v8273
        %v9956 = vsel %vm6379, %v9892, %v8275
        %v9957 = vsel %vm6379, %v9893, %v8277
        %v9958 = vsel %vm6379, %v9894, %v8279
        %v9959 = vsel %vm6379, %v9895, %v8281
        %v9960 = vsel %vm6379, %v9896, %v8283
        %v9961 = vsel %vm6379, %v9897, %v8285
        %v9962 = vsel %vm6379, %v9898, %v8287
        %v9963 = vsel %vm6379, %v9899, %v8289
        %v9964 = vsel %vm6379, %v9900, %v8291
        %v9965 = vsel %vm6379, %v9901, %v8293
        %v9966 = vsel %vm6379, %v9902, %v8295
        %v9967 = vsel %vm6379, %v9903, %v8297
        %v9968 = vsel %vm6379, %v9904, %v8299
        %v9969 = vsel %vm6379, %v9905, %v8301
        %v9970 = vsel %vm6379, %v9906, %v8303
        %v9971 = vsel %vm6379, %v9907, %v8305
        %v9972 = vsel %vm6379, %v9908, %v8307
        %v9973 = vsel %vm6379, %v9909, %v8309
        %v9974 = vsel %vm6444, %v9910, %v8439
        %v9975 = vsel %vm6444, %v9911, %v8441
        %v9976 = vsel %vm6444, %v9912, %v8443
        %v9977 = vsel %vm6444, %v9913, %v8445
        %v9978 = vsel %vm6444, %v9914, %v8447
        %v9979 = vsel %vm6444, %v9915, %v8449
        %v9980 = vsel %vm6444, %v9916, %v8451
        %v9981 = vsel %vm6444, %v9917, %v8453
        %v9982 = vsel %vm6444, %v9918, %v8455
        %v9983 = vsel %vm6444, %v9919, %v8457
        %v9984 = vsel %vm6444, %v9920, %v8459
        %v9985 = vsel %vm6444, %v9921, %v8461
        %v9986 = vsel %vm6444, %v9922, %v8463
        %v9987 = vsel %vm6444, %v9923, %v8465
        %v9988 = vsel %vm6444, %v9924, %v8467
        %v9989 = vsel %vm6444, %v9925, %v8469
        %v9990 = vsel %vm6444, %v9926, %v8471
        %v9991 = vsel %vm6444, %v9927, %v8473
        %v9992 = vsel %vm6444, %v9928, %v8475
        %v9993 = vsel %vm6444, %v9929, %v8477
        %v9994 = vsel %vm6444, %v9930, %v8479
        %v9995 = vsel %vm6444, %v9931, %v8481
        %v9996 = vsel %vm6444, %v9932, %v8483
        %v9997 = vsel %vm6444, %v9933, %v8485
        %v9998 = vsel %vm6444, %v9934, %v8487
        %v9999 = vsel %vm6444, %v9935, %v8489
        %v10000 = vsel %vm6444, %v9936, %v8491
        %v10001 = vsel %vm6444, %v9937, %v8493
        %v10002 = vsel %vm6444, %v9938, %v8495
        %v10003 = vsel %vm6444, %v9939, %v8497
        %v10004 = vsel %vm6444, %v9940, %v8499
        %v10005 = vsel %vm6444, %v9941, %v8501
        %v10006 = vsel %vm6444, %v9942, %v8503
        %v10007 = vsel %vm6444, %v9943, %v8505
        %v10008 = vsel %vm6444, %v9944, %v8507
        %v10009 = vsel %vm6444, %v9945, %v8509
        %v10010 = vsel %vm6444, %v9946, %v8511
        %v10011 = vsel %vm6444, %v9947, %v8513
        %v10012 = vsel %vm6444, %v9948, %v8515
        %v10013 = vsel %vm6444, %v9949, %v8517
        %v10014 = vsel %vm6444, %v9950, %v8519
        %v10015 = vsel %vm6444, %v9951, %v8521
        %v10016 = vsel %vm6444, %v9952, %v8523
        %v10017 = vsel %vm6444, %v9953, %v8525
        %v10018 = vsel %vm6444, %v9954, %v8527
        %v10019 = vsel %vm6444, %v9955, %v8529
        %v10020 = vsel %vm6444, %v9956, %v8531
        %v10021 = vsel %vm6444, %v9957, %v8533
        %v10022 = vsel %vm6444, %v9958, %v8535
        %v10023 = vsel %vm6444, %v9959, %v8537
        %v10024 = vsel %vm6444, %v9960, %v8539
        %v10025 = vsel %vm6444, %v9961, %v8541
        %v10026 = vsel %vm6444, %v9962, %v8543
        %v10027 = vsel %vm6444, %v9963, %v8545
        %v10028 = vsel %vm6444, %v9964, %v8547
        %v10029 = vsel %vm6444, %v9965, %v8549
        %v10030 = vsel %vm6444, %v9966, %v8551
        %v10031 = vsel %vm6444, %v9967, %v8553
        %v10032 = vsel %vm6444, %v9968, %v8555
        %v10033 = vsel %vm6444, %v9969, %v8557
        %v10034 = vsel %vm6444, %v9970, %v8559
        %v10035 = vsel %vm6444, %v9971, %v8561
        %v10036 = vsel %vm6444, %v9972, %v8563
        %v10037 = vsel %vm6444, %v9973, %v8565
        %v10038 = vsel %vm6509, %v9974, %v8695
        %v10039 = vsel %vm6509, %v9975, %v8697
        %v10040 = vsel %vm6509, %v9976, %v8699
        %v10041 = vsel %vm6509, %v9977, %v8701
        %v10042 = vsel %vm6509, %v9978, %v8703
        %v10043 = vsel %vm6509, %v9979, %v8705
        %v10044 = vsel %vm6509, %v9980, %v8707
        %v10045 = vsel %vm6509, %v9981, %v8709
        %v10046 = vsel %vm6509, %v9982, %v8711
        %v10047 = vsel %vm6509, %v9983, %v8713
        %v10048 = vsel %vm6509, %v9984, %v8715
        %v10049 = vsel %vm6509, %v9985, %v8717
        %v10050 = vsel %vm6509, %v9986, %v8719
        %v10051 = vsel %vm6509, %v9987, %v8721
        %v10052 = vsel %vm6509, %v9988, %v8723
        %v10053 = vsel %vm6509, %v9989, %v8725
        %v10054 = vsel %vm6509, %v9990, %v8727
        %v10055 = vsel %vm6509, %v9991, %v8729
        %v10056 = vsel %vm6509, %v9992, %v8731
        %v10057 = vsel %vm6509, %v9993, %v8733
        %v10058 = vsel %vm6509, %v9994, %v8735
        %v10059 = vsel %vm6509, %v9995, %v8737
        %v10060 = vsel %vm6509, %v9996, %v8739
        %v10061 = vsel %vm6509, %v9997, %v8741
        %v10062 = vsel %vm6509, %v9998, %v8743
        %v10063 = vsel %vm6509, %v9999, %v8745
        %v10064 = vsel %vm6509, %v10000, %v8747
        %v10065 = vsel %vm6509, %v10001, %v8749
        %v10066 = vsel %vm6509, %v10002, %v8751
        %v10067 = vsel %vm6509, %v10003, %v8753
        %v10068 = vsel %vm6509, %v10004, %v8755
        %v10069 = vsel %vm6509, %v10005, %v8757
        %v10070 = vsel %vm6509, %v10006, %v8759
        %v10071 = vsel %vm6509, %v10007, %v8761
        %v10072 = vsel %vm6509, %v10008, %v8763
        %v10073 = vsel %vm6509, %v10009, %v8765
        %v10074 = vsel %vm6509, %v10010, %v8767
        %v10075 = vsel %vm6509, %v10011, %v8769
        %v10076 = vsel %vm6509, %v10012, %v8771
        %v10077 = vsel %vm6509, %v10013, %v8773
        %v10078 = vsel %vm6509, %v10014, %v8775
        %v10079 = vsel %vm6509, %v10015, %v8777
        %v10080 = vsel %vm6509, %v10016, %v8779
        %v10081 = vsel %vm6509, %v10017, %v8781
        %v10082 = vsel %vm6509, %v10018, %v8783
        %v10083 = vsel %vm6509, %v10019, %v8785
        %v10084 = vsel %vm6509, %v10020, %v8787
        %v10085 = vsel %vm6509, %v10021, %v8789
        %v10086 = vsel %vm6509, %v10022, %v8791
        %v10087 = vsel %vm6509, %v10023, %v8793
        %v10088 = vsel %vm6509, %v10024, %v8795
        %v10089 = vsel %vm6509, %v10025, %v8797
        %v10090 = vsel %vm6509, %v10026, %v8799
        %v10091 = vsel %vm6509, %v10027, %v8801
        %v10092 = vsel %vm6509, %v10028, %v8803
        %v10093 = vsel %vm6509, %v10029, %v8805
        %v10094 = vsel %vm6509, %v10030, %v8807
        %v10095 = vsel %vm6509, %v10031, %v8809
        %v10096 = vsel %vm6509, %v10032, %v8811
        %v10097 = vsel %vm6509, %v10033, %v8813
        %v10098 = vsel %vm6509, %v10034, %v8815
        %v10099 = vsel %vm6509, %v10035, %v8817
        %v10100 = vsel %vm6509, %v10036, %v8819
        %v10101 = vsel %vm6509, %v10037, %v8821
        %v10102 = vsel %vm6574, %v10038, %v8951
        %v10103 = vsel %vm6574, %v10039, %v8953
        %v10104 = vsel %vm6574, %v10040, %v8955
        %v10105 = vsel %vm6574, %v10041, %v8957
        %v10106 = vsel %vm6574, %v10042, %v8959
        %v10107 = vsel %vm6574, %v10043, %v8961
        %v10108 = vsel %vm6574, %v10044, %v8963
        %v10109 = vsel %vm6574, %v10045, %v8965
        %v10110 = vsel %vm6574, %v10046, %v8967
        %v10111 = vsel %vm6574, %v10047, %v8969
        %v10112 = vsel %vm6574, %v10048, %v8971
        %v10113 = vsel %vm6574, %v10049, %v8973
        %v10114 = vsel %vm6574, %v10050, %v8975
        %v10115 = vsel %vm6574, %v10051, %v8977
        %v10116 = vsel %vm6574, %v10052, %v8979
        %v10117 = vsel %vm6574, %v10053, %v8981
        %v10118 = vsel %vm6574, %v10054, %v8983
        %v10119 = vsel %vm6574, %v10055, %v8985
        %v10120 = vsel %vm6574, %v10056, %v8987
        %v10121 = vsel %vm6574, %v10057, %v8989
        %v10122 = vsel %vm6574, %v10058, %v8991
        %v10123 = vsel %vm6574, %v10059, %v8993
        %v10124 = vsel %vm6574, %v10060, %v8995
        %v10125 = vsel %vm6574, %v10061, %v8997
        %v10126 = vsel %vm6574, %v10062, %v8999
        %v10127 = vsel %vm6574, %v10063, %v9001
        %v10128 = vsel %vm6574, %v10064, %v9003
        %v10129 = vsel %vm6574, %v10065, %v9005
        %v10130 = vsel %vm6574, %v10066, %v9007
        %v10131 = vsel %vm6574, %v10067, %v9009
        %v10132 = vsel %vm6574, %v10068, %v9011
        %v10133 = vsel %vm6574, %v10069, %v9013
        %v10134 = vsel %vm6574, %v10070, %v9015
        %v10135 = vsel %vm6574, %v10071, %v9017
        %v10136 = vsel %vm6574, %v10072, %v9019
        %v10137 = vsel %vm6574, %v10073, %v9021
        %v10138 = vsel %vm6574, %v10074, %v9023
        %v10139 = vsel %vm6574, %v10075, %v9025
        %v10140 = vsel %vm6574, %v10076, %v9027
        %v10141 = vsel %vm6574, %v10077, %v9029
        %v10142 = vsel %vm6574, %v10078, %v9031
        %v10143 = vsel %vm6574, %v10079, %v9033
        %v10144 = vsel %vm6574, %v10080, %v9035
        %v10145 = vsel %vm6574, %v10081, %v9037
        %v10146 = vsel %vm6574, %v10082, %v9039
        %v10147 = vsel %vm6574, %v10083, %v9041
        %v10148 = vsel %vm6574, %v10084, %v9043
        %v10149 = vsel %vm6574, %v10085, %v9045
        %v10150 = vsel %vm6574, %v10086, %v9047
        %v10151 = vsel %vm6574, %v10087, %v9049
        %v10152 = vsel %vm6574, %v10088, %v9051
        %v10153 = vsel %vm6574, %v10089, %v9053
        %v10154 = vsel %vm6574, %v10090, %v9055
        %v10155 = vsel %vm6574, %v10091, %v9057
        %v10156 = vsel %vm6574, %v10092, %v9059
        %v10157 = vsel %vm6574, %v10093, %v9061
        %v10158 = vsel %vm6574, %v10094, %v9063
        %v10159 = vsel %vm6574, %v10095, %v9065
        %v10160 = vsel %vm6574, %v10096, %v9067
        %v10161 = vsel %vm6574, %v10097, %v9069
        %v10162 = vsel %vm6574, %v10098, %v9071
        %v10163 = vsel %vm6574, %v10099, %v9073
        %v10164 = vsel %vm6574, %v10100, %v9075
        %v10165 = vsel %vm6574, %v10101, %v9077
        %v10166 = vsel %vm6639, %v10102, %v9207
        %v10167 = vsel %vm6639, %v10103, %v9209
        %v10168 = vsel %vm6639, %v10104, %v9211
        %v10169 = vsel %vm6639, %v10105, %v9213
        %v10170 = vsel %vm6639, %v10106, %v9215
        %v10171 = vsel %vm6639, %v10107, %v9217
        %v10172 = vsel %vm6639, %v10108, %v9219
        %v10173 = vsel %vm6639, %v10109, %v9221
        %v10174 = vsel %vm6639, %v10110, %v9223
        %v10175 = vsel %vm6639, %v10111, %v9225
        %v10176 = vsel %vm6639, %v10112, %v9227
        %v10177 = vsel %vm6639, %v10113, %v9229
        %v10178 = vsel %vm6639, %v10114, %v9231
        %v10179 = vsel %vm6639, %v10115, %v9233
        %v10180 = vsel %vm6639, %v10116, %v9235
        %v10181 = vsel %vm6639, %v10117, %v9237
        %v10182 = vsel %vm6639, %v10118, %v9239
        %v10183 = vsel %vm6639, %v10119, %v9241
        %v10184 = vsel %vm6639, %v10120, %v9243
        %v10185 = vsel %vm6639, %v10121, %v9245
        %v10186 = vsel %vm6639, %v10122, %v9247
        %v10187 = vsel %vm6639, %v10123, %v9249
        %v10188 = vsel %vm6639, %v10124, %v9251
        %v10189 = vsel %vm6639, %v10125, %v9253
        %v10190 = vsel %vm6639, %v10126, %v9255
        %v10191 = vsel %vm6639, %v10127, %v9257
        %v10192 = vsel %vm6639, %v10128, %v9259
        %v10193 = vsel %vm6639, %v10129, %v9261
        %v10194 = vsel %vm6639, %v10130, %v9263
        %v10195 = vsel %vm6639, %v10131, %v9265
        %v10196 = vsel %vm6639, %v10132, %v9267
        %v10197 = vsel %vm6639, %v10133, %v9269
        %v10198 = vsel %vm6639, %v10134, %v9271
        %v10199 = vsel %vm6639, %v10135, %v9273
        %v10200 = vsel %vm6639, %v10136, %v9275
        %v10201 = vsel %vm6639, %v10137, %v9277
        %v10202 = vsel %vm6639, %v10138, %v9279
        %v10203 = vsel %vm6639, %v10139, %v9281
        %v10204 = vsel %vm6639, %v10140, %v9283
        %v10205 = vsel %vm6639, %v10141, %v9285
        %v10206 = vsel %vm6639, %v10142, %v9287
        %v10207 = vsel %vm6639, %v10143, %v9289
        %v10208 = vsel %vm6639, %v10144, %v9291
        %v10209 = vsel %vm6639, %v10145, %v9293
        %v10210 = vsel %vm6639, %v10146, %v9295
        %v10211 = vsel %vm6639, %v10147, %v9297
        %v10212 = vsel %vm6639, %v10148, %v9299
        %v10213 = vsel %vm6639, %v10149, %v9301
        %v10214 = vsel %vm6639, %v10150, %v9303
        %v10215 = vsel %vm6639, %v10151, %v9305
        %v10216 = vsel %vm6639, %v10152, %v9307
        %v10217 = vsel %vm6639, %v10153, %v9309
        %v10218 = vsel %vm6639, %v10154, %v9311
        %v10219 = vsel %vm6639, %v10155, %v9313
        %v10220 = vsel %vm6639, %v10156, %v9315
        %v10221 = vsel %vm6639, %v10157, %v9317
        %v10222 = vsel %vm6639, %v10158, %v9319
        %v10223 = vsel %vm6639, %v10159, %v9321
        %v10224 = vsel %vm6639, %v10160, %v9323
        %v10225 = vsel %vm6639, %v10161, %v9325
        %v10226 = vsel %vm6639, %v10162, %v9327
        %v10227 = vsel %vm6639, %v10163, %v9329
        %v10228 = vsel %vm6639, %v10164, %v9331
        %v10229 = vsel %vm6639, %v10165, %v9333
        %v10230 = vsel %vm6704, %v10166, %v9463
        %v10231 = vsel %vm6704, %v10167, %v9465
        %v10232 = vsel %vm6704, %v10168, %v9467
        %v10233 = vsel %vm6704, %v10169, %v9469
        %v10234 = vsel %vm6704, %v10170, %v9471
        %v10235 = vsel %vm6704, %v10171, %v9473
        %v10236 = vsel %vm6704, %v10172, %v9475
        %v10237 = vsel %vm6704, %v10173, %v9477
        %v10238 = vsel %vm6704, %v10174, %v9479
        %v10239 = vsel %vm6704, %v10175, %v9481
        %v10240 = vsel %vm6704, %v10176, %v9483
        %v10241 = vsel %vm6704, %v10177, %v9485
        %v10242 = vsel %vm6704, %v10178, %v9487
        %v10243 = vsel %vm6704, %v10179, %v9489
        %v10244 = vsel %vm6704, %v10180, %v9491
        %v10245 = vsel %vm6704, %v10181, %v9493
        %v10246 = vsel %vm6704, %v10182, %v9495
        %v10247 = vsel %vm6704, %v10183, %v9497
        %v10248 = vsel %vm6704, %v10184, %v9499
        %v10249 = vsel %vm6704, %v10185, %v9501
        %v10250 = vsel %vm6704, %v10186, %v9503
        %v10251 = vsel %vm6704, %v10187, %v9505
        %v10252 = vsel %vm6704, %v10188, %v9507
        %v10253 = vsel %vm6704, %v10189, %v9509
        %v10254 = vsel %vm6704, %v10190, %v9511
        %v10255 = vsel %vm6704, %v10191, %v9513
        %v10256 = vsel %vm6704, %v10192, %v9515
        %v10257 = vsel %vm6704, %v10193, %v9517
        %v10258 = vsel %vm6704, %v10194, %v9519
        %v10259 = vsel %vm6704, %v10195, %v9521
        %v10260 = vsel %vm6704, %v10196, %v9523
        %v10261 = vsel %vm6704, %v10197, %v9525
        %v10262 = vsel %vm6704, %v10198, %v9527
        %v10263 = vsel %vm6704, %v10199, %v9529
        %v10264 = vsel %vm6704, %v10200, %v9531
        %v10265 = vsel %vm6704, %v10201, %v9533
        %v10266 = vsel %vm6704, %v10202, %v9535
        %v10267 = vsel %vm6704, %v10203, %v9537
        %v10268 = vsel %vm6704, %v10204, %v9539
        %v10269 = vsel %vm6704, %v10205, %v9541
        %v10270 = vsel %vm6704, %v10206, %v9543
        %v10271 = vsel %vm6704, %v10207, %v9545
        %v10272 = vsel %vm6704, %v10208, %v9547
        %v10273 = vsel %vm6704, %v10209, %v9549
        %v10274 = vsel %vm6704, %v10210, %v9551
        %v10275 = vsel %vm6704, %v10211, %v9553
        %v10276 = vsel %vm6704, %v10212, %v9555
        %v10277 = vsel %vm6704, %v10213, %v9557
        %v10278 = vsel %vm6704, %v10214, %v9559
        %v10279 = vsel %vm6704, %v10215, %v9561
        %v10280 = vsel %vm6704, %v10216, %v9563
        %v10281 = vsel %vm6704, %v10217, %v9565
        %v10282 = vsel %vm6704, %v10218, %v9567
        %v10283 = vsel %vm6704, %v10219, %v9569
        %v10284 = vsel %vm6704, %v10220, %v9571
        %v10285 = vsel %vm6704, %v10221, %v9573
        %v10286 = vsel %vm6704, %v10222, %v9575
        %v10287 = vsel %vm6704, %v10223, %v9577
        %v10288 = vsel %vm6704, %v10224, %v9579
        %v10289 = vsel %vm6704, %v10225, %v9581
        %v10290 = vsel %vm6704, %v10226, %v9583
        %v10291 = vsel %vm6704, %v10227, %v9585
        %v10292 = vsel %vm6704, %v10228, %v9587
        %v10293 = vsel %vm6704, %v10229, %v9589
        %10358 = vrot.lane.b32.xlu0 %v10230, 64
        %v10359 = vpop.permute.xlu0 %10358
        %10360 = vrot.lane.b32.xlu0 %v10231, 64
        %v10361 = vpop.permute.xlu0 %10360
        %10362 = vrot.lane.b32.xlu0 %v10232, 64
        %v10363 = vpop.permute.xlu0 %10362
        %10364 = vrot.lane.b32.xlu0 %v10233, 64
        %v10365 = vpop.permute.xlu0 %10364
        %10366 = vrot.lane.b32.xlu0 %v10234, 64
        %v10367 = vpop.permute.xlu0 %10366
        %10368 = vrot.lane.b32.xlu0 %v10235, 64
        %v10369 = vpop.permute.xlu0 %10368
        %10370 = vrot.lane.b32.xlu0 %v10236, 64
        %v10371 = vpop.permute.xlu0 %10370
        %10372 = vrot.lane.b32.xlu0 %v10237, 64
        %v10373 = vpop.permute.xlu0 %10372
        %10374 = vrot.lane.b32.xlu0 %v10238, 64
        %v10375 = vpop.permute.xlu0 %10374
        %10376 = vrot.lane.b32.xlu0 %v10239, 64
        %v10377 = vpop.permute.xlu0 %10376
        %10378 = vrot.lane.b32.xlu0 %v10240, 64
        %v10379 = vpop.permute.xlu0 %10378
        %10380 = vrot.lane.b32.xlu0 %v10241, 64
        %v10381 = vpop.permute.xlu0 %10380
        %10382 = vrot.lane.b32.xlu0 %v10242, 64
        %v10383 = vpop.permute.xlu0 %10382
        %10384 = vrot.lane.b32.xlu0 %v10243, 64
        %v10385 = vpop.permute.xlu0 %10384
        %10386 = vrot.lane.b32.xlu0 %v10244, 64
        %v10387 = vpop.permute.xlu0 %10386
        %10388 = vrot.lane.b32.xlu0 %v10245, 64
        %v10389 = vpop.permute.xlu0 %10388
        %10390 = vrot.lane.b32.xlu0 %v10246, 64
        %v10391 = vpop.permute.xlu0 %10390
        %10392 = vrot.lane.b32.xlu0 %v10247, 64
        %v10393 = vpop.permute.xlu0 %10392
        %10394 = vrot.lane.b32.xlu0 %v10248, 64
        %v10395 = vpop.permute.xlu0 %10394
        %10396 = vrot.lane.b32.xlu0 %v10249, 64
        %v10397 = vpop.permute.xlu0 %10396
        %10398 = vrot.lane.b32.xlu0 %v10250, 64
        %v10399 = vpop.permute.xlu0 %10398
        %10400 = vrot.lane.b32.xlu0 %v10251, 64
        %v10401 = vpop.permute.xlu0 %10400
        %10402 = vrot.lane.b32.xlu0 %v10252, 64
        %v10403 = vpop.permute.xlu0 %10402
        %10404 = vrot.lane.b32.xlu0 %v10253, 64
        %v10405 = vpop.permute.xlu0 %10404
        %10406 = vrot.lane.b32.xlu0 %v10254, 64
        %v10407 = vpop.permute.xlu0 %10406
        %10408 = vrot.lane.b32.xlu0 %v10255, 64
        %v10409 = vpop.permute.xlu0 %10408
        %10410 = vrot.lane.b32.xlu0 %v10256, 64
        %v10411 = vpop.permute.xlu0 %10410
        %10412 = vrot.lane.b32.xlu0 %v10257, 64
        %v10413 = vpop.permute.xlu0 %10412
        %10414 = vrot.lane.b32.xlu0 %v10258, 64
        %v10415 = vpop.permute.xlu0 %10414
        %10416 = vrot.lane.b32.xlu0 %v10259, 64
        %v10417 = vpop.permute.xlu0 %10416
        %10418 = vrot.lane.b32.xlu0 %v10260, 64
        %v10419 = vpop.permute.xlu0 %10418
        %10420 = vrot.lane.b32.xlu0 %v10261, 64
        %v10421 = vpop.permute.xlu0 %10420
        %10422 = vrot.lane.b32.xlu0 %v10262, 64
        %v10423 = vpop.permute.xlu0 %10422
        %10424 = vrot.lane.b32.xlu0 %v10263, 64
        %v10425 = vpop.permute.xlu0 %10424
        %10426 = vrot.lane.b32.xlu0 %v10264, 64
        %v10427 = vpop.permute.xlu0 %10426
        %10428 = vrot.lane.b32.xlu0 %v10265, 64
        %v10429 = vpop.permute.xlu0 %10428
        %10430 = vrot.lane.b32.xlu0 %v10266, 64
        %v10431 = vpop.permute.xlu0 %10430
        %10432 = vrot.lane.b32.xlu0 %v10267, 64
        %v10433 = vpop.permute.xlu0 %10432
        %10434 = vrot.lane.b32.xlu0 %v10268, 64
        %v10435 = vpop.permute.xlu0 %10434
        %10436 = vrot.lane.b32.xlu0 %v10269, 64
        %v10437 = vpop.permute.xlu0 %10436
        %10438 = vrot.lane.b32.xlu0 %v10270, 64
        %v10439 = vpop.permute.xlu0 %10438
        %10440 = vrot.lane.b32.xlu0 %v10271, 64
        %v10441 = vpop.permute.xlu0 %10440
        %10442 = vrot.lane.b32.xlu0 %v10272, 64
        %v10443 = vpop.permute.xlu0 %10442
        %10444 = vrot.lane.b32.xlu0 %v10273, 64
        %v10445 = vpop.permute.xlu0 %10444
        %10446 = vrot.lane.b32.xlu0 %v10274, 64
        %v10447 = vpop.permute.xlu0 %10446
        %10448 = vrot.lane.b32.xlu0 %v10275, 64
        %v10449 = vpop.permute.xlu0 %10448
        %10450 = vrot.lane.b32.xlu0 %v10276, 64
        %v10451 = vpop.permute.xlu0 %10450
        %10452 = vrot.lane.b32.xlu0 %v10277, 64
        %v10453 = vpop.permute.xlu0 %10452
        %10454 = vrot.lane.b32.xlu0 %v10278, 64
        %v10455 = vpop.permute.xlu0 %10454
        %10456 = vrot.lane.b32.xlu0 %v10279, 64
        %v10457 = vpop.permute.xlu0 %10456
        %10458 = vrot.lane.b32.xlu0 %v10280, 64
        %v10459 = vpop.permute.xlu0 %10458
        %10460 = vrot.lane.b32.xlu0 %v10281, 64
        %v10461 = vpop.permute.xlu0 %10460
        %10462 = vrot.lane.b32.xlu0 %v10282, 64
        %v10463 = vpop.permute.xlu0 %10462
        %10464 = vrot.lane.b32.xlu0 %v10283, 64
        %v10465 = vpop.permute.xlu0 %10464
        %10466 = vrot.lane.b32.xlu0 %v10284, 64
        %v10467 = vpop.permute.xlu0 %10466
        %10468 = vrot.lane.b32.xlu0 %v10285, 64
        %v10469 = vpop.permute.xlu0 %10468
        %10470 = vrot.lane.b32.xlu0 %v10286, 64
        %v10471 = vpop.permute.xlu0 %10470
        %10472 = vrot.lane.b32.xlu0 %v10287, 64
        %v10473 = vpop.permute.xlu0 %10472
        %10474 = vrot.lane.b32.xlu0 %v10288, 64
        %v10475 = vpop.permute.xlu0 %10474
        %10476 = vrot.lane.b32.xlu0 %v10289, 64
        %v10477 = vpop.permute.xlu0 %10476
        %10478 = vrot.lane.b32.xlu0 %v10290, 64
        %v10479 = vpop.permute.xlu0 %10478
        %10480 = vrot.lane.b32.xlu0 %v10291, 64
        %v10481 = vpop.permute.xlu0 %10480
        %10482 = vrot.lane.b32.xlu0 %v10292, 64
        %v10483 = vpop.permute.xlu0 %10482
        %10484 = vrot.lane.b32.xlu0 %v10293, 64
        %v10485 = vpop.permute.xlu0 %10484
        %vm10550 = vcmask 523264
        %v10551 = vsel %vm10550, %v7030, %v10359
        %v10552 = vsel %vm10550, %v7031, %v10361
        %v10553 = vsel %vm10550, %v7032, %v10363
        %v10554 = vsel %vm10550, %v7033, %v10365
        %v10555 = vsel %vm10550, %v7034, %v10367
        %v10556 = vsel %vm10550, %v7035, %v10369
        %v10557 = vsel %vm10550, %v7036, %v10371
        %v10558 = vsel %vm10550, %v7037, %v10373
        %v10559 = vsel %vm10550, %v7038, %v10375
        %v10560 = vsel %vm10550, %v7039, %v10377
        %v10561 = vsel %vm10550, %v7040, %v10379
        %v10562 = vsel %vm10550, %v7041, %v10381
        %v10563 = vsel %vm10550, %v7042, %v10383
        %v10564 = vsel %vm10550, %v7043, %v10385
        %v10565 = vsel %vm10550, %v7044, %v10387
        %v10566 = vsel %vm10550, %v7045, %v10389
        %v10567 = vsel %vm10550, %v7046, %v10391
        %v10568 = vsel %vm10550, %v7047, %v10393
        %v10569 = vsel %vm10550, %v7048, %v10395
        %v10570 = vsel %vm10550, %v7049, %v10397
        %v10571 = vsel %vm10550, %v7050, %v10399
        %v10572 = vsel %vm10550, %v7051, %v10401
        %v10573 = vsel %vm10550, %v7052, %v10403
        %v10574 = vsel %vm10550, %v7053, %v10405
        %v10575 = vsel %vm10550, %v7054, %v10407
        %v10576 = vsel %vm10550, %v7055, %v10409
        %v10577 = vsel %vm10550, %v7056, %v10411
        %v10578 = vsel %vm10550, %v7057, %v10413
        %v10579 = vsel %vm10550, %v7058, %v10415
        %v10580 = vsel %vm10550, %v7059, %v10417
        %v10581 = vsel %vm10550, %v7060, %v10419
        %v10582 = vsel %vm10550, %v7061, %v10421
        %v10583 = vsel %vm10550, %v7062, %v10423
        %v10584 = vsel %vm10550, %v7063, %v10425
        %v10585 = vsel %vm10550, %v7064, %v10427
        %v10586 = vsel %vm10550, %v7065, %v10429
        %v10587 = vsel %vm10550, %v7066, %v10431
        %v10588 = vsel %vm10550, %v7067, %v10433
        %v10589 = vsel %vm10550, %v7068, %v10435
        %v10590 = vsel %vm10550, %v7069, %v10437
        %v10591 = vsel %vm10550, %v7070, %v10439
        %v10592 = vsel %vm10550, %v7071, %v10441
        %v10593 = vsel %vm10550, %v7072, %v10443
        %v10594 = vsel %vm10550, %v7073, %v10445
        %v10595 = vsel %vm10550, %v7074, %v10447
        %v10596 = vsel %vm10550, %v7075, %v10449
        %v10597 = vsel %vm10550, %v7076, %v10451
        %v10598 = vsel %vm10550, %v7077, %v10453
        %v10599 = vsel %vm10550, %v7078, %v10455
        %v10600 = vsel %vm10550, %v7079, %v10457
        %v10601 = vsel %vm10550, %v7080, %v10459
        %v10602 = vsel %vm10550, %v7081, %v10461
        %v10603 = vsel %vm10550, %v7082, %v10463
        %v10604 = vsel %vm10550, %v7083, %v10465
        %v10605 = vsel %vm10550, %v7084, %v10467
        %v10606 = vsel %vm10550, %v7085, %v10469
        %v10607 = vsel %vm10550, %v7086, %v10471
        %v10608 = vsel %vm10550, %v7087, %v10473
        %v10609 = vsel %vm10550, %v7088, %v10475
        %v10610 = vsel %vm10550, %v7089, %v10477
        %v10611 = vsel %vm10550, %v7090, %v10479
        %v10612 = vsel %vm10550, %v7091, %v10481
        %v10613 = vsel %vm10550, %v7092, %v10483
        %v10614 = vsel %vm10550, %v7093, %v10485
        %v10615 = vld [vmem:[%s210] sm:$0xff]
        %v10616 = vld [vmem:[%s210 + $0x8] sm:$0xff]
        %v10617 = vld [vmem:[%s210 + $0x10] sm:$0xff]
        %v10618 = vld [vmem:[%s210 + $0x18] sm:$0xff]
        %v10619 = vld [vmem:[%s210 + $0x20] sm:$0xff]
        %v10620 = vld [vmem:[%s210 + $0x28] sm:$0xff]
        %v10621 = vld [vmem:[%s210 + $0x30] sm:$0xff]
        %v10622 = vld [vmem:[%s210 + $0x38] sm:$0xff]
        %v10623 = vld [vmem:[%s210 + $0x40] sm:$0xff]
        %v10624 = vld [vmem:[%s210 + $0x48] sm:$0xff]
        %v10625 = vld [vmem:[%s210 + $0x50] sm:$0xff]
        %v10626 = vld [vmem:[%s210 + $0x58] sm:$0xff]
        %v10627 = vld [vmem:[%s210 + $0x60] sm:$0xff]
        %v10628 = vld [vmem:[%s210 + $0x68] sm:$0xf]
        %v10629 = vld [vmem:[%s213] sm:$0x1]
        %v10631 = vlaneseq
        %v10632 = vshrl.u32 %v10631, 7
        %v10633 = vsub.s32 0, %v10632
        %v10634 = vrot.slane %v10629, %v10633
        %vm10636 = vcmask 883712
        %v10638 = vsel %vm10636, %v10551, 0
        %v10641 = vsel %vm10636, %v10552, 0
        %v10644 = vsel %vm10636, %v10553, 0
        %v10647 = vsel %vm10636, %v10554, 0
        %v10650 = vsel %vm10636, %v10555, 0
        %v10653 = vsel %vm10636, %v10556, 0
        %v10656 = vsel %vm10636, %v10557, 0
        %v10659 = vsel %vm10636, %v10558, 0
        %v10662 = vsel %vm10636, %v10559, 0
        %v10665 = vsel %vm10636, %v10560, 0
        %v10668 = vsel %vm10636, %v10561, 0
        %v10671 = vsel %vm10636, %v10562, 0
        %v10674 = vsel %vm10636, %v10563, 0
        %v10677 = vsel %vm10636, %v10564, 0
        %v10680 = vsel %vm10636, %v10565, 0
        %v10683 = vsel %vm10636, %v10566, 0
        %v10686 = vsel %vm10636, %v10567, 0
        %v10689 = vsel %vm10636, %v10568, 0
        %v10692 = vsel %vm10636, %v10569, 0
        %v10695 = vsel %vm10636, %v10570, 0
        %v10698 = vsel %vm10636, %v10571, 0
        %v10701 = vsel %vm10636, %v10572, 0
        %v10704 = vsel %vm10636, %v10573, 0
        %v10707 = vsel %vm10636, %v10574, 0
        %v10710 = vsel %vm10636, %v10575, 0
        %v10713 = vsel %vm10636, %v10576, 0
        %v10716 = vsel %vm10636, %v10577, 0
        %v10719 = vsel %vm10636, %v10578, 0
        %v10722 = vsel %vm10636, %v10579, 0
        %v10725 = vsel %vm10636, %v10580, 0
        %v10728 = vsel %vm10636, %v10581, 0
        %v10731 = vsel %vm10636, %v10582, 0
        %v10734 = vsel %vm10636, %v10583, 0
        %v10737 = vsel %vm10636, %v10584, 0
        %v10740 = vsel %vm10636, %v10585, 0
        %v10743 = vsel %vm10636, %v10586, 0
        %v10746 = vsel %vm10636, %v10587, 0
        %v10749 = vsel %vm10636, %v10588, 0
        %v10752 = vsel %vm10636, %v10589, 0
        %v10755 = vsel %vm10636, %v10590, 0
        %v10758 = vsel %vm10636, %v10591, 0
        %v10761 = vsel %vm10636, %v10592, 0
        %v10764 = vsel %vm10636, %v10593, 0
        %v10767 = vsel %vm10636, %v10594, 0
        %v10770 = vsel %vm10636, %v10595, 0
        %v10773 = vsel %vm10636, %v10596, 0
        %v10776 = vsel %vm10636, %v10597, 0
        %v10779 = vsel %vm10636, %v10598, 0
        %v10782 = vsel %vm10636, %v10599, 0
        %v10785 = vsel %vm10636, %v10600, 0
        %v10788 = vsel %vm10636, %v10601, 0
        %v10791 = vsel %vm10636, %v10602, 0
        %v10794 = vsel %vm10636, %v10603, 0
        %v10797 = vsel %vm10636, %v10604, 0
        %v10800 = vsel %vm10636, %v10605, 0
        %v10803 = vsel %vm10636, %v10606, 0
        %v10806 = vsel %vm10636, %v10607, 0
        %v10809 = vsel %vm10636, %v10608, 0
        %v10812 = vsel %vm10636, %v10609, 0
        %v10815 = vsel %vm10636, %v10610, 0
        %v10818 = vsel %vm10636, %v10611, 0
        %v10821 = vsel %vm10636, %v10612, 0
        %v10824 = vsel %vm10636, %v10613, 0
        %v10827 = vsel %vm10636, %v10614, 0
        %vm10829 = vcmask 1043456
        %v10831 = vsel %vm10829, %v10628, 0
        %10833 = vmatprep.subr.mxu0 0.0
        %10834 = vmatpush1.msra.mxu0 %v10615
        %10835 = vmatprep.subr.mxu0 0.0
        %10836 = vmatpush1.msra.mxu0 %v10616
        %10837 = vmatprep.subr.mxu0 0.0
        %10838 = vmatpush1.msra.mxu0 %v10617
        %10839 = vmatprep.subr.mxu0 0.0
        %10840 = vmatpush1.msra.mxu0 %v10618
        %10841 = vmatprep.subr.mxu0 0.0
        %10842 = vmatpush1.msra.mxu0 %v10619
        %10843 = vmatprep.subr.mxu0 0.0
        %10844 = vmatpush1.msra.mxu0 %v10620
        %10845 = vmatprep.subr.mxu0 0.0
        %10846 = vmatpush1.msra.mxu0 %v10621
        %10847 = vmatprep.subr.mxu0 0.0
        %10848 = vmatpush1.msra.mxu0 %v10622
        %10849 = vmatprep.subr.mxu0 0.0
        %10850 = vmatpush1.msra.mxu0 %v10623
        %10851 = vmatprep.subr.mxu0 0.0
        %10852 = vmatpush1.msra.mxu0 %v10624
        %10853 = vmatprep.subr.mxu0 0.0
        %10854 = vmatpush1.msra.mxu0 %v10625
        %10855 = vmatprep.subr.mxu0 0.0
        %10856 = vmatpush1.msra.mxu0 %v10626
        %10857 = vmatprep.subr.mxu0 0.0
        %10858 = vmatpush1.msra.mxu0 %v10627
        %10859 = vmatprep.subr.mxu0 0.0
        %10860 = vmatpush1.msra.mxu0 %v10831
        %10861 = vmatprep.subr.mxu0 0.0
        %10862 = vmatpush1.msra.mxu0 0.0
        %10863 = vmatprep.subr.mxu0 0.0
        %10864 = vmatpush1.msra.mxu0 0.0
        %10865 = vmatprep.subr.mxu0 0.0
        %10866 = vmatpush1.msra.mxu0 0.0
        %10867 = vmatprep.subr.mxu0 0.0
        %10868 = vmatpush1.msra.mxu0 0.0
        %10869 = vmatprep.subr.mxu0 0.0
        %10870 = vmatpush1.msra.mxu0 0.0
        %10871 = vmatprep.subr.mxu0 0.0
        %10872 = vmatpush1.msra.mxu0 0.0
        %10873 = vmatprep.subr.mxu0 0.0
        %10874 = vmatpush1.msra.mxu0 0.0
        %10875 = vmatprep.subr.mxu0 0.0
        %10876 = vmatpush1.msra.mxu0 0.0
        %10877 = vmatprep.subr.mxu0 0.0
        %10878 = vmatpush1.msra.mxu0 0.0
        %10879 = vmatprep.subr.mxu0 0.0
        %10880 = vmatpush1.msra.mxu0 0.0
        %10881 = vmatprep.subr.mxu0 0.0
        %10882 = vmatpush1.msra.mxu0 0.0
        %10883 = vmatprep.subr.mxu0 0.0
        %10884 = vmatpush1.msra.mxu0 0.0
        %10885 = vmatprep.subr.mxu0 0.0
        %10886 = vmatpush1.msra.mxu0 0.0
        %10887 = vmatprep.subr.mxu0 0.0
        %10888 = vmatpush1.msra.mxu0 0.0
        %10889 = vmatprep.subr.mxu0 0.0
        %10890 = vmatpush1.msra.mxu0 0.0
        %10891 = vmatprep.subr.mxu0 0.0
        %10892 = vmatpush1.msra.mxu0 0.0
        %10893 = vmatprep.subr.mxu0 0.0
        %10894 = vmatpush1.msra.mxu0 0.0
        %10895 = vmatprep.subr.mxu0 0.0
        %10896 = vmatpush1.msra.mxu0 0.0
        %10897 = vmatprep.mubr.f32.mxu0 0.0
        %10898 = vmatmul.mubr.f32.gmra.mrb[0].mxu0 %v10638
        %v10899 = vpop.f32.mrb[0].mxu0
        %v10900 = vadd.f32 %v10634, %v10899
        %v10901 = vpop.f32.mrb[0].mxu0
        %10902 = vmatprep.mubr.f32.mxu0 0.0
        %10903 = vmatmul.mubr.f32.gmra.mrb[0].mxu0 %v10641
        %v10904 = vpop.f32.mrb[0].mxu0
        %v10905 = vadd.f32 %v10634, %v10904
        %v10906 = vpop.f32.mrb[0].mxu0
        %10907 = vmatprep.mubr.f32.mxu0 0.0
        %10908 = vmatmul.mubr.f32.gmra.mrb[0].mxu0 %v10644
        %v10909 = vpop.f32.mrb[0].mxu0
        %v10910 = vadd.f32 %v10634, %v10909
        %v10911 = vpop.f32.mrb[0].mxu0
        %10912 = vmatprep.mubr.f32.mxu0 0.0
        %10913 = vmatmul.mubr.f32.gmra.mrb[0].mxu0 %v10647
        %v10914 = vpop.f32.mrb[0].mxu0
        %v10915 = vadd.f32 %v10634, %v10914
        %v10916 = vpop.f32.mrb[0].mxu0
        %10917 = vmatprep.mubr.f32.mxu0 0.0
        %10918 = vmatmul.mubr.f32.gmra.mrb[0].mxu0 %v10650
        %v10919 = vpop.f32.mrb[0].mxu0
        %v10920 = vadd.f32 %v10634, %v10919
        %v10921 = vpop.f32.mrb[0].mxu0
        %10922 = vmatprep.mubr.f32.mxu0 0.0
        %10923 = vmatmul.mubr.f32.gmra.mrb[0].mxu0 %v10653
        %v10924 = vpop.f32.mrb[0].mxu0
        %v10925 = vadd.f32 %v10634, %v10924
        %v10926 = vpop.f32.mrb[0].mxu0
        %10927 = vmatprep.mubr.f32.mxu0 0.0
        %10928 = vmatmul.mubr.f32.gmra.mrb[0].mxu0 %v10656
        %v10929 = vpop.f32.mrb[0].mxu0
        %v10930 = vadd.f32 %v10634, %v10929
        %v10931 = vpop.f32.mrb[0].mxu0
        %10932 = vmatprep.mubr.f32.mxu0 0.0
        %10933 = vmatmul.mubr.f32.gmra.mrb[0].mxu0 %v10659
        %v10934 = vpop.f32.mrb[0].mxu0
        %v10935 = vadd.f32 %v10634, %v10934
        %v10936 = vpop.f32.mrb[0].mxu0
        %10937 = vmatprep.mubr.f32.mxu0 0.0
        %10938 = vmatmul.mubr.f32.gmra.mrb[0].mxu0 %v10662
        %v10939 = vpop.f32.mrb[0].mxu0
        %v10940 = vadd.f32 %v10634, %v10939
        %v10941 = vpop.f32.mrb[0].mxu0
        %10942 = vmatprep.mubr.f32.mxu0 0.0
        %10943 = vmatmul.mubr.f32.gmra.mrb[0].mxu0 %v10665
        %v10944 = vpop.f32.mrb[0].mxu0
        %v10945 = vadd.f32 %v10634, %v10944
        %v10946 = vpop.f32.mrb[0].mxu0
        %10947 = vmatprep.mubr.f32.mxu0 0.0
        %10948 = vmatmul.mubr.f32.gmra.mrb[0].mxu0 %v10668
        %v10949 = vpop.f32.mrb[0].mxu0
        %v10950 = vadd.f32 %v10634, %v10949
        %v10951 = vpop.f32.mrb[0].mxu0
        %10952 = vmatprep.mubr.f32.mxu0 0.0
        %10953 = vmatmul.mubr.f32.gmra.mrb[0].mxu0 %v10671
        %v10954 = vpop.f32.mrb[0].mxu0
        %v10955 = vadd.f32 %v10634, %v10954
        %v10956 = vpop.f32.mrb[0].mxu0
        %10957 = vmatprep.mubr.f32.mxu0 0.0
        %10958 = vmatmul.mubr.f32.gmra.mrb[0].mxu0 %v10674
        %v10959 = vpop.f32.mrb[0].mxu0
        %v10960 = vadd.f32 %v10634, %v10959
        %v10961 = vpop.f32.mrb[0].mxu0
        %10962 = vmatprep.mubr.f32.mxu0 0.0
        %10963 = vmatmul.mubr.f32.gmra.mrb[0].mxu0 %v10677
        %v10964 = vpop.f32.mrb[0].mxu0
        %v10965 = vadd.f32 %v10634, %v10964
        %v10966 = vpop.f32.mrb[0].mxu0
        %10967 = vmatprep.mubr.f32.mxu0 0.0
        %10968 = vmatmul.mubr.f32.gmra.mrb[0].mxu0 %v10680
        %v10969 = vpop.f32.mrb[0].mxu0
        %v10970 = vadd.f32 %v10634, %v10969
        %v10971 = vpop.f32.mrb[0].mxu0
        %10972 = vmatprep.mubr.f32.mxu0 0.0
        %10973 = vmatmul.mubr.f32.gmra.mrb[0].mxu0 %v10683
        %v10974 = vpop.f32.mrb[0].mxu0
        %v10975 = vadd.f32 %v10634, %v10974
        %v10976 = vpop.f32.mrb[0].mxu0
        %10977 = vmatprep.mubr.f32.mxu0 0.0
        %10978 = vmatmul.mubr.f32.gmra.mrb[0].mxu0 %v10686
        %v10979 = vpop.f32.mrb[0].mxu0
        %v10980 = vadd.f32 %v10634, %v10979
        %v10981 = vpop.f32.mrb[0].mxu0
        %10982 = vmatprep.mubr.f32.mxu0 0.0
        %10983 = vmatmul.mubr.f32.gmra.mrb[0].mxu0 %v10689
        %v10984 = vpop.f32.mrb[0].mxu0
        %v10985 = vadd.f32 %v10634, %v10984
        %v10986 = vpop.f32.mrb[0].mxu0
        %10987 = vmatprep.mubr.f32.mxu0 0.0
        %10988 = vmatmul.mubr.f32.gmra.mrb[0].mxu0 %v10692
        %v10989 = vpop.f32.mrb[0].mxu0
        %v10990 = vadd.f32 %v10634, %v10989
        %v10991 = vpop.f32.mrb[0].mxu0
        %10992 = vmatprep.mubr.f32.mxu0 0.0
        %10993 = vmatmul.mubr.f32.gmra.mrb[0].mxu0 %v10695
        %v10994 = vpop.f32.mrb[0].mxu0
        %v10995 = vadd.f32 %v10634, %v10994
        %v10996 = vpop.f32.mrb[0].mxu0
        %10997 = vmatprep.mubr.f32.mxu0 0.0
        %10998 = vmatmul.mubr.f32.gmra.mrb[0].mxu0 %v10698
        %v10999 = vpop.f32.mrb[0].mxu0
        %v11000 = vadd.f32 %v10634, %v10999
        %v11001 = vpop.f32.mrb[0].mxu0
        %11002 = vmatprep.mubr.f32.mxu0 0.0
        %11003 = vmatmul.mubr.f32.gmra.mrb[0].mxu0 %v10701
        %v11004 = vpop.f32.mrb[0].mxu0
        %v11005 = vadd.f32 %v10634, %v11004
        %v11006 = vpop.f32.mrb[0].mxu0
        %11007 = vmatprep.mubr.f32.mxu0 0.0
        %11008 = vmatmul.mubr.f32.gmra.mrb[0].mxu0 %v10704
        %v11009 = vpop.f32.mrb[0].mxu0
        %v11010 = vadd.f32 %v10634, %v11009
        %v11011 = vpop.f32.mrb[0].mxu0
        %11012 = vmatprep.mubr.f32.mxu0 0.0
        %11013 = vmatmul.mubr.f32.gmra.mrb[0].mxu0 %v10707
        %v11014 = vpop.f32.mrb[0].mxu0
        %v11015 = vadd.f32 %v10634, %v11014
        %v11016 = vpop.f32.mrb[0].mxu0
        %11017 = vmatprep.mubr.f32.mxu0 0.0
        %11018 = vmatmul.mubr.f32.gmra.mrb[0].mxu0 %v10710
        %v11019 = vpop.f32.mrb[0].mxu0
        %v11020 = vadd.f32 %v10634, %v11019
        %v11021 = vpop.f32.mrb[0].mxu0
        %11022 = vmatprep.mubr.f32.mxu0 0.0
        %11023 = vmatmul.mubr.f32.gmra.mrb[0].mxu0 %v10713
        %v11024 = vpop.f32.mrb[0].mxu0
        %v11025 = vadd.f32 %v10634, %v11024
        %v11026 = vpop.f32.mrb[0].mxu0
        %11027 = vmatprep.mubr.f32.mxu0 0.0
        %11028 = vmatmul.mubr.f32.gmra.mrb[0].mxu0 %v10716
        %v11029 = vpop.f32.mrb[0].mxu0
        %v11030 = vadd.f32 %v10634, %v11029
        %v11031 = vpop.f32.mrb[0].mxu0
        %11032 = vmatprep.mubr.f32.mxu0 0.0
        %11033 = vmatmul.mubr.f32.gmra.mrb[0].mxu0 %v10719
        %v11034 = vpop.f32.mrb[0].mxu0
        %v11035 = vadd.f32 %v10634, %v11034
        %v11036 = vpop.f32.mrb[0].mxu0
        %11037 = vmatprep.mubr.f32.mxu0 0.0
        %11038 = vmatmul.mubr.f32.gmra.mrb[0].mxu0 %v10722
        %v11039 = vpop.f32.mrb[0].mxu0
        %v11040 = vadd.f32 %v10634, %v11039
        %v11041 = vpop.f32.mrb[0].mxu0
        %11042 = vmatprep.mubr.f32.mxu0 0.0
        %11043 = vmatmul.mubr.f32.gmra.mrb[0].mxu0 %v10725
        %v11044 = vpop.f32.mrb[0].mxu0
        %v11045 = vadd.f32 %v10634, %v11044
        %v11046 = vpop.f32.mrb[0].mxu0
        %11047 = vmatprep.mubr.f32.mxu0 0.0
        %11048 = vmatmul.mubr.f32.gmra.mrb[0].mxu0 %v10728
        %v11049 = vpop.f32.mrb[0].mxu0
        %v11050 = vadd.f32 %v10634, %v11049
        %v11051 = vpop.f32.mrb[0].mxu0
        %11052 = vmatprep.mubr.f32.mxu0 0.0
        %11053 = vmatmul.mubr.f32.gmra.mrb[0].mxu0 %v10731
        %v11054 = vpop.f32.mrb[0].mxu0
        %v11055 = vadd.f32 %v10634, %v11054
        %v11056 = vpop.f32.mrb[0].mxu0
        %11057 = vmatprep.mubr.f32.mxu0 0.0
        %11058 = vmatmul.mubr.f32.gmra.mrb[0].mxu0 %v10734
        %v11059 = vpop.f32.mrb[0].mxu0
        %v11060 = vadd.f32 %v10634, %v11059
        %v11061 = vpop.f32.mrb[0].mxu0
        %11062 = vmatprep.mubr.f32.mxu0 0.0
        %11063 = vmatmul.mubr.f32.gmra.mrb[0].mxu0 %v10737
        %v11064 = vpop.f32.mrb[0].mxu0
        %v11065 = vadd.f32 %v10634, %v11064
        %v11066 = vpop.f32.mrb[0].mxu0
        %11067 = vmatprep.mubr.f32.mxu0 0.0
        %11068 = vmatmul.mubr.f32.gmra.mrb[0].mxu0 %v10740
        %v11069 = vpop.f32.mrb[0].mxu0
        %v11070 = vadd.f32 %v10634, %v11069
        %v11071 = vpop.f32.mrb[0].mxu0
        %11072 = vmatprep.mubr.f32.mxu0 0.0
        %11073 = vmatmul.mubr.f32.gmra.mrb[0].mxu0 %v10743
        %v11074 = vpop.f32.mrb[0].mxu0
        %v11075 = vadd.f32 %v10634, %v11074
        %v11076 = vpop.f32.mrb[0].mxu0
        %11077 = vmatprep.mubr.f32.mxu0 0.0
        %11078 = vmatmul.mubr.f32.gmra.mrb[0].mxu0 %v10746
        %v11079 = vpop.f32.mrb[0].mxu0
        %v11080 = vadd.f32 %v10634, %v11079
        %v11081 = vpop.f32.mrb[0].mxu0
        %11082 = vmatprep.mubr.f32.mxu0 0.0
        %11083 = vmatmul.mubr.f32.gmra.mrb[0].mxu0 %v10749
        %v11084 = vpop.f32.mrb[0].mxu0
        %v11085 = vadd.f32 %v10634, %v11084
        %v11086 = vpop.f32.mrb[0].mxu0
        %11087 = vmatprep.mubr.f32.mxu0 0.0
        %11088 = vmatmul.mubr.f32.gmra.mrb[0].mxu0 %v10752
        %v11089 = vpop.f32.mrb[0].mxu0
        %v11090 = vadd.f32 %v10634, %v11089
        %v11091 = vpop.f32.mrb[0].mxu0
        %11092 = vmatprep.mubr.f32.mxu0 0.0
        %11093 = vmatmul.mubr.f32.gmra.mrb[0].mxu0 %v10755
        %v11094 = vpop.f32.mrb[0].mxu0
        %v11095 = vadd.f32 %v10634, %v11094
        %v11096 = vpop.f32.mrb[0].mxu0
        %11097 = vmatprep.mubr.f32.mxu0 0.0
        %11098 = vmatmul.mubr.f32.gmra.mrb[0].mxu0 %v10758
        %v11099 = vpop.f32.mrb[0].mxu0
        %v11100 = vadd.f32 %v10634, %v11099
        %v11101 = vpop.f32.mrb[0].mxu0
        %11102 = vmatprep.mubr.f32.mxu0 0.0
        %11103 = vmatmul.mubr.f32.gmra.mrb[0].mxu0 %v10761
        %v11104 = vpop.f32.mrb[0].mxu0
        %v11105 = vadd.f32 %v10634, %v11104
        %v11106 = vpop.f32.mrb[0].mxu0
        %11107 = vmatprep.mubr.f32.mxu0 0.0
        %11108 = vmatmul.mubr.f32.gmra.mrb[0].mxu0 %v10764
        %v11109 = vpop.f32.mrb[0].mxu0
        %v11110 = vadd.f32 %v10634, %v11109
        %v11111 = vpop.f32.mrb[0].mxu0
        %11112 = vmatprep.mubr.f32.mxu0 0.0
        %11113 = vmatmul.mubr.f32.gmra.mrb[0].mxu0 %v10767
        %v11114 = vpop.f32.mrb[0].mxu0
        %v11115 = vadd.f32 %v10634, %v11114
        %v11116 = vpop.f32.mrb[0].mxu0
        %11117 = vmatprep.mubr.f32.mxu0 0.0
        %11118 = vmatmul.mubr.f32.gmra.mrb[0].mxu0 %v10770
        %v11119 = vpop.f32.mrb[0].mxu0
        %v11120 = vadd.f32 %v10634, %v11119
        %v11121 = vpop.f32.mrb[0].mxu0
        %11122 = vmatprep.mubr.f32.mxu0 0.0
        %11123 = vmatmul.mubr.f32.gmra.mrb[0].mxu0 %v10773
        %v11124 = vpop.f32.mrb[0].mxu0
        %v11125 = vadd.f32 %v10634, %v11124
        %v11126 = vpop.f32.mrb[0].mxu0
        %11127 = vmatprep.mubr.f32.mxu0 0.0
        %11128 = vmatmul.mubr.f32.gmra.mrb[0].mxu0 %v10776
        %v11129 = vpop.f32.mrb[0].mxu0
        %v11130 = vadd.f32 %v10634, %v11129
        %v11131 = vpop.f32.mrb[0].mxu0
        %11132 = vmatprep.mubr.f32.mxu0 0.0
        %11133 = vmatmul.mubr.f32.gmra.mrb[0].mxu0 %v10779
        %v11134 = vpop.f32.mrb[0].mxu0
        %v11135 = vadd.f32 %v10634, %v11134
        %v11136 = vpop.f32.mrb[0].mxu0
        %11137 = vmatprep.mubr.f32.mxu0 0.0
        %11138 = vmatmul.mubr.f32.gmra.mrb[0].mxu0 %v10782
        %v11139 = vpop.f32.mrb[0].mxu0
        %v11140 = vadd.f32 %v10634, %v11139
        %v11141 = vpop.f32.mrb[0].mxu0
        %11142 = vmatprep.mubr.f32.mxu0 0.0
        %11143 = vmatmul.mubr.f32.gmra.mrb[0].mxu0 %v10785
        %v11144 = vpop.f32.mrb[0].mxu0
        %v11145 = vadd.f32 %v10634, %v11144
        %v11146 = vpop.f32.mrb[0].mxu0
        %11147 = vmatprep.mubr.f32.mxu0 0.0
        %11148 = vmatmul.mubr.f32.gmra.mrb[0].mxu0 %v10788
        %v11149 = vpop.f32.mrb[0].mxu0
        %v11150 = vadd.f32 %v10634, %v11149
        %v11151 = vpop.f32.mrb[0].mxu0
        %11152 = vmatprep.mubr.f32.mxu0 0.0
        %11153 = vmatmul.mubr.f32.gmra.mrb[0].mxu0 %v10791
        %v11154 = vpop.f32.mrb[0].mxu0
        %v11155 = vadd.f32 %v10634, %v11154
        %v11156 = vpop.f32.mrb[0].mxu0
        %11157 = vmatprep.mubr.f32.mxu0 0.0
        %11158 = vmatmul.mubr.f32.gmra.mrb[0].mxu0 %v10794
        %v11159 = vpop.f32.mrb[0].mxu0
        %v11160 = vadd.f32 %v10634, %v11159
        %v11161 = vpop.f32.mrb[0].mxu0
        %11162 = vmatprep.mubr.f32.mxu0 0.0
        %11163 = vmatmul.mubr.f32.gmra.mrb[0].mxu0 %v10797
        %v11164 = vpop.f32.mrb[0].mxu0
        %v11165 = vadd.f32 %v10634, %v11164
        %v11166 = vpop.f32.mrb[0].mxu0
        %11167 = vmatprep.mubr.f32.mxu0 0.0
        %11168 = vmatmul.mubr.f32.gmra.mrb[0].mxu0 %v10800
        %v11169 = vpop.f32.mrb[0].mxu0
        %v11170 = vadd.f32 %v10634, %v11169
        %v11171 = vpop.f32.mrb[0].mxu0
        %11172 = vmatprep.mubr.f32.mxu0 0.0
        %11173 = vmatmul.mubr.f32.gmra.mrb[0].mxu0 %v10803
        %v11174 = vpop.f32.mrb[0].mxu0
        %v11175 = vadd.f32 %v10634, %v11174
        %v11176 = vpop.f32.mrb[0].mxu0
        %11177 = vmatprep.mubr.f32.mxu0 0.0
        %11178 = vmatmul.mubr.f32.gmra.mrb[0].mxu0 %v10806
        %v11179 = vpop.f32.mrb[0].mxu0
        %v11180 = vadd.f32 %v10634, %v11179
        %v11181 = vpop.f32.mrb[0].mxu0
        %11182 = vmatprep.mubr.f32.mxu0 0.0
        %11183 = vmatmul.mubr.f32.gmra.mrb[0].mxu0 %v10809
        %v11184 = vpop.f32.mrb[0].mxu0
        %v11185 = vadd.f32 %v10634, %v11184
        %v11186 = vpop.f32.mrb[0].mxu0
        %11187 = vmatprep.mubr.f32.mxu0 0.0
        %11188 = vmatmul.mubr.f32.gmra.mrb[0].mxu0 %v10812
        %v11189 = vpop.f32.mrb[0].mxu0
        %v11190 = vadd.f32 %v10634, %v11189
        %v11191 = vpop.f32.mrb[0].mxu0
        %11192 = vmatprep.mubr.f32.mxu0 0.0
        %11193 = vmatmul.mubr.f32.gmra.mrb[0].mxu0 %v10815
        %v11194 = vpop.f32.mrb[0].mxu0
        %v11195 = vadd.f32 %v10634, %v11194
        %v11196 = vpop.f32.mrb[0].mxu0
        %11197 = vmatprep.mubr.f32.mxu0 0.0
        %11198 = vmatmul.mubr.f32.gmra.mrb[0].mxu0 %v10818
        %v11199 = vpop.f32.mrb[0].mxu0
        %v11200 = vadd.f32 %v10634, %v11199
        %v11201 = vpop.f32.mrb[0].mxu0
        %11202 = vmatprep.mubr.f32.mxu0 0.0
        %11203 = vmatmul.mubr.f32.gmra.mrb[0].mxu0 %v10821
        %v11204 = vpop.f32.mrb[0].mxu0
        %v11205 = vadd.f32 %v10634, %v11204
        %v11206 = vpop.f32.mrb[0].mxu0
        %11207 = vmatprep.mubr.f32.mxu0 0.0
        %11208 = vmatmul.mubr.f32.gmra.mrb[0].mxu0 %v10824
        %v11209 = vpop.f32.mrb[0].mxu0
        %v11210 = vadd.f32 %v10634, %v11209
        %v11211 = vpop.f32.mrb[0].mxu0
        %11212 = vmatprep.mubr.f32.mxu0 0.0
        %11213 = vmatmul.mubr.f32.gmra.mrb[0].mxu0 %v10827
        %v11214 = vpop.f32.mrb[0].mxu0
        %v11215 = vadd.f32 %v10634, %v11214
        %v11216 = vpop.f32.mrb[0].mxu0
        %11217 = vdwg.mxu0
        %11218 = vst [vmem:[%s201] sm:$0xff] %v10900
        %11219 = vst [vmem:[%s201 + $0x8] sm:$0xff] %v10905
        %11220 = vst [vmem:[%s201 + $0x10] sm:$0xff] %v10910
        %11221 = vst [vmem:[%s201 + $0x18] sm:$0xff] %v10915
        %11222 = vst [vmem:[%s201 + $0x20] sm:$0xff] %v10920
        %11223 = vst [vmem:[%s201 + $0x28] sm:$0xff] %v10925
        %11224 = vst [vmem:[%s201 + $0x30] sm:$0xff] %v10930
        %11225 = vst [vmem:[%s201 + $0x38] sm:$0xff] %v10935
        %11226 = vst [vmem:[%s201 + $0x40] sm:$0xff] %v10940
        %11227 = vst [vmem:[%s201 + $0x48] sm:$0xff] %v10945
        %11228 = vst [vmem:[%s201 + $0x50] sm:$0xff] %v10950
        %11229 = vst [vmem:[%s201 + $0x58] sm:$0xff] %v10955
        %11230 = vst [vmem:[%s201 + $0x60] sm:$0xff] %v10960
        %11231 = vst [vmem:[%s201 + $0x68] sm:$0xff] %v10965
        %11232 = vst [vmem:[%s201 + $0x70] sm:$0xff] %v10970
        %11233 = vst [vmem:[%s201 + $0x78] sm:$0xff] %v10975
        %11234 = vst [vmem:[%s201 + $0x80] sm:$0xff] %v10980
        %11235 = vst [vmem:[%s201 + $0x88] sm:$0xff] %v10985
        %11236 = vst [vmem:[%s201 + $0x90] sm:$0xff] %v10990
        %11237 = vst [vmem:[%s201 + $0x98] sm:$0xff] %v10995
        %11238 = vst [vmem:[%s201 + $0xa0] sm:$0xff] %v11000
        %11239 = vst [vmem:[%s201 + $0xa8] sm:$0xff] %v11005
        %11240 = vst [vmem:[%s201 + $0xb0] sm:$0xff] %v11010
        %11241 = vst [vmem:[%s201 + $0xb8] sm:$0xff] %v11015
        %11242 = vst [vmem:[%s201 + $0xc0] sm:$0xff] %v11020
        %11243 = vst [vmem:[%s201 + $0xc8] sm:$0xff] %v11025
        %11244 = vst [vmem:[%s201 + $0xd0] sm:$0xff] %v11030
        %11245 = vst [vmem:[%s201 + $0xd8] sm:$0xff] %v11035
        %11246 = vst [vmem:[%s201 + $0xe0] sm:$0xff] %v11040
        %11247 = vst [vmem:[%s201 + $0xe8] sm:$0xff] %v11045
        %11248 = vst [vmem:[%s201 + $0xf0] sm:$0xff] %v11050
        %11249 = vst [vmem:[%s201 + $0xf8] sm:$0xff] %v11055
        %11250 = vst [vmem:[%s201 + $0x100] sm:$0xff] %v11060
        %11251 = vst [vmem:[%s201 + $0x108] sm:$0xff] %v11065
        %11252 = vst [vmem:[%s201 + $0x110] sm:$0xff] %v11070
        %11253 = vst [vmem:[%s201 + $0x118] sm:$0xff] %v11075
        %11254 = vst [vmem:[%s201 + $0x120] sm:$0xff] %v11080
        %11255 = vst [vmem:[%s201 + $0x128] sm:$0xff] %v11085
        %11256 = vst [vmem:[%s201 + $0x130] sm:$0xff] %v11090
        %11257 = vst [vmem:[%s201 + $0x138] sm:$0xff] %v11095
        %11258 = vst [vmem:[%s201 + $0x140] sm:$0xff] %v11100
        %11259 = vst [vmem:[%s201 + $0x148] sm:$0xff] %v11105
        %11260 = vst [vmem:[%s201 + $0x150] sm:$0xff] %v11110
        %11261 = vst [vmem:[%s201 + $0x158] sm:$0xff] %v11115
        %11262 = vst [vmem:[%s201 + $0x160] sm:$0xff] %v11120
        %11263 = vst [vmem:[%s201 + $0x168] sm:$0xff] %v11125
        %11264 = vst [vmem:[%s201 + $0x170] sm:$0xff] %v11130
        %11265 = vst [vmem:[%s201 + $0x178] sm:$0xff] %v11135
        %11266 = vst [vmem:[%s201 + $0x180] sm:$0xff] %v11140
        %11267 = vst [vmem:[%s201 + $0x188] sm:$0xff] %v11145
        %11268 = vst [vmem:[%s201 + $0x190] sm:$0xff] %v11150
        %11269 = vst [vmem:[%s201 + $0x198] sm:$0xff] %v11155
        %11270 = vst [vmem:[%s201 + $0x1a0] sm:$0xff] %v11160
        %11271 = vst [vmem:[%s201 + $0x1a8] sm:$0xff] %v11165
        %11272 = vst [vmem:[%s201 + $0x1b0] sm:$0xff] %v11170
        %11273 = vst [vmem:[%s201 + $0x1b8] sm:$0xff] %v11175
        %11274 = vst [vmem:[%s201 + $0x1c0] sm:$0xff] %v11180
        %11275 = vst [vmem:[%s201 + $0x1c8] sm:$0xff] %v11185
        %11276 = vst [vmem:[%s201 + $0x1d0] sm:$0xff] %v11190
        %11277 = vst [vmem:[%s201 + $0x1d8] sm:$0xff] %v11195
        %11278 = vst [vmem:[%s201 + $0x1e0] sm:$0xff] %v11200
        %11279 = vst [vmem:[%s201 + $0x1e8] sm:$0xff] %v11205
        %11280 = vst [vmem:[%s201 + $0x1f0] sm:$0xff] %v11210
        %11281 = vst [vmem:[%s201 + $0x1f8] sm:$0xff] %v11215
        %v11282 = vld [vmem:[%s201] sm:$0xff]
        %v11283 = vld [vmem:[%s201 + $0x8] sm:$0xff]
        %v11284 = vld [vmem:[%s201 + $0x10] sm:$0xff]
        %v11285 = vld [vmem:[%s201 + $0x18] sm:$0xff]
        %v11286 = vld [vmem:[%s201 + $0x20] sm:$0xff]
        %v11287 = vld [vmem:[%s201 + $0x28] sm:$0xff]
        %v11288 = vld [vmem:[%s201 + $0x30] sm:$0xff]
        %v11289 = vld [vmem:[%s201 + $0x38] sm:$0xff]
        %v11290 = vld [vmem:[%s201 + $0x40] sm:$0xff]
        %v11291 = vld [vmem:[%s201 + $0x48] sm:$0xff]
        %v11292 = vld [vmem:[%s201 + $0x50] sm:$0xff]
        %v11293 = vld [vmem:[%s201 + $0x58] sm:$0xff]
        %v11294 = vld [vmem:[%s201 + $0x60] sm:$0xff]
        %v11295 = vld [vmem:[%s201 + $0x68] sm:$0xff]
        %v11296 = vld [vmem:[%s201 + $0x70] sm:$0xff]
        %v11297 = vld [vmem:[%s201 + $0x78] sm:$0xff]
        %v11298 = vld [vmem:[%s201 + $0x80] sm:$0xff]
        %v11299 = vld [vmem:[%s201 + $0x88] sm:$0xff]
        %v11300 = vld [vmem:[%s201 + $0x90] sm:$0xff]
        %v11301 = vld [vmem:[%s201 + $0x98] sm:$0xff]
        %v11302 = vld [vmem:[%s201 + $0xa0] sm:$0xff]
        %v11303 = vld [vmem:[%s201 + $0xa8] sm:$0xff]
        %v11304 = vld [vmem:[%s201 + $0xb0] sm:$0xff]
        %v11305 = vld [vmem:[%s201 + $0xb8] sm:$0xff]
        %v11306 = vld [vmem:[%s201 + $0xc0] sm:$0xff]
        %v11307 = vld [vmem:[%s201 + $0xc8] sm:$0xff]
        %v11308 = vld [vmem:[%s201 + $0xd0] sm:$0xff]
        %v11309 = vld [vmem:[%s201 + $0xd8] sm:$0xff]
        %v11310 = vld [vmem:[%s201 + $0xe0] sm:$0xff]
        %v11311 = vld [vmem:[%s201 + $0xe8] sm:$0xff]
        %v11312 = vld [vmem:[%s201 + $0xf0] sm:$0xff]
        %v11313 = vld [vmem:[%s201 + $0xf8] sm:$0xff]
        %v11314 = vld [vmem:[%s201 + $0x100] sm:$0xff]
        %v11315 = vld [vmem:[%s201 + $0x108] sm:$0xff]
        %v11316 = vld [vmem:[%s201 + $0x110] sm:$0xff]
        %v11317 = vld [vmem:[%s201 + $0x118] sm:$0xff]
        %v11318 = vld [vmem:[%s201 + $0x120] sm:$0xff]
        %v11319 = vld [vmem:[%s201 + $0x128] sm:$0xff]
        %v11320 = vld [vmem:[%s201 + $0x130] sm:$0xff]
        %v11321 = vld [vmem:[%s201 + $0x138] sm:$0xff]
        %v11322 = vld [vmem:[%s201 + $0x140] sm:$0xff]
        %v11323 = vld [vmem:[%s201 + $0x148] sm:$0xff]
        %v11324 = vld [vmem:[%s201 + $0x150] sm:$0xff]
        %v11325 = vld [vmem:[%s201 + $0x158] sm:$0xff]
        %v11326 = vld [vmem:[%s201 + $0x160] sm:$0xff]
        %v11327 = vld [vmem:[%s201 + $0x168] sm:$0xff]
        %v11328 = vld [vmem:[%s201 + $0x170] sm:$0xff]
        %v11329 = vld [vmem:[%s201 + $0x178] sm:$0xff]
        %v11330 = vld [vmem:[%s201 + $0x180] sm:$0xff]
        %v11331 = vld [vmem:[%s201 + $0x188] sm:$0xff]
        %v11332 = vld [vmem:[%s201 + $0x190] sm:$0xff]
        %v11333 = vld [vmem:[%s201 + $0x198] sm:$0xff]
        %v11334 = vld [vmem:[%s201 + $0x1a0] sm:$0xff]
        %v11335 = vld [vmem:[%s201 + $0x1a8] sm:$0xff]
        %v11336 = vld [vmem:[%s201 + $0x1b0] sm:$0xff]
        %v11337 = vld [vmem:[%s201 + $0x1b8] sm:$0xff]
        %v11338 = vld [vmem:[%s201 + $0x1c0] sm:$0xff]
        %v11339 = vld [vmem:[%s201 + $0x1c8] sm:$0xff]
        %v11340 = vld [vmem:[%s201 + $0x1d0] sm:$0xff]
        %v11341 = vld [vmem:[%s201 + $0x1d8] sm:$0xff]
        %v11342 = vld [vmem:[%s201 + $0x1e0] sm:$0xff]
        %v11343 = vld [vmem:[%s201 + $0x1e8] sm:$0xff]
        %v11344 = vld [vmem:[%s201 + $0x1f0] sm:$0xff]
        %v11345 = vld [vmem:[%s201 + $0x1f8] sm:$0xff]
        %v11346 = vadd.f32 %v11282, %v11283
        %v11347 = vadd.f32 %v11346, %v11284
        %v11348 = vadd.f32 %v11347, %v11285
        %v11349 = vadd.f32 %v11348, %v11286
        %v11350 = vadd.f32 %v11349, %v11287
        %v11351 = vadd.f32 %v11350, %v11288
        %v11352 = vadd.f32 %v11351, %v11289
        %v11353 = vadd.f32 %v11352, %v11290
        %v11354 = vadd.f32 %v11353, %v11291
        %v11355 = vadd.f32 %v11354, %v11292
        %v11356 = vadd.f32 %v11355, %v11293
        %v11357 = vadd.f32 %v11356, %v11294
        %v11358 = vadd.f32 %v11357, %v11295
        %v11359 = vadd.f32 %v11358, %v11296
        %v11360 = vadd.f32 %v11359, %v11297
        %v11361 = vadd.f32 %v11360, %v11298
        %v11362 = vadd.f32 %v11361, %v11299
        %v11363 = vadd.f32 %v11362, %v11300
        %v11364 = vadd.f32 %v11363, %v11301
        %v11365 = vadd.f32 %v11364, %v11302
        %v11366 = vadd.f32 %v11365, %v11303
        %v11367 = vadd.f32 %v11366, %v11304
        %v11368 = vadd.f32 %v11367, %v11305
        %v11369 = vadd.f32 %v11368, %v11306
        %v11370 = vadd.f32 %v11369, %v11307
        %v11371 = vadd.f32 %v11370, %v11308
        %v11372 = vadd.f32 %v11371, %v11309
        %v11373 = vadd.f32 %v11372, %v11310
        %v11374 = vadd.f32 %v11373, %v11311
        %v11375 = vadd.f32 %v11374, %v11312
        %v11376 = vadd.f32 %v11375, %v11313
        %v11377 = vadd.f32 %v11376, %v11314
        %v11378 = vadd.f32 %v11377, %v11315
        %v11379 = vadd.f32 %v11378, %v11316
        %v11380 = vadd.f32 %v11379, %v11317
        %v11381 = vadd.f32 %v11380, %v11318
        %v11382 = vadd.f32 %v11381, %v11319
        %v11383 = vadd.f32 %v11382, %v11320
        %v11384 = vadd.f32 %v11383, %v11321
        %v11385 = vadd.f32 %v11384, %v11322
        %v11386 = vadd.f32 %v11385, %v11323
        %v11387 = vadd.f32 %v11386, %v11324
        %v11388 = vadd.f32 %v11387, %v11325
        %v11389 = vadd.f32 %v11388, %v11326
        %v11390 = vadd.f32 %v11389, %v11327
        %v11391 = vadd.f32 %v11390, %v11328
        %v11392 = vadd.f32 %v11391, %v11329
        %v11393 = vadd.f32 %v11392, %v11330
        %v11394 = vadd.f32 %v11393, %v11331
        %v11395 = vadd.f32 %v11394, %v11332
        %v11396 = vadd.f32 %v11395, %v11333
        %v11397 = vadd.f32 %v11396, %v11334
        %v11398 = vadd.f32 %v11397, %v11335
        %v11399 = vadd.f32 %v11398, %v11336
        %v11400 = vadd.f32 %v11399, %v11337
        %v11401 = vadd.f32 %v11400, %v11338
        %v11402 = vadd.f32 %v11401, %v11339
        %v11403 = vadd.f32 %v11402, %v11340
        %v11404 = vadd.f32 %v11403, %v11341
        %v11405 = vadd.f32 %v11404, %v11342
        %v11406 = vadd.f32 %v11405, %v11343
        %v11407 = vadd.f32 %v11406, %v11344
        %v11408 = vadd.f32 %v11407, %v11345
        %v11409 = vrot.slane %v11408, 4
        %v11410 = vadd.f32 %v11408, %v11409
        %v11411 = vrot.slane %v11410, 2
        %v11412 = vadd.f32 %v11410, %v11411
        %v11413 = vrot.slane %v11412, 1
        %v11414 = vadd.f32 %v11412, %v11413
        %v11415 = vmul.f32 %v11282, %v11282
        %v11416 = vmul.f32 %v11283, %v11283
        %v11417 = vmul.f32 %v11284, %v11284
        %v11418 = vmul.f32 %v11285, %v11285
        %v11419 = vmul.f32 %v11286, %v11286
        %v11420 = vmul.f32 %v11287, %v11287
        %v11421 = vmul.f32 %v11288, %v11288
        %v11422 = vmul.f32 %v11289, %v11289
        %v11423 = vmul.f32 %v11290, %v11290
        %v11424 = vmul.f32 %v11291, %v11291
        %v11425 = vmul.f32 %v11292, %v11292
        %v11426 = vmul.f32 %v11293, %v11293
        %v11427 = vmul.f32 %v11294, %v11294
        %v11428 = vmul.f32 %v11295, %v11295
        %v11429 = vmul.f32 %v11296, %v11296
        %v11430 = vmul.f32 %v11297, %v11297
        %v11431 = vmul.f32 %v11298, %v11298
        %v11432 = vmul.f32 %v11299, %v11299
        %v11433 = vmul.f32 %v11300, %v11300
        %v11434 = vmul.f32 %v11301, %v11301
        %v11435 = vmul.f32 %v11302, %v11302
        %v11436 = vmul.f32 %v11303, %v11303
        %v11437 = vmul.f32 %v11304, %v11304
        %v11438 = vmul.f32 %v11305, %v11305
        %v11439 = vmul.f32 %v11306, %v11306
        %v11440 = vmul.f32 %v11307, %v11307
        %v11441 = vmul.f32 %v11308, %v11308
        %v11442 = vmul.f32 %v11309, %v11309
        %v11443 = vmul.f32 %v11310, %v11310
        %v11444 = vmul.f32 %v11311, %v11311
        %v11445 = vmul.f32 %v11312, %v11312
        %v11446 = vmul.f32 %v11313, %v11313
        %v11447 = vmul.f32 %v11314, %v11314
        %v11448 = vmul.f32 %v11315, %v11315
        %v11449 = vmul.f32 %v11316, %v11316
        %v11450 = vmul.f32 %v11317, %v11317
        %v11451 = vmul.f32 %v11318, %v11318
        %v11452 = vmul.f32 %v11319, %v11319
        %v11453 = vmul.f32 %v11320, %v11320
        %v11454 = vmul.f32 %v11321, %v11321
        %v11455 = vmul.f32 %v11322, %v11322
        %v11456 = vmul.f32 %v11323, %v11323
        %v11457 = vmul.f32 %v11324, %v11324
        %v11458 = vmul.f32 %v11325, %v11325
        %v11459 = vmul.f32 %v11326, %v11326
        %v11460 = vmul.f32 %v11327, %v11327
        %v11461 = vmul.f32 %v11328, %v11328
        %v11462 = vmul.f32 %v11329, %v11329
        %v11463 = vmul.f32 %v11330, %v11330
        %v11464 = vmul.f32 %v11331, %v11331
        %v11465 = vmul.f32 %v11332, %v11332
        %v11466 = vmul.f32 %v11333, %v11333
        %v11467 = vmul.f32 %v11334, %v11334
        %v11468 = vmul.f32 %v11335, %v11335
        %v11469 = vmul.f32 %v11336, %v11336
        %v11470 = vmul.f32 %v11337, %v11337
        %v11471 = vmul.f32 %v11338, %v11338
        %v11472 = vmul.f32 %v11339, %v11339
        %v11473 = vmul.f32 %v11340, %v11340
        %v11474 = vmul.f32 %v11341, %v11341
        %v11475 = vmul.f32 %v11342, %v11342
        %v11476 = vmul.f32 %v11343, %v11343
        %v11477 = vmul.f32 %v11344, %v11344
        %v11478 = vmul.f32 %v11345, %v11345
        %v11479 = vadd.f32 %v11415, %v11416
        %v11480 = vadd.f32 %v11479, %v11417
        %v11481 = vadd.f32 %v11480, %v11418
        %v11482 = vadd.f32 %v11481, %v11419
        %v11483 = vadd.f32 %v11482, %v11420
        %v11484 = vadd.f32 %v11483, %v11421
        %v11485 = vadd.f32 %v11484, %v11422
        %v11486 = vadd.f32 %v11485, %v11423
        %v11487 = vadd.f32 %v11486, %v11424
        %v11488 = vadd.f32 %v11487, %v11425
        %v11489 = vadd.f32 %v11488, %v11426
        %v11490 = vadd.f32 %v11489, %v11427
        %v11491 = vadd.f32 %v11490, %v11428
        %v11492 = vadd.f32 %v11491, %v11429
        %v11493 = vadd.f32 %v11492, %v11430
        %v11494 = vadd.f32 %v11493, %v11431
        %v11495 = vadd.f32 %v11494, %v11432
        %v11496 = vadd.f32 %v11495, %v11433
        %v11497 = vadd.f32 %v11496, %v11434
        %v11498 = vadd.f32 %v11497, %v11435
        %v11499 = vadd.f32 %v11498, %v11436
        %v11500 = vadd.f32 %v11499, %v11437
        %v11501 = vadd.f32 %v11500, %v11438
        %v11502 = vadd.f32 %v11501, %v11439
        %v11503 = vadd.f32 %v11502, %v11440
        %v11504 = vadd.f32 %v11503, %v11441
        %v11505 = vadd.f32 %v11504, %v11442
        %v11506 = vadd.f32 %v11505, %v11443
        %v11507 = vadd.f32 %v11506, %v11444
        %v11508 = vadd.f32 %v11507, %v11445
        %v11509 = vadd.f32 %v11508, %v11446
        %v11510 = vadd.f32 %v11509, %v11447
        %v11511 = vadd.f32 %v11510, %v11448
        %v11512 = vadd.f32 %v11511, %v11449
        %v11513 = vadd.f32 %v11512, %v11450
        %v11514 = vadd.f32 %v11513, %v11451
        %v11515 = vadd.f32 %v11514, %v11452
        %v11516 = vadd.f32 %v11515, %v11453
        %v11517 = vadd.f32 %v11516, %v11454
        %v11518 = vadd.f32 %v11517, %v11455
        %v11519 = vadd.f32 %v11518, %v11456
        %v11520 = vadd.f32 %v11519, %v11457
        %v11521 = vadd.f32 %v11520, %v11458
        %v11522 = vadd.f32 %v11521, %v11459
        %v11523 = vadd.f32 %v11522, %v11460
        %v11524 = vadd.f32 %v11523, %v11461
        %v11525 = vadd.f32 %v11524, %v11462
        %v11526 = vadd.f32 %v11525, %v11463
        %v11527 = vadd.f32 %v11526, %v11464
        %v11528 = vadd.f32 %v11527, %v11465
        %v11529 = vadd.f32 %v11528, %v11466
        %v11530 = vadd.f32 %v11529, %v11467
        %v11531 = vadd.f32 %v11530, %v11468
        %v11532 = vadd.f32 %v11531, %v11469
        %v11533 = vadd.f32 %v11532, %v11470
        %v11534 = vadd.f32 %v11533, %v11471
        %v11535 = vadd.f32 %v11534, %v11472
        %v11536 = vadd.f32 %v11535, %v11473
        %v11537 = vadd.f32 %v11536, %v11474
        %v11538 = vadd.f32 %v11537, %v11475
        %v11539 = vadd.f32 %v11538, %v11476
        %v11540 = vadd.f32 %v11539, %v11477
        %v11541 = vadd.f32 %v11540, %v11478
        %v11542 = vrot.slane %v11541, 4
        %v11543 = vadd.f32 %v11541, %v11542
        %v11544 = vrot.slane %v11543, 2
        %v11545 = vadd.f32 %v11543, %v11544
        %v11546 = vrot.slane %v11545, 1
        %v11547 = vadd.f32 %v11545, %v11546
        %v11548 = vmul.f32 %v11414, 0.001953125
        %v11549 = vmul.f32 %v11547, 0.001953125
        %v11550 = vmul.f32 %v11548, %v11548
        %v11551 = vsub.f32 %v11549, %v11550
        %v11552 = vmax.f32 %v11551, 0.0
        %v11553 = vsub.f32 %v11282, %v11548
        %v11554 = vsub.f32 %v11283, %v11548
        %v11555 = vsub.f32 %v11284, %v11548
        %v11556 = vsub.f32 %v11285, %v11548
        %v11557 = vsub.f32 %v11286, %v11548
        %v11558 = vsub.f32 %v11287, %v11548
        %v11559 = vsub.f32 %v11288, %v11548
        %v11560 = vsub.f32 %v11289, %v11548
        %v11561 = vsub.f32 %v11290, %v11548
        %v11562 = vsub.f32 %v11291, %v11548
        %v11563 = vsub.f32 %v11292, %v11548
        %v11564 = vsub.f32 %v11293, %v11548
        %v11565 = vsub.f32 %v11294, %v11548
        %v11566 = vsub.f32 %v11295, %v11548
        %v11567 = vsub.f32 %v11296, %v11548
        %v11568 = vsub.f32 %v11297, %v11548
        %v11569 = vsub.f32 %v11298, %v11548
        %v11570 = vsub.f32 %v11299, %v11548
        %v11571 = vsub.f32 %v11300, %v11548
        %v11572 = vsub.f32 %v11301, %v11548
        %v11573 = vsub.f32 %v11302, %v11548
        %v11574 = vsub.f32 %v11303, %v11548
        %v11575 = vsub.f32 %v11304, %v11548
        %v11576 = vsub.f32 %v11305, %v11548
        %v11577 = vsub.f32 %v11306, %v11548
        %v11578 = vsub.f32 %v11307, %v11548
        %v11579 = vsub.f32 %v11308, %v11548
        %v11580 = vsub.f32 %v11309, %v11548
        %v11581 = vsub.f32 %v11310, %v11548
        %v11582 = vsub.f32 %v11311, %v11548
        %v11583 = vsub.f32 %v11312, %v11548
        %v11584 = vsub.f32 %v11313, %v11548
        %v11585 = vsub.f32 %v11314, %v11548
        %v11586 = vsub.f32 %v11315, %v11548
        %v11587 = vsub.f32 %v11316, %v11548
        %v11588 = vsub.f32 %v11317, %v11548
        %v11589 = vsub.f32 %v11318, %v11548
        %v11590 = vsub.f32 %v11319, %v11548
        %v11591 = vsub.f32 %v11320, %v11548
        %v11592 = vsub.f32 %v11321, %v11548
        %v11593 = vsub.f32 %v11322, %v11548
        %v11594 = vsub.f32 %v11323, %v11548
        %v11595 = vsub.f32 %v11324, %v11548
        %v11596 = vsub.f32 %v11325, %v11548
        %v11597 = vsub.f32 %v11326, %v11548
        %v11598 = vsub.f32 %v11327, %v11548
        %v11599 = vsub.f32 %v11328, %v11548
        %v11600 = vsub.f32 %v11329, %v11548
        %v11601 = vsub.f32 %v11330, %v11548
        %v11602 = vsub.f32 %v11331, %v11548
        %v11603 = vsub.f32 %v11332, %v11548
        %v11604 = vsub.f32 %v11333, %v11548
        %v11605 = vsub.f32 %v11334, %v11548
        %v11606 = vsub.f32 %v11335, %v11548
        %v11607 = vsub.f32 %v11336, %v11548
        %v11608 = vsub.f32 %v11337, %v11548
        %v11609 = vsub.f32 %v11338, %v11548
        %v11610 = vsub.f32 %v11339, %v11548
        %v11611 = vsub.f32 %v11340, %v11548
        %v11612 = vsub.f32 %v11341, %v11548
        %v11613 = vsub.f32 %v11342, %v11548
        %v11614 = vsub.f32 %v11343, %v11548
        %v11615 = vsub.f32 %v11344, %v11548
        %v11616 = vsub.f32 %v11345, %v11548
        %v11617 = vadd.f32 %v11552, 1e-05
        %v11618 = vrsqrt.pop %v11617
        %v11619 = vmul.f32 %v11553, %v11618
        %v11620 = vmul.f32 %v11554, %v11618
        %v11621 = vmul.f32 %v11555, %v11618
        %v11622 = vmul.f32 %v11556, %v11618
        %v11623 = vmul.f32 %v11557, %v11618
        %v11624 = vmul.f32 %v11558, %v11618
        %v11625 = vmul.f32 %v11559, %v11618
        %v11626 = vmul.f32 %v11560, %v11618
        %v11627 = vmul.f32 %v11561, %v11618
        %v11628 = vmul.f32 %v11562, %v11618
        %v11629 = vmul.f32 %v11563, %v11618
        %v11630 = vmul.f32 %v11564, %v11618
        %v11631 = vmul.f32 %v11565, %v11618
        %v11632 = vmul.f32 %v11566, %v11618
        %v11633 = vmul.f32 %v11567, %v11618
        %v11634 = vmul.f32 %v11568, %v11618
        %v11635 = vmul.f32 %v11569, %v11618
        %v11636 = vmul.f32 %v11570, %v11618
        %v11637 = vmul.f32 %v11571, %v11618
        %v11638 = vmul.f32 %v11572, %v11618
        %v11639 = vmul.f32 %v11573, %v11618
        %v11640 = vmul.f32 %v11574, %v11618
        %v11641 = vmul.f32 %v11575, %v11618
        %v11642 = vmul.f32 %v11576, %v11618
        %v11643 = vmul.f32 %v11577, %v11618
        %v11644 = vmul.f32 %v11578, %v11618
        %v11645 = vmul.f32 %v11579, %v11618
        %v11646 = vmul.f32 %v11580, %v11618
        %v11647 = vmul.f32 %v11581, %v11618
        %v11648 = vmul.f32 %v11582, %v11618
        %v11649 = vmul.f32 %v11583, %v11618
        %v11650 = vmul.f32 %v11584, %v11618
        %v11651 = vmul.f32 %v11585, %v11618
        %v11652 = vmul.f32 %v11586, %v11618
        %v11653 = vmul.f32 %v11587, %v11618
        %v11654 = vmul.f32 %v11588, %v11618
        %v11655 = vmul.f32 %v11589, %v11618
        %v11656 = vmul.f32 %v11590, %v11618
        %v11657 = vmul.f32 %v11591, %v11618
        %v11658 = vmul.f32 %v11592, %v11618
        %v11659 = vmul.f32 %v11593, %v11618
        %v11660 = vmul.f32 %v11594, %v11618
        %v11661 = vmul.f32 %v11595, %v11618
        %v11662 = vmul.f32 %v11596, %v11618
        %v11663 = vmul.f32 %v11597, %v11618
        %v11664 = vmul.f32 %v11598, %v11618
        %v11665 = vmul.f32 %v11599, %v11618
        %v11666 = vmul.f32 %v11600, %v11618
        %v11667 = vmul.f32 %v11601, %v11618
        %v11668 = vmul.f32 %v11602, %v11618
        %v11669 = vmul.f32 %v11603, %v11618
        %v11670 = vmul.f32 %v11604, %v11618
        %v11671 = vmul.f32 %v11605, %v11618
        %v11672 = vmul.f32 %v11606, %v11618
        %v11673 = vmul.f32 %v11607, %v11618
        %v11674 = vmul.f32 %v11608, %v11618
        %v11675 = vmul.f32 %v11609, %v11618
        %v11676 = vmul.f32 %v11610, %v11618
        %v11677 = vmul.f32 %v11611, %v11618
        %v11678 = vmul.f32 %v11612, %v11618
        %v11679 = vmul.f32 %v11613, %v11618
        %v11680 = vmul.f32 %v11614, %v11618
        %v11681 = vmul.f32 %v11615, %v11618
        %v11682 = vmul.f32 %v11616, %v11618
        %vm11683 = vcmp.ge.f32.partialorder %v11619, 0.0
        %vm11684 = vcmp.ge.f32.partialorder %v11620, 0.0
        %vm11685 = vcmp.ge.f32.partialorder %v11621, 0.0
        %vm11686 = vcmp.ge.f32.partialorder %v11622, 0.0
        %vm11687 = vcmp.ge.f32.partialorder %v11623, 0.0
        %vm11688 = vcmp.ge.f32.partialorder %v11624, 0.0
        %vm11689 = vcmp.ge.f32.partialorder %v11625, 0.0
        %vm11690 = vcmp.ge.f32.partialorder %v11626, 0.0
        %vm11691 = vcmp.ge.f32.partialorder %v11627, 0.0
        %vm11692 = vcmp.ge.f32.partialorder %v11628, 0.0
        %vm11693 = vcmp.ge.f32.partialorder %v11629, 0.0
        %vm11694 = vcmp.ge.f32.partialorder %v11630, 0.0
        %vm11695 = vcmp.ge.f32.partialorder %v11631, 0.0
        %vm11696 = vcmp.ge.f32.partialorder %v11632, 0.0
        %vm11697 = vcmp.ge.f32.partialorder %v11633, 0.0
        %vm11698 = vcmp.ge.f32.partialorder %v11634, 0.0
        %vm11699 = vcmp.ge.f32.partialorder %v11635, 0.0
        %vm11700 = vcmp.ge.f32.partialorder %v11636, 0.0
        %vm11701 = vcmp.ge.f32.partialorder %v11637, 0.0
        %vm11702 = vcmp.ge.f32.partialorder %v11638, 0.0
        %vm11703 = vcmp.ge.f32.partialorder %v11639, 0.0
        %vm11704 = vcmp.ge.f32.partialorder %v11640, 0.0
        %vm11705 = vcmp.ge.f32.partialorder %v11641, 0.0
        %vm11706 = vcmp.ge.f32.partialorder %v11642, 0.0
        %vm11707 = vcmp.ge.f32.partialorder %v11643, 0.0
        %vm11708 = vcmp.ge.f32.partialorder %v11644, 0.0
        %vm11709 = vcmp.ge.f32.partialorder %v11645, 0.0
        %vm11710 = vcmp.ge.f32.partialorder %v11646, 0.0
        %vm11711 = vcmp.ge.f32.partialorder %v11647, 0.0
        %vm11712 = vcmp.ge.f32.partialorder %v11648, 0.0
        %vm11713 = vcmp.ge.f32.partialorder %v11649, 0.0
        %vm11714 = vcmp.ge.f32.partialorder %v11650, 0.0
        %vm11715 = vcmp.ge.f32.partialorder %v11651, 0.0
        %vm11716 = vcmp.ge.f32.partialorder %v11652, 0.0
        %vm11717 = vcmp.ge.f32.partialorder %v11653, 0.0
        %vm11718 = vcmp.ge.f32.partialorder %v11654, 0.0
        %vm11719 = vcmp.ge.f32.partialorder %v11655, 0.0
        %vm11720 = vcmp.ge.f32.partialorder %v11656, 0.0
        %vm11721 = vcmp.ge.f32.partialorder %v11657, 0.0
        %vm11722 = vcmp.ge.f32.partialorder %v11658, 0.0
        %vm11723 = vcmp.ge.f32.partialorder %v11659, 0.0
        %vm11724 = vcmp.ge.f32.partialorder %v11660, 0.0
        %vm11725 = vcmp.ge.f32.partialorder %v11661, 0.0
        %vm11726 = vcmp.ge.f32.partialorder %v11662, 0.0
        %vm11727 = vcmp.ge.f32.partialorder %v11663, 0.0
        %vm11728 = vcmp.ge.f32.partialorder %v11664, 0.0
        %vm11729 = vcmp.ge.f32.partialorder %v11665, 0.0
        %vm11730 = vcmp.ge.f32.partialorder %v11666, 0.0
        %vm11731 = vcmp.ge.f32.partialorder %v11667, 0.0
        %vm11732 = vcmp.ge.f32.partialorder %v11668, 0.0
        %vm11733 = vcmp.ge.f32.partialorder %v11669, 0.0
        %vm11734 = vcmp.ge.f32.partialorder %v11670, 0.0
        %vm11735 = vcmp.ge.f32.partialorder %v11671, 0.0
        %vm11736 = vcmp.ge.f32.partialorder %v11672, 0.0
        %vm11737 = vcmp.ge.f32.partialorder %v11673, 0.0
        %vm11738 = vcmp.ge.f32.partialorder %v11674, 0.0
        %vm11739 = vcmp.ge.f32.partialorder %v11675, 0.0
        %vm11740 = vcmp.ge.f32.partialorder %v11676, 0.0
        %vm11741 = vcmp.ge.f32.partialorder %v11677, 0.0
        %vm11742 = vcmp.ge.f32.partialorder %v11678, 0.0
        %vm11743 = vcmp.ge.f32.partialorder %v11679, 0.0
        %vm11744 = vcmp.ge.f32.partialorder %v11680, 0.0
        %vm11745 = vcmp.ge.f32.partialorder %v11681, 0.0
        %vm11746 = vcmp.ge.f32.partialorder %v11682, 0.0
        %v11747 = vmul.f32 %v11619, 0.2
        %v11748 = vmul.f32 %v11620, 0.2
        %v11749 = vmul.f32 %v11621, 0.2
        %v11750 = vmul.f32 %v11622, 0.2
        %v11751 = vmul.f32 %v11623, 0.2
        %v11752 = vmul.f32 %v11624, 0.2
        %v11753 = vmul.f32 %v11625, 0.2
        %v11754 = vmul.f32 %v11626, 0.2
        %v11755 = vmul.f32 %v11627, 0.2
        %v11756 = vmul.f32 %v11628, 0.2
        %v11757 = vmul.f32 %v11629, 0.2
        %v11758 = vmul.f32 %v11630, 0.2
        %v11759 = vmul.f32 %v11631, 0.2
        %v11760 = vmul.f32 %v11632, 0.2
        %v11761 = vmul.f32 %v11633, 0.2
        %v11762 = vmul.f32 %v11634, 0.2
        %v11763 = vmul.f32 %v11635, 0.2
        %v11764 = vmul.f32 %v11636, 0.2
        %v11765 = vmul.f32 %v11637, 0.2
        %v11766 = vmul.f32 %v11638, 0.2
        %v11767 = vmul.f32 %v11639, 0.2
        %v11768 = vmul.f32 %v11640, 0.2
        %v11769 = vmul.f32 %v11641, 0.2
        %v11770 = vmul.f32 %v11642, 0.2
        %v11771 = vmul.f32 %v11643, 0.2
        %v11772 = vmul.f32 %v11644, 0.2
        %v11773 = vmul.f32 %v11645, 0.2
        %v11774 = vmul.f32 %v11646, 0.2
        %v11775 = vmul.f32 %v11647, 0.2
        %v11776 = vmul.f32 %v11648, 0.2
        %v11777 = vmul.f32 %v11649, 0.2
        %v11778 = vmul.f32 %v11650, 0.2
        %v11779 = vmul.f32 %v11651, 0.2
        %v11780 = vmul.f32 %v11652, 0.2
        %v11781 = vmul.f32 %v11653, 0.2
        %v11782 = vmul.f32 %v11654, 0.2
        %v11783 = vmul.f32 %v11655, 0.2
        %v11784 = vmul.f32 %v11656, 0.2
        %v11785 = vmul.f32 %v11657, 0.2
        %v11786 = vmul.f32 %v11658, 0.2
        %v11787 = vmul.f32 %v11659, 0.2
        %v11788 = vmul.f32 %v11660, 0.2
        %v11789 = vmul.f32 %v11661, 0.2
        %v11790 = vmul.f32 %v11662, 0.2
        %v11791 = vmul.f32 %v11663, 0.2
        %v11792 = vmul.f32 %v11664, 0.2
        %v11793 = vmul.f32 %v11665, 0.2
        %v11794 = vmul.f32 %v11666, 0.2
        %v11795 = vmul.f32 %v11667, 0.2
        %v11796 = vmul.f32 %v11668, 0.2
        %v11797 = vmul.f32 %v11669, 0.2
        %v11798 = vmul.f32 %v11670, 0.2
        %v11799 = vmul.f32 %v11671, 0.2
        %v11800 = vmul.f32 %v11672, 0.2
        %v11801 = vmul.f32 %v11673, 0.2
        %v11802 = vmul.f32 %v11674, 0.2
        %v11803 = vmul.f32 %v11675, 0.2
        %v11804 = vmul.f32 %v11676, 0.2
        %v11805 = vmul.f32 %v11677, 0.2
        %v11806 = vmul.f32 %v11678, 0.2
        %v11807 = vmul.f32 %v11679, 0.2
        %v11808 = vmul.f32 %v11680, 0.2
        %v11809 = vmul.f32 %v11681, 0.2
        %v11810 = vmul.f32 %v11682, 0.2
        %v11811 = vsel %vm11683, %v11619, %v11747
        %v11812 = vsel %vm11684, %v11620, %v11748
        %v11813 = vsel %vm11685, %v11621, %v11749
        %v11814 = vsel %vm11686, %v11622, %v11750
        %v11815 = vsel %vm11687, %v11623, %v11751
        %v11816 = vsel %vm11688, %v11624, %v11752
        %v11817 = vsel %vm11689, %v11625, %v11753
        %v11818 = vsel %vm11690, %v11626, %v11754
        %v11819 = vsel %vm11691, %v11627, %v11755
        %v11820 = vsel %vm11692, %v11628, %v11756
        %v11821 = vsel %vm11693, %v11629, %v11757
        %v11822 = vsel %vm11694, %v11630, %v11758
        %v11823 = vsel %vm11695, %v11631, %v11759
        %v11824 = vsel %vm11696, %v11632, %v11760
        %v11825 = vsel %vm11697, %v11633, %v11761
        %v11826 = vsel %vm11698, %v11634, %v11762
        %v11827 = vsel %vm11699, %v11635, %v11763
        %v11828 = vsel %vm11700, %v11636, %v11764
        %v11829 = vsel %vm11701, %v11637, %v11765
        %v11830 = vsel %vm11702, %v11638, %v11766
        %v11831 = vsel %vm11703, %v11639, %v11767
        %v11832 = vsel %vm11704, %v11640, %v11768
        %v11833 = vsel %vm11705, %v11641, %v11769
        %v11834 = vsel %vm11706, %v11642, %v11770
        %v11835 = vsel %vm11707, %v11643, %v11771
        %v11836 = vsel %vm11708, %v11644, %v11772
        %v11837 = vsel %vm11709, %v11645, %v11773
        %v11838 = vsel %vm11710, %v11646, %v11774
        %v11839 = vsel %vm11711, %v11647, %v11775
        %v11840 = vsel %vm11712, %v11648, %v11776
        %v11841 = vsel %vm11713, %v11649, %v11777
        %v11842 = vsel %vm11714, %v11650, %v11778
        %v11843 = vsel %vm11715, %v11651, %v11779
        %v11844 = vsel %vm11716, %v11652, %v11780
        %v11845 = vsel %vm11717, %v11653, %v11781
        %v11846 = vsel %vm11718, %v11654, %v11782
        %v11847 = vsel %vm11719, %v11655, %v11783
        %v11848 = vsel %vm11720, %v11656, %v11784
        %v11849 = vsel %vm11721, %v11657, %v11785
        %v11850 = vsel %vm11722, %v11658, %v11786
        %v11851 = vsel %vm11723, %v11659, %v11787
        %v11852 = vsel %vm11724, %v11660, %v11788
        %v11853 = vsel %vm11725, %v11661, %v11789
        %v11854 = vsel %vm11726, %v11662, %v11790
        %v11855 = vsel %vm11727, %v11663, %v11791
        %v11856 = vsel %vm11728, %v11664, %v11792
        %v11857 = vsel %vm11729, %v11665, %v11793
        %v11858 = vsel %vm11730, %v11666, %v11794
        %v11859 = vsel %vm11731, %v11667, %v11795
        %v11860 = vsel %vm11732, %v11668, %v11796
        %v11861 = vsel %vm11733, %v11669, %v11797
        %v11862 = vsel %vm11734, %v11670, %v11798
        %v11863 = vsel %vm11735, %v11671, %v11799
        %v11864 = vsel %vm11736, %v11672, %v11800
        %v11865 = vsel %vm11737, %v11673, %v11801
        %v11866 = vsel %vm11738, %v11674, %v11802
        %v11867 = vsel %vm11739, %v11675, %v11803
        %v11868 = vsel %vm11740, %v11676, %v11804
        %v11869 = vsel %vm11741, %v11677, %v11805
        %v11870 = vsel %vm11742, %v11678, %v11806
        %v11871 = vsel %vm11743, %v11679, %v11807
        %v11872 = vsel %vm11744, %v11680, %v11808
        %v11873 = vsel %vm11745, %v11681, %v11809
        %v11874 = vsel %vm11746, %v11682, %v11810
        %11875 = vst [vmem:[%s201] sm:$0xff] %v11811
        %11876 = vst [vmem:[%s201 + $0x8] sm:$0xff] %v11812
        %11877 = vst [vmem:[%s201 + $0x10] sm:$0xff] %v11813
        %11878 = vst [vmem:[%s201 + $0x18] sm:$0xff] %v11814
        %11879 = vst [vmem:[%s201 + $0x20] sm:$0xff] %v11815
        %11880 = vst [vmem:[%s201 + $0x28] sm:$0xff] %v11816
        %11881 = vst [vmem:[%s201 + $0x30] sm:$0xff] %v11817
        %11882 = vst [vmem:[%s201 + $0x38] sm:$0xff] %v11818
        %11883 = vst [vmem:[%s201 + $0x40] sm:$0xff] %v11819
        %11884 = vst [vmem:[%s201 + $0x48] sm:$0xff] %v11820
        %11885 = vst [vmem:[%s201 + $0x50] sm:$0xff] %v11821
        %11886 = vst [vmem:[%s201 + $0x58] sm:$0xff] %v11822
        %11887 = vst [vmem:[%s201 + $0x60] sm:$0xff] %v11823
        %11888 = vst [vmem:[%s201 + $0x68] sm:$0xff] %v11824
        %11889 = vst [vmem:[%s201 + $0x70] sm:$0xff] %v11825
        %11890 = vst [vmem:[%s201 + $0x78] sm:$0xff] %v11826
        %11891 = vst [vmem:[%s201 + $0x80] sm:$0xff] %v11827
        %11892 = vst [vmem:[%s201 + $0x88] sm:$0xff] %v11828
        %11893 = vst [vmem:[%s201 + $0x90] sm:$0xff] %v11829
        %11894 = vst [vmem:[%s201 + $0x98] sm:$0xff] %v11830
        %11895 = vst [vmem:[%s201 + $0xa0] sm:$0xff] %v11831
        %11896 = vst [vmem:[%s201 + $0xa8] sm:$0xff] %v11832
        %11897 = vst [vmem:[%s201 + $0xb0] sm:$0xff] %v11833
        %11898 = vst [vmem:[%s201 + $0xb8] sm:$0xff] %v11834
        %11899 = vst [vmem:[%s201 + $0xc0] sm:$0xff] %v11835
        %11900 = vst [vmem:[%s201 + $0xc8] sm:$0xff] %v11836
        %11901 = vst [vmem:[%s201 + $0xd0] sm:$0xff] %v11837
        %11902 = vst [vmem:[%s201 + $0xd8] sm:$0xff] %v11838
        %11903 = vst [vmem:[%s201 + $0xe0] sm:$0xff] %v11839
        %11904 = vst [vmem:[%s201 + $0xe8] sm:$0xff] %v11840
        %11905 = vst [vmem:[%s201 + $0xf0] sm:$0xff] %v11841
        %11906 = vst [vmem:[%s201 + $0xf8] sm:$0xff] %v11842
        %11907 = vst [vmem:[%s201 + $0x100] sm:$0xff] %v11843
        %11908 = vst [vmem:[%s201 + $0x108] sm:$0xff] %v11844
        %11909 = vst [vmem:[%s201 + $0x110] sm:$0xff] %v11845
        %11910 = vst [vmem:[%s201 + $0x118] sm:$0xff] %v11846
        %11911 = vst [vmem:[%s201 + $0x120] sm:$0xff] %v11847
        %11912 = vst [vmem:[%s201 + $0x128] sm:$0xff] %v11848
        %11913 = vst [vmem:[%s201 + $0x130] sm:$0xff] %v11849
        %11914 = vst [vmem:[%s201 + $0x138] sm:$0xff] %v11850
        %11915 = vst [vmem:[%s201 + $0x140] sm:$0xff] %v11851
        %11916 = vst [vmem:[%s201 + $0x148] sm:$0xff] %v11852
        %11917 = vst [vmem:[%s201 + $0x150] sm:$0xff] %v11853
        %11918 = vst [vmem:[%s201 + $0x158] sm:$0xff] %v11854
        %11919 = vst [vmem:[%s201 + $0x160] sm:$0xff] %v11855
        %11920 = vst [vmem:[%s201 + $0x168] sm:$0xff] %v11856
        %11921 = vst [vmem:[%s201 + $0x170] sm:$0xff] %v11857
        %11922 = vst [vmem:[%s201 + $0x178] sm:$0xff] %v11858
        %11923 = vst [vmem:[%s201 + $0x180] sm:$0xff] %v11859
        %11924 = vst [vmem:[%s201 + $0x188] sm:$0xff] %v11860
        %11925 = vst [vmem:[%s201 + $0x190] sm:$0xff] %v11861
        %11926 = vst [vmem:[%s201 + $0x198] sm:$0xff] %v11862
        %11927 = vst [vmem:[%s201 + $0x1a0] sm:$0xff] %v11863
        %11928 = vst [vmem:[%s201 + $0x1a8] sm:$0xff] %v11864
        %11929 = vst [vmem:[%s201 + $0x1b0] sm:$0xff] %v11865
        %11930 = vst [vmem:[%s201 + $0x1b8] sm:$0xff] %v11866
        %11931 = vst [vmem:[%s201 + $0x1c0] sm:$0xff] %v11867
        %11932 = vst [vmem:[%s201 + $0x1c8] sm:$0xff] %v11868
        %11933 = vst [vmem:[%s201 + $0x1d0] sm:$0xff] %v11869
        %11934 = vst [vmem:[%s201 + $0x1d8] sm:$0xff] %v11870
        %11935 = vst [vmem:[%s201 + $0x1e0] sm:$0xff] %v11871
        %11936 = vst [vmem:[%s201 + $0x1e8] sm:$0xff] %v11872
        %11937 = vst [vmem:[%s201 + $0x1f0] sm:$0xff] %v11873
        %11938 = vst [vmem:[%s201 + $0x1f8] sm:$0xff] %v11874
        %s11939 = sand.u32 %s117, 1
        %s11940 = scalar_lea.sflag [#allocation4], %s11939
        %s11941 = sand.u32 %s117, 1
        %s11942 = smul.addr %s11941, 512
        %s11943 = scalar_lea.vmem [#allocation3], %s11942
        // Predicated region
        $region33: #{tpu_custom_call.1} parent=31 // pred_check
          %p11944 = pneg %p127
        $region34: #{tpu_custom_call.1} parent=31 // pred_check_branch
          %11946 = sbr.rel (%p11944) target = $region36
        $region35: #{tpu_custom_call.1} parent=31 // pred_region
          %s11948 = ssub.s32 8192, 8192
          %11949 = vsyncadd %s11940, %s11948
          %s11950 = smul.addr %s21, 64
          %s11951 = sadd.s32 %s22, %s11950
          %s11952 = smul.addr %s11951, 128
          %s11953 = scalar_lea.hbm %s3, %s11952
          %s11954 = sshll.u32 %s11943, 4
          %s11955 = int_to_ptr.vmem [resolvable:$true] %s11954
          %11960 = dma.vmem_to_hbm [thread:$0]  %s11955, 8192, %s11953, %s11940, 128, 128, 8
        $region36: #{tpu_custom_call.1} parent=31 // pred_fallthru
          _
      $region32: #{tpu_custom_call.1} parent=5 // pred_fallthru
        _
      %p11961 = scmp.le.s32.totalorder 2, %s12
      // Predicated region
      $region37: #{tpu_custom_call.1} parent=5 // pred_check
        %p11962 = pneg %p11961
      $region38: #{tpu_custom_call.1} parent=5 // pred_check_branch
        %11964 = sbr.rel (%p11962) target = $region40
      $region39: #{tpu_custom_call.1} parent=5 // pred_region
        %s11965 = ssub.s32 %s12, 2
        // Predicated region
        $region41: #{tpu_custom_call.1} parent=39 // pred_check
          %p11966 = pneg %p133
        $region42: #{tpu_custom_call.1} parent=39 // pred_check_branch
          %11968 = sbr.rel (%p11966) target = $region44
        $region43: #{tpu_custom_call.1} parent=39 // pred_region
          %s11969 = sand.u32 %s118, 1
          %s11970 = scalar_lea.sflag [#allocation4], %s11969
          %s11971 = sand.u32 %s118, 1
          %s11972 = smul.addr %s11971, 512
          %s11973 = scalar_lea.vmem [#allocation3], %s11972
          %11974 = dma.done %s11970, 8192
        $region44: #{tpu_custom_call.1} parent=39 // pred_fallthru
          _
      $region40: #{tpu_custom_call.1} parent=5 // pred_fallthru
        _
    $region6: #{tpu_custom_call.1} parent=1 // loop_footer
      %s16 = sadd.s32 1, %s12
    $region7: #{tpu_custom_call.1} parent=1 // loop_footer_branch
      %11 = sbr.rel target = $region3
    $region8: #{tpu_custom_call.1} parent=1 // loop_exit
      _
    %11975 = vsyncpa [#allocation4], 1
    %s11976 = scalar_lea.sflag [#allocation4], 1
    %11977 = vsyncpa %s11976, 1

</llo_original>
